<compile_context>
chip_gen: v7x
topology: tpu7x:2x2x1
jax: 0.10.0
libtpu: 0.0.40
codegen_flags: <defaults>
</compile_context>

<pallas_src>
import functools

import jax
import jax.numpy as jnp
from jax.experimental import pallas as pl
from jax.experimental.pallas import tpu as pltpu

D = 768          # embed_dim (fixed by the module: Linear(768, ...) / MHA embed_dim=768)
H = 8            # num_heads
DH = D // H      # head_dim = 96
SCALE = 1.0 / (DH ** 0.5)


# ---------------------------------------------------------------------------
# Fully fused per-batch kernel:
#   q = msg @ Wq' + bq'            (scale folded into Wq', bq')
#   kv = patch @ Wkv + bkv         (K || V fused, lane-dense 1536 output)
#   ctx = concat_h softmax(q_h k_h^T) v_h
#   att = ctx @ Wo + bo ; res = msg + att ; avg = mean_S(res)
#   out = MLP(avg) with ReLU after every layer (dropout = identity in eval)
# ---------------------------------------------------------------------------
def _fused_kernel(msg_ref, patch_ref,
                  wq, bq, wkv, bkv, wo, bo,
                  w1, b1, w2, b2, w3, b3, w4, b4,
                  o_ref):
    msg = msg_ref[0]                                    # (S, 768)
    patch = patch_ref[0]                                # (L, 768), L = 2S

    # --- projections ---
    q = jnp.dot(msg, wq[...], preferred_element_type=jnp.float32) + bq[...]      # (S, 768)
    kv = jnp.dot(patch, wkv[...], preferred_element_type=jnp.float32) + bkv[...]  # (L, 1536)

    # --- 8-head attention, unrolled head loop (static slices) ---
    outs = []
    for h in range(H):
        qh = q[:, h * DH:(h + 1) * DH]                  # (S, 96)
        kh = kv[:, h * DH:(h + 1) * DH]                 # (L, 96)
        vh = kv[:, D + h * DH:D + (h + 1) * DH]         # (L, 96)
        s = jnp.dot(qh, kh.T, preferred_element_type=jnp.float32)    # (S, L)
        s = s - jnp.max(s, axis=-1, keepdims=True)
        p = jnp.exp(s)
        p = p * pl.reciprocal(jnp.sum(p, axis=-1, keepdims=True), approx=True)
        outs.append(jnp.dot(p, vh, preferred_element_type=jnp.float32))
    ctx = jnp.concatenate(outs, axis=-1)                # (S, 768)

    # --- out-projection + residual + mean over sequence ---
    att = jnp.dot(ctx, wo[...], preferred_element_type=jnp.float32) + bo[...]
    res = msg + att
    # torch.mean(res_output, dim=1): mean over the 2S duplicated rows equals
    # the mean over the S unique rows.
    avg = jnp.mean(res, axis=0, keepdims=True)          # (1, 768)

    # --- classifier head (Dropout == identity at inference) ---
    hdn = jnp.maximum(jnp.dot(avg, w1[...], preferred_element_type=jnp.float32) + b1[...], 0.0)
    hdn = jnp.maximum(jnp.dot(hdn, w2[...], preferred_element_type=jnp.float32) + b2[...], 0.0)
    hdn = jnp.maximum(jnp.dot(hdn, w3[...], preferred_element_type=jnp.float32) + b3[...], 0.0)
    o_ref[0] = jnp.maximum(jnp.dot(hdn, w4[...], preferred_element_type=jnp.float32) + b4[...], 0.0)


def fused_attention_classifier(message, patch, p):
    """message: (B, S, 768), patch: (B, 2S, 768) -> (B, 12)."""
    B, S, _ = message.shape
    L = patch.shape[1]
    weights = [
        p["wq_scaled_t"], p["bq_scaled"].reshape(1, D),
        p["wkv_t"], p["bkv"].reshape(1, 2 * D),
        p["wo_t"], p["bo"].reshape(1, D),
        p["w1_t"], p["b1"].reshape(1, 256),
        p["w2_t"], p["b2"].reshape(1, 64),
        p["w3_t"], p["b3"].reshape(1, 16),
        p["w4_t"], p["b4"].reshape(1, 12),
    ]
    in_specs = [
        pl.BlockSpec((1, S, D), lambda b: (b, 0, 0)),
        pl.BlockSpec((1, L, D), lambda b: (b, 0, 0)),
    ] + [pl.BlockSpec(w.shape, lambda b: (0, 0)) for w in weights]   # resident weights

    out = pl.pallas_call(
        _fused_kernel,
        grid=(B,),
        in_specs=in_specs,
        out_specs=pl.BlockSpec((1, 1, 12), lambda b: (b, 0, 0)),
        out_shape=jax.ShapeDtypeStruct((B, 1, 12), jnp.float32),
        compiler_params=pltpu.CompilerParams(
            dimension_semantics=("parallel",),
            vmem_limit_bytes=48 * 1024 * 1024,
        ),
    )(message, patch, *weights)
    return out.reshape(B, 12)


# ---------------------------------------------------------------------------
# Parameters (deterministic synthetic init)
# ---------------------------------------------------------------------------
def init_params(key, vocab):
    ks = jax.random.split(key, 20)
    w = lambda k, shape, s=0.02: (jax.random.normal(k, shape, jnp.float32) * s)
    wq_t = w(ks[2], (D, D)); bq = w(ks[3], (D,))
    wk_t = w(ks[4], (D, D)); bk = w(ks[5], (D,))
    wv_t = w(ks[6], (D, D)); bv = w(ks[7], (D,))
    return {
        # stand-in embedding tables for the pretrained encoders
        "emb_msg": w(ks[0], (vocab, D)),
        "emb_code": w(ks[1], (vocab, D)),
        # q projection with the 1/sqrt(head_dim) scale folded in
        "wq_scaled_t": wq_t * SCALE, "bq_scaled": bq * SCALE,
        # fused K||V projection (one (768, 1536) matmul)
        "wkv_t": jnp.concatenate([wk_t, wv_t], axis=1),
        "bkv": jnp.concatenate([bk, bv]),
        # MHA out-projection
        "wo_t": w(ks[8], (D, D)), "bo": w(ks[9], (D,)),
        # hidden MLP
        "w1_t": w(ks[10], (D, 256)), "b1": w(ks[11], (256,)),
        "w2_t": w(ks[12], (256, 64)), "b2": w(ks[13], (64,)),
        "w3_t": w(ks[14], (64, 16)), "b3": w(ks[15], (16,)),
        "w4_t": w(ks[16], (16, 12)), "b4": w(ks[17], (12,)),
    }


# ---------------------------------------------------------------------------
# Forward pass
# ---------------------------------------------------------------------------
def _embed(table, ids, mask):
    # TODO(synk): stand-in for the pretrained BERT / RoBERTa encoder stacks
    # (bert1.roberta / bert2); a full transformer encoder is out of scope here.
    e = table[ids]                                     # [B, S, D]
    return e * mask[..., None].astype(e.dtype)


def multi_classifier_forward(params, message_id, add_id, del_id,
                             message_mask, add_mask, del_mask):
    message = _embed(params["emb_msg"], message_id, message_mask)      # [B, S, D]
    add_patch = _embed(params["emb_code"], add_id, add_mask)           # [B, S, D]
    del_patch = _embed(params["emb_code"], del_id, del_mask)           # [B, S, D]

    patch = jnp.concatenate([add_patch, del_patch], axis=1)            # [B, 2S, D]

    # MultiheadAttention(message.repeat(1,2,1), patch, patch) + residual +
    # mean over sequence + classifier head, all fused in one Pallas kernel.
    return fused_attention_classifier(message, patch, params)          # [B, 12]


# ---------------------------------------------------------------------------
if __name__ == "__main__":
    B, S, VOCAB = 2, 8, 100

    key = jax.random.PRNGKey(0)
    k1, k2, k3 = jax.random.split(key, 3)
    message_id = jax.random.randint(k1, (B, S), 0, VOCAB, dtype=jnp.int32)
    add_id = jax.random.randint(k2, (B, S), 0, VOCAB, dtype=jnp.int32)
    del_id = jax.random.randint(k3, (B, S), 0, VOCAB, dtype=jnp.int32)
    message_mask = jnp.ones((B, S), dtype=jnp.int32)
    add_mask = jnp.ones((B, S), dtype=jnp.int32)
    del_mask = jnp.ones((B, S), dtype=jnp.int32)

    params = init_params(jax.random.PRNGKey(42), VOCAB)

    fwd = jax.jit(functools.partial(multi_classifier_forward, params))
    out = fwd(message_id, add_id, del_id, message_mask, add_mask, del_mask)
    out = jax.block_until_ready(out)

    assert out.shape == (B, 12), out.shape
    assert out.dtype == jnp.float32
    print("KERNEL_OK")
</pallas_src>

<mosaic_0001>
module attributes {stable_mosaic.version = 11 : i64} {
  func.func @_fused_kernel(%arg0: i32, %arg1: memref<1x8x768xf32, #tpu.memory_space<vmem>>, %arg2: memref<1x16x768xf32, #tpu.memory_space<vmem>>, %arg3: memref<768x768xf32, #tpu.memory_space<vmem>>, %arg4: memref<1x768xf32, #tpu.memory_space<vmem>>, %arg5: memref<768x1536xf32, #tpu.memory_space<vmem>>, %arg6: memref<1x1536xf32, #tpu.memory_space<vmem>>, %arg7: memref<768x768xf32, #tpu.memory_space<vmem>>, %arg8: memref<1x768xf32, #tpu.memory_space<vmem>>, %arg9: memref<768x256xf32, #tpu.memory_space<vmem>>, %arg10: memref<1x256xf32, #tpu.memory_space<vmem>>, %arg11: memref<256x64xf32, #tpu.memory_space<vmem>>, %arg12: memref<1x64xf32, #tpu.memory_space<vmem>>, %arg13: memref<64x16xf32, #tpu.memory_space<vmem>>, %arg14: memref<1x16xf32, #tpu.memory_space<vmem>>, %arg15: memref<16x12xf32, #tpu.memory_space<vmem>>, %arg16: memref<1x12xf32, #tpu.memory_space<vmem>>, %arg17: memref<1x1x12xf32, #tpu.memory_space<vmem>>) attributes {dimension_semantics = [#tpu.dimension_semantics<parallel>], iteration_bounds = array<i64: 2>, scalar_prefetch = 0 : i64, scratch_operands = 0 : i64, tpu.core_type = #tpu.core_type<tc>, window_params = [{transform_indices = @transform_0, window_bounds = array<i64: 1, 8, 768>}, {transform_indices = @transform_1, window_bounds = array<i64: 1, 16, 768>}, {pipeline_mode = #tpu.pipeline_mode<synchronous>, transform_indices = @transform_2, window_bounds = array<i64: 768, 768>}, {pipeline_mode = #tpu.pipeline_mode<synchronous>, transform_indices = @transform_3, window_bounds = array<i64: 1, 768>}, {pipeline_mode = #tpu.pipeline_mode<synchronous>, transform_indices = @transform_4, window_bounds = array<i64: 768, 1536>}, {pipeline_mode = #tpu.pipeline_mode<synchronous>, transform_indices = @transform_5, window_bounds = array<i64: 1, 1536>}, {pipeline_mode = #tpu.pipeline_mode<synchronous>, transform_indices = @transform_6, window_bounds = array<i64: 768, 768>}, {pipeline_mode = #tpu.pipeline_mode<synchronous>, transform_indices = @transform_7, window_bounds = array<i64: 1, 768>}, {pipeline_mode = #tpu.pipeline_mode<synchronous>, transform_indices = @transform_8, window_bounds = array<i64: 768, 256>}, {pipeline_mode = #tpu.pipeline_mode<synchronous>, transform_indices = @transform_9, window_bounds = array<i64: 1, 256>}, {pipeline_mode = #tpu.pipeline_mode<synchronous>, transform_indices = @transform_10, window_bounds = array<i64: 256, 64>}, {pipeline_mode = #tpu.pipeline_mode<synchronous>, transform_indices = @transform_11, window_bounds = array<i64: 1, 64>}, {pipeline_mode = #tpu.pipeline_mode<synchronous>, transform_indices = @transform_12, window_bounds = array<i64: 64, 16>}, {pipeline_mode = #tpu.pipeline_mode<synchronous>, transform_indices = @transform_13, window_bounds = array<i64: 1, 16>}, {pipeline_mode = #tpu.pipeline_mode<synchronous>, transform_indices = @transform_14, window_bounds = array<i64: 16, 12>}, {pipeline_mode = #tpu.pipeline_mode<synchronous>, transform_indices = @transform_15, window_bounds = array<i64: 1, 12>}, {transform_indices = @transform_16, window_bounds = array<i64: 1, 1, 12>}]} {
    %c0 = arith.constant 0 : index
    %c0_0 = arith.constant 0 : index
    %c0_1 = arith.constant 0 : index
    %0 = vector.load %arg1[%c0, %c0_0, %c0_1] : memref<1x8x768xf32, #tpu.memory_space<vmem>>, vector<1x8x768xf32>
    %1 = vector.shape_cast %0 : vector<1x8x768xf32> to vector<8x768xf32>
    %c0_2 = arith.constant 0 : index
    %c0_3 = arith.constant 0 : index
    %c0_4 = arith.constant 0 : index
    %2 = vector.load %arg2[%c0_2, %c0_3, %c0_4] : memref<1x16x768xf32, #tpu.memory_space<vmem>>, vector<1x16x768xf32>
    %3 = vector.shape_cast %2 : vector<1x16x768xf32> to vector<16x768xf32>
    %c0_5 = arith.constant 0 : index
    %c0_6 = arith.constant 0 : index
    %4 = vector.load %arg3[%c0_5, %c0_6] : memref<768x768xf32, #tpu.memory_space<vmem>>, vector<768x768xf32>
    %cst = arith.constant dense<0.000000e+00> : vector<8x768xf32>
    %5 = tpu.matmul %1, %4, %cst {dimension_numbers = #tpu.dot_dimension_numbers<[1], [0], [0], [1], [0, 0, 1, 1], [], []>} : vector<8x768xf32>, vector<768x768xf32>, vector<8x768xf32> -> vector<8x768xf32>
    %c0_7 = arith.constant 0 : index
    %c0_8 = arith.constant 0 : index
    %6 = vector.load %arg4[%c0_7, %c0_8] : memref<1x768xf32, #tpu.memory_space<vmem>>, vector<1x768xf32>
    %7 = vector.broadcast %6 : vector<1x768xf32> to vector<8x768xf32>
    %8 = arith.addf %5, %7 : vector<8x768xf32>
    %c0_9 = arith.constant 0 : index
    %c0_10 = arith.constant 0 : index
    %9 = vector.load %arg5[%c0_9, %c0_10] : memref<768x1536xf32, #tpu.memory_space<vmem>>, vector<768x1536xf32>
    %cst_11 = arith.constant dense<0.000000e+00> : vector<16x1536xf32>
    %10 = tpu.matmul %3, %9, %cst_11 {dimension_numbers = #tpu.dot_dimension_numbers<[1], [0], [0], [1], [0, 0, 1, 1], [], []>} : vector<16x768xf32>, vector<768x1536xf32>, vector<16x1536xf32> -> vector<16x1536xf32>
    %c0_12 = arith.constant 0 : index
    %c0_13 = arith.constant 0 : index
    %11 = vector.load %arg6[%c0_12, %c0_13] : memref<1x1536xf32, #tpu.memory_space<vmem>>, vector<1x1536xf32>
    %12 = vector.broadcast %11 : vector<1x1536xf32> to vector<16x1536xf32>
    %13 = arith.addf %10, %12 : vector<16x1536xf32>
    %14 = vector.extract_strided_slice %8 {offsets = [0, 0], sizes = [8, 96], strides = [1, 1]} : vector<8x768xf32> to vector<8x96xf32>
    %15 = vector.extract_strided_slice %13 {offsets = [0, 0], sizes = [16, 96], strides = [1, 1]} : vector<16x1536xf32> to vector<16x96xf32>
    %16 = vector.extract_strided_slice %13 {offsets = [0, 768], sizes = [16, 96], strides = [1, 1]} : vector<16x1536xf32> to vector<16x96xf32>
    %17 = tpu.transpose %15, [1, 0] : vector<16x96xf32> -> vector<96x16xf32>
    %cst_14 = arith.constant dense<0.000000e+00> : vector<8x16xf32>
    %18 = tpu.matmul %14, %17, %cst_14 {dimension_numbers = #tpu.dot_dimension_numbers<[1], [0], [0], [1], [0, 0, 1, 1], [], []>} : vector<8x96xf32>, vector<96x16xf32>, vector<8x16xf32> -> vector<8x16xf32>
    %cst_15 = arith.constant dense<0xFF800000> : vector<8xf32>
    %19 = vector.multi_reduction <maximumf>, %18, %cst_15 [1] : vector<8x16xf32> to vector<8xf32>
    %20 = vector.shape_cast %19 : vector<8xf32> to vector<8x1xf32>
    %21 = vector.broadcast %20 : vector<8x1xf32> to vector<8x16xf32>
    %22 = arith.subf %18, %21 : vector<8x16xf32>
    %23 = math.exp %22 : vector<8x16xf32>
    %cst_16 = arith.constant dense<0.000000e+00> : vector<8xf32>
    %24 = vector.multi_reduction <add>, %23, %cst_16 [1] : vector<8x16xf32> to vector<8xf32>
    %25 = vector.shape_cast %24 : vector<8xf32> to vector<8x1xf32>
    %26 = tpu.reciprocal %25 {approx = true} : vector<8x1xf32> -> vector<8x1xf32>
    %27 = vector.broadcast %26 : vector<8x1xf32> to vector<8x16xf32>
    %28 = arith.mulf %23, %27 : vector<8x16xf32>
    %cst_17 = arith.constant dense<0.000000e+00> : vector<8x96xf32>
    %29 = tpu.matmul %28, %16, %cst_17 {dimension_numbers = #tpu.dot_dimension_numbers<[1], [0], [0], [1], [0, 0, 1, 1], [], []>} : vector<8x16xf32>, vector<16x96xf32>, vector<8x96xf32> -> vector<8x96xf32>
    %30 = vector.extract_strided_slice %8 {offsets = [0, 96], sizes = [8, 96], strides = [1, 1]} : vector<8x768xf32> to vector<8x96xf32>
    %31 = vector.extract_strided_slice %13 {offsets = [0, 96], sizes = [16, 96], strides = [1, 1]} : vector<16x1536xf32> to vector<16x96xf32>
    %32 = vector.extract_strided_slice %13 {offsets = [0, 864], sizes = [16, 96], strides = [1, 1]} : vector<16x1536xf32> to vector<16x96xf32>
    %33 = tpu.transpose %31, [1, 0] : vector<16x96xf32> -> vector<96x16xf32>
    %cst_18 = arith.constant dense<0.000000e+00> : vector<8x16xf32>
    %34 = tpu.matmul %30, %33, %cst_18 {dimension_numbers = #tpu.dot_dimension_numbers<[1], [0], [0], [1], [0, 0, 1, 1], [], []>} : vector<8x96xf32>, vector<96x16xf32>, vector<8x16xf32> -> vector<8x16xf32>
    %cst_19 = arith.constant dense<0xFF800000> : vector<8xf32>
    %35 = vector.multi_reduction <maximumf>, %34, %cst_19 [1] : vector<8x16xf32> to vector<8xf32>
    %36 = vector.shape_cast %35 : vector<8xf32> to vector<8x1xf32>
    %37 = vector.broadcast %36 : vector<8x1xf32> to vector<8x16xf32>
    %38 = arith.subf %34, %37 : vector<8x16xf32>
    %39 = math.exp %38 : vector<8x16xf32>
    %cst_20 = arith.constant dense<0.000000e+00> : vector<8xf32>
    %40 = vector.multi_reduction <add>, %39, %cst_20 [1] : vector<8x16xf32> to vector<8xf32>
    %41 = vector.shape_cast %40 : vector<8xf32> to vector<8x1xf32>
    %42 = tpu.reciprocal %41 {approx = true} : vector<8x1xf32> -> vector<8x1xf32>
    %43 = vector.broadcast %42 : vector<8x1xf32> to vector<8x16xf32>
    %44 = arith.mulf %39, %43 : vector<8x16xf32>
    %cst_21 = arith.constant dense<0.000000e+00> : vector<8x96xf32>
    %45 = tpu.matmul %44, %32, %cst_21 {dimension_numbers = #tpu.dot_dimension_numbers<[1], [0], [0], [1], [0, 0, 1, 1], [], []>} : vector<8x16xf32>, vector<16x96xf32>, vector<8x96xf32> -> vector<8x96xf32>
    %46 = vector.extract_strided_slice %8 {offsets = [0, 192], sizes = [8, 96], strides = [1, 1]} : vector<8x768xf32> to vector<8x96xf32>
    %47 = vector.extract_strided_slice %13 {offsets = [0, 192], sizes = [16, 96], strides = [1, 1]} : vector<16x1536xf32> to vector<16x96xf32>
    %48 = vector.extract_strided_slice %13 {offsets = [0, 960], sizes = [16, 96], strides = [1, 1]} : vector<16x1536xf32> to vector<16x96xf32>
    %49 = tpu.transpose %47, [1, 0] : vector<16x96xf32> -> vector<96x16xf32>
    %cst_22 = arith.constant dense<0.000000e+00> : vector<8x16xf32>
    %50 = tpu.matmul %46, %49, %cst_22 {dimension_numbers = #tpu.dot_dimension_numbers<[1], [0], [0], [1], [0, 0, 1, 1], [], []>} : vector<8x96xf32>, vector<96x16xf32>, vector<8x16xf32> -> vector<8x16xf32>
    %cst_23 = arith.constant dense<0xFF800000> : vector<8xf32>
    %51 = vector.multi_reduction <maximumf>, %50, %cst_23 [1] : vector<8x16xf32> to vector<8xf32>
    %52 = vector.shape_cast %51 : vector<8xf32> to vector<8x1xf32>
    %53 = vector.broadcast %52 : vector<8x1xf32> to vector<8x16xf32>
    %54 = arith.subf %50, %53 : vector<8x16xf32>
    %55 = math.exp %54 : vector<8x16xf32>
    %cst_24 = arith.constant dense<0.000000e+00> : vector<8xf32>
    %56 = vector.multi_reduction <add>, %55, %cst_24 [1] : vector<8x16xf32> to vector<8xf32>
    %57 = vector.shape_cast %56 : vector<8xf32> to vector<8x1xf32>
    %58 = tpu.reciprocal %57 {approx = true} : vector<8x1xf32> -> vector<8x1xf32>
    %59 = vector.broadcast %58 : vector<8x1xf32> to vector<8x16xf32>
    %60 = arith.mulf %55, %59 : vector<8x16xf32>
    %cst_25 = arith.constant dense<0.000000e+00> : vector<8x96xf32>
    %61 = tpu.matmul %60, %48, %cst_25 {dimension_numbers = #tpu.dot_dimension_numbers<[1], [0], [0], [1], [0, 0, 1, 1], [], []>} : vector<8x16xf32>, vector<16x96xf32>, vector<8x96xf32> -> vector<8x96xf32>
    %62 = vector.extract_strided_slice %8 {offsets = [0, 288], sizes = [8, 96], strides = [1, 1]} : vector<8x768xf32> to vector<8x96xf32>
    %63 = vector.extract_strided_slice %13 {offsets = [0, 288], sizes = [16, 96], strides = [1, 1]} : vector<16x1536xf32> to vector<16x96xf32>
    %64 = vector.extract_strided_slice %13 {offsets = [0, 1056], sizes = [16, 96], strides = [1, 1]} : vector<16x1536xf32> to vector<16x96xf32>
    %65 = tpu.transpose %63, [1, 0] : vector<16x96xf32> -> vector<96x16xf32>
    %cst_26 = arith.constant dense<0.000000e+00> : vector<8x16xf32>
    %66 = tpu.matmul %62, %65, %cst_26 {dimension_numbers = #tpu.dot_dimension_numbers<[1], [0], [0], [1], [0, 0, 1, 1], [], []>} : vector<8x96xf32>, vector<96x16xf32>, vector<8x16xf32> -> vector<8x16xf32>
    %cst_27 = arith.constant dense<0xFF800000> : vector<8xf32>
    %67 = vector.multi_reduction <maximumf>, %66, %cst_27 [1] : vector<8x16xf32> to vector<8xf32>
    %68 = vector.shape_cast %67 : vector<8xf32> to vector<8x1xf32>
    %69 = vector.broadcast %68 : vector<8x1xf32> to vector<8x16xf32>
    %70 = arith.subf %66, %69 : vector<8x16xf32>
    %71 = math.exp %70 : vector<8x16xf32>
    %cst_28 = arith.constant dense<0.000000e+00> : vector<8xf32>
    %72 = vector.multi_reduction <add>, %71, %cst_28 [1] : vector<8x16xf32> to vector<8xf32>
    %73 = vector.shape_cast %72 : vector<8xf32> to vector<8x1xf32>
    %74 = tpu.reciprocal %73 {approx = true} : vector<8x1xf32> -> vector<8x1xf32>
    %75 = vector.broadcast %74 : vector<8x1xf32> to vector<8x16xf32>
    %76 = arith.mulf %71, %75 : vector<8x16xf32>
    %cst_29 = arith.constant dense<0.000000e+00> : vector<8x96xf32>
    %77 = tpu.matmul %76, %64, %cst_29 {dimension_numbers = #tpu.dot_dimension_numbers<[1], [0], [0], [1], [0, 0, 1, 1], [], []>} : vector<8x16xf32>, vector<16x96xf32>, vector<8x96xf32> -> vector<8x96xf32>
    %78 = vector.extract_strided_slice %8 {offsets = [0, 384], sizes = [8, 96], strides = [1, 1]} : vector<8x768xf32> to vector<8x96xf32>
    %79 = vector.extract_strided_slice %13 {offsets = [0, 384], sizes = [16, 96], strides = [1, 1]} : vector<16x1536xf32> to vector<16x96xf32>
    %80 = vector.extract_strided_slice %13 {offsets = [0, 1152], sizes = [16, 96], strides = [1, 1]} : vector<16x1536xf32> to vector<16x96xf32>
    %81 = tpu.transpose %79, [1, 0] : vector<16x96xf32> -> vector<96x16xf32>
    %cst_30 = arith.constant dense<0.000000e+00> : vector<8x16xf32>
    %82 = tpu.matmul %78, %81, %cst_30 {dimension_numbers = #tpu.dot_dimension_numbers<[1], [0], [0], [1], [0, 0, 1, 1], [], []>} : vector<8x96xf32>, vector<96x16xf32>, vector<8x16xf32> -> vector<8x16xf32>
    %cst_31 = arith.constant dense<0xFF800000> : vector<8xf32>
    %83 = vector.multi_reduction <maximumf>, %82, %cst_31 [1] : vector<8x16xf32> to vector<8xf32>
    %84 = vector.shape_cast %83 : vector<8xf32> to vector<8x1xf32>
    %85 = vector.broadcast %84 : vector<8x1xf32> to vector<8x16xf32>
    %86 = arith.subf %82, %85 : vector<8x16xf32>
    %87 = math.exp %86 : vector<8x16xf32>
    %cst_32 = arith.constant dense<0.000000e+00> : vector<8xf32>
    %88 = vector.multi_reduction <add>, %87, %cst_32 [1] : vector<8x16xf32> to vector<8xf32>
    %89 = vector.shape_cast %88 : vector<8xf32> to vector<8x1xf32>
    %90 = tpu.reciprocal %89 {approx = true} : vector<8x1xf32> -> vector<8x1xf32>
    %91 = vector.broadcast %90 : vector<8x1xf32> to vector<8x16xf32>
    %92 = arith.mulf %87, %91 : vector<8x16xf32>
    %cst_33 = arith.constant dense<0.000000e+00> : vector<8x96xf32>
    %93 = tpu.matmul %92, %80, %cst_33 {dimension_numbers = #tpu.dot_dimension_numbers<[1], [0], [0], [1], [0, 0, 1, 1], [], []>} : vector<8x16xf32>, vector<16x96xf32>, vector<8x96xf32> -> vector<8x96xf32>
    %94 = vector.extract_strided_slice %8 {offsets = [0, 480], sizes = [8, 96], strides = [1, 1]} : vector<8x768xf32> to vector<8x96xf32>
    %95 = vector.extract_strided_slice %13 {offsets = [0, 480], sizes = [16, 96], strides = [1, 1]} : vector<16x1536xf32> to vector<16x96xf32>
    %96 = vector.extract_strided_slice %13 {offsets = [0, 1248], sizes = [16, 96], strides = [1, 1]} : vector<16x1536xf32> to vector<16x96xf32>
    %97 = tpu.transpose %95, [1, 0] : vector<16x96xf32> -> vector<96x16xf32>
    %cst_34 = arith.constant dense<0.000000e+00> : vector<8x16xf32>
    %98 = tpu.matmul %94, %97, %cst_34 {dimension_numbers = #tpu.dot_dimension_numbers<[1], [0], [0], [1], [0, 0, 1, 1], [], []>} : vector<8x96xf32>, vector<96x16xf32>, vector<8x16xf32> -> vector<8x16xf32>
    %cst_35 = arith.constant dense<0xFF800000> : vector<8xf32>
    %99 = vector.multi_reduction <maximumf>, %98, %cst_35 [1] : vector<8x16xf32> to vector<8xf32>
    %100 = vector.shape_cast %99 : vector<8xf32> to vector<8x1xf32>
    %101 = vector.broadcast %100 : vector<8x1xf32> to vector<8x16xf32>
    %102 = arith.subf %98, %101 : vector<8x16xf32>
    %103 = math.exp %102 : vector<8x16xf32>
    %cst_36 = arith.constant dense<0.000000e+00> : vector<8xf32>
    %104 = vector.multi_reduction <add>, %103, %cst_36 [1] : vector<8x16xf32> to vector<8xf32>
    %105 = vector.shape_cast %104 : vector<8xf32> to vector<8x1xf32>
    %106 = tpu.reciprocal %105 {approx = true} : vector<8x1xf32> -> vector<8x1xf32>
    %107 = vector.broadcast %106 : vector<8x1xf32> to vector<8x16xf32>
    %108 = arith.mulf %103, %107 : vector<8x16xf32>
    %cst_37 = arith.constant dense<0.000000e+00> : vector<8x96xf32>
    %109 = tpu.matmul %108, %96, %cst_37 {dimension_numbers = #tpu.dot_dimension_numbers<[1], [0], [0], [1], [0, 0, 1, 1], [], []>} : vector<8x16xf32>, vector<16x96xf32>, vector<8x96xf32> -> vector<8x96xf32>
    %110 = vector.extract_strided_slice %8 {offsets = [0, 576], sizes = [8, 96], strides = [1, 1]} : vector<8x768xf32> to vector<8x96xf32>
    %111 = vector.extract_strided_slice %13 {offsets = [0, 576], sizes = [16, 96], strides = [1, 1]} : vector<16x1536xf32> to vector<16x96xf32>
    %112 = vector.extract_strided_slice %13 {offsets = [0, 1344], sizes = [16, 96], strides = [1, 1]} : vector<16x1536xf32> to vector<16x96xf32>
    %113 = tpu.transpose %111, [1, 0] : vector<16x96xf32> -> vector<96x16xf32>
    %cst_38 = arith.constant dense<0.000000e+00> : vector<8x16xf32>
    %114 = tpu.matmul %110, %113, %cst_38 {dimension_numbers = #tpu.dot_dimension_numbers<[1], [0], [0], [1], [0, 0, 1, 1], [], []>} : vector<8x96xf32>, vector<96x16xf32>, vector<8x16xf32> -> vector<8x16xf32>
    %cst_39 = arith.constant dense<0xFF800000> : vector<8xf32>
    %115 = vector.multi_reduction <maximumf>, %114, %cst_39 [1] : vector<8x16xf32> to vector<8xf32>
    %116 = vector.shape_cast %115 : vector<8xf32> to vector<8x1xf32>
    %117 = vector.broadcast %116 : vector<8x1xf32> to vector<8x16xf32>
    %118 = arith.subf %114, %117 : vector<8x16xf32>
    %119 = math.exp %118 : vector<8x16xf32>
    %cst_40 = arith.constant dense<0.000000e+00> : vector<8xf32>
    %120 = vector.multi_reduction <add>, %119, %cst_40 [1] : vector<8x16xf32> to vector<8xf32>
    %121 = vector.shape_cast %120 : vector<8xf32> to vector<8x1xf32>
    %122 = tpu.reciprocal %121 {approx = true} : vector<8x1xf32> -> vector<8x1xf32>
    %123 = vector.broadcast %122 : vector<8x1xf32> to vector<8x16xf32>
    %124 = arith.mulf %119, %123 : vector<8x16xf32>
    %cst_41 = arith.constant dense<0.000000e+00> : vector<8x96xf32>
    %125 = tpu.matmul %124, %112, %cst_41 {dimension_numbers = #tpu.dot_dimension_numbers<[1], [0], [0], [1], [0, 0, 1, 1], [], []>} : vector<8x16xf32>, vector<16x96xf32>, vector<8x96xf32> -> vector<8x96xf32>
    %126 = vector.extract_strided_slice %8 {offsets = [0, 672], sizes = [8, 96], strides = [1, 1]} : vector<8x768xf32> to vector<8x96xf32>
    %127 = vector.extract_strided_slice %13 {offsets = [0, 672], sizes = [16, 96], strides = [1, 1]} : vector<16x1536xf32> to vector<16x96xf32>
    %128 = vector.extract_strided_slice %13 {offsets = [0, 1440], sizes = [16, 96], strides = [1, 1]} : vector<16x1536xf32> to vector<16x96xf32>
    %129 = tpu.transpose %127, [1, 0] : vector<16x96xf32> -> vector<96x16xf32>
    %cst_42 = arith.constant dense<0.000000e+00> : vector<8x16xf32>
    %130 = tpu.matmul %126, %129, %cst_42 {dimension_numbers = #tpu.dot_dimension_numbers<[1], [0], [0], [1], [0, 0, 1, 1], [], []>} : vector<8x96xf32>, vector<96x16xf32>, vector<8x16xf32> -> vector<8x16xf32>
    %cst_43 = arith.constant dense<0xFF800000> : vector<8xf32>
    %131 = vector.multi_reduction <maximumf>, %130, %cst_43 [1] : vector<8x16xf32> to vector<8xf32>
    %132 = vector.shape_cast %131 : vector<8xf32> to vector<8x1xf32>
    %133 = vector.broadcast %132 : vector<8x1xf32> to vector<8x16xf32>
    %134 = arith.subf %130, %133 : vector<8x16xf32>
    %135 = math.exp %134 : vector<8x16xf32>
    %cst_44 = arith.constant dense<0.000000e+00> : vector<8xf32>
    %136 = vector.multi_reduction <add>, %135, %cst_44 [1] : vector<8x16xf32> to vector<8xf32>
    %137 = vector.shape_cast %136 : vector<8xf32> to vector<8x1xf32>
    %138 = tpu.reciprocal %137 {approx = true} : vector<8x1xf32> -> vector<8x1xf32>
    %139 = vector.broadcast %138 : vector<8x1xf32> to vector<8x16xf32>
    %140 = arith.mulf %135, %139 : vector<8x16xf32>
    %cst_45 = arith.constant dense<0.000000e+00> : vector<8x96xf32>
    %141 = tpu.matmul %140, %128, %cst_45 {dimension_numbers = #tpu.dot_dimension_numbers<[1], [0], [0], [1], [0, 0, 1, 1], [], []>} : vector<8x16xf32>, vector<16x96xf32>, vector<8x96xf32> -> vector<8x96xf32>
    %142 = tpu.concatenate %29, %45, %61, %77, %93, %109, %125, %141 in 1 : vector<8x96xf32>, vector<8x96xf32>, vector<8x96xf32>, vector<8x96xf32>, vector<8x96xf32>, vector<8x96xf32>, vector<8x96xf32>, vector<8x96xf32> -> vector<8x768xf32>
    %c0_46 = arith.constant 0 : index
    %c0_47 = arith.constant 0 : index
    %143 = vector.load %arg7[%c0_46, %c0_47] : memref<768x768xf32, #tpu.memory_space<vmem>>, vector<768x768xf32>
    %cst_48 = arith.constant dense<0.000000e+00> : vector<8x768xf32>
    %144 = tpu.matmul %142, %143, %cst_48 {dimension_numbers = #tpu.dot_dimension_numbers<[1], [0], [0], [1], [0, 0, 1, 1], [], []>} : vector<8x768xf32>, vector<768x768xf32>, vector<8x768xf32> -> vector<8x768xf32>
    %c0_49 = arith.constant 0 : index
    %c0_50 = arith.constant 0 : index
    %145 = vector.load %arg8[%c0_49, %c0_50] : memref<1x768xf32, #tpu.memory_space<vmem>>, vector<1x768xf32>
    %146 = vector.broadcast %145 : vector<1x768xf32> to vector<8x768xf32>
    %147 = arith.addf %144, %146 : vector<8x768xf32>
    %148 = arith.addf %1, %147 : vector<8x768xf32>
    %cst_51 = arith.constant dense<0.000000e+00> : vector<768xf32>
    %149 = vector.multi_reduction <add>, %148, %cst_51 [0] : vector<8x768xf32> to vector<768xf32>
    %150 = vector.shape_cast %149 : vector<768xf32> to vector<1x768xf32>
    %cst_52 = arith.constant 8.000000e+00 : f32
    %151 = vector.broadcast %cst_52 : f32 to vector<1x768xf32>
    %152 = arith.divf %150, %151 : vector<1x768xf32>
    %c0_53 = arith.constant 0 : index
    %c0_54 = arith.constant 0 : index
    %153 = vector.load %arg9[%c0_53, %c0_54] : memref<768x256xf32, #tpu.memory_space<vmem>>, vector<768x256xf32>
    %cst_55 = arith.constant dense<0.000000e+00> : vector<1x256xf32>
    %154 = tpu.matmul %152, %153, %cst_55 {dimension_numbers = #tpu.dot_dimension_numbers<[1], [0], [0], [1], [0, 0, 1, 1], [], []>} : vector<1x768xf32>, vector<768x256xf32>, vector<1x256xf32> -> vector<1x256xf32>
    %c0_56 = arith.constant 0 : index
    %c0_57 = arith.constant 0 : index
    %155 = vector.load %arg10[%c0_56, %c0_57] : memref<1x256xf32, #tpu.memory_space<vmem>>, vector<1x256xf32>
    %156 = arith.addf %154, %155 : vector<1x256xf32>
    %cst_58 = arith.constant 0.000000e+00 : f32
    %157 = vector.broadcast %cst_58 : f32 to vector<1x256xf32>
    %158 = arith.maximumf %156, %157 : vector<1x256xf32>
    %c0_59 = arith.constant 0 : index
    %c0_60 = arith.constant 0 : index
    %159 = vector.load %arg11[%c0_59, %c0_60] : memref<256x64xf32, #tpu.memory_space<vmem>>, vector<256x64xf32>
    %cst_61 = arith.constant dense<0.000000e+00> : vector<1x64xf32>
    %160 = tpu.matmul %158, %159, %cst_61 {dimension_numbers = #tpu.dot_dimension_numbers<[1], [0], [0], [1], [0, 0, 1, 1], [], []>} : vector<1x256xf32>, vector<256x64xf32>, vector<1x64xf32> -> vector<1x64xf32>
    %c0_62 = arith.constant 0 : index
    %c0_63 = arith.constant 0 : index
    %161 = vector.load %arg12[%c0_62, %c0_63] : memref<1x64xf32, #tpu.memory_space<vmem>>, vector<1x64xf32>
    %162 = arith.addf %160, %161 : vector<1x64xf32>
    %cst_64 = arith.constant 0.000000e+00 : f32
    %163 = vector.broadcast %cst_64 : f32 to vector<1x64xf32>
    %164 = arith.maximumf %162, %163 : vector<1x64xf32>
    %c0_65 = arith.constant 0 : index
    %c0_66 = arith.constant 0 : index
    %165 = vector.load %arg13[%c0_65, %c0_66] : memref<64x16xf32, #tpu.memory_space<vmem>>, vector<64x16xf32>
    %cst_67 = arith.constant dense<0.000000e+00> : vector<1x16xf32>
    %166 = tpu.matmul %164, %165, %cst_67 {dimension_numbers = #tpu.dot_dimension_numbers<[1], [0], [0], [1], [0, 0, 1, 1], [], []>} : vector<1x64xf32>, vector<64x16xf32>, vector<1x16xf32> -> vector<1x16xf32>
    %c0_68 = arith.constant 0 : index
    %c0_69 = arith.constant 0 : index
    %167 = vector.load %arg14[%c0_68, %c0_69] : memref<1x16xf32, #tpu.memory_space<vmem>>, vector<1x16xf32>
    %168 = arith.addf %166, %167 : vector<1x16xf32>
    %cst_70 = arith.constant 0.000000e+00 : f32
    %169 = vector.broadcast %cst_70 : f32 to vector<1x16xf32>
    %170 = arith.maximumf %168, %169 : vector<1x16xf32>
    %c0_71 = arith.constant 0 : index
    %c0_72 = arith.constant 0 : index
    %171 = vector.load %arg15[%c0_71, %c0_72] : memref<16x12xf32, #tpu.memory_space<vmem>>, vector<16x12xf32>
    %cst_73 = arith.constant dense<0.000000e+00> : vector<1x12xf32>
    %172 = tpu.matmul %170, %171, %cst_73 {dimension_numbers = #tpu.dot_dimension_numbers<[1], [0], [0], [1], [0, 0, 1, 1], [], []>} : vector<1x16xf32>, vector<16x12xf32>, vector<1x12xf32> -> vector<1x12xf32>
    %c0_74 = arith.constant 0 : index
    %c0_75 = arith.constant 0 : index
    %173 = vector.load %arg16[%c0_74, %c0_75] : memref<1x12xf32, #tpu.memory_space<vmem>>, vector<1x12xf32>
    %174 = arith.addf %172, %173 : vector<1x12xf32>
    %cst_76 = arith.constant 0.000000e+00 : f32
    %175 = vector.broadcast %cst_76 : f32 to vector<1x12xf32>
    %176 = arith.maximumf %174, %175 : vector<1x12xf32>
    %c0_77 = arith.constant 0 : index
    %c0_78 = arith.constant 0 : index
    %c0_79 = arith.constant 0 : index
    %177 = vector.load %arg17[%c0_77, %c0_78, %c0_79] : memref<1x1x12xf32, #tpu.memory_space<vmem>>, vector<1x1x12xf32>
    %178 = vector.shape_cast %177 : vector<1x1x12xf32> to vector<1x12xf32>
    %179 = vector.shape_cast %176 : vector<1x12xf32> to vector<1x1x12xf32>
    tpu.vector_store %arg17[%c0_77, %c0_78, %c0_79], %179 {strides = array<i32>} : memref<1x1x12xf32, #tpu.memory_space<vmem>>, vector<1x1x12xf32>,
    return
  }
  func.func @transform_0(%arg0: i32) -> (i32, i32, i32) {
    %c0_i32 = arith.constant 0 : i32
    %c0_i32_0 = arith.constant 0 : i32
    %c0_i32_1 = arith.constant 0 : i32
    return %arg0, %c0_i32, %c0_i32_0 : i32, i32, i32
  }
  func.func @transform_1(%arg0: i32) -> (i32, i32, i32) {
    %c0_i32 = arith.constant 0 : i32
    %c0_i32_0 = arith.constant 0 : i32
    %c0_i32_1 = arith.constant 0 : i32
    return %arg0, %c0_i32, %c0_i32_0 : i32, i32, i32
  }
  func.func @transform_2(%arg0: i32) -> (i32, i32) {
    %c0_i32 = arith.constant 0 : i32
    %c0_i32_0 = arith.constant 0 : i32
    %c0_i32_1 = arith.constant 0 : i32
    return %c0_i32, %c0_i32_0 : i32, i32
  }
  func.func @transform_3(%arg0: i32) -> (i32, i32) {
    %c0_i32 = arith.constant 0 : i32
    %c0_i32_0 = arith.constant 0 : i32
    %c0_i32_1 = arith.constant 0 : i32
    return %c0_i32, %c0_i32_0 : i32, i32
  }
  func.func @transform_4(%arg0: i32) -> (i32, i32) {
    %c0_i32 = arith.constant 0 : i32
    %c0_i32_0 = arith.constant 0 : i32
    %c0_i32_1 = arith.constant 0 : i32
    return %c0_i32, %c0_i32_0 : i32, i32
  }
  func.func @transform_5(%arg0: i32) -> (i32, i32) {
    %c0_i32 = arith.constant 0 : i32
    %c0_i32_0 = arith.constant 0 : i32
    %c0_i32_1 = arith.constant 0 : i32
    return %c0_i32, %c0_i32_0 : i32, i32
  }
  func.func @transform_6(%arg0: i32) -> (i32, i32) {
    %c0_i32 = arith.constant 0 : i32
    %c0_i32_0 = arith.constant 0 : i32
    %c0_i32_1 = arith.constant 0 : i32
    return %c0_i32, %c0_i32_0 : i32, i32
  }
  func.func @transform_7(%arg0: i32) -> (i32, i32) {
    %c0_i32 = arith.constant 0 : i32
    %c0_i32_0 = arith.constant 0 : i32
    %c0_i32_1 = arith.constant 0 : i32
    return %c0_i32, %c0_i32_0 : i32, i32
  }
  func.func @transform_8(%arg0: i32) -> (i32, i32) {
    %c0_i32 = arith.constant 0 : i32
    %c0_i32_0 = arith.constant 0 : i32
    %c0_i32_1 = arith.constant 0 : i32
    return %c0_i32, %c0_i32_0 : i32, i32
  }
  func.func @transform_9(%arg0: i32) -> (i32, i32) {
    %c0_i32 = arith.constant 0 : i32
    %c0_i32_0 = arith.constant 0 : i32
    %c0_i32_1 = arith.constant 0 : i32
    return %c0_i32, %c0_i32_0 : i32, i32
  }
  func.func @transform_10(%arg0: i32) -> (i32, i32) {
    %c0_i32 = arith.constant 0 : i32
    %c0_i32_0 = arith.constant 0 : i32
    %c0_i32_1 = arith.constant 0 : i32
    return %c0_i32, %c0_i32_0 : i32, i32
  }
  func.func @transform_11(%arg0: i32) -> (i32, i32) {
    %c0_i32 = arith.constant 0 : i32
    %c0_i32_0 = arith.constant 0 : i32
    %c0_i32_1 = arith.constant 0 : i32
    return %c0_i32, %c0_i32_0 : i32, i32
  }
  func.func @transform_12(%arg0: i32) -> (i32, i32) {
    %c0_i32 = arith.constant 0 : i32
    %c0_i32_0 = arith.constant 0 : i32
    %c0_i32_1 = arith.constant 0 : i32
    return %c0_i32, %c0_i32_0 : i32, i32
  }
  func.func @transform_13(%arg0: i32) -> (i32, i32) {
    %c0_i32 = arith.constant 0 : i32
    %c0_i32_0 = arith.constant 0 : i32
    %c0_i32_1 = arith.constant 0 : i32
    return %c0_i32, %c0_i32_0 : i32, i32
  }
  func.func @transform_14(%arg0: i32) -> (i32, i32) {
    %c0_i32 = arith.constant 0 : i32
    %c0_i32_0 = arith.constant 0 : i32
    %c0_i32_1 = arith.constant 0 : i32
    return %c0_i32, %c0_i32_0 : i32, i32
  }
  func.func @transform_15(%arg0: i32) -> (i32, i32) {
    %c0_i32 = arith.constant 0 : i32
    %c0_i32_0 = arith.constant 0 : i32
    %c0_i32_1 = arith.constant 0 : i32
    return %c0_i32, %c0_i32_0 : i32, i32
  }
  func.func @transform_16(%arg0: i32) -> (i32, i32, i32) {
    %c0_i32 = arith.constant 0 : i32
    %c0_i32_0 = arith.constant 0 : i32
    %c0_i32_1 = arith.constant 0 : i32
    return %arg0, %c0_i32, %c0_i32_0 : i32, i32, i32
  }
}

</mosaic_0001>

<llo_original>
// kernel: multi_classifier_forward.1
$region0: #{multi_classifier_forward.1}
  #allocation0 [shape = 'u32[]', space=smem, size = 0x4, offset = 0x4, fixed_abs, tag = 'smem constant byte address 0x4 - core index']
  #allocation1 [shape = 'u32[144,128]{1,0:T(1,128)}', space=vmem, size = 0x12000, scoped, tag = 'internal scratch']
  %s0 = inlined_call_operand.vmem [shape: f32[2,8,768], index: 0, kind: input, shape index: {}]
  %s1 = inlined_call_operand.vmem [shape: f32[2,16,768], index: 1, kind: input, shape index: {}]
  %s2 = inlined_call_operand.hbm [shape: f32[768,768], index: 2, kind: input, shape index: {}]
  %s3 = inlined_call_operand.hbm [shape: f32[1,768], index: 3, kind: input, shape index: {}]
  %s4 = inlined_call_operand.hbm [shape: f32[768,1536], index: 4, kind: input, shape index: {}]
  %s5 = inlined_call_operand.hbm [shape: f32[1,1536], index: 5, kind: input, shape index: {}]
  %s6 = inlined_call_operand.hbm [shape: f32[768,768], index: 6, kind: input, shape index: {}]
  %s7 = inlined_call_operand.hbm [shape: f32[1,768], index: 7, kind: input, shape index: {}]
  %s8 = inlined_call_operand.vmem [shape: f32[768,256], index: 8, kind: input, shape index: {}]
  %s9 = inlined_call_operand.hbm [shape: f32[1,256], index: 9, kind: input, shape index: {}]
  %s10 = inlined_call_operand.hbm [shape: f32[256,64], index: 10, kind: input, shape index: {}]
  %s11 = inlined_call_operand.hbm [shape: f32[1,64], index: 11, kind: input, shape index: {}]
  %s12 = inlined_call_operand.hbm [shape: f32[64,16], index: 12, kind: input, shape index: {}]
  %s13 = inlined_call_operand.hbm [shape: f32[1,16], index: 13, kind: input, shape index: {}]
  %s14 = inlined_call_operand.hbm [shape: f32[16,12], index: 14, kind: input, shape index: {}]
  %s15 = inlined_call_operand.hbm [shape: f32[1,12], index: 15, kind: input, shape index: {}]
  %s16 = inlined_call_operand.hbm [shape: f32[2,1,12], index: 16, kind: output, shape index: {}]
  %s17 = sld [smem:[#allocation0]]
  $region149: #{multi_classifier_forward.1} parent=0
    _
  %s19 = ssub.s32 1, %s17
  %s20 = scalar_select 0, %s19, %s17
  $region1: #{multi_classifier_forward.1} parent=0
    #allocation2 [shape = 'u8[2359296]{0}', space=vmem, size = 0x240000, scoped, tag = 'input window, operand 2, single buffered']
    #allocation3 [shape = 's32[2]{0}', space=sflag, size = 0x8, scoped, tag = 'scoped memory for multi_classifier_forward.1']
    #allocation4 [shape = 's32[2]{0}', space=sflag, size = 0x8, scoped, tag = 'scoped memory for multi_classifier_forward.1']
    #allocation5 [shape = 'u8[3072]{0}', space=vmem, size = 0xc00, scoped, tag = 'input window, operand 3, single buffered']
    #allocation6 [shape = 's32[1]{0}', space=sflag, size = 0x4, scoped, tag = 'scoped memory for multi_classifier_forward.1']
    #allocation7 [shape = 'u8[4718592]{0}', space=vmem, size = 0x480000, scoped, tag = 'input window, operand 4, single buffered']
    #allocation8 [shape = 'u8[6144]{0}', space=vmem, size = 0x1800, scoped, tag = 'input window, operand 5, single buffered']
    #allocation9 [shape = 's32[1]{0}', space=sflag, size = 0x4, scoped, tag = 'scoped memory for multi_classifier_forward.1']
    #allocation10 [shape = 'u8[2359296]{0}', space=vmem, size = 0x240000, scoped, tag = 'input window, operand 6, single buffered']
    #allocation11 [shape = 'u8[3072]{0}', space=vmem, size = 0xc00, scoped, tag = 'input window, operand 7, single buffered']
    #allocation12 [shape = 's32[1]{0}', space=sflag, size = 0x4, scoped, tag = 'scoped memory for multi_classifier_forward.1']
    #allocation13 [shape = 'u8[1024]{0}', space=vmem, size = 0x400, scoped, tag = 'input window, operand 9, single buffered']
    #allocation14 [shape = 'u8[131072]{0}', space=vmem, size = 0x20000, scoped, tag = 'input window, operand 10, single buffered']
    #allocation15 [shape = 's32[1]{0}', space=sflag, size = 0x4, scoped, tag = 'scoped memory for multi_classifier_forward.1']
    #allocation16 [shape = 'u8[512]{0}', space=vmem, size = 0x400, scoped, tag = 'input window, operand 11, single buffered']
    #allocation17 [shape = 'u8[32768]{0}', space=vmem, size = 0x8000, scoped, tag = 'input window, operand 12, single buffered']
    #allocation18 [shape = 's32[1]{0}', space=sflag, size = 0x4, scoped, tag = 'scoped memory for multi_classifier_forward.1']
    #allocation19 [shape = 'u8[512]{0}', space=vmem, size = 0x400, scoped, tag = 'input window, operand 13, single buffered']
    #allocation20 [shape = 'u8[8192]{0}', space=vmem, size = 0x2000, scoped, tag = 'input window, operand 14, single buffered']
    #allocation21 [shape = 's32[1]{0}', space=sflag, size = 0x4, scoped, tag = 'scoped memory for multi_classifier_forward.1']
    #allocation22 [shape = 'u8[512]{0}', space=vmem, size = 0x400, scoped, tag = 'input window, operand 15, single buffered']
    #allocation23 [shape = 'u8[1024]{0}', space=vmem, size = 0x400, scoped, tag = 'output window, operand 0']
    %21 = vsyncpa [#allocation3], 0
    %22 = vsyncpa [#allocation6], 0
    %23 = vsyncpa [#allocation9], 0
    %24 = vsyncpa [#allocation12], 0
    %25 = vsyncpa [#allocation15], 0
    %26 = vsyncpa [#allocation18], 0
    %27 = vsyncpa [#allocation21], 0
    %28 = vsyncpa [#allocation4], 0
    %s29 = scalar_lea.sflag [#allocation4], 1
    %30 = vsyncpa %s29, 0
    loop: start=0, step=1, limit=4
    $region2: #{multi_classifier_forward.1} parent=1 // loop_pre_header
      _
    $region3: #{multi_classifier_forward.1} parent=1 // loop_header
      %s32 = sphi 0, %s36
      %p33 = scmp.ge.s32.totalorder %s32, 4
      %s42 = sphi 0, %s44
      %s45 = sphi 0, %s42
      %s46 = sphi 0, %s45
      %s62 = sphi 0, %s46
      %s68 = sphi 0, %s70
      %s71 = sphi 0, %s68
      %s72 = sphi 0, %s71
      %s88 = sphi 0, %s72
      %s92 = sphi 0, %s92
      %s94 = sphi 0, %s92
      %s95 = sphi 0, %s94
      %s109 = sphi 0, %s95
      %s113 = sphi 0, %s113
      %s115 = sphi 0, %s113
      %s116 = sphi 0, %s115
      %s130 = sphi 0, %s116
      %s134 = sphi 0, %s134
      %s136 = sphi 0, %s134
      %s137 = sphi 0, %s136
      %s151 = sphi 0, %s137
      %s155 = sphi 0, %s155
      %s157 = sphi 0, %s155
      %s158 = sphi 0, %s157
      %s172 = sphi 0, %s158
      %s176 = sphi 0, %s176
      %s178 = sphi 0, %s176
      %s179 = sphi 0, %s178
      %s193 = sphi 0, %s179
      %s197 = sphi 0, %s197
      %s199 = sphi 0, %s197
      %s200 = sphi 0, %s199
      %s214 = sphi 0, %s200
      %s218 = sphi 0, %s218
      %s220 = sphi 0, %s218
      %s221 = sphi 0, %s220
      %s235 = sphi 0, %s221
      %s239 = sphi 0, %s239
      %s241 = sphi 0, %s239
      %s242 = sphi 0, %s241
      %s256 = sphi 0, %s242
      %s260 = sphi 0, %s260
      %s262 = sphi 0, %s260
      %s263 = sphi 0, %s262
      %s277 = sphi 0, %s263
      %s281 = sphi 0, %s281
      %s283 = sphi 0, %s281
      %s284 = sphi 0, %s283
      %s298 = sphi 0, %s284
      %s302 = sphi 0, %s302
      %s304 = sphi 0, %s302
      %s305 = sphi 0, %s304
      %s319 = sphi 0, %s305
      %s323 = sphi 0, %s323
      %s325 = sphi 0, %s323
      %s326 = sphi 0, %s325
      %s340 = sphi 0, %s326
      %s344 = sphi 0, %s344
      %s346 = sphi 0, %s344
      %s347 = sphi 0, %s346
      %s361 = sphi 0, %s347
      %s365 = sphi 0, %s365
      %s367 = sphi 0, %s365
      %s368 = sphi 0, %s367
      %s382 = sphi 0, %s368
      %s388 = sphi 0, %s390
      %s391 = sphi 0, %s388
      %s392 = sphi 0, %s391
      %s408 = sphi 0, %s392
    $region4: #{multi_classifier_forward.1} parent=1 // loop_header_branch
      %35 = sbr.rel (%p33) target = $region8
    $region5: #{multi_classifier_forward.1} parent=1 // loop_body
      %s37 = ssub.s32 %s32, 1
      %s38 = ssub.s32 %s32, 2
      %s39 = sadd.s32 %s32, 1
      %s40 = ssub.s32 %s32, %s39
      %p41 = scmp.eq.s32.totalorder %s40, 0
      %s43 = sadd.s32 %s42, 1
      %s44 = scalar_select %p41, %s42, %s43
      %p47 = pneg %p41
      %p48 = scmp.eq.s32.totalorder %s32, 1
      %p49 = por %p47, %p48
      %p50 = scmp.ne.s32.totalorder %s42, %s45
      %p51 = scmp.eq.s32.totalorder %s32, 0
      %p52 = por %p50, %p51
      %p53 = scmp.ne.s32.totalorder %s42, %s45
      %p54 = scmp.eq.s32.totalorder %s37, 1
      %p55 = por %p53, %p54
      %p56 = scmp.ne.s32.totalorder %s45, %s46
      %p57 = scmp.eq.s32.totalorder %s37, 0
      %p58 = por %p56, %p57
      %p59 = scmp.ne.s32.totalorder %s45, %s46
      %p60 = scmp.eq.s32.totalorder %s38, 1
      %p61 = por %p59, %p60
      %p63 = scmp.ne.s32.totalorder %s46, %s62
      %p64 = scmp.eq.s32.totalorder %s38, 0
      %p65 = por %p63, %p64
      %s66 = ssub.s32 %s32, %s39
      %p67 = scmp.eq.s32.totalorder %s66, 0
      %s69 = sadd.s32 %s68, 1
      %s70 = scalar_select %p67, %s68, %s69
      %p73 = pneg %p67
      %p74 = scmp.eq.s32.totalorder %s32, 1
      %p75 = por %p73, %p74
      %p76 = scmp.ne.s32.totalorder %s68, %s71
      %p77 = scmp.eq.s32.totalorder %s32, 0
      %p78 = por %p76, %p77
      %p79 = scmp.ne.s32.totalorder %s68, %s71
      %p80 = scmp.eq.s32.totalorder %s37, 1
      %p81 = por %p79, %p80
      %p82 = scmp.ne.s32.totalorder %s71, %s72
      %p83 = scmp.eq.s32.totalorder %s37, 0
      %p84 = por %p82, %p83
      %p85 = scmp.ne.s32.totalorder %s71, %s72
      %p86 = scmp.eq.s32.totalorder %s38, 1
      %p87 = por %p85, %p86
      %p89 = scmp.ne.s32.totalorder %s72, %s88
      %p90 = scmp.eq.s32.totalorder %s38, 0
      %p91 = por %p89, %p90
      %s93 = sadd.s32 %s92, 1
      %p96 = scmp.eq.s32.totalorder %s32, 1
      %p97 = scmp.ne.s32.totalorder %s92, %s94
      %p98 = scmp.eq.s32.totalorder %s32, 0
      %p99 = por %p97, %p98
      %p100 = scmp.ne.s32.totalorder %s92, %s94
      %p101 = scmp.eq.s32.totalorder %s37, 1
      %p102 = por %p100, %p101
      %p103 = scmp.ne.s32.totalorder %s94, %s95
      %p104 = scmp.eq.s32.totalorder %s37, 0
      %p105 = por %p103, %p104
      %p106 = scmp.ne.s32.totalorder %s94, %s95
      %p107 = scmp.eq.s32.totalorder %s38, 1
      %p108 = por %p106, %p107
      %p110 = scmp.ne.s32.totalorder %s95, %s109
      %p111 = scmp.eq.s32.totalorder %s38, 0
      %p112 = por %p110, %p111
      %s114 = sadd.s32 %s113, 1
      %p117 = scmp.eq.s32.totalorder %s32, 1
      %p118 = scmp.ne.s32.totalorder %s113, %s115
      %p119 = scmp.eq.s32.totalorder %s32, 0
      %p120 = por %p118, %p119
      %p121 = scmp.ne.s32.totalorder %s113, %s115
      %p122 = scmp.eq.s32.totalorder %s37, 1
      %p123 = por %p121, %p122
      %p124 = scmp.ne.s32.totalorder %s115, %s116
      %p125 = scmp.eq.s32.totalorder %s37, 0
      %p126 = por %p124, %p125
      %p127 = scmp.ne.s32.totalorder %s115, %s116
      %p128 = scmp.eq.s32.totalorder %s38, 1
      %p129 = por %p127, %p128
      %p131 = scmp.ne.s32.totalorder %s116, %s130
      %p132 = scmp.eq.s32.totalorder %s38, 0
      %p133 = por %p131, %p132
      %s135 = sadd.s32 %s134, 1
      %p138 = scmp.eq.s32.totalorder %s32, 1
      %p139 = scmp.ne.s32.totalorder %s134, %s136
      %p140 = scmp.eq.s32.totalorder %s32, 0
      %p141 = por %p139, %p140
      %p142 = scmp.ne.s32.totalorder %s134, %s136
      %p143 = scmp.eq.s32.totalorder %s37, 1
      %p144 = por %p142, %p143
      %p145 = scmp.ne.s32.totalorder %s136, %s137
      %p146 = scmp.eq.s32.totalorder %s37, 0
      %p147 = por %p145, %p146
      %p148 = scmp.ne.s32.totalorder %s136, %s137
      %p149 = scmp.eq.s32.totalorder %s38, 1
      %p150 = por %p148, %p149
      %p152 = scmp.ne.s32.totalorder %s137, %s151
      %p153 = scmp.eq.s32.totalorder %s38, 0
      %p154 = por %p152, %p153
      %s156 = sadd.s32 %s155, 1
      %p159 = scmp.eq.s32.totalorder %s32, 1
      %p160 = scmp.ne.s32.totalorder %s155, %s157
      %p161 = scmp.eq.s32.totalorder %s32, 0
      %p162 = por %p160, %p161
      %p163 = scmp.ne.s32.totalorder %s155, %s157
      %p164 = scmp.eq.s32.totalorder %s37, 1
      %p165 = por %p163, %p164
      %p166 = scmp.ne.s32.totalorder %s157, %s158
      %p167 = scmp.eq.s32.totalorder %s37, 0
      %p168 = por %p166, %p167
      %p169 = scmp.ne.s32.totalorder %s157, %s158
      %p170 = scmp.eq.s32.totalorder %s38, 1
      %p171 = por %p169, %p170
      %p173 = scmp.ne.s32.totalorder %s158, %s172
      %p174 = scmp.eq.s32.totalorder %s38, 0
      %p175 = por %p173, %p174
      %s177 = sadd.s32 %s176, 1
      %p180 = scmp.eq.s32.totalorder %s32, 1
      %p181 = scmp.ne.s32.totalorder %s176, %s178
      %p182 = scmp.eq.s32.totalorder %s32, 0
      %p183 = por %p181, %p182
      %p184 = scmp.ne.s32.totalorder %s176, %s178
      %p185 = scmp.eq.s32.totalorder %s37, 1
      %p186 = por %p184, %p185
      %p187 = scmp.ne.s32.totalorder %s178, %s179
      %p188 = scmp.eq.s32.totalorder %s37, 0
      %p189 = por %p187, %p188
      %p190 = scmp.ne.s32.totalorder %s178, %s179
      %p191 = scmp.eq.s32.totalorder %s38, 1
      %p192 = por %p190, %p191
      %p194 = scmp.ne.s32.totalorder %s179, %s193
      %p195 = scmp.eq.s32.totalorder %s38, 0
      %p196 = por %p194, %p195
      %s198 = sadd.s32 %s197, 1
      %p201 = scmp.eq.s32.totalorder %s32, 1
      %p202 = scmp.ne.s32.totalorder %s197, %s199
      %p203 = scmp.eq.s32.totalorder %s32, 0
      %p204 = por %p202, %p203
      %p205 = scmp.ne.s32.totalorder %s197, %s199
      %p206 = scmp.eq.s32.totalorder %s37, 1
      %p207 = por %p205, %p206
      %p208 = scmp.ne.s32.totalorder %s199, %s200
      %p209 = scmp.eq.s32.totalorder %s37, 0
      %p210 = por %p208, %p209
      %p211 = scmp.ne.s32.totalorder %s199, %s200
      %p212 = scmp.eq.s32.totalorder %s38, 1
      %p213 = por %p211, %p212
      %p215 = scmp.ne.s32.totalorder %s200, %s214
      %p216 = scmp.eq.s32.totalorder %s38, 0
      %p217 = por %p215, %p216
      %s219 = sadd.s32 %s218, 1
      %p222 = scmp.eq.s32.totalorder %s32, 1
      %p223 = scmp.ne.s32.totalorder %s218, %s220
      %p224 = scmp.eq.s32.totalorder %s32, 0
      %p225 = por %p223, %p224
      %p226 = scmp.ne.s32.totalorder %s218, %s220
      %p227 = scmp.eq.s32.totalorder %s37, 1
      %p228 = por %p226, %p227
      %p229 = scmp.ne.s32.totalorder %s220, %s221
      %p230 = scmp.eq.s32.totalorder %s37, 0
      %p231 = por %p229, %p230
      %p232 = scmp.ne.s32.totalorder %s220, %s221
      %p233 = scmp.eq.s32.totalorder %s38, 1
      %p234 = por %p232, %p233
      %p236 = scmp.ne.s32.totalorder %s221, %s235
      %p237 = scmp.eq.s32.totalorder %s38, 0
      %p238 = por %p236, %p237
      %s240 = sadd.s32 %s239, 1
      %p243 = scmp.eq.s32.totalorder %s32, 1
      %p244 = scmp.ne.s32.totalorder %s239, %s241
      %p245 = scmp.eq.s32.totalorder %s32, 0
      %p246 = por %p244, %p245
      %p247 = scmp.ne.s32.totalorder %s239, %s241
      %p248 = scmp.eq.s32.totalorder %s37, 1
      %p249 = por %p247, %p248
      %p250 = scmp.ne.s32.totalorder %s241, %s242
      %p251 = scmp.eq.s32.totalorder %s37, 0
      %p252 = por %p250, %p251
      %p253 = scmp.ne.s32.totalorder %s241, %s242
      %p254 = scmp.eq.s32.totalorder %s38, 1
      %p255 = por %p253, %p254
      %p257 = scmp.ne.s32.totalorder %s242, %s256
      %p258 = scmp.eq.s32.totalorder %s38, 0
      %p259 = por %p257, %p258
      %s261 = sadd.s32 %s260, 1
      %p264 = scmp.eq.s32.totalorder %s32, 1
      %p265 = scmp.ne.s32.totalorder %s260, %s262
      %p266 = scmp.eq.s32.totalorder %s32, 0
      %p267 = por %p265, %p266
      %p268 = scmp.ne.s32.totalorder %s260, %s262
      %p269 = scmp.eq.s32.totalorder %s37, 1
      %p270 = por %p268, %p269
      %p271 = scmp.ne.s32.totalorder %s262, %s263
      %p272 = scmp.eq.s32.totalorder %s37, 0
      %p273 = por %p271, %p272
      %p274 = scmp.ne.s32.totalorder %s262, %s263
      %p275 = scmp.eq.s32.totalorder %s38, 1
      %p276 = por %p274, %p275
      %p278 = scmp.ne.s32.totalorder %s263, %s277
      %p279 = scmp.eq.s32.totalorder %s38, 0
      %p280 = por %p278, %p279
      %s282 = sadd.s32 %s281, 1
      %p285 = scmp.eq.s32.totalorder %s32, 1
      %p286 = scmp.ne.s32.totalorder %s281, %s283
      %p287 = scmp.eq.s32.totalorder %s32, 0
      %p288 = por %p286, %p287
      %p289 = scmp.ne.s32.totalorder %s281, %s283
      %p290 = scmp.eq.s32.totalorder %s37, 1
      %p291 = por %p289, %p290
      %p292 = scmp.ne.s32.totalorder %s283, %s284
      %p293 = scmp.eq.s32.totalorder %s37, 0
      %p294 = por %p292, %p293
      %p295 = scmp.ne.s32.totalorder %s283, %s284
      %p296 = scmp.eq.s32.totalorder %s38, 1
      %p297 = por %p295, %p296
      %p299 = scmp.ne.s32.totalorder %s284, %s298
      %p300 = scmp.eq.s32.totalorder %s38, 0
      %p301 = por %p299, %p300
      %s303 = sadd.s32 %s302, 1
      %p306 = scmp.eq.s32.totalorder %s32, 1
      %p307 = scmp.ne.s32.totalorder %s302, %s304
      %p308 = scmp.eq.s32.totalorder %s32, 0
      %p309 = por %p307, %p308
      %p310 = scmp.ne.s32.totalorder %s302, %s304
      %p311 = scmp.eq.s32.totalorder %s37, 1
      %p312 = por %p310, %p311
      %p313 = scmp.ne.s32.totalorder %s304, %s305
      %p314 = scmp.eq.s32.totalorder %s37, 0
      %p315 = por %p313, %p314
      %p316 = scmp.ne.s32.totalorder %s304, %s305
      %p317 = scmp.eq.s32.totalorder %s38, 1
      %p318 = por %p316, %p317
      %p320 = scmp.ne.s32.totalorder %s305, %s319
      %p321 = scmp.eq.s32.totalorder %s38, 0
      %p322 = por %p320, %p321
      %s324 = sadd.s32 %s323, 1
      %p327 = scmp.eq.s32.totalorder %s32, 1
      %p328 = scmp.ne.s32.totalorder %s323, %s325
      %p329 = scmp.eq.s32.totalorder %s32, 0
      %p330 = por %p328, %p329
      %p331 = scmp.ne.s32.totalorder %s323, %s325
      %p332 = scmp.eq.s32.totalorder %s37, 1
      %p333 = por %p331, %p332
      %p334 = scmp.ne.s32.totalorder %s325, %s326
      %p335 = scmp.eq.s32.totalorder %s37, 0
      %p336 = por %p334, %p335
      %p337 = scmp.ne.s32.totalorder %s325, %s326
      %p338 = scmp.eq.s32.totalorder %s38, 1
      %p339 = por %p337, %p338
      %p341 = scmp.ne.s32.totalorder %s326, %s340
      %p342 = scmp.eq.s32.totalorder %s38, 0
      %p343 = por %p341, %p342
      %s345 = sadd.s32 %s344, 1
      %p348 = scmp.eq.s32.totalorder %s32, 1
      %p349 = scmp.ne.s32.totalorder %s344, %s346
      %p350 = scmp.eq.s32.totalorder %s32, 0
      %p351 = por %p349, %p350
      %p352 = scmp.ne.s32.totalorder %s344, %s346
      %p353 = scmp.eq.s32.totalorder %s37, 1
      %p354 = por %p352, %p353
      %p355 = scmp.ne.s32.totalorder %s346, %s347
      %p356 = scmp.eq.s32.totalorder %s37, 0
      %p357 = por %p355, %p356
      %p358 = scmp.ne.s32.totalorder %s346, %s347
      %p359 = scmp.eq.s32.totalorder %s38, 1
      %p360 = por %p358, %p359
      %p362 = scmp.ne.s32.totalorder %s347, %s361
      %p363 = scmp.eq.s32.totalorder %s38, 0
      %p364 = por %p362, %p363
      %s366 = sadd.s32 %s365, 1
      %p369 = scmp.eq.s32.totalorder %s32, 1
      %p370 = scmp.ne.s32.totalorder %s365, %s367
      %p371 = scmp.eq.s32.totalorder %s32, 0
      %p372 = por %p370, %p371
      %p373 = scmp.ne.s32.totalorder %s365, %s367
      %p374 = scmp.eq.s32.totalorder %s37, 1
      %p375 = por %p373, %p374
      %p376 = scmp.ne.s32.totalorder %s367, %s368
      %p377 = scmp.eq.s32.totalorder %s37, 0
      %p378 = por %p376, %p377
      %p379 = scmp.ne.s32.totalorder %s367, %s368
      %p380 = scmp.eq.s32.totalorder %s38, 1
      %p381 = por %p379, %p380
      %p383 = scmp.ne.s32.totalorder %s368, %s382
      %p384 = scmp.eq.s32.totalorder %s38, 0
      %p385 = por %p383, %p384
      %s386 = ssub.s32 %s32, %s39
      %p387 = scmp.eq.s32.totalorder %s386, 0
      %s389 = sadd.s32 %s388, 1
      %s390 = scalar_select %p387, %s388, %s389
      %p393 = pneg %p387
      %p394 = scmp.eq.s32.totalorder %s32, 1
      %p395 = por %p393, %p394
      %p396 = scmp.ne.s32.totalorder %s388, %s391
      %p397 = scmp.eq.s32.totalorder %s32, 0
      %p398 = por %p396, %p397
      %p399 = scmp.ne.s32.totalorder %s388, %s391
      %p400 = scmp.eq.s32.totalorder %s37, 1
      %p401 = por %p399, %p400
      %p402 = scmp.ne.s32.totalorder %s391, %s392
      %p403 = scmp.eq.s32.totalorder %s37, 0
      %p404 = por %p402, %p403
      %p405 = scmp.ne.s32.totalorder %s391, %s392
      %p406 = scmp.eq.s32.totalorder %s38, 1
      %p407 = por %p405, %p406
      %p409 = scmp.ne.s32.totalorder %s392, %s408
      %p410 = scmp.eq.s32.totalorder %s38, 0
      %p411 = por %p409, %p410
      %p412 = scmp.le.s32.totalorder 1, %s32
      %p413 = scmp.lt.s32.totalorder %s32, 3
      %p414 = pnand %p412, %p413
      %p415 = pneg %p414
      // Predicated region
      $region9: #{multi_classifier_forward.1} parent=5 // pred_check
        _
      $region10: #{multi_classifier_forward.1} parent=5 // pred_check_branch
        %417 = sbr.rel (%p414) target = $region12
      $region11: #{multi_classifier_forward.1} parent=5 // pred_region
        %s418 = ssub.s32 %s32, 1
        // Predicated region
        $region13: #{multi_classifier_forward.1} parent=11 // pred_check
          %p419 = pneg %p105
        $region14: #{multi_classifier_forward.1} parent=11 // pred_check_branch
          %421 = sbr.rel (%p419) target = $region16
        $region15: #{multi_classifier_forward.1} parent=11 // pred_region
          %s423 = ssub.s32 73728, 73728
          %424 = vsyncadd [#allocation3], %s423
          %s425 = sshll.u32 [#allocation2], 4
          %s426 = int_to_ptr.vmem [resolvable:$true] %s425
          %431 = dma.hbm_to_vmem [thread:$0]  %s2, 73728, %s426, [#allocation3], 768, 768, 48
        $region16: #{multi_classifier_forward.1} parent=11 // pred_fallthru
          _
        // Predicated region
        $region17: #{multi_classifier_forward.1} parent=11 // pred_check
          %p432 = pneg %p126
        $region18: #{multi_classifier_forward.1} parent=11 // pred_check_branch
          %434 = sbr.rel (%p432) target = $region20
        $region19: #{multi_classifier_forward.1} parent=11 // pred_region
          %s436 = ssub.s32 96, 96
          %437 = vsyncadd [#allocation6], %s436
          %s439 = sshll.u32 [#allocation5], 4
          %s440 = int_to_ptr.vmem [resolvable:$true] %s439
          %442 = dma.hbm_to_vmem [thread:$0]  %s3, 96, %s440, [#allocation6]
        $region20: #{multi_classifier_forward.1} parent=11 // pred_fallthru
          _
        // Predicated region
        $region21: #{multi_classifier_forward.1} parent=11 // pred_check
          %p443 = pneg %p147
        $region22: #{multi_classifier_forward.1} parent=11 // pred_check_branch
          %445 = sbr.rel (%p443) target = $region24
        $region23: #{multi_classifier_forward.1} parent=11 // pred_region
          %s447 = ssub.s32 147456, 147456
          %448 = vsyncadd [#allocation6], %s447
          %s449 = sshll.u32 [#allocation7], 4
          %s450 = int_to_ptr.vmem [resolvable:$true] %s449
          %455 = dma.hbm_to_vmem [thread:$0]  %s4, 147456, %s450, [#allocation6], 1536, 1536, 96
        $region24: #{multi_classifier_forward.1} parent=11 // pred_fallthru
          _
        // Predicated region
        $region25: #{multi_classifier_forward.1} parent=11 // pred_check
          %p456 = pneg %p168
        $region26: #{multi_classifier_forward.1} parent=11 // pred_check_branch
          %458 = sbr.rel (%p456) target = $region28
        $region27: #{multi_classifier_forward.1} parent=11 // pred_region
          %s460 = ssub.s32 192, 192
          %461 = vsyncadd [#allocation9], %s460
          %s463 = sshll.u32 [#allocation8], 4
          %s464 = int_to_ptr.vmem [resolvable:$true] %s463
          %466 = dma.hbm_to_vmem [thread:$0]  %s5, 192, %s464, [#allocation9]
        $region28: #{multi_classifier_forward.1} parent=11 // pred_fallthru
          _
        // Predicated region
        $region29: #{multi_classifier_forward.1} parent=11 // pred_check
          %p467 = pneg %p189
        $region30: #{multi_classifier_forward.1} parent=11 // pred_check_branch
          %469 = sbr.rel (%p467) target = $region32
        $region31: #{multi_classifier_forward.1} parent=11 // pred_region
          %s471 = ssub.s32 73728, 73728
          %472 = vsyncadd [#allocation9], %s471
          %s473 = sshll.u32 [#allocation10], 4
          %s474 = int_to_ptr.vmem [resolvable:$true] %s473
          %479 = dma.hbm_to_vmem [thread:$0]  %s6, 73728, %s474, [#allocation9], 768, 768, 48
        $region32: #{multi_classifier_forward.1} parent=11 // pred_fallthru
          _
        // Predicated region
        $region33: #{multi_classifier_forward.1} parent=11 // pred_check
          %p480 = pneg %p210
        $region34: #{multi_classifier_forward.1} parent=11 // pred_check_branch
          %482 = sbr.rel (%p480) target = $region36
        $region35: #{multi_classifier_forward.1} parent=11 // pred_region
          %s484 = ssub.s32 96, 96
          %485 = vsyncadd [#allocation12], %s484
          %s487 = sshll.u32 [#allocation11], 4
          %s488 = int_to_ptr.vmem [resolvable:$true] %s487
          %490 = dma.hbm_to_vmem [thread:$0]  %s7, 96, %s488, [#allocation12]
        $region36: #{multi_classifier_forward.1} parent=11 // pred_fallthru
          _
        // Predicated region
        $region37: #{multi_classifier_forward.1} parent=11 // pred_check
          %p491 = pneg %p231
        $region38: #{multi_classifier_forward.1} parent=11 // pred_check_branch
          %493 = sbr.rel (%p491) target = $region40
        $region39: #{multi_classifier_forward.1} parent=11 // pred_region
          _
        $region40: #{multi_classifier_forward.1} parent=11 // pred_fallthru
          _
        // Predicated region
        $region41: #{multi_classifier_forward.1} parent=11 // pred_check
          %p494 = pneg %p252
        $region42: #{multi_classifier_forward.1} parent=11 // pred_check_branch
          %496 = sbr.rel (%p494) target = $region44
        $region43: #{multi_classifier_forward.1} parent=11 // pred_region
          %s498 = ssub.s32 32, 32
          %499 = vsyncadd [#allocation12], %s498
          %s501 = sshll.u32 [#allocation13], 4
          %s502 = int_to_ptr.vmem [resolvable:$true] %s501
          %504 = dma.hbm_to_vmem [thread:$0]  %s9, 32, %s502, [#allocation12]
        $region44: #{multi_classifier_forward.1} parent=11 // pred_fallthru
          _
        // Predicated region
        $region45: #{multi_classifier_forward.1} parent=11 // pred_check
          %p505 = pneg %p273
        $region46: #{multi_classifier_forward.1} parent=11 // pred_check_branch
          %507 = sbr.rel (%p505) target = $region48
        $region47: #{multi_classifier_forward.1} parent=11 // pred_region
          %s509 = ssub.s32 4096, 4096
          %510 = vsyncadd [#allocation15], %s509
          %s511 = sshll.u32 [#allocation14], 4
          %s512 = int_to_ptr.vmem [resolvable:$true] %s511
          %517 = dma.hbm_to_vmem [thread:$0]  %s10, 4096, %s512, [#allocation15], 128, 128, 8
        $region48: #{multi_classifier_forward.1} parent=11 // pred_fallthru
          _
        // Predicated region
        $region49: #{multi_classifier_forward.1} parent=11 // pred_check
          %p518 = pneg %p294
        $region50: #{multi_classifier_forward.1} parent=11 // pred_check_branch
          %520 = sbr.rel (%p518) target = $region52
        $region51: #{multi_classifier_forward.1} parent=11 // pred_region
          %s522 = ssub.s32 16, 16
          %523 = vsyncadd [#allocation15], %s522
          %s525 = sshll.u32 [#allocation16], 4
          %s526 = int_to_ptr.vmem [resolvable:$true] %s525
          %528 = dma.hbm_to_vmem [thread:$0]  %s11, 16, %s526, [#allocation15]
        $region52: #{multi_classifier_forward.1} parent=11 // pred_fallthru
          _
        // Predicated region
        $region53: #{multi_classifier_forward.1} parent=11 // pred_check
          %p529 = pneg %p315
        $region54: #{multi_classifier_forward.1} parent=11 // pred_check_branch
          %531 = sbr.rel (%p529) target = $region56
        $region55: #{multi_classifier_forward.1} parent=11 // pred_region
          %s533 = ssub.s32 1024, 1024
          %534 = vsyncadd [#allocation18], %s533
          %s535 = sshll.u32 [#allocation17], 4
          %s536 = int_to_ptr.vmem [resolvable:$true] %s535
          %541 = dma.hbm_to_vmem [thread:$0]  %s12, 1024, %s536, [#allocation18], 128, 128, 8
        $region56: #{multi_classifier_forward.1} parent=11 // pred_fallthru
          _
        // Predicated region
        $region57: #{multi_classifier_forward.1} parent=11 // pred_check
          %p542 = pneg %p336
        $region58: #{multi_classifier_forward.1} parent=11 // pred_check_branch
          %544 = sbr.rel (%p542) target = $region60
        $region59: #{multi_classifier_forward.1} parent=11 // pred_region
          %s546 = ssub.s32 16, 16
          %547 = vsyncadd [#allocation18], %s546
          %s549 = sshll.u32 [#allocation19], 4
          %s550 = int_to_ptr.vmem [resolvable:$true] %s549
          %552 = dma.hbm_to_vmem [thread:$0]  %s13, 16, %s550, [#allocation18]
        $region60: #{multi_classifier_forward.1} parent=11 // pred_fallthru
          _
        // Predicated region
        $region61: #{multi_classifier_forward.1} parent=11 // pred_check
          %p553 = pneg %p357
        $region62: #{multi_classifier_forward.1} parent=11 // pred_check_branch
          %555 = sbr.rel (%p553) target = $region64
        $region63: #{multi_classifier_forward.1} parent=11 // pred_region
          %s557 = ssub.s32 256, 256
          %558 = vsyncadd [#allocation21], %s557
          %s559 = sshll.u32 [#allocation20], 4
          %s560 = int_to_ptr.vmem [resolvable:$true] %s559
          %565 = dma.hbm_to_vmem [thread:$0]  %s14, 256, %s560, [#allocation21], 128, 128, 8
        $region64: #{multi_classifier_forward.1} parent=11 // pred_fallthru
          _
        // Predicated region
        $region65: #{multi_classifier_forward.1} parent=11 // pred_check
          %p566 = pneg %p378
        $region66: #{multi_classifier_forward.1} parent=11 // pred_check_branch
          %568 = sbr.rel (%p566) target = $region68
        $region67: #{multi_classifier_forward.1} parent=11 // pred_region
          %s570 = ssub.s32 16, 16
          %571 = vsyncadd [#allocation21], %s570
          %s573 = sshll.u32 [#allocation22], 4
          %s574 = int_to_ptr.vmem [resolvable:$true] %s573
          %576 = dma.hbm_to_vmem [thread:$0]  %s15, 16, %s574, [#allocation21]
        $region68: #{multi_classifier_forward.1} parent=11 // pred_fallthru
          _
      $region12: #{multi_classifier_forward.1} parent=5 // pred_fallthru
        _
      %p577 = scmp.lt.s32.totalorder %s32, 2
      // Predicated region
      $region69: #{multi_classifier_forward.1} parent=5 // pred_check
        %p578 = pneg %p577
      $region70: #{multi_classifier_forward.1} parent=5 // pred_check_branch
        %580 = sbr.rel (%p578) target = $region72
      $region71: #{multi_classifier_forward.1} parent=5 // pred_region
        // Predicated region
        $region73: #{multi_classifier_forward.1} parent=71 // pred_check
          %p581 = pneg %p52
        $region74: #{multi_classifier_forward.1} parent=71 // pred_check_branch
          %583 = sbr.rel (%p581) target = $region76
        $region75: #{multi_classifier_forward.1} parent=71 // pred_region
          %p584 = scmp.lt.s32.totalorder %s32, 1
          %s585 = scalar_select %p584, %s32, 1
          %s586 = smul.addr %s585, 6
          %s587 = smul.addr %s586, 8
          %s588 = scalar_lea.vmem %s0, %s587
        $region76: #{multi_classifier_forward.1} parent=71 // pred_fallthru
          _
        // Predicated region
        $region77: #{multi_classifier_forward.1} parent=71 // pred_check
          %p589 = pneg %p78
        $region78: #{multi_classifier_forward.1} parent=71 // pred_check_branch
          %591 = sbr.rel (%p589) target = $region80
        $region79: #{multi_classifier_forward.1} parent=71 // pred_region
          %p592 = scmp.lt.s32.totalorder %s32, 1
          %s593 = scalar_select %p592, %s32, 1
          %s594 = smul.addr %s593, 12
          %s595 = smul.addr %s594, 8
          %s596 = scalar_lea.vmem %s1, %s595
        $region80: #{multi_classifier_forward.1} parent=71 // pred_fallthru
          _
      $region72: #{multi_classifier_forward.1} parent=5 // pred_fallthru
        _
      %p597 = scmp.le.s32.totalorder 1, %s32
      %p598 = scmp.lt.s32.totalorder %s32, 3
      %p599 = pnand %p597, %p598
      %p600 = pneg %p599
      // Predicated region
      $region81: #{multi_classifier_forward.1} parent=5 // pred_check
        _
      $region82: #{multi_classifier_forward.1} parent=5 // pred_check_branch
        %602 = sbr.rel (%p599) target = $region84
      $region83: #{multi_classifier_forward.1} parent=5 // pred_region
        %s603 = ssub.s32 %s32, 1
        // Predicated region
        $region85: #{multi_classifier_forward.1} parent=83 // pred_check
          %p604 = pneg %p105
        $region86: #{multi_classifier_forward.1} parent=83 // pred_check_branch
          %606 = sbr.rel (%p604) target = $region88
        $region87: #{multi_classifier_forward.1} parent=83 // pred_region
          %607 = dma.done [#allocation3], 73728
        $region88: #{multi_classifier_forward.1} parent=83 // pred_fallthru
          _
        // Predicated region
        $region89: #{multi_classifier_forward.1} parent=83 // pred_check
          %p608 = pneg %p126
        $region90: #{multi_classifier_forward.1} parent=83 // pred_check_branch
          %610 = sbr.rel (%p608) target = $region92
        $region91: #{multi_classifier_forward.1} parent=83 // pred_region
          %611 = dma.done [#allocation6], 96
        $region92: #{multi_classifier_forward.1} parent=83 // pred_fallthru
          _
        // Predicated region
        $region93: #{multi_classifier_forward.1} parent=83 // pred_check
          %p612 = pneg %p147
        $region94: #{multi_classifier_forward.1} parent=83 // pred_check_branch
          %614 = sbr.rel (%p612) target = $region96
        $region95: #{multi_classifier_forward.1} parent=83 // pred_region
          %615 = dma.done [#allocation6], 147456
        $region96: #{multi_classifier_forward.1} parent=83 // pred_fallthru
          _
        // Predicated region
        $region97: #{multi_classifier_forward.1} parent=83 // pred_check
          %p616 = pneg %p168
        $region98: #{multi_classifier_forward.1} parent=83 // pred_check_branch
          %618 = sbr.rel (%p616) target = $region100
        $region99: #{multi_classifier_forward.1} parent=83 // pred_region
          %619 = dma.done [#allocation9], 192
        $region100: #{multi_classifier_forward.1} parent=83 // pred_fallthru
          _
        // Predicated region
        $region101: #{multi_classifier_forward.1} parent=83 // pred_check
          %p620 = pneg %p189
        $region102: #{multi_classifier_forward.1} parent=83 // pred_check_branch
          %622 = sbr.rel (%p620) target = $region104
        $region103: #{multi_classifier_forward.1} parent=83 // pred_region
          %623 = dma.done [#allocation9], 73728
        $region104: #{multi_classifier_forward.1} parent=83 // pred_fallthru
          _
        // Predicated region
        $region105: #{multi_classifier_forward.1} parent=83 // pred_check
          %p624 = pneg %p210
        $region106: #{multi_classifier_forward.1} parent=83 // pred_check_branch
          %626 = sbr.rel (%p624) target = $region108
        $region107: #{multi_classifier_forward.1} parent=83 // pred_region
          %627 = dma.done [#allocation12], 96
        $region108: #{multi_classifier_forward.1} parent=83 // pred_fallthru
          _
        // Predicated region
        $region109: #{multi_classifier_forward.1} parent=83 // pred_check
          %p628 = pneg %p252
        $region110: #{multi_classifier_forward.1} parent=83 // pred_check_branch
          %630 = sbr.rel (%p628) target = $region112
        $region111: #{multi_classifier_forward.1} parent=83 // pred_region
          %631 = dma.done [#allocation12], 32
        $region112: #{multi_classifier_forward.1} parent=83 // pred_fallthru
          _
        // Predicated region
        $region113: #{multi_classifier_forward.1} parent=83 // pred_check
          %p632 = pneg %p273
        $region114: #{multi_classifier_forward.1} parent=83 // pred_check_branch
          %634 = sbr.rel (%p632) target = $region116
        $region115: #{multi_classifier_forward.1} parent=83 // pred_region
          %635 = dma.done [#allocation15], 4096
        $region116: #{multi_classifier_forward.1} parent=83 // pred_fallthru
          _
        // Predicated region
        $region117: #{multi_classifier_forward.1} parent=83 // pred_check
          %p636 = pneg %p294
        $region118: #{multi_classifier_forward.1} parent=83 // pred_check_branch
          %638 = sbr.rel (%p636) target = $region120
        $region119: #{multi_classifier_forward.1} parent=83 // pred_region
          %639 = dma.done [#allocation15], 16
        $region120: #{multi_classifier_forward.1} parent=83 // pred_fallthru
          _
        // Predicated region
        $region121: #{multi_classifier_forward.1} parent=83 // pred_check
          %p640 = pneg %p315
        $region122: #{multi_classifier_forward.1} parent=83 // pred_check_branch
          %642 = sbr.rel (%p640) target = $region124
        $region123: #{multi_classifier_forward.1} parent=83 // pred_region
          %643 = dma.done [#allocation18], 1024
        $region124: #{multi_classifier_forward.1} parent=83 // pred_fallthru
          _
        // Predicated region
        $region125: #{multi_classifier_forward.1} parent=83 // pred_check
          %p644 = pneg %p336
        $region126: #{multi_classifier_forward.1} parent=83 // pred_check_branch
          %646 = sbr.rel (%p644) target = $region128
        $region127: #{multi_classifier_forward.1} parent=83 // pred_region
          %647 = dma.done [#allocation18], 16
        $region128: #{multi_classifier_forward.1} parent=83 // pred_fallthru
          _
        // Predicated region
        $region129: #{multi_classifier_forward.1} parent=83 // pred_check
          %p648 = pneg %p357
        $region130: #{multi_classifier_forward.1} parent=83 // pred_check_branch
          %650 = sbr.rel (%p648) target = $region132
        $region131: #{multi_classifier_forward.1} parent=83 // pred_region
          %651 = dma.done [#allocation21], 256
        $region132: #{multi_classifier_forward.1} parent=83 // pred_fallthru
          _
        // Predicated region
        $region133: #{multi_classifier_forward.1} parent=83 // pred_check
          %p652 = pneg %p378
        $region134: #{multi_classifier_forward.1} parent=83 // pred_check_branch
          %654 = sbr.rel (%p652) target = $region136
        $region135: #{multi_classifier_forward.1} parent=83 // pred_region
          %655 = dma.done [#allocation21], 16
        $region136: #{multi_classifier_forward.1} parent=83 // pred_fallthru
          _
        %p656 = scmp.lt.s32.totalorder %s37, 1
        %s657 = scalar_select %p656, %s37, 1
        %s658 = smul.addr %s657, 6
        %s659 = smul.addr %s658, 8
        %s660 = scalar_lea.vmem %s0, %s659
        %p661 = pneg %p58
        %p662 = pneg %p55
        %p663 = scmp.lt.s32.totalorder %s37, 1
        %s664 = scalar_select %p663, %s37, 1
        %s665 = smul.addr %s664, 12
        %s666 = smul.addr %s665, 8
        %s667 = scalar_lea.vmem %s1, %s666
        %p668 = pneg %p84
        %p669 = pneg %p81
        %p670 = pneg %p105
        %p671 = pneg %p102
        %p672 = pneg %p126
        %p673 = pneg %p123
        %p674 = pneg %p147
        %p675 = pneg %p144
        %p676 = pneg %p168
        %p677 = pneg %p165
        %p678 = pneg %p189
        %p679 = pneg %p186
        %p680 = pneg %p210
        %p681 = pneg %p207
        %p682 = pneg %p231
        %p683 = pneg %p228
        %p684 = pneg %p252
        %p685 = pneg %p249
        %p686 = pneg %p273
        %p687 = pneg %p270
        %p688 = pneg %p294
        %p689 = pneg %p291
        %p690 = pneg %p315
        %p691 = pneg %p312
        %p692 = pneg %p336
        %p693 = pneg %p333
        %p694 = pneg %p357
        %p695 = pneg %p354
        %p696 = pneg %p378
        %p697 = pneg %p375
        %p698 = pneg %p404
        %p699 = pneg %p401
        %s700 = sand.u32 %s391, 1
        %s701 = scalar_lea.sflag [#allocation4], %s700
        %s702 = sand.u32 %s391, 1
        %s703 = scalar_lea.vmem [#allocation23], %s702
        %p704 = scmp.lt.s32.totalorder %s37, 1
        %s705 = scalar_select %p704, %s37, 1
        %s706 = smul.addr %s705, 6
        %s707 = smul.addr %s706, 8
        %s708 = scalar_lea.vmem %s0, %s707
        %p709 = scmp.lt.s32.totalorder %s37, 1
        %s710 = scalar_select %p709, %s37, 1
        %s711 = smul.addr %s710, 12
        %s712 = smul.addr %s711, 8
        %s713 = scalar_lea.vmem %s1, %s712
        %v714 = vld [vmem:[%s708] sm:$0xff]
        %v715 = vld [vmem:[%s708 + $0x8] sm:$0xff]
        %v716 = vld [vmem:[%s708 + $0x10] sm:$0xff]
        %v717 = vld [vmem:[%s708 + $0x18] sm:$0xff]
        %v718 = vld [vmem:[%s708 + $0x20] sm:$0xff]
        %v719 = vld [vmem:[%s708 + $0x28] sm:$0xff]
        %v720 = vld [vmem:[%s713] sm:$0xff]
        %v721 = vld [vmem:[%s713 + $0x8] sm:$0xff]
        %v722 = vld [vmem:[%s713 + $0x10] sm:$0xff]
        %v723 = vld [vmem:[%s713 + $0x18] sm:$0xff]
        %v724 = vld [vmem:[%s713 + $0x20] sm:$0xff]
        %v725 = vld [vmem:[%s713 + $0x28] sm:$0xff]
        %v726 = vld [vmem:[%s713 + $0x30] sm:$0xff]
        %v727 = vld [vmem:[%s713 + $0x38] sm:$0xff]
        %v728 = vld [vmem:[%s713 + $0x40] sm:$0xff]
        %v729 = vld [vmem:[%s713 + $0x48] sm:$0xff]
        %v730 = vld [vmem:[%s713 + $0x50] sm:$0xff]
        %v731 = vld [vmem:[%s713 + $0x58] sm:$0xff]
        %v732 = vld [vmem:[#allocation2] sm:$0xff]
        %v733 = vld [vmem:[#allocation2 + $0x8] sm:$0xff]
        %v734 = vld [vmem:[#allocation2 + $0x10] sm:$0xff]
        %v735 = vld [vmem:[#allocation2 + $0x18] sm:$0xff]
        %v736 = vld [vmem:[#allocation2 + $0x20] sm:$0xff]
        %v737 = vld [vmem:[#allocation2 + $0x28] sm:$0xff]
        %v738 = vld [vmem:[#allocation2 + $0x30] sm:$0xff]
        %v739 = vld [vmem:[#allocation2 + $0x38] sm:$0xff]
        %v740 = vld [vmem:[#allocation2 + $0x40] sm:$0xff]
        %v741 = vld [vmem:[#allocation2 + $0x48] sm:$0xff]
        %v742 = vld [vmem:[#allocation2 + $0x50] sm:$0xff]
        %v743 = vld [vmem:[#allocation2 + $0x58] sm:$0xff]
        %v744 = vld [vmem:[#allocation2 + $0x60] sm:$0xff]
        %v745 = vld [vmem:[#allocation2 + $0x68] sm:$0xff]
        %v746 = vld [vmem:[#allocation2 + $0x70] sm:$0xff]
        %v747 = vld [vmem:[#allocation2 + $0x78] sm:$0xff]
        %v748 = vld [vmem:[#allocation2 + $0x80] sm:$0xff]
        %v749 = vld [vmem:[#allocation2 + $0x88] sm:$0xff]
        %v750 = vld [vmem:[#allocation2 + $0x90] sm:$0xff]
        %v751 = vld [vmem:[#allocation2 + $0x98] sm:$0xff]
        %v752 = vld [vmem:[#allocation2 + $0xa0] sm:$0xff]
        %v753 = vld [vmem:[#allocation2 + $0xa8] sm:$0xff]
        %v754 = vld [vmem:[#allocation2 + $0xb0] sm:$0xff]
        %v755 = vld [vmem:[#allocation2 + $0xb8] sm:$0xff]
        %v756 = vld [vmem:[#allocation2 + $0xc0] sm:$0xff]
        %v757 = vld [vmem:[#allocation2 + $0xc8] sm:$0xff]
        %v758 = vld [vmem:[#allocation2 + $0xd0] sm:$0xff]
        %v759 = vld [vmem:[#allocation2 + $0xd8] sm:$0xff]
        %v760 = vld [vmem:[#allocation2 + $0xe0] sm:$0xff]
        %v761 = vld [vmem:[#allocation2 + $0xe8] sm:$0xff]
        %v762 = vld [vmem:[#allocation2 + $0xf0] sm:$0xff]
        %v763 = vld [vmem:[#allocation2 + $0xf8] sm:$0xff]
        %v764 = vld [vmem:[#allocation2 + $0x100] sm:$0xff]
        %v765 = vld [vmem:[#allocation2 + $0x108] sm:$0xff]
        %v766 = vld [vmem:[#allocation2 + $0x110] sm:$0xff]
        %v767 = vld [vmem:[#allocation2 + $0x118] sm:$0xff]
        %v768 = vld [vmem:[#allocation2 + $0x120] sm:$0xff]
        %v769 = vld [vmem:[#allocation2 + $0x128] sm:$0xff]
        %v770 = vld [vmem:[#allocation2 + $0x130] sm:$0xff]
        %v771 = vld [vmem:[#allocation2 + $0x138] sm:$0xff]
        %v772 = vld [vmem:[#allocation2 + $0x140] sm:$0xff]
        %v773 = vld [vmem:[#allocation2 + $0x148] sm:$0xff]
        %v774 = vld [vmem:[#allocation2 + $0x150] sm:$0xff]
        %v775 = vld [vmem:[#allocation2 + $0x158] sm:$0xff]
        %v776 = vld [vmem:[#allocation2 + $0x160] sm:$0xff]
        %v777 = vld [vmem:[#allocation2 + $0x168] sm:$0xff]
        %v778 = vld [vmem:[#allocation2 + $0x170] sm:$0xff]
        %v779 = vld [vmem:[#allocation2 + $0x178] sm:$0xff]
        %v780 = vld [vmem:[#allocation2 + $0x180] sm:$0xff]
        %v781 = vld [vmem:[#allocation2 + $0x188] sm:$0xff]
        %v782 = vld [vmem:[#allocation2 + $0x190] sm:$0xff]
        %v783 = vld [vmem:[#allocation2 + $0x198] sm:$0xff]
        %v784 = vld [vmem:[#allocation2 + $0x1a0] sm:$0xff]
        %v785 = vld [vmem:[#allocation2 + $0x1a8] sm:$0xff]
        %v786 = vld [vmem:[#allocation2 + $0x1b0] sm:$0xff]
        %v787 = vld [vmem:[#allocation2 + $0x1b8] sm:$0xff]
        %v788 = vld [vmem:[#allocation2 + $0x1c0] sm:$0xff]
        %v789 = vld [vmem:[#allocation2 + $0x1c8] sm:$0xff]
        %v790 = vld [vmem:[#allocation2 + $0x1d0] sm:$0xff]
        %v791 = vld [vmem:[#allocation2 + $0x1d8] sm:$0xff]
        %v792 = vld [vmem:[#allocation2 + $0x1e0] sm:$0xff]
        %v793 = vld [vmem:[#allocation2 + $0x1e8] sm:$0xff]
        %v794 = vld [vmem:[#allocation2 + $0x1f0] sm:$0xff]
        %v795 = vld [vmem:[#allocation2 + $0x1f8] sm:$0xff]
        %v796 = vld [vmem:[#allocation2 + $0x200] sm:$0xff]
        %v797 = vld [vmem:[#allocation2 + $0x208] sm:$0xff]
        %v798 = vld [vmem:[#allocation2 + $0x210] sm:$0xff]
        %v799 = vld [vmem:[#allocation2 + $0x218] sm:$0xff]
        %v800 = vld [vmem:[#allocation2 + $0x220] sm:$0xff]
        %v801 = vld [vmem:[#allocation2 + $0x228] sm:$0xff]
        %v802 = vld [vmem:[#allocation2 + $0x230] sm:$0xff]
        %v803 = vld [vmem:[#allocation2 + $0x238] sm:$0xff]
        %v804 = vld [vmem:[#allocation2 + $0x240] sm:$0xff]
        %v805 = vld [vmem:[#allocation2 + $0x248] sm:$0xff]
        %v806 = vld [vmem:[#allocation2 + $0x250] sm:$0xff]
        %v807 = vld [vmem:[#allocation2 + $0x258] sm:$0xff]
        %v808 = vld [vmem:[#allocation2 + $0x260] sm:$0xff]
        %v809 = vld [vmem:[#allocation2 + $0x268] sm:$0xff]
        %v810 = vld [vmem:[#allocation2 + $0x270] sm:$0xff]
        %v811 = vld [vmem:[#allocation2 + $0x278] sm:$0xff]
        %v812 = vld [vmem:[#allocation2 + $0x280] sm:$0xff]
        %v813 = vld [vmem:[#allocation2 + $0x288] sm:$0xff]
        %v814 = vld [vmem:[#allocation2 + $0x290] sm:$0xff]
        %v815 = vld [vmem:[#allocation2 + $0x298] sm:$0xff]
        %v816 = vld [vmem:[#allocation2 + $0x2a0] sm:$0xff]
        %v817 = vld [vmem:[#allocation2 + $0x2a8] sm:$0xff]
        %v818 = vld [vmem:[#allocation2 + $0x2b0] sm:$0xff]
        %v819 = vld [vmem:[#allocation2 + $0x2b8] sm:$0xff]
        %v820 = vld [vmem:[#allocation2 + $0x2c0] sm:$0xff]
        %v821 = vld [vmem:[#allocation2 + $0x2c8] sm:$0xff]
        %v822 = vld [vmem:[#allocation2 + $0x2d0] sm:$0xff]
        %v823 = vld [vmem:[#allocation2 + $0x2d8] sm:$0xff]
        %v824 = vld [vmem:[#allocation2 + $0x2e0] sm:$0xff]
        %v825 = vld [vmem:[#allocation2 + $0x2e8] sm:$0xff]
        %v826 = vld [vmem:[#allocation2 + $0x2f0] sm:$0xff]
        %v827 = vld [vmem:[#allocation2 + $0x2f8] sm:$0xff]
        %v828 = vld [vmem:[#allocation2 + $0x300] sm:$0xff]
        %v829 = vld [vmem:[#allocation2 + $0x308] sm:$0xff]
        %v830 = vld [vmem:[#allocation2 + $0x310] sm:$0xff]
        %v831 = vld [vmem:[#allocation2 + $0x318] sm:$0xff]
        %v832 = vld [vmem:[#allocation2 + $0x320] sm:$0xff]
        %v833 = vld [vmem:[#allocation2 + $0x328] sm:$0xff]
        %v834 = vld [vmem:[#allocation2 + $0x330] sm:$0xff]
        %v835 = vld [vmem:[#allocation2 + $0x338] sm:$0xff]
        %v836 = vld [vmem:[#allocation2 + $0x340] sm:$0xff]
        %v837 = vld [vmem:[#allocation2 + $0x348] sm:$0xff]
        %v838 = vld [vmem:[#allocation2 + $0x350] sm:$0xff]
        %v839 = vld [vmem:[#allocation2 + $0x358] sm:$0xff]
        %v840 = vld [vmem:[#allocation2 + $0x360] sm:$0xff]
        %v841 = vld [vmem:[#allocation2 + $0x368] sm:$0xff]
        %v842 = vld [vmem:[#allocation2 + $0x370] sm:$0xff]
        %v843 = vld [vmem:[#allocation2 + $0x378] sm:$0xff]
        %v844 = vld [vmem:[#allocation2 + $0x380] sm:$0xff]
        %v845 = vld [vmem:[#allocation2 + $0x388] sm:$0xff]
        %v846 = vld [vmem:[#allocation2 + $0x390] sm:$0xff]
        %v847 = vld [vmem:[#allocation2 + $0x398] sm:$0xff]
        %v848 = vld [vmem:[#allocation2 + $0x3a0] sm:$0xff]
        %v849 = vld [vmem:[#allocation2 + $0x3a8] sm:$0xff]
        %v850 = vld [vmem:[#allocation2 + $0x3b0] sm:$0xff]
        %v851 = vld [vmem:[#allocation2 + $0x3b8] sm:$0xff]
        %v852 = vld [vmem:[#allocation2 + $0x3c0] sm:$0xff]
        %v853 = vld [vmem:[#allocation2 + $0x3c8] sm:$0xff]
        %v854 = vld [vmem:[#allocation2 + $0x3d0] sm:$0xff]
        %v855 = vld [vmem:[#allocation2 + $0x3d8] sm:$0xff]
        %v856 = vld [vmem:[#allocation2 + $0x3e0] sm:$0xff]
        %v857 = vld [vmem:[#allocation2 + $0x3e8] sm:$0xff]
        %v858 = vld [vmem:[#allocation2 + $0x3f0] sm:$0xff]
        %v859 = vld [vmem:[#allocation2 + $0x3f8] sm:$0xff]
        %v860 = vld [vmem:[#allocation2 + $0x400] sm:$0xff]
        %v861 = vld [vmem:[#allocation2 + $0x408] sm:$0xff]
        %v862 = vld [vmem:[#allocation2 + $0x410] sm:$0xff]
        %v863 = vld [vmem:[#allocation2 + $0x418] sm:$0xff]
        %v864 = vld [vmem:[#allocation2 + $0x420] sm:$0xff]
        %v865 = vld [vmem:[#allocation2 + $0x428] sm:$0xff]
        %v866 = vld [vmem:[#allocation2 + $0x430] sm:$0xff]
        %v867 = vld [vmem:[#allocation2 + $0x438] sm:$0xff]
        %v868 = vld [vmem:[#allocation2 + $0x440] sm:$0xff]
        %v869 = vld [vmem:[#allocation2 + $0x448] sm:$0xff]
        %v870 = vld [vmem:[#allocation2 + $0x450] sm:$0xff]
        %v871 = vld [vmem:[#allocation2 + $0x458] sm:$0xff]
        %v872 = vld [vmem:[#allocation2 + $0x460] sm:$0xff]
        %v873 = vld [vmem:[#allocation2 + $0x468] sm:$0xff]
        %v874 = vld [vmem:[#allocation2 + $0x470] sm:$0xff]
        %v875 = vld [vmem:[#allocation2 + $0x478] sm:$0xff]
        %v876 = vld [vmem:[#allocation2 + $0x480] sm:$0xff]
        %v877 = vld [vmem:[#allocation2 + $0x488] sm:$0xff]
        %v878 = vld [vmem:[#allocation2 + $0x490] sm:$0xff]
        %v879 = vld [vmem:[#allocation2 + $0x498] sm:$0xff]
        %v880 = vld [vmem:[#allocation2 + $0x4a0] sm:$0xff]
        %v881 = vld [vmem:[#allocation2 + $0x4a8] sm:$0xff]
        %v882 = vld [vmem:[#allocation2 + $0x4b0] sm:$0xff]
        %v883 = vld [vmem:[#allocation2 + $0x4b8] sm:$0xff]
        %v884 = vld [vmem:[#allocation2 + $0x4c0] sm:$0xff]
        %v885 = vld [vmem:[#allocation2 + $0x4c8] sm:$0xff]
        %v886 = vld [vmem:[#allocation2 + $0x4d0] sm:$0xff]
        %v887 = vld [vmem:[#allocation2 + $0x4d8] sm:$0xff]
        %v888 = vld [vmem:[#allocation2 + $0x4e0] sm:$0xff]
        %v889 = vld [vmem:[#allocation2 + $0x4e8] sm:$0xff]
        %v890 = vld [vmem:[#allocation2 + $0x4f0] sm:$0xff]
        %v891 = vld [vmem:[#allocation2 + $0x4f8] sm:$0xff]
        %v892 = vld [vmem:[#allocation2 + $0x500] sm:$0xff]
        %v893 = vld [vmem:[#allocation2 + $0x508] sm:$0xff]
        %v894 = vld [vmem:[#allocation2 + $0x510] sm:$0xff]
        %v895 = vld [vmem:[#allocation2 + $0x518] sm:$0xff]
        %v896 = vld [vmem:[#allocation2 + $0x520] sm:$0xff]
        %v897 = vld [vmem:[#allocation2 + $0x528] sm:$0xff]
        %v898 = vld [vmem:[#allocation2 + $0x530] sm:$0xff]
        %v899 = vld [vmem:[#allocation2 + $0x538] sm:$0xff]
        %v900 = vld [vmem:[#allocation2 + $0x540] sm:$0xff]
        %v901 = vld [vmem:[#allocation2 + $0x548] sm:$0xff]
        %v902 = vld [vmem:[#allocation2 + $0x550] sm:$0xff]
        %v903 = vld [vmem:[#allocation2 + $0x558] sm:$0xff]
        %v904 = vld [vmem:[#allocation2 + $0x560] sm:$0xff]
        %v905 = vld [vmem:[#allocation2 + $0x568] sm:$0xff]
        %v906 = vld [vmem:[#allocation2 + $0x570] sm:$0xff]
        %v907 = vld [vmem:[#allocation2 + $0x578] sm:$0xff]
        %v908 = vld [vmem:[#allocation2 + $0x580] sm:$0xff]
        %v909 = vld [vmem:[#allocation2 + $0x588] sm:$0xff]
        %v910 = vld [vmem:[#allocation2 + $0x590] sm:$0xff]
        %v911 = vld [vmem:[#allocation2 + $0x598] sm:$0xff]
        %v912 = vld [vmem:[#allocation2 + $0x5a0] sm:$0xff]
        %v913 = vld [vmem:[#allocation2 + $0x5a8] sm:$0xff]
        %v914 = vld [vmem:[#allocation2 + $0x5b0] sm:$0xff]
        %v915 = vld [vmem:[#allocation2 + $0x5b8] sm:$0xff]
        %v916 = vld [vmem:[#allocation2 + $0x5c0] sm:$0xff]
        %v917 = vld [vmem:[#allocation2 + $0x5c8] sm:$0xff]
        %v918 = vld [vmem:[#allocation2 + $0x5d0] sm:$0xff]
        %v919 = vld [vmem:[#allocation2 + $0x5d8] sm:$0xff]
        %v920 = vld [vmem:[#allocation2 + $0x5e0] sm:$0xff]
        %v921 = vld [vmem:[#allocation2 + $0x5e8] sm:$0xff]
        %v922 = vld [vmem:[#allocation2 + $0x5f0] sm:$0xff]
        %v923 = vld [vmem:[#allocation2 + $0x5f8] sm:$0xff]
        %v924 = vld [vmem:[#allocation2 + $0x600] sm:$0xff]
        %v925 = vld [vmem:[#allocation2 + $0x608] sm:$0xff]
        %v926 = vld [vmem:[#allocation2 + $0x610] sm:$0xff]
        %v927 = vld [vmem:[#allocation2 + $0x618] sm:$0xff]
        %v928 = vld [vmem:[#allocation2 + $0x620] sm:$0xff]
        %v929 = vld [vmem:[#allocation2 + $0x628] sm:$0xff]
        %v930 = vld [vmem:[#allocation2 + $0x630] sm:$0xff]
        %v931 = vld [vmem:[#allocation2 + $0x638] sm:$0xff]
        %v932 = vld [vmem:[#allocation2 + $0x640] sm:$0xff]
        %v933 = vld [vmem:[#allocation2 + $0x648] sm:$0xff]
        %v934 = vld [vmem:[#allocation2 + $0x650] sm:$0xff]
        %v935 = vld [vmem:[#allocation2 + $0x658] sm:$0xff]
        %v936 = vld [vmem:[#allocation2 + $0x660] sm:$0xff]
        %v937 = vld [vmem:[#allocation2 + $0x668] sm:$0xff]
        %v938 = vld [vmem:[#allocation2 + $0x670] sm:$0xff]
        %v939 = vld [vmem:[#allocation2 + $0x678] sm:$0xff]
        %v940 = vld [vmem:[#allocation2 + $0x680] sm:$0xff]
        %v941 = vld [vmem:[#allocation2 + $0x688] sm:$0xff]
        %v942 = vld [vmem:[#allocation2 + $0x690] sm:$0xff]
        %v943 = vld [vmem:[#allocation2 + $0x698] sm:$0xff]
        %v944 = vld [vmem:[#allocation2 + $0x6a0] sm:$0xff]
        %v945 = vld [vmem:[#allocation2 + $0x6a8] sm:$0xff]
        %v946 = vld [vmem:[#allocation2 + $0x6b0] sm:$0xff]
        %v947 = vld [vmem:[#allocation2 + $0x6b8] sm:$0xff]
        %v948 = vld [vmem:[#allocation2 + $0x6c0] sm:$0xff]
        %v949 = vld [vmem:[#allocation2 + $0x6c8] sm:$0xff]
        %v950 = vld [vmem:[#allocation2 + $0x6d0] sm:$0xff]
        %v951 = vld [vmem:[#allocation2 + $0x6d8] sm:$0xff]
        %v952 = vld [vmem:[#allocation2 + $0x6e0] sm:$0xff]
        %v953 = vld [vmem:[#allocation2 + $0x6e8] sm:$0xff]
        %v954 = vld [vmem:[#allocation2 + $0x6f0] sm:$0xff]
        %v955 = vld [vmem:[#allocation2 + $0x6f8] sm:$0xff]
        %v956 = vld [vmem:[#allocation2 + $0x700] sm:$0xff]
        %v957 = vld [vmem:[#allocation2 + $0x708] sm:$0xff]
        %v958 = vld [vmem:[#allocation2 + $0x710] sm:$0xff]
        %v959 = vld [vmem:[#allocation2 + $0x718] sm:$0xff]
        %v960 = vld [vmem:[#allocation2 + $0x720] sm:$0xff]
        %v961 = vld [vmem:[#allocation2 + $0x728] sm:$0xff]
        %v962 = vld [vmem:[#allocation2 + $0x730] sm:$0xff]
        %v963 = vld [vmem:[#allocation2 + $0x738] sm:$0xff]
        %v964 = vld [vmem:[#allocation2 + $0x740] sm:$0xff]
        %v965 = vld [vmem:[#allocation2 + $0x748] sm:$0xff]
        %v966 = vld [vmem:[#allocation2 + $0x750] sm:$0xff]
        %v967 = vld [vmem:[#allocation2 + $0x758] sm:$0xff]
        %v968 = vld [vmem:[#allocation2 + $0x760] sm:$0xff]
        %v969 = vld [vmem:[#allocation2 + $0x768] sm:$0xff]
        %v970 = vld [vmem:[#allocation2 + $0x770] sm:$0xff]
        %v971 = vld [vmem:[#allocation2 + $0x778] sm:$0xff]
        %v972 = vld [vmem:[#allocation2 + $0x780] sm:$0xff]
        %v973 = vld [vmem:[#allocation2 + $0x788] sm:$0xff]
        %v974 = vld [vmem:[#allocation2 + $0x790] sm:$0xff]
        %v975 = vld [vmem:[#allocation2 + $0x798] sm:$0xff]
        %v976 = vld [vmem:[#allocation2 + $0x7a0] sm:$0xff]
        %v977 = vld [vmem:[#allocation2 + $0x7a8] sm:$0xff]
        %v978 = vld [vmem:[#allocation2 + $0x7b0] sm:$0xff]
        %v979 = vld [vmem:[#allocation2 + $0x7b8] sm:$0xff]
        %v980 = vld [vmem:[#allocation2 + $0x7c0] sm:$0xff]
        %v981 = vld [vmem:[#allocation2 + $0x7c8] sm:$0xff]
        %v982 = vld [vmem:[#allocation2 + $0x7d0] sm:$0xff]
        %v983 = vld [vmem:[#allocation2 + $0x7d8] sm:$0xff]
        %v984 = vld [vmem:[#allocation2 + $0x7e0] sm:$0xff]
        %v985 = vld [vmem:[#allocation2 + $0x7e8] sm:$0xff]
        %v986 = vld [vmem:[#allocation2 + $0x7f0] sm:$0xff]
        %v987 = vld [vmem:[#allocation2 + $0x7f8] sm:$0xff]
        %v988 = vld [vmem:[#allocation2 + $0x800] sm:$0xff]
        %v989 = vld [vmem:[#allocation2 + $0x808] sm:$0xff]
        %v990 = vld [vmem:[#allocation2 + $0x810] sm:$0xff]
        %v991 = vld [vmem:[#allocation2 + $0x818] sm:$0xff]
        %v992 = vld [vmem:[#allocation2 + $0x820] sm:$0xff]
        %v993 = vld [vmem:[#allocation2 + $0x828] sm:$0xff]
        %v994 = vld [vmem:[#allocation2 + $0x830] sm:$0xff]
        %v995 = vld [vmem:[#allocation2 + $0x838] sm:$0xff]
        %v996 = vld [vmem:[#allocation2 + $0x840] sm:$0xff]
        %v997 = vld [vmem:[#allocation2 + $0x848] sm:$0xff]
        %v998 = vld [vmem:[#allocation2 + $0x850] sm:$0xff]
        %v999 = vld [vmem:[#allocation2 + $0x858] sm:$0xff]
        %v1000 = vld [vmem:[#allocation2 + $0x860] sm:$0xff]
        %v1001 = vld [vmem:[#allocation2 + $0x868] sm:$0xff]
        %v1002 = vld [vmem:[#allocation2 + $0x870] sm:$0xff]
        %v1003 = vld [vmem:[#allocation2 + $0x878] sm:$0xff]
        %v1004 = vld [vmem:[#allocation2 + $0x880] sm:$0xff]
        %v1005 = vld [vmem:[#allocation2 + $0x888] sm:$0xff]
        %v1006 = vld [vmem:[#allocation2 + $0x890] sm:$0xff]
        %v1007 = vld [vmem:[#allocation2 + $0x898] sm:$0xff]
        %v1008 = vld [vmem:[#allocation2 + $0x8a0] sm:$0xff]
        %v1009 = vld [vmem:[#allocation2 + $0x8a8] sm:$0xff]
        %v1010 = vld [vmem:[#allocation2 + $0x8b0] sm:$0xff]
        %v1011 = vld [vmem:[#allocation2 + $0x8b8] sm:$0xff]
        %v1012 = vld [vmem:[#allocation2 + $0x8c0] sm:$0xff]
        %v1013 = vld [vmem:[#allocation2 + $0x8c8] sm:$0xff]
        %v1014 = vld [vmem:[#allocation2 + $0x8d0] sm:$0xff]
        %v1015 = vld [vmem:[#allocation2 + $0x8d8] sm:$0xff]
        %v1016 = vld [vmem:[#allocation2 + $0x8e0] sm:$0xff]
        %v1017 = vld [vmem:[#allocation2 + $0x8e8] sm:$0xff]
        %v1018 = vld [vmem:[#allocation2 + $0x8f0] sm:$0xff]
        %v1019 = vld [vmem:[#allocation2 + $0x8f8] sm:$0xff]
        %v1020 = vld [vmem:[#allocation2 + $0x900] sm:$0xff]
        %v1021 = vld [vmem:[#allocation2 + $0x908] sm:$0xff]
        %v1022 = vld [vmem:[#allocation2 + $0x910] sm:$0xff]
        %v1023 = vld [vmem:[#allocation2 + $0x918] sm:$0xff]
        %v1024 = vld [vmem:[#allocation2 + $0x920] sm:$0xff]
        %v1025 = vld [vmem:[#allocation2 + $0x928] sm:$0xff]
        %v1026 = vld [vmem:[#allocation2 + $0x930] sm:$0xff]
        %v1027 = vld [vmem:[#allocation2 + $0x938] sm:$0xff]
        %v1028 = vld [vmem:[#allocation2 + $0x940] sm:$0xff]
        %v1029 = vld [vmem:[#allocation2 + $0x948] sm:$0xff]
        %v1030 = vld [vmem:[#allocation2 + $0x950] sm:$0xff]
        %v1031 = vld [vmem:[#allocation2 + $0x958] sm:$0xff]
        %v1032 = vld [vmem:[#allocation2 + $0x960] sm:$0xff]
        %v1033 = vld [vmem:[#allocation2 + $0x968] sm:$0xff]
        %v1034 = vld [vmem:[#allocation2 + $0x970] sm:$0xff]
        %v1035 = vld [vmem:[#allocation2 + $0x978] sm:$0xff]
        %v1036 = vld [vmem:[#allocation2 + $0x980] sm:$0xff]
        %v1037 = vld [vmem:[#allocation2 + $0x988] sm:$0xff]
        %v1038 = vld [vmem:[#allocation2 + $0x990] sm:$0xff]
        %v1039 = vld [vmem:[#allocation2 + $0x998] sm:$0xff]
        %v1040 = vld [vmem:[#allocation2 + $0x9a0] sm:$0xff]
        %v1041 = vld [vmem:[#allocation2 + $0x9a8] sm:$0xff]
        %v1042 = vld [vmem:[#allocation2 + $0x9b0] sm:$0xff]
        %v1043 = vld [vmem:[#allocation2 + $0x9b8] sm:$0xff]
        %v1044 = vld [vmem:[#allocation2 + $0x9c0] sm:$0xff]
        %v1045 = vld [vmem:[#allocation2 + $0x9c8] sm:$0xff]
        %v1046 = vld [vmem:[#allocation2 + $0x9d0] sm:$0xff]
        %v1047 = vld [vmem:[#allocation2 + $0x9d8] sm:$0xff]
        %v1048 = vld [vmem:[#allocation2 + $0x9e0] sm:$0xff]
        %v1049 = vld [vmem:[#allocation2 + $0x9e8] sm:$0xff]
        %v1050 = vld [vmem:[#allocation2 + $0x9f0] sm:$0xff]
        %v1051 = vld [vmem:[#allocation2 + $0x9f8] sm:$0xff]
        %v1052 = vld [vmem:[#allocation2 + $0xa00] sm:$0xff]
        %v1053 = vld [vmem:[#allocation2 + $0xa08] sm:$0xff]
        %v1054 = vld [vmem:[#allocation2 + $0xa10] sm:$0xff]
        %v1055 = vld [vmem:[#allocation2 + $0xa18] sm:$0xff]
        %v1056 = vld [vmem:[#allocation2 + $0xa20] sm:$0xff]
        %v1057 = vld [vmem:[#allocation2 + $0xa28] sm:$0xff]
        %v1058 = vld [vmem:[#allocation2 + $0xa30] sm:$0xff]
        %v1059 = vld [vmem:[#allocation2 + $0xa38] sm:$0xff]
        %v1060 = vld [vmem:[#allocation2 + $0xa40] sm:$0xff]
        %v1061 = vld [vmem:[#allocation2 + $0xa48] sm:$0xff]
        %v1062 = vld [vmem:[#allocation2 + $0xa50] sm:$0xff]
        %v1063 = vld [vmem:[#allocation2 + $0xa58] sm:$0xff]
        %v1064 = vld [vmem:[#allocation2 + $0xa60] sm:$0xff]
        %v1065 = vld [vmem:[#allocation2 + $0xa68] sm:$0xff]
        %v1066 = vld [vmem:[#allocation2 + $0xa70] sm:$0xff]
        %v1067 = vld [vmem:[#allocation2 + $0xa78] sm:$0xff]
        %v1068 = vld [vmem:[#allocation2 + $0xa80] sm:$0xff]
        %v1069 = vld [vmem:[#allocation2 + $0xa88] sm:$0xff]
        %v1070 = vld [vmem:[#allocation2 + $0xa90] sm:$0xff]
        %v1071 = vld [vmem:[#allocation2 + $0xa98] sm:$0xff]
        %v1072 = vld [vmem:[#allocation2 + $0xaa0] sm:$0xff]
        %v1073 = vld [vmem:[#allocation2 + $0xaa8] sm:$0xff]
        %v1074 = vld [vmem:[#allocation2 + $0xab0] sm:$0xff]
        %v1075 = vld [vmem:[#allocation2 + $0xab8] sm:$0xff]
        %v1076 = vld [vmem:[#allocation2 + $0xac0] sm:$0xff]
        %v1077 = vld [vmem:[#allocation2 + $0xac8] sm:$0xff]
        %v1078 = vld [vmem:[#allocation2 + $0xad0] sm:$0xff]
        %v1079 = vld [vmem:[#allocation2 + $0xad8] sm:$0xff]
        %v1080 = vld [vmem:[#allocation2 + $0xae0] sm:$0xff]
        %v1081 = vld [vmem:[#allocation2 + $0xae8] sm:$0xff]
        %v1082 = vld [vmem:[#allocation2 + $0xaf0] sm:$0xff]
        %v1083 = vld [vmem:[#allocation2 + $0xaf8] sm:$0xff]
        %v1084 = vld [vmem:[#allocation2 + $0xb00] sm:$0xff]
        %v1085 = vld [vmem:[#allocation2 + $0xb08] sm:$0xff]
        %v1086 = vld [vmem:[#allocation2 + $0xb10] sm:$0xff]
        %v1087 = vld [vmem:[#allocation2 + $0xb18] sm:$0xff]
        %v1088 = vld [vmem:[#allocation2 + $0xb20] sm:$0xff]
        %v1089 = vld [vmem:[#allocation2 + $0xb28] sm:$0xff]
        %v1090 = vld [vmem:[#allocation2 + $0xb30] sm:$0xff]
        %v1091 = vld [vmem:[#allocation2 + $0xb38] sm:$0xff]
        %v1092 = vld [vmem:[#allocation2 + $0xb40] sm:$0xff]
        %v1093 = vld [vmem:[#allocation2 + $0xb48] sm:$0xff]
        %v1094 = vld [vmem:[#allocation2 + $0xb50] sm:$0xff]
        %v1095 = vld [vmem:[#allocation2 + $0xb58] sm:$0xff]
        %v1096 = vld [vmem:[#allocation2 + $0xb60] sm:$0xff]
        %v1097 = vld [vmem:[#allocation2 + $0xb68] sm:$0xff]
        %v1098 = vld [vmem:[#allocation2 + $0xb70] sm:$0xff]
        %v1099 = vld [vmem:[#allocation2 + $0xb78] sm:$0xff]
        %v1100 = vld [vmem:[#allocation2 + $0xb80] sm:$0xff]
        %v1101 = vld [vmem:[#allocation2 + $0xb88] sm:$0xff]
        %v1102 = vld [vmem:[#allocation2 + $0xb90] sm:$0xff]
        %v1103 = vld [vmem:[#allocation2 + $0xb98] sm:$0xff]
        %v1104 = vld [vmem:[#allocation2 + $0xba0] sm:$0xff]
        %v1105 = vld [vmem:[#allocation2 + $0xba8] sm:$0xff]
        %v1106 = vld [vmem:[#allocation2 + $0xbb0] sm:$0xff]
        %v1107 = vld [vmem:[#allocation2 + $0xbb8] sm:$0xff]
        %v1108 = vld [vmem:[#allocation2 + $0xbc0] sm:$0xff]
        %v1109 = vld [vmem:[#allocation2 + $0xbc8] sm:$0xff]
        %v1110 = vld [vmem:[#allocation2 + $0xbd0] sm:$0xff]
        %v1111 = vld [vmem:[#allocation2 + $0xbd8] sm:$0xff]
        %v1112 = vld [vmem:[#allocation2 + $0xbe0] sm:$0xff]
        %v1113 = vld [vmem:[#allocation2 + $0xbe8] sm:$0xff]
        %v1114 = vld [vmem:[#allocation2 + $0xbf0] sm:$0xff]
        %v1115 = vld [vmem:[#allocation2 + $0xbf8] sm:$0xff]
        %v1116 = vld [vmem:[#allocation2 + $0xc00] sm:$0xff]
        %v1117 = vld [vmem:[#allocation2 + $0xc08] sm:$0xff]
        %v1118 = vld [vmem:[#allocation2 + $0xc10] sm:$0xff]
        %v1119 = vld [vmem:[#allocation2 + $0xc18] sm:$0xff]
        %v1120 = vld [vmem:[#allocation2 + $0xc20] sm:$0xff]
        %v1121 = vld [vmem:[#allocation2 + $0xc28] sm:$0xff]
        %v1122 = vld [vmem:[#allocation2 + $0xc30] sm:$0xff]
        %v1123 = vld [vmem:[#allocation2 + $0xc38] sm:$0xff]
        %v1124 = vld [vmem:[#allocation2 + $0xc40] sm:$0xff]
        %v1125 = vld [vmem:[#allocation2 + $0xc48] sm:$0xff]
        %v1126 = vld [vmem:[#allocation2 + $0xc50] sm:$0xff]
        %v1127 = vld [vmem:[#allocation2 + $0xc58] sm:$0xff]
        %v1128 = vld [vmem:[#allocation2 + $0xc60] sm:$0xff]
        %v1129 = vld [vmem:[#allocation2 + $0xc68] sm:$0xff]
        %v1130 = vld [vmem:[#allocation2 + $0xc70] sm:$0xff]
        %v1131 = vld [vmem:[#allocation2 + $0xc78] sm:$0xff]
        %v1132 = vld [vmem:[#allocation2 + $0xc80] sm:$0xff]
        %v1133 = vld [vmem:[#allocation2 + $0xc88] sm:$0xff]
        %v1134 = vld [vmem:[#allocation2 + $0xc90] sm:$0xff]
        %v1135 = vld [vmem:[#allocation2 + $0xc98] sm:$0xff]
        %v1136 = vld [vmem:[#allocation2 + $0xca0] sm:$0xff]
        %v1137 = vld [vmem:[#allocation2 + $0xca8] sm:$0xff]
        %v1138 = vld [vmem:[#allocation2 + $0xcb0] sm:$0xff]
        %v1139 = vld [vmem:[#allocation2 + $0xcb8] sm:$0xff]
        %v1140 = vld [vmem:[#allocation2 + $0xcc0] sm:$0xff]
        %v1141 = vld [vmem:[#allocation2 + $0xcc8] sm:$0xff]
        %v1142 = vld [vmem:[#allocation2 + $0xcd0] sm:$0xff]
        %v1143 = vld [vmem:[#allocation2 + $0xcd8] sm:$0xff]
        %v1144 = vld [vmem:[#allocation2 + $0xce0] sm:$0xff]
        %v1145 = vld [vmem:[#allocation2 + $0xce8] sm:$0xff]
        %v1146 = vld [vmem:[#allocation2 + $0xcf0] sm:$0xff]
        %v1147 = vld [vmem:[#allocation2 + $0xcf8] sm:$0xff]
        %v1148 = vld [vmem:[#allocation2 + $0xd00] sm:$0xff]
        %v1149 = vld [vmem:[#allocation2 + $0xd08] sm:$0xff]
        %v1150 = vld [vmem:[#allocation2 + $0xd10] sm:$0xff]
        %v1151 = vld [vmem:[#allocation2 + $0xd18] sm:$0xff]
        %v1152 = vld [vmem:[#allocation2 + $0xd20] sm:$0xff]
        %v1153 = vld [vmem:[#allocation2 + $0xd28] sm:$0xff]
        %v1154 = vld [vmem:[#allocation2 + $0xd30] sm:$0xff]
        %v1155 = vld [vmem:[#allocation2 + $0xd38] sm:$0xff]
        %v1156 = vld [vmem:[#allocation2 + $0xd40] sm:$0xff]
        %v1157 = vld [vmem:[#allocation2 + $0xd48] sm:$0xff]
        %v1158 = vld [vmem:[#allocation2 + $0xd50] sm:$0xff]
        %v1159 = vld [vmem:[#allocation2 + $0xd58] sm:$0xff]
        %v1160 = vld [vmem:[#allocation2 + $0xd60] sm:$0xff]
        %v1161 = vld [vmem:[#allocation2 + $0xd68] sm:$0xff]
        %v1162 = vld [vmem:[#allocation2 + $0xd70] sm:$0xff]
        %v1163 = vld [vmem:[#allocation2 + $0xd78] sm:$0xff]
        %v1164 = vld [vmem:[#allocation2 + $0xd80] sm:$0xff]
        %v1165 = vld [vmem:[#allocation2 + $0xd88] sm:$0xff]
        %v1166 = vld [vmem:[#allocation2 + $0xd90] sm:$0xff]
        %v1167 = vld [vmem:[#allocation2 + $0xd98] sm:$0xff]
        %v1168 = vld [vmem:[#allocation2 + $0xda0] sm:$0xff]
        %v1169 = vld [vmem:[#allocation2 + $0xda8] sm:$0xff]
        %v1170 = vld [vmem:[#allocation2 + $0xdb0] sm:$0xff]
        %v1171 = vld [vmem:[#allocation2 + $0xdb8] sm:$0xff]
        %v1172 = vld [vmem:[#allocation2 + $0xdc0] sm:$0xff]
        %v1173 = vld [vmem:[#allocation2 + $0xdc8] sm:$0xff]
        %v1174 = vld [vmem:[#allocation2 + $0xdd0] sm:$0xff]
        %v1175 = vld [vmem:[#allocation2 + $0xdd8] sm:$0xff]
        %v1176 = vld [vmem:[#allocation2 + $0xde0] sm:$0xff]
        %v1177 = vld [vmem:[#allocation2 + $0xde8] sm:$0xff]
        %v1178 = vld [vmem:[#allocation2 + $0xdf0] sm:$0xff]
        %v1179 = vld [vmem:[#allocation2 + $0xdf8] sm:$0xff]
        %v1180 = vld [vmem:[#allocation2 + $0xe00] sm:$0xff]
        %v1181 = vld [vmem:[#allocation2 + $0xe08] sm:$0xff]
        %v1182 = vld [vmem:[#allocation2 + $0xe10] sm:$0xff]
        %v1183 = vld [vmem:[#allocation2 + $0xe18] sm:$0xff]
        %v1184 = vld [vmem:[#allocation2 + $0xe20] sm:$0xff]
        %v1185 = vld [vmem:[#allocation2 + $0xe28] sm:$0xff]
        %v1186 = vld [vmem:[#allocation2 + $0xe30] sm:$0xff]
        %v1187 = vld [vmem:[#allocation2 + $0xe38] sm:$0xff]
        %v1188 = vld [vmem:[#allocation2 + $0xe40] sm:$0xff]
        %v1189 = vld [vmem:[#allocation2 + $0xe48] sm:$0xff]
        %v1190 = vld [vmem:[#allocation2 + $0xe50] sm:$0xff]
        %v1191 = vld [vmem:[#allocation2 + $0xe58] sm:$0xff]
        %v1192 = vld [vmem:[#allocation2 + $0xe60] sm:$0xff]
        %v1193 = vld [vmem:[#allocation2 + $0xe68] sm:$0xff]
        %v1194 = vld [vmem:[#allocation2 + $0xe70] sm:$0xff]
        %v1195 = vld [vmem:[#allocation2 + $0xe78] sm:$0xff]
        %v1196 = vld [vmem:[#allocation2 + $0xe80] sm:$0xff]
        %v1197 = vld [vmem:[#allocation2 + $0xe88] sm:$0xff]
        %v1198 = vld [vmem:[#allocation2 + $0xe90] sm:$0xff]
        %v1199 = vld [vmem:[#allocation2 + $0xe98] sm:$0xff]
        %v1200 = vld [vmem:[#allocation2 + $0xea0] sm:$0xff]
        %v1201 = vld [vmem:[#allocation2 + $0xea8] sm:$0xff]
        %v1202 = vld [vmem:[#allocation2 + $0xeb0] sm:$0xff]
        %v1203 = vld [vmem:[#allocation2 + $0xeb8] sm:$0xff]
        %v1204 = vld [vmem:[#allocation2 + $0xec0] sm:$0xff]
        %v1205 = vld [vmem:[#allocation2 + $0xec8] sm:$0xff]
        %v1206 = vld [vmem:[#allocation2 + $0xed0] sm:$0xff]
        %v1207 = vld [vmem:[#allocation2 + $0xed8] sm:$0xff]
        %v1208 = vld [vmem:[#allocation2 + $0xee0] sm:$0xff]
        %v1209 = vld [vmem:[#allocation2 + $0xee8] sm:$0xff]
        %v1210 = vld [vmem:[#allocation2 + $0xef0] sm:$0xff]
        %v1211 = vld [vmem:[#allocation2 + $0xef8] sm:$0xff]
        %v1212 = vld [vmem:[#allocation2 + $0xf00] sm:$0xff]
        %v1213 = vld [vmem:[#allocation2 + $0xf08] sm:$0xff]
        %v1214 = vld [vmem:[#allocation2 + $0xf10] sm:$0xff]
        %v1215 = vld [vmem:[#allocation2 + $0xf18] sm:$0xff]
        %v1216 = vld [vmem:[#allocation2 + $0xf20] sm:$0xff]
        %v1217 = vld [vmem:[#allocation2 + $0xf28] sm:$0xff]
        %v1218 = vld [vmem:[#allocation2 + $0xf30] sm:$0xff]
        %v1219 = vld [vmem:[#allocation2 + $0xf38] sm:$0xff]
        %v1220 = vld [vmem:[#allocation2 + $0xf40] sm:$0xff]
        %v1221 = vld [vmem:[#allocation2 + $0xf48] sm:$0xff]
        %v1222 = vld [vmem:[#allocation2 + $0xf50] sm:$0xff]
        %v1223 = vld [vmem:[#allocation2 + $0xf58] sm:$0xff]
        %v1224 = vld [vmem:[#allocation2 + $0xf60] sm:$0xff]
        %v1225 = vld [vmem:[#allocation2 + $0xf68] sm:$0xff]
        %v1226 = vld [vmem:[#allocation2 + $0xf70] sm:$0xff]
        %v1227 = vld [vmem:[#allocation2 + $0xf78] sm:$0xff]
        %v1228 = vld [vmem:[#allocation2 + $0xf80] sm:$0xff]
        %v1229 = vld [vmem:[#allocation2 + $0xf88] sm:$0xff]
        %v1230 = vld [vmem:[#allocation2 + $0xf90] sm:$0xff]
        %v1231 = vld [vmem:[#allocation2 + $0xf98] sm:$0xff]
        %v1232 = vld [vmem:[#allocation2 + $0xfa0] sm:$0xff]
        %v1233 = vld [vmem:[#allocation2 + $0xfa8] sm:$0xff]
        %v1234 = vld [vmem:[#allocation2 + $0xfb0] sm:$0xff]
        %v1235 = vld [vmem:[#allocation2 + $0xfb8] sm:$0xff]
        %v1236 = vld [vmem:[#allocation2 + $0xfc0] sm:$0xff]
        %v1237 = vld [vmem:[#allocation2 + $0xfc8] sm:$0xff]
        %v1238 = vld [vmem:[#allocation2 + $0xfd0] sm:$0xff]
        %v1239 = vld [vmem:[#allocation2 + $0xfd8] sm:$0xff]
        %v1240 = vld [vmem:[#allocation2 + $0xfe0] sm:$0xff]
        %v1241 = vld [vmem:[#allocation2 + $0xfe8] sm:$0xff]
        %v1242 = vld [vmem:[#allocation2 + $0xff0] sm:$0xff]
        %v1243 = vld [vmem:[#allocation2 + $0xff8] sm:$0xff]
        %v1244 = vld [vmem:[#allocation2 + $0x1000] sm:$0xff]
        %v1245 = vld [vmem:[#allocation2 + $0x1008] sm:$0xff]
        %v1246 = vld [vmem:[#allocation2 + $0x1010] sm:$0xff]
        %v1247 = vld [vmem:[#allocation2 + $0x1018] sm:$0xff]
        %v1248 = vld [vmem:[#allocation2 + $0x1020] sm:$0xff]
        %v1249 = vld [vmem:[#allocation2 + $0x1028] sm:$0xff]
        %v1250 = vld [vmem:[#allocation2 + $0x1030] sm:$0xff]
        %v1251 = vld [vmem:[#allocation2 + $0x1038] sm:$0xff]
        %v1252 = vld [vmem:[#allocation2 + $0x1040] sm:$0xff]
        %v1253 = vld [vmem:[#allocation2 + $0x1048] sm:$0xff]
        %v1254 = vld [vmem:[#allocation2 + $0x1050] sm:$0xff]
        %v1255 = vld [vmem:[#allocation2 + $0x1058] sm:$0xff]
        %v1256 = vld [vmem:[#allocation2 + $0x1060] sm:$0xff]
        %v1257 = vld [vmem:[#allocation2 + $0x1068] sm:$0xff]
        %v1258 = vld [vmem:[#allocation2 + $0x1070] sm:$0xff]
        %v1259 = vld [vmem:[#allocation2 + $0x1078] sm:$0xff]
        %v1260 = vld [vmem:[#allocation2 + $0x1080] sm:$0xff]
        %v1261 = vld [vmem:[#allocation2 + $0x1088] sm:$0xff]
        %v1262 = vld [vmem:[#allocation2 + $0x1090] sm:$0xff]
        %v1263 = vld [vmem:[#allocation2 + $0x1098] sm:$0xff]
        %v1264 = vld [vmem:[#allocation2 + $0x10a0] sm:$0xff]
        %v1265 = vld [vmem:[#allocation2 + $0x10a8] sm:$0xff]
        %v1266 = vld [vmem:[#allocation2 + $0x10b0] sm:$0xff]
        %v1267 = vld [vmem:[#allocation2 + $0x10b8] sm:$0xff]
        %v1268 = vld [vmem:[#allocation2 + $0x10c0] sm:$0xff]
        %v1269 = vld [vmem:[#allocation2 + $0x10c8] sm:$0xff]
        %v1270 = vld [vmem:[#allocation2 + $0x10d0] sm:$0xff]
        %v1271 = vld [vmem:[#allocation2 + $0x10d8] sm:$0xff]
        %v1272 = vld [vmem:[#allocation2 + $0x10e0] sm:$0xff]
        %v1273 = vld [vmem:[#allocation2 + $0x10e8] sm:$0xff]
        %v1274 = vld [vmem:[#allocation2 + $0x10f0] sm:$0xff]
        %v1275 = vld [vmem:[#allocation2 + $0x10f8] sm:$0xff]
        %v1276 = vld [vmem:[#allocation2 + $0x1100] sm:$0xff]
        %v1277 = vld [vmem:[#allocation2 + $0x1108] sm:$0xff]
        %v1278 = vld [vmem:[#allocation2 + $0x1110] sm:$0xff]
        %v1279 = vld [vmem:[#allocation2 + $0x1118] sm:$0xff]
        %v1280 = vld [vmem:[#allocation2 + $0x1120] sm:$0xff]
        %v1281 = vld [vmem:[#allocation2 + $0x1128] sm:$0xff]
        %v1282 = vld [vmem:[#allocation2 + $0x1130] sm:$0xff]
        %v1283 = vld [vmem:[#allocation2 + $0x1138] sm:$0xff]
        %v1284 = vld [vmem:[#allocation2 + $0x1140] sm:$0xff]
        %v1285 = vld [vmem:[#allocation2 + $0x1148] sm:$0xff]
        %v1286 = vld [vmem:[#allocation2 + $0x1150] sm:$0xff]
        %v1287 = vld [vmem:[#allocation2 + $0x1158] sm:$0xff]
        %v1288 = vld [vmem:[#allocation2 + $0x1160] sm:$0xff]
        %v1289 = vld [vmem:[#allocation2 + $0x1168] sm:$0xff]
        %v1290 = vld [vmem:[#allocation2 + $0x1170] sm:$0xff]
        %v1291 = vld [vmem:[#allocation2 + $0x1178] sm:$0xff]
        %v1292 = vld [vmem:[#allocation2 + $0x1180] sm:$0xff]
        %v1293 = vld [vmem:[#allocation2 + $0x1188] sm:$0xff]
        %v1294 = vld [vmem:[#allocation2 + $0x1190] sm:$0xff]
        %v1295 = vld [vmem:[#allocation2 + $0x1198] sm:$0xff]
        %v1296 = vld [vmem:[#allocation2 + $0x11a0] sm:$0xff]
        %v1297 = vld [vmem:[#allocation2 + $0x11a8] sm:$0xff]
        %v1298 = vld [vmem:[#allocation2 + $0x11b0] sm:$0xff]
        %v1299 = vld [vmem:[#allocation2 + $0x11b8] sm:$0xff]
        %v1300 = vld [vmem:[#allocation2 + $0x11c0] sm:$0xff]
        %v1301 = vld [vmem:[#allocation2 + $0x11c8] sm:$0xff]
        %v1302 = vld [vmem:[#allocation2 + $0x11d0] sm:$0xff]
        %v1303 = vld [vmem:[#allocation2 + $0x11d8] sm:$0xff]
        %v1304 = vld [vmem:[#allocation2 + $0x11e0] sm:$0xff]
        %v1305 = vld [vmem:[#allocation2 + $0x11e8] sm:$0xff]
        %v1306 = vld [vmem:[#allocation2 + $0x11f0] sm:$0xff]
        %v1307 = vld [vmem:[#allocation2 + $0x11f8] sm:$0xff]
        %v1308 = vld [vmem:[#allocation5] sm:$0x3f]
        %v1310 = vlaneseq
        %v1311 = vshrl.u32 %v1310, 7
        %v1312 = vsub.s32 0, %v1311
        %v1313 = vrot.slane %v1308, %v1312
        %v1314 = vlaneseq
        %v1315 = vshrl.u32 %v1314, 7
        %v1316 = vsub.s32 1, %v1315
        %v1317 = vrot.slane %v1308, %v1316
        %v1318 = vlaneseq
        %v1319 = vshrl.u32 %v1318, 7
        %v1320 = vsub.s32 2, %v1319
        %v1321 = vrot.slane %v1308, %v1320
        %v1322 = vlaneseq
        %v1323 = vshrl.u32 %v1322, 7
        %v1324 = vsub.s32 3, %v1323
        %v1325 = vrot.slane %v1308, %v1324
        %v1326 = vlaneseq
        %v1327 = vshrl.u32 %v1326, 7
        %v1328 = vsub.s32 4, %v1327
        %v1329 = vrot.slane %v1308, %v1328
        %v1330 = vlaneseq
        %v1331 = vshrl.u32 %v1330, 7
        %v1332 = vsub.s32 5, %v1331
        %v1333 = vrot.slane %v1308, %v1332
        %1340 = vmatprep.subr.mxu0 %v733
        %1341 = vmatpush1.msra.mxu0 %v732
        %1342 = vmatprep.subr.mxu0 %v739
        %1343 = vmatpush1.msra.mxu0 %v738
        %1344 = vmatprep.subr.mxu0 %v745
        %1345 = vmatpush1.msra.mxu0 %v744
        %1346 = vmatprep.subr.mxu0 %v751
        %1347 = vmatpush1.msra.mxu0 %v750
        %1348 = vmatprep.subr.mxu0 %v757
        %1349 = vmatpush1.msra.mxu0 %v756
        %1350 = vmatprep.subr.mxu0 %v763
        %1351 = vmatpush1.msra.mxu0 %v762
        %1352 = vmatprep.subr.mxu0 %v769
        %1353 = vmatpush1.msra.mxu0 %v768
        %1354 = vmatprep.subr.mxu0 %v775
        %1355 = vmatpush1.msra.mxu0 %v774
        %1356 = vmatprep.subr.mxu0 %v781
        %1357 = vmatpush1.msra.mxu0 %v780
        %1358 = vmatprep.subr.mxu0 %v787
        %1359 = vmatpush1.msra.mxu0 %v786
        %1360 = vmatprep.subr.mxu0 %v793
        %1361 = vmatpush1.msra.mxu0 %v792
        %1362 = vmatprep.subr.mxu0 %v799
        %1363 = vmatpush1.msra.mxu0 %v798
        %1364 = vmatprep.subr.mxu0 %v805
        %1365 = vmatpush1.msra.mxu0 %v804
        %1366 = vmatprep.subr.mxu0 %v811
        %1367 = vmatpush1.msra.mxu0 %v810
        %1368 = vmatprep.subr.mxu0 %v817
        %1369 = vmatpush1.msra.mxu0 %v816
        %1370 = vmatprep.subr.mxu0 %v823
        %1371 = vmatpush1.msra.mxu0 %v822
        %1372 = vmatprep.subr.mxu0 %v829
        %1373 = vmatpush1.msra.mxu0 %v828
        %1374 = vmatprep.subr.mxu0 %v835
        %1375 = vmatpush1.msra.mxu0 %v834
        %1376 = vmatprep.subr.mxu0 %v841
        %1377 = vmatpush1.msra.mxu0 %v840
        %1378 = vmatprep.subr.mxu0 %v847
        %1379 = vmatpush1.msra.mxu0 %v846
        %1380 = vmatprep.subr.mxu0 %v853
        %1381 = vmatpush1.msra.mxu0 %v852
        %1382 = vmatprep.subr.mxu0 %v859
        %1383 = vmatpush1.msra.mxu0 %v858
        %1384 = vmatprep.subr.mxu0 %v865
        %1385 = vmatpush1.msra.mxu0 %v864
        %1386 = vmatprep.subr.mxu0 %v871
        %1387 = vmatpush1.msra.mxu0 %v870
        %1388 = vmatprep.subr.mxu0 %v877
        %1389 = vmatpush1.msra.mxu0 %v876
        %1390 = vmatprep.subr.mxu0 %v883
        %1391 = vmatpush1.msra.mxu0 %v882
        %1392 = vmatprep.subr.mxu0 %v889
        %1393 = vmatpush1.msra.mxu0 %v888
        %1394 = vmatprep.subr.mxu0 %v895
        %1395 = vmatpush1.msra.mxu0 %v894
        %1396 = vmatprep.subr.mxu0 %v901
        %1397 = vmatpush1.msra.mxu0 %v900
        %1398 = vmatprep.subr.mxu0 %v907
        %1399 = vmatpush1.msra.mxu0 %v906
        %1400 = vmatprep.subr.mxu0 %v913
        %1401 = vmatpush1.msra.mxu0 %v912
        %1402 = vmatprep.subr.mxu0 %v919
        %1403 = vmatpush1.msra.mxu0 %v918
        %1404 = vmatprep.mubr.f32.mxu0 %v715
        %1405 = vmatmul.mubr.f32.gmra.mrb[0].mxu0 %v714
        %v1406 = vpop.f32.mrb[0].mxu0
        %v1407 = vadd.f32 %v1313, %v1406
        %v1408 = vpop.f32.mrb[0].mxu0
        %v1409 = vadd.f32 %v1317, %v1408
        %1410 = vdwg.mxu0
        %1411 = vmatprep.subr.mxu0 %v925
        %1412 = vmatpush1.msra.mxu0 %v924
        %1413 = vmatprep.subr.mxu0 %v931
        %1414 = vmatpush1.msra.mxu0 %v930
        %1415 = vmatprep.subr.mxu0 %v937
        %1416 = vmatpush1.msra.mxu0 %v936
        %1417 = vmatprep.subr.mxu0 %v943
        %1418 = vmatpush1.msra.mxu0 %v942
        %1419 = vmatprep.subr.mxu0 %v949
        %1420 = vmatpush1.msra.mxu0 %v948
        %1421 = vmatprep.subr.mxu0 %v955
        %1422 = vmatpush1.msra.mxu0 %v954
        %1423 = vmatprep.subr.mxu0 %v961
        %1424 = vmatpush1.msra.mxu0 %v960
        %1425 = vmatprep.subr.mxu0 %v967
        %1426 = vmatpush1.msra.mxu0 %v966
        %1427 = vmatprep.subr.mxu0 %v973
        %1428 = vmatpush1.msra.mxu0 %v972
        %1429 = vmatprep.subr.mxu0 %v979
        %1430 = vmatpush1.msra.mxu0 %v978
        %1431 = vmatprep.subr.mxu0 %v985
        %1432 = vmatpush1.msra.mxu0 %v984
        %1433 = vmatprep.subr.mxu0 %v991
        %1434 = vmatpush1.msra.mxu0 %v990
        %1435 = vmatprep.subr.mxu0 %v997
        %1436 = vmatpush1.msra.mxu0 %v996
        %1437 = vmatprep.subr.mxu0 %v1003
        %1438 = vmatpush1.msra.mxu0 %v1002
        %1439 = vmatprep.subr.mxu0 %v1009
        %1440 = vmatpush1.msra.mxu0 %v1008
        %1441 = vmatprep.subr.mxu0 %v1015
        %1442 = vmatpush1.msra.mxu0 %v1014
        %1443 = vmatprep.subr.mxu0 %v1021
        %1444 = vmatpush1.msra.mxu0 %v1020
        %1445 = vmatprep.subr.mxu0 %v1027
        %1446 = vmatpush1.msra.mxu0 %v1026
        %1447 = vmatprep.subr.mxu0 %v1033
        %1448 = vmatpush1.msra.mxu0 %v1032
        %1449 = vmatprep.subr.mxu0 %v1039
        %1450 = vmatpush1.msra.mxu0 %v1038
        %1451 = vmatprep.subr.mxu0 %v1045
        %1452 = vmatpush1.msra.mxu0 %v1044
        %1453 = vmatprep.subr.mxu0 %v1051
        %1454 = vmatpush1.msra.mxu0 %v1050
        %1455 = vmatprep.subr.mxu0 %v1057
        %1456 = vmatpush1.msra.mxu0 %v1056
        %1457 = vmatprep.subr.mxu0 %v1063
        %1458 = vmatpush1.msra.mxu0 %v1062
        %1459 = vmatprep.subr.mxu0 %v1069
        %1460 = vmatpush1.msra.mxu0 %v1068
        %1461 = vmatprep.subr.mxu0 %v1075
        %1462 = vmatpush1.msra.mxu0 %v1074
        %1463 = vmatprep.subr.mxu0 %v1081
        %1464 = vmatpush1.msra.mxu0 %v1080
        %1465 = vmatprep.subr.mxu0 %v1087
        %1466 = vmatpush1.msra.mxu0 %v1086
        %1467 = vmatprep.subr.mxu0 %v1093
        %1468 = vmatpush1.msra.mxu0 %v1092
        %1469 = vmatprep.subr.mxu0 %v1099
        %1470 = vmatpush1.msra.mxu0 %v1098
        %1471 = vmatprep.subr.mxu0 %v1105
        %1472 = vmatpush1.msra.mxu0 %v1104
        %1473 = vmatprep.subr.mxu0 %v1111
        %1474 = vmatpush1.msra.mxu0 %v1110
        %1475 = vmatprep.mubr.f32.mxu0 %v717
        %1476 = vmatmul.mubr.f32.gmra.mrb[0].mxu0 %v716
        %v1477 = vpop.f32.mrb[0].mxu0
        %v1478 = vadd.f32 %v1407, %v1477
        %v1479 = vpop.f32.mrb[0].mxu0
        %v1480 = vadd.f32 %v1409, %v1479
        %1481 = vdwg.mxu0
        %1482 = vmatprep.subr.mxu0 %v1117
        %1483 = vmatpush1.msra.mxu0 %v1116
        %1484 = vmatprep.subr.mxu0 %v1123
        %1485 = vmatpush1.msra.mxu0 %v1122
        %1486 = vmatprep.subr.mxu0 %v1129
        %1487 = vmatpush1.msra.mxu0 %v1128
        %1488 = vmatprep.subr.mxu0 %v1135
        %1489 = vmatpush1.msra.mxu0 %v1134
        %1490 = vmatprep.subr.mxu0 %v1141
        %1491 = vmatpush1.msra.mxu0 %v1140
        %1492 = vmatprep.subr.mxu0 %v1147
        %1493 = vmatpush1.msra.mxu0 %v1146
        %1494 = vmatprep.subr.mxu0 %v1153
        %1495 = vmatpush1.msra.mxu0 %v1152
        %1496 = vmatprep.subr.mxu0 %v1159
        %1497 = vmatpush1.msra.mxu0 %v1158
        %1498 = vmatprep.subr.mxu0 %v1165
        %1499 = vmatpush1.msra.mxu0 %v1164
        %1500 = vmatprep.subr.mxu0 %v1171
        %1501 = vmatpush1.msra.mxu0 %v1170
        %1502 = vmatprep.subr.mxu0 %v1177
        %1503 = vmatpush1.msra.mxu0 %v1176
        %1504 = vmatprep.subr.mxu0 %v1183
        %1505 = vmatpush1.msra.mxu0 %v1182
        %1506 = vmatprep.subr.mxu0 %v1189
        %1507 = vmatpush1.msra.mxu0 %v1188
        %1508 = vmatprep.subr.mxu0 %v1195
        %1509 = vmatpush1.msra.mxu0 %v1194
        %1510 = vmatprep.subr.mxu0 %v1201
        %1511 = vmatpush1.msra.mxu0 %v1200
        %1512 = vmatprep.subr.mxu0 %v1207
        %1513 = vmatpush1.msra.mxu0 %v1206
        %1514 = vmatprep.subr.mxu0 %v1213
        %1515 = vmatpush1.msra.mxu0 %v1212
        %1516 = vmatprep.subr.mxu0 %v1219
        %1517 = vmatpush1.msra.mxu0 %v1218
        %1518 = vmatprep.subr.mxu0 %v1225
        %1519 = vmatpush1.msra.mxu0 %v1224
        %1520 = vmatprep.subr.mxu0 %v1231
        %1521 = vmatpush1.msra.mxu0 %v1230
        %1522 = vmatprep.subr.mxu0 %v1237
        %1523 = vmatpush1.msra.mxu0 %v1236
        %1524 = vmatprep.subr.mxu0 %v1243
        %1525 = vmatpush1.msra.mxu0 %v1242
        %1526 = vmatprep.subr.mxu0 %v1249
        %1527 = vmatpush1.msra.mxu0 %v1248
        %1528 = vmatprep.subr.mxu0 %v1255
        %1529 = vmatpush1.msra.mxu0 %v1254
        %1530 = vmatprep.subr.mxu0 %v1261
        %1531 = vmatpush1.msra.mxu0 %v1260
        %1532 = vmatprep.subr.mxu0 %v1267
        %1533 = vmatpush1.msra.mxu0 %v1266
        %1534 = vmatprep.subr.mxu0 %v1273
        %1535 = vmatpush1.msra.mxu0 %v1272
        %1536 = vmatprep.subr.mxu0 %v1279
        %1537 = vmatpush1.msra.mxu0 %v1278
        %1538 = vmatprep.subr.mxu0 %v1285
        %1539 = vmatpush1.msra.mxu0 %v1284
        %1540 = vmatprep.subr.mxu0 %v1291
        %1541 = vmatpush1.msra.mxu0 %v1290
        %1542 = vmatprep.subr.mxu0 %v1297
        %1543 = vmatpush1.msra.mxu0 %v1296
        %1544 = vmatprep.subr.mxu0 %v1303
        %1545 = vmatpush1.msra.mxu0 %v1302
        %1546 = vmatprep.mubr.f32.mxu0 %v719
        %1547 = vmatmul.mubr.f32.gmra.mrb[0].mxu0 %v718
        %v1548 = vpop.f32.mrb[0].mxu0
        %v1549 = vadd.f32 %v1478, %v1548
        %v1550 = vpop.f32.mrb[0].mxu0
        %v1551 = vadd.f32 %v1480, %v1550
        %1552 = vdwg.mxu0
        %1553 = vmatprep.subr.mxu0 %v735
        %1554 = vmatpush1.msra.mxu0 %v734
        %1555 = vmatprep.subr.mxu0 %v741
        %1556 = vmatpush1.msra.mxu0 %v740
        %1557 = vmatprep.subr.mxu0 %v747
        %1558 = vmatpush1.msra.mxu0 %v746
        %1559 = vmatprep.subr.mxu0 %v753
        %1560 = vmatpush1.msra.mxu0 %v752
        %1561 = vmatprep.subr.mxu0 %v759
        %1562 = vmatpush1.msra.mxu0 %v758
        %1563 = vmatprep.subr.mxu0 %v765
        %1564 = vmatpush1.msra.mxu0 %v764
        %1565 = vmatprep.subr.mxu0 %v771
        %1566 = vmatpush1.msra.mxu0 %v770
        %1567 = vmatprep.subr.mxu0 %v777
        %1568 = vmatpush1.msra.mxu0 %v776
        %1569 = vmatprep.subr.mxu0 %v783
        %1570 = vmatpush1.msra.mxu0 %v782
        %1571 = vmatprep.subr.mxu0 %v789
        %1572 = vmatpush1.msra.mxu0 %v788
        %1573 = vmatprep.subr.mxu0 %v795
        %1574 = vmatpush1.msra.mxu0 %v794
        %1575 = vmatprep.subr.mxu0 %v801
        %1576 = vmatpush1.msra.mxu0 %v800
        %1577 = vmatprep.subr.mxu0 %v807
        %1578 = vmatpush1.msra.mxu0 %v806
        %1579 = vmatprep.subr.mxu0 %v813
        %1580 = vmatpush1.msra.mxu0 %v812
        %1581 = vmatprep.subr.mxu0 %v819
        %1582 = vmatpush1.msra.mxu0 %v818
        %1583 = vmatprep.subr.mxu0 %v825
        %1584 = vmatpush1.msra.mxu0 %v824
        %1585 = vmatprep.subr.mxu0 %v831
        %1586 = vmatpush1.msra.mxu0 %v830
        %1587 = vmatprep.subr.mxu0 %v837
        %1588 = vmatpush1.msra.mxu0 %v836
        %1589 = vmatprep.subr.mxu0 %v843
        %1590 = vmatpush1.msra.mxu0 %v842
        %1591 = vmatprep.subr.mxu0 %v849
        %1592 = vmatpush1.msra.mxu0 %v848
        %1593 = vmatprep.subr.mxu0 %v855
        %1594 = vmatpush1.msra.mxu0 %v854
        %1595 = vmatprep.subr.mxu0 %v861
        %1596 = vmatpush1.msra.mxu0 %v860
        %1597 = vmatprep.subr.mxu0 %v867
        %1598 = vmatpush1.msra.mxu0 %v866
        %1599 = vmatprep.subr.mxu0 %v873
        %1600 = vmatpush1.msra.mxu0 %v872
        %1601 = vmatprep.subr.mxu0 %v879
        %1602 = vmatpush1.msra.mxu0 %v878
        %1603 = vmatprep.subr.mxu0 %v885
        %1604 = vmatpush1.msra.mxu0 %v884
        %1605 = vmatprep.subr.mxu0 %v891
        %1606 = vmatpush1.msra.mxu0 %v890
        %1607 = vmatprep.subr.mxu0 %v897
        %1608 = vmatpush1.msra.mxu0 %v896
        %1609 = vmatprep.subr.mxu0 %v903
        %1610 = vmatpush1.msra.mxu0 %v902
        %1611 = vmatprep.subr.mxu0 %v909
        %1612 = vmatpush1.msra.mxu0 %v908
        %1613 = vmatprep.subr.mxu0 %v915
        %1614 = vmatpush1.msra.mxu0 %v914
        %1615 = vmatprep.subr.mxu0 %v921
        %1616 = vmatpush1.msra.mxu0 %v920
        %1617 = vmatprep.mubr.f32.mxu0 %v715
        %1618 = vmatmul.mubr.f32.gmra.mrb[0].mxu0 %v714
        %v1619 = vpop.f32.mrb[0].mxu0
        %v1620 = vadd.f32 %v1321, %v1619
        %v1621 = vpop.f32.mrb[0].mxu0
        %v1622 = vadd.f32 %v1325, %v1621
        %1623 = vdwg.mxu0
        %1624 = vmatprep.subr.mxu0 %v927
        %1625 = vmatpush1.msra.mxu0 %v926
        %1626 = vmatprep.subr.mxu0 %v933
        %1627 = vmatpush1.msra.mxu0 %v932
        %1628 = vmatprep.subr.mxu0 %v939
        %1629 = vmatpush1.msra.mxu0 %v938
        %1630 = vmatprep.subr.mxu0 %v945
        %1631 = vmatpush1.msra.mxu0 %v944
        %1632 = vmatprep.subr.mxu0 %v951
        %1633 = vmatpush1.msra.mxu0 %v950
        %1634 = vmatprep.subr.mxu0 %v957
        %1635 = vmatpush1.msra.mxu0 %v956
        %1636 = vmatprep.subr.mxu0 %v963
        %1637 = vmatpush1.msra.mxu0 %v962
        %1638 = vmatprep.subr.mxu0 %v969
        %1639 = vmatpush1.msra.mxu0 %v968
        %1640 = vmatprep.subr.mxu0 %v975
        %1641 = vmatpush1.msra.mxu0 %v974
        %1642 = vmatprep.subr.mxu0 %v981
        %1643 = vmatpush1.msra.mxu0 %v980
        %1644 = vmatprep.subr.mxu0 %v987
        %1645 = vmatpush1.msra.mxu0 %v986
        %1646 = vmatprep.subr.mxu0 %v993
        %1647 = vmatpush1.msra.mxu0 %v992
        %1648 = vmatprep.subr.mxu0 %v999
        %1649 = vmatpush1.msra.mxu0 %v998
        %1650 = vmatprep.subr.mxu0 %v1005
        %1651 = vmatpush1.msra.mxu0 %v1004
        %1652 = vmatprep.subr.mxu0 %v1011
        %1653 = vmatpush1.msra.mxu0 %v1010
        %1654 = vmatprep.subr.mxu0 %v1017
        %1655 = vmatpush1.msra.mxu0 %v1016
        %1656 = vmatprep.subr.mxu0 %v1023
        %1657 = vmatpush1.msra.mxu0 %v1022
        %1658 = vmatprep.subr.mxu0 %v1029
        %1659 = vmatpush1.msra.mxu0 %v1028
        %1660 = vmatprep.subr.mxu0 %v1035
        %1661 = vmatpush1.msra.mxu0 %v1034
        %1662 = vmatprep.subr.mxu0 %v1041
        %1663 = vmatpush1.msra.mxu0 %v1040
        %1664 = vmatprep.subr.mxu0 %v1047
        %1665 = vmatpush1.msra.mxu0 %v1046
        %1666 = vmatprep.subr.mxu0 %v1053
        %1667 = vmatpush1.msra.mxu0 %v1052
        %1668 = vmatprep.subr.mxu0 %v1059
        %1669 = vmatpush1.msra.mxu0 %v1058
        %1670 = vmatprep.subr.mxu0 %v1065
        %1671 = vmatpush1.msra.mxu0 %v1064
        %1672 = vmatprep.subr.mxu0 %v1071
        %1673 = vmatpush1.msra.mxu0 %v1070
        %1674 = vmatprep.subr.mxu0 %v1077
        %1675 = vmatpush1.msra.mxu0 %v1076
        %1676 = vmatprep.subr.mxu0 %v1083
        %1677 = vmatpush1.msra.mxu0 %v1082
        %1678 = vmatprep.subr.mxu0 %v1089
        %1679 = vmatpush1.msra.mxu0 %v1088
        %1680 = vmatprep.subr.mxu0 %v1095
        %1681 = vmatpush1.msra.mxu0 %v1094
        %1682 = vmatprep.subr.mxu0 %v1101
        %1683 = vmatpush1.msra.mxu0 %v1100
        %1684 = vmatprep.subr.mxu0 %v1107
        %1685 = vmatpush1.msra.mxu0 %v1106
        %1686 = vmatprep.subr.mxu0 %v1113
        %1687 = vmatpush1.msra.mxu0 %v1112
        %1688 = vmatprep.mubr.f32.mxu0 %v717
        %1689 = vmatmul.mubr.f32.gmra.mrb[0].mxu0 %v716
        %v1690 = vpop.f32.mrb[0].mxu0
        %v1691 = vadd.f32 %v1620, %v1690
        %v1692 = vpop.f32.mrb[0].mxu0
        %v1693 = vadd.f32 %v1622, %v1692
        %1694 = vdwg.mxu0
        %1695 = vmatprep.subr.mxu0 %v1119
        %1696 = vmatpush1.msra.mxu0 %v1118
        %1697 = vmatprep.subr.mxu0 %v1125
        %1698 = vmatpush1.msra.mxu0 %v1124
        %1699 = vmatprep.subr.mxu0 %v1131
        %1700 = vmatpush1.msra.mxu0 %v1130
        %1701 = vmatprep.subr.mxu0 %v1137
        %1702 = vmatpush1.msra.mxu0 %v1136
        %1703 = vmatprep.subr.mxu0 %v1143
        %1704 = vmatpush1.msra.mxu0 %v1142
        %1705 = vmatprep.subr.mxu0 %v1149
        %1706 = vmatpush1.msra.mxu0 %v1148
        %1707 = vmatprep.subr.mxu0 %v1155
        %1708 = vmatpush1.msra.mxu0 %v1154
        %1709 = vmatprep.subr.mxu0 %v1161
        %1710 = vmatpush1.msra.mxu0 %v1160
        %1711 = vmatprep.subr.mxu0 %v1167
        %1712 = vmatpush1.msra.mxu0 %v1166
        %1713 = vmatprep.subr.mxu0 %v1173
        %1714 = vmatpush1.msra.mxu0 %v1172
        %1715 = vmatprep.subr.mxu0 %v1179
        %1716 = vmatpush1.msra.mxu0 %v1178
        %1717 = vmatprep.subr.mxu0 %v1185
        %1718 = vmatpush1.msra.mxu0 %v1184
        %1719 = vmatprep.subr.mxu0 %v1191
        %1720 = vmatpush1.msra.mxu0 %v1190
        %1721 = vmatprep.subr.mxu0 %v1197
        %1722 = vmatpush1.msra.mxu0 %v1196
        %1723 = vmatprep.subr.mxu0 %v1203
        %1724 = vmatpush1.msra.mxu0 %v1202
        %1725 = vmatprep.subr.mxu0 %v1209
        %1726 = vmatpush1.msra.mxu0 %v1208
        %1727 = vmatprep.subr.mxu0 %v1215
        %1728 = vmatpush1.msra.mxu0 %v1214
        %1729 = vmatprep.subr.mxu0 %v1221
        %1730 = vmatpush1.msra.mxu0 %v1220
        %1731 = vmatprep.subr.mxu0 %v1227
        %1732 = vmatpush1.msra.mxu0 %v1226
        %1733 = vmatprep.subr.mxu0 %v1233
        %1734 = vmatpush1.msra.mxu0 %v1232
        %1735 = vmatprep.subr.mxu0 %v1239
        %1736 = vmatpush1.msra.mxu0 %v1238
        %1737 = vmatprep.subr.mxu0 %v1245
        %1738 = vmatpush1.msra.mxu0 %v1244
        %1739 = vmatprep.subr.mxu0 %v1251
        %1740 = vmatpush1.msra.mxu0 %v1250
        %1741 = vmatprep.subr.mxu0 %v1257
        %1742 = vmatpush1.msra.mxu0 %v1256
        %1743 = vmatprep.subr.mxu0 %v1263
        %1744 = vmatpush1.msra.mxu0 %v1262
        %1745 = vmatprep.subr.mxu0 %v1269
        %1746 = vmatpush1.msra.mxu0 %v1268
        %1747 = vmatprep.subr.mxu0 %v1275
        %1748 = vmatpush1.msra.mxu0 %v1274
        %1749 = vmatprep.subr.mxu0 %v1281
        %1750 = vmatpush1.msra.mxu0 %v1280
        %1751 = vmatprep.subr.mxu0 %v1287
        %1752 = vmatpush1.msra.mxu0 %v1286
        %1753 = vmatprep.subr.mxu0 %v1293
        %1754 = vmatpush1.msra.mxu0 %v1292
        %1755 = vmatprep.subr.mxu0 %v1299
        %1756 = vmatpush1.msra.mxu0 %v1298
        %1757 = vmatprep.subr.mxu0 %v1305
        %1758 = vmatpush1.msra.mxu0 %v1304
        %1759 = vmatprep.mubr.f32.mxu0 %v719
        %1760 = vmatmul.mubr.f32.gmra.mrb[0].mxu0 %v718
        %v1761 = vpop.f32.mrb[0].mxu0
        %v1762 = vadd.f32 %v1691, %v1761
        %v1763 = vpop.f32.mrb[0].mxu0
        %v1764 = vadd.f32 %v1693, %v1763
        %1765 = vdwg.mxu0
        %1766 = vmatprep.subr.mxu0 %v737
        %1767 = vmatpush1.msra.mxu0 %v736
        %1768 = vmatprep.subr.mxu0 %v743
        %1769 = vmatpush1.msra.mxu0 %v742
        %1770 = vmatprep.subr.mxu0 %v749
        %1771 = vmatpush1.msra.mxu0 %v748
        %1772 = vmatprep.subr.mxu0 %v755
        %1773 = vmatpush1.msra.mxu0 %v754
        %1774 = vmatprep.subr.mxu0 %v761
        %1775 = vmatpush1.msra.mxu0 %v760
        %1776 = vmatprep.subr.mxu0 %v767
        %1777 = vmatpush1.msra.mxu0 %v766
        %1778 = vmatprep.subr.mxu0 %v773
        %1779 = vmatpush1.msra.mxu0 %v772
        %1780 = vmatprep.subr.mxu0 %v779
        %1781 = vmatpush1.msra.mxu0 %v778
        %1782 = vmatprep.subr.mxu0 %v785
        %1783 = vmatpush1.msra.mxu0 %v784
        %1784 = vmatprep.subr.mxu0 %v791
        %1785 = vmatpush1.msra.mxu0 %v790
        %1786 = vmatprep.subr.mxu0 %v797
        %1787 = vmatpush1.msra.mxu0 %v796
        %1788 = vmatprep.subr.mxu0 %v803
        %1789 = vmatpush1.msra.mxu0 %v802
        %1790 = vmatprep.subr.mxu0 %v809
        %1791 = vmatpush1.msra.mxu0 %v808
        %1792 = vmatprep.subr.mxu0 %v815
        %1793 = vmatpush1.msra.mxu0 %v814
        %1794 = vmatprep.subr.mxu0 %v821
        %1795 = vmatpush1.msra.mxu0 %v820
        %1796 = vmatprep.subr.mxu0 %v827
        %1797 = vmatpush1.msra.mxu0 %v826
        %1798 = vmatprep.subr.mxu0 %v833
        %1799 = vmatpush1.msra.mxu0 %v832
        %1800 = vmatprep.subr.mxu0 %v839
        %1801 = vmatpush1.msra.mxu0 %v838
        %1802 = vmatprep.subr.mxu0 %v845
        %1803 = vmatpush1.msra.mxu0 %v844
        %1804 = vmatprep.subr.mxu0 %v851
        %1805 = vmatpush1.msra.mxu0 %v850
        %1806 = vmatprep.subr.mxu0 %v857
        %1807 = vmatpush1.msra.mxu0 %v856
        %1808 = vmatprep.subr.mxu0 %v863
        %1809 = vmatpush1.msra.mxu0 %v862
        %1810 = vmatprep.subr.mxu0 %v869
        %1811 = vmatpush1.msra.mxu0 %v868
        %1812 = vmatprep.subr.mxu0 %v875
        %1813 = vmatpush1.msra.mxu0 %v874
        %1814 = vmatprep.subr.mxu0 %v881
        %1815 = vmatpush1.msra.mxu0 %v880
        %1816 = vmatprep.subr.mxu0 %v887
        %1817 = vmatpush1.msra.mxu0 %v886
        %1818 = vmatprep.subr.mxu0 %v893
        %1819 = vmatpush1.msra.mxu0 %v892
        %1820 = vmatprep.subr.mxu0 %v899
        %1821 = vmatpush1.msra.mxu0 %v898
        %1822 = vmatprep.subr.mxu0 %v905
        %1823 = vmatpush1.msra.mxu0 %v904
        %1824 = vmatprep.subr.mxu0 %v911
        %1825 = vmatpush1.msra.mxu0 %v910
        %1826 = vmatprep.subr.mxu0 %v917
        %1827 = vmatpush1.msra.mxu0 %v916
        %1828 = vmatprep.subr.mxu0 %v923
        %1829 = vmatpush1.msra.mxu0 %v922
        %1830 = vmatprep.mubr.f32.mxu0 %v715
        %1831 = vmatmul.mubr.f32.gmra.mrb[0].mxu0 %v714
        %v1832 = vpop.f32.mrb[0].mxu0
        %v1833 = vadd.f32 %v1329, %v1832
        %v1834 = vpop.f32.mrb[0].mxu0
        %v1835 = vadd.f32 %v1333, %v1834
        %1836 = vdwg.mxu0
        %1837 = vmatprep.subr.mxu0 %v929
        %1838 = vmatpush1.msra.mxu0 %v928
        %1839 = vmatprep.subr.mxu0 %v935
        %1840 = vmatpush1.msra.mxu0 %v934
        %1841 = vmatprep.subr.mxu0 %v941
        %1842 = vmatpush1.msra.mxu0 %v940
        %1843 = vmatprep.subr.mxu0 %v947
        %1844 = vmatpush1.msra.mxu0 %v946
        %1845 = vmatprep.subr.mxu0 %v953
        %1846 = vmatpush1.msra.mxu0 %v952
        %1847 = vmatprep.subr.mxu0 %v959
        %1848 = vmatpush1.msra.mxu0 %v958
        %1849 = vmatprep.subr.mxu0 %v965
        %1850 = vmatpush1.msra.mxu0 %v964
        %1851 = vmatprep.subr.mxu0 %v971
        %1852 = vmatpush1.msra.mxu0 %v970
        %1853 = vmatprep.subr.mxu0 %v977
        %1854 = vmatpush1.msra.mxu0 %v976
        %1855 = vmatprep.subr.mxu0 %v983
        %1856 = vmatpush1.msra.mxu0 %v982
        %1857 = vmatprep.subr.mxu0 %v989
        %1858 = vmatpush1.msra.mxu0 %v988
        %1859 = vmatprep.subr.mxu0 %v995
        %1860 = vmatpush1.msra.mxu0 %v994
        %1861 = vmatprep.subr.mxu0 %v1001
        %1862 = vmatpush1.msra.mxu0 %v1000
        %1863 = vmatprep.subr.mxu0 %v1007
        %1864 = vmatpush1.msra.mxu0 %v1006
        %1865 = vmatprep.subr.mxu0 %v1013
        %1866 = vmatpush1.msra.mxu0 %v1012
        %1867 = vmatprep.subr.mxu0 %v1019
        %1868 = vmatpush1.msra.mxu0 %v1018
        %1869 = vmatprep.subr.mxu0 %v1025
        %1870 = vmatpush1.msra.mxu0 %v1024
        %1871 = vmatprep.subr.mxu0 %v1031
        %1872 = vmatpush1.msra.mxu0 %v1030
        %1873 = vmatprep.subr.mxu0 %v1037
        %1874 = vmatpush1.msra.mxu0 %v1036
        %1875 = vmatprep.subr.mxu0 %v1043
        %1876 = vmatpush1.msra.mxu0 %v1042
        %1877 = vmatprep.subr.mxu0 %v1049
        %1878 = vmatpush1.msra.mxu0 %v1048
        %1879 = vmatprep.subr.mxu0 %v1055
        %1880 = vmatpush1.msra.mxu0 %v1054
        %1881 = vmatprep.subr.mxu0 %v1061
        %1882 = vmatpush1.msra.mxu0 %v1060
        %1883 = vmatprep.subr.mxu0 %v1067
        %1884 = vmatpush1.msra.mxu0 %v1066
        %1885 = vmatprep.subr.mxu0 %v1073
        %1886 = vmatpush1.msra.mxu0 %v1072
        %1887 = vmatprep.subr.mxu0 %v1079
        %1888 = vmatpush1.msra.mxu0 %v1078
        %1889 = vmatprep.subr.mxu0 %v1085
        %1890 = vmatpush1.msra.mxu0 %v1084
        %1891 = vmatprep.subr.mxu0 %v1091
        %1892 = vmatpush1.msra.mxu0 %v1090
        %1893 = vmatprep.subr.mxu0 %v1097
        %1894 = vmatpush1.msra.mxu0 %v1096
        %1895 = vmatprep.subr.mxu0 %v1103
        %1896 = vmatpush1.msra.mxu0 %v1102
        %1897 = vmatprep.subr.mxu0 %v1109
        %1898 = vmatpush1.msra.mxu0 %v1108
        %1899 = vmatprep.subr.mxu0 %v1115
        %1900 = vmatpush1.msra.mxu0 %v1114
        %1901 = vmatprep.mubr.f32.mxu0 %v717
        %1902 = vmatmul.mubr.f32.gmra.mrb[0].mxu0 %v716
        %v1903 = vpop.f32.mrb[0].mxu0
        %v1904 = vadd.f32 %v1833, %v1903
        %v1905 = vpop.f32.mrb[0].mxu0
        %v1906 = vadd.f32 %v1835, %v1905
        %1907 = vdwg.mxu0
        %1908 = vmatprep.subr.mxu0 %v1121
        %1909 = vmatpush1.msra.mxu0 %v1120
        %1910 = vmatprep.subr.mxu0 %v1127
        %1911 = vmatpush1.msra.mxu0 %v1126
        %1912 = vmatprep.subr.mxu0 %v1133
        %1913 = vmatpush1.msra.mxu0 %v1132
        %1914 = vmatprep.subr.mxu0 %v1139
        %1915 = vmatpush1.msra.mxu0 %v1138
        %1916 = vmatprep.subr.mxu0 %v1145
        %1917 = vmatpush1.msra.mxu0 %v1144
        %1918 = vmatprep.subr.mxu0 %v1151
        %1919 = vmatpush1.msra.mxu0 %v1150
        %1920 = vmatprep.subr.mxu0 %v1157
        %1921 = vmatpush1.msra.mxu0 %v1156
        %1922 = vmatprep.subr.mxu0 %v1163
        %1923 = vmatpush1.msra.mxu0 %v1162
        %1924 = vmatprep.subr.mxu0 %v1169
        %1925 = vmatpush1.msra.mxu0 %v1168
        %1926 = vmatprep.subr.mxu0 %v1175
        %1927 = vmatpush1.msra.mxu0 %v1174
        %1928 = vmatprep.subr.mxu0 %v1181
        %1929 = vmatpush1.msra.mxu0 %v1180
        %1930 = vmatprep.subr.mxu0 %v1187
        %1931 = vmatpush1.msra.mxu0 %v1186
        %1932 = vmatprep.subr.mxu0 %v1193
        %1933 = vmatpush1.msra.mxu0 %v1192
        %1934 = vmatprep.subr.mxu0 %v1199
        %1935 = vmatpush1.msra.mxu0 %v1198
        %1936 = vmatprep.subr.mxu0 %v1205
        %1937 = vmatpush1.msra.mxu0 %v1204
        %1938 = vmatprep.subr.mxu0 %v1211
        %1939 = vmatpush1.msra.mxu0 %v1210
        %1940 = vmatprep.subr.mxu0 %v1217
        %1941 = vmatpush1.msra.mxu0 %v1216
        %1942 = vmatprep.subr.mxu0 %v1223
        %1943 = vmatpush1.msra.mxu0 %v1222
        %1944 = vmatprep.subr.mxu0 %v1229
        %1945 = vmatpush1.msra.mxu0 %v1228
        %1946 = vmatprep.subr.mxu0 %v1235
        %1947 = vmatpush1.msra.mxu0 %v1234
        %1948 = vmatprep.subr.mxu0 %v1241
        %1949 = vmatpush1.msra.mxu0 %v1240
        %1950 = vmatprep.subr.mxu0 %v1247
        %1951 = vmatpush1.msra.mxu0 %v1246
        %1952 = vmatprep.subr.mxu0 %v1253
        %1953 = vmatpush1.msra.mxu0 %v1252
        %1954 = vmatprep.subr.mxu0 %v1259
        %1955 = vmatpush1.msra.mxu0 %v1258
        %1956 = vmatprep.subr.mxu0 %v1265
        %1957 = vmatpush1.msra.mxu0 %v1264
        %1958 = vmatprep.subr.mxu0 %v1271
        %1959 = vmatpush1.msra.mxu0 %v1270
        %1960 = vmatprep.subr.mxu0 %v1277
        %1961 = vmatpush1.msra.mxu0 %v1276
        %1962 = vmatprep.subr.mxu0 %v1283
        %1963 = vmatpush1.msra.mxu0 %v1282
        %1964 = vmatprep.subr.mxu0 %v1289
        %1965 = vmatpush1.msra.mxu0 %v1288
        %1966 = vmatprep.subr.mxu0 %v1295
        %1967 = vmatpush1.msra.mxu0 %v1294
        %1968 = vmatprep.subr.mxu0 %v1301
        %1969 = vmatpush1.msra.mxu0 %v1300
        %1970 = vmatprep.subr.mxu0 %v1307
        %1971 = vmatpush1.msra.mxu0 %v1306
        %1972 = vmatprep.mubr.f32.mxu0 %v719
        %1973 = vmatmul.mubr.f32.gmra.mrb[0].mxu0 %v718
        %v1974 = vpop.f32.mrb[0].mxu0
        %v1975 = vadd.f32 %v1904, %v1974
        %v1976 = vpop.f32.mrb[0].mxu0
        %v1977 = vadd.f32 %v1906, %v1976
        %1978 = vdwg.mxu0
        %v1979 = vld [vmem:[#allocation7] sm:$0xff]
        %v1980 = vld [vmem:[#allocation7 + $0x8] sm:$0xff]
        %v1981 = vld [vmem:[#allocation7 + $0x10] sm:$0xff]
        %v1982 = vld [vmem:[#allocation7 + $0x18] sm:$0xff]
        %v1983 = vld [vmem:[#allocation7 + $0x20] sm:$0xff]
        %v1984 = vld [vmem:[#allocation7 + $0x28] sm:$0xff]
        %v1985 = vld [vmem:[#allocation7 + $0x30] sm:$0xff]
        %v1986 = vld [vmem:[#allocation7 + $0x38] sm:$0xff]
        %v1987 = vld [vmem:[#allocation7 + $0x40] sm:$0xff]
        %v1988 = vld [vmem:[#allocation7 + $0x48] sm:$0xff]
        %v1989 = vld [vmem:[#allocation7 + $0x50] sm:$0xff]
        %v1990 = vld [vmem:[#allocation7 + $0x58] sm:$0xff]
        %v1991 = vld [vmem:[#allocation7 + $0x60] sm:$0xff]
        %v1992 = vld [vmem:[#allocation7 + $0x68] sm:$0xff]
        %v1993 = vld [vmem:[#allocation7 + $0x70] sm:$0xff]
        %v1994 = vld [vmem:[#allocation7 + $0x78] sm:$0xff]
        %v1995 = vld [vmem:[#allocation7 + $0x80] sm:$0xff]
        %v1996 = vld [vmem:[#allocation7 + $0x88] sm:$0xff]
        %v1997 = vld [vmem:[#allocation7 + $0x90] sm:$0xff]
        %v1998 = vld [vmem:[#allocation7 + $0x98] sm:$0xff]
        %v1999 = vld [vmem:[#allocation7 + $0xa0] sm:$0xff]
        %v2000 = vld [vmem:[#allocation7 + $0xa8] sm:$0xff]
        %v2001 = vld [vmem:[#allocation7 + $0xb0] sm:$0xff]
        %v2002 = vld [vmem:[#allocation7 + $0xb8] sm:$0xff]
        %v2003 = vld [vmem:[#allocation7 + $0xc0] sm:$0xff]
        %v2004 = vld [vmem:[#allocation7 + $0xc8] sm:$0xff]
        %v2005 = vld [vmem:[#allocation7 + $0xd0] sm:$0xff]
        %v2006 = vld [vmem:[#allocation7 + $0xd8] sm:$0xff]
        %v2007 = vld [vmem:[#allocation7 + $0xe0] sm:$0xff]
        %v2008 = vld [vmem:[#allocation7 + $0xe8] sm:$0xff]
        %v2009 = vld [vmem:[#allocation7 + $0xf0] sm:$0xff]
        %v2010 = vld [vmem:[#allocation7 + $0xf8] sm:$0xff]
        %v2011 = vld [vmem:[#allocation7 + $0x100] sm:$0xff]
        %v2012 = vld [vmem:[#allocation7 + $0x108] sm:$0xff]
        %v2013 = vld [vmem:[#allocation7 + $0x110] sm:$0xff]
        %v2014 = vld [vmem:[#allocation7 + $0x118] sm:$0xff]
        %v2015 = vld [vmem:[#allocation7 + $0x120] sm:$0xff]
        %v2016 = vld [vmem:[#allocation7 + $0x128] sm:$0xff]
        %v2017 = vld [vmem:[#allocation7 + $0x130] sm:$0xff]
        %v2018 = vld [vmem:[#allocation7 + $0x138] sm:$0xff]
        %v2019 = vld [vmem:[#allocation7 + $0x140] sm:$0xff]
        %v2020 = vld [vmem:[#allocation7 + $0x148] sm:$0xff]
        %v2021 = vld [vmem:[#allocation7 + $0x150] sm:$0xff]
        %v2022 = vld [vmem:[#allocation7 + $0x158] sm:$0xff]
        %v2023 = vld [vmem:[#allocation7 + $0x160] sm:$0xff]
        %v2024 = vld [vmem:[#allocation7 + $0x168] sm:$0xff]
        %v2025 = vld [vmem:[#allocation7 + $0x170] sm:$0xff]
        %v2026 = vld [vmem:[#allocation7 + $0x178] sm:$0xff]
        %v2027 = vld [vmem:[#allocation7 + $0x180] sm:$0xff]
        %v2028 = vld [vmem:[#allocation7 + $0x188] sm:$0xff]
        %v2029 = vld [vmem:[#allocation7 + $0x190] sm:$0xff]
        %v2030 = vld [vmem:[#allocation7 + $0x198] sm:$0xff]
        %v2031 = vld [vmem:[#allocation7 + $0x1a0] sm:$0xff]
        %v2032 = vld [vmem:[#allocation7 + $0x1a8] sm:$0xff]
        %v2033 = vld [vmem:[#allocation7 + $0x1b0] sm:$0xff]
        %v2034 = vld [vmem:[#allocation7 + $0x1b8] sm:$0xff]
        %v2035 = vld [vmem:[#allocation7 + $0x1c0] sm:$0xff]
        %v2036 = vld [vmem:[#allocation7 + $0x1c8] sm:$0xff]
        %v2037 = vld [vmem:[#allocation7 + $0x1d0] sm:$0xff]
        %v2038 = vld [vmem:[#allocation7 + $0x1d8] sm:$0xff]
        %v2039 = vld [vmem:[#allocation7 + $0x1e0] sm:$0xff]
        %v2040 = vld [vmem:[#allocation7 + $0x1e8] sm:$0xff]
        %v2041 = vld [vmem:[#allocation7 + $0x1f0] sm:$0xff]
        %v2042 = vld [vmem:[#allocation7 + $0x1f8] sm:$0xff]
        %v2043 = vld [vmem:[#allocation7 + $0x200] sm:$0xff]
        %v2044 = vld [vmem:[#allocation7 + $0x208] sm:$0xff]
        %v2045 = vld [vmem:[#allocation7 + $0x210] sm:$0xff]
        %v2046 = vld [vmem:[#allocation7 + $0x218] sm:$0xff]
        %v2047 = vld [vmem:[#allocation7 + $0x220] sm:$0xff]
        %v2048 = vld [vmem:[#allocation7 + $0x228] sm:$0xff]
        %v2049 = vld [vmem:[#allocation7 + $0x230] sm:$0xff]
        %v2050 = vld [vmem:[#allocation7 + $0x238] sm:$0xff]
        %v2051 = vld [vmem:[#allocation7 + $0x240] sm:$0xff]
        %v2052 = vld [vmem:[#allocation7 + $0x248] sm:$0xff]
        %v2053 = vld [vmem:[#allocation7 + $0x250] sm:$0xff]
        %v2054 = vld [vmem:[#allocation7 + $0x258] sm:$0xff]
        %v2055 = vld [vmem:[#allocation7 + $0x260] sm:$0xff]
        %v2056 = vld [vmem:[#allocation7 + $0x268] sm:$0xff]
        %v2057 = vld [vmem:[#allocation7 + $0x270] sm:$0xff]
        %v2058 = vld [vmem:[#allocation7 + $0x278] sm:$0xff]
        %v2059 = vld [vmem:[#allocation7 + $0x280] sm:$0xff]
        %v2060 = vld [vmem:[#allocation7 + $0x288] sm:$0xff]
        %v2061 = vld [vmem:[#allocation7 + $0x290] sm:$0xff]
        %v2062 = vld [vmem:[#allocation7 + $0x298] sm:$0xff]
        %v2063 = vld [vmem:[#allocation7 + $0x2a0] sm:$0xff]
        %v2064 = vld [vmem:[#allocation7 + $0x2a8] sm:$0xff]
        %v2065 = vld [vmem:[#allocation7 + $0x2b0] sm:$0xff]
        %v2066 = vld [vmem:[#allocation7 + $0x2b8] sm:$0xff]
        %v2067 = vld [vmem:[#allocation7 + $0x2c0] sm:$0xff]
        %v2068 = vld [vmem:[#allocation7 + $0x2c8] sm:$0xff]
        %v2069 = vld [vmem:[#allocation7 + $0x2d0] sm:$0xff]
        %v2070 = vld [vmem:[#allocation7 + $0x2d8] sm:$0xff]
        %v2071 = vld [vmem:[#allocation7 + $0x2e0] sm:$0xff]
        %v2072 = vld [vmem:[#allocation7 + $0x2e8] sm:$0xff]
        %v2073 = vld [vmem:[#allocation7 + $0x2f0] sm:$0xff]
        %v2074 = vld [vmem:[#allocation7 + $0x2f8] sm:$0xff]
        %v2075 = vld [vmem:[#allocation7 + $0x300] sm:$0xff]
        %v2076 = vld [vmem:[#allocation7 + $0x308] sm:$0xff]
        %v2077 = vld [vmem:[#allocation7 + $0x310] sm:$0xff]
        %v2078 = vld [vmem:[#allocation7 + $0x318] sm:$0xff]
        %v2079 = vld [vmem:[#allocation7 + $0x320] sm:$0xff]
        %v2080 = vld [vmem:[#allocation7 + $0x328] sm:$0xff]
        %v2081 = vld [vmem:[#allocation7 + $0x330] sm:$0xff]
        %v2082 = vld [vmem:[#allocation7 + $0x338] sm:$0xff]
        %v2083 = vld [vmem:[#allocation7 + $0x340] sm:$0xff]
        %v2084 = vld [vmem:[#allocation7 + $0x348] sm:$0xff]
        %v2085 = vld [vmem:[#allocation7 + $0x350] sm:$0xff]
        %v2086 = vld [vmem:[#allocation7 + $0x358] sm:$0xff]
        %v2087 = vld [vmem:[#allocation7 + $0x360] sm:$0xff]
        %v2088 = vld [vmem:[#allocation7 + $0x368] sm:$0xff]
        %v2089 = vld [vmem:[#allocation7 + $0x370] sm:$0xff]
        %v2090 = vld [vmem:[#allocation7 + $0x378] sm:$0xff]
        %v2091 = vld [vmem:[#allocation7 + $0x380] sm:$0xff]
        %v2092 = vld [vmem:[#allocation7 + $0x388] sm:$0xff]
        %v2093 = vld [vmem:[#allocation7 + $0x390] sm:$0xff]
        %v2094 = vld [vmem:[#allocation7 + $0x398] sm:$0xff]
        %v2095 = vld [vmem:[#allocation7 + $0x3a0] sm:$0xff]
        %v2096 = vld [vmem:[#allocation7 + $0x3a8] sm:$0xff]
        %v2097 = vld [vmem:[#allocation7 + $0x3b0] sm:$0xff]
        %v2098 = vld [vmem:[#allocation7 + $0x3b8] sm:$0xff]
        %v2099 = vld [vmem:[#allocation7 + $0x3c0] sm:$0xff]
        %v2100 = vld [vmem:[#allocation7 + $0x3c8] sm:$0xff]
        %v2101 = vld [vmem:[#allocation7 + $0x3d0] sm:$0xff]
        %v2102 = vld [vmem:[#allocation7 + $0x3d8] sm:$0xff]
        %v2103 = vld [vmem:[#allocation7 + $0x3e0] sm:$0xff]
        %v2104 = vld [vmem:[#allocation7 + $0x3e8] sm:$0xff]
        %v2105 = vld [vmem:[#allocation7 + $0x3f0] sm:$0xff]
        %v2106 = vld [vmem:[#allocation7 + $0x3f8] sm:$0xff]
        %v2107 = vld [vmem:[#allocation7 + $0x400] sm:$0xff]
        %v2108 = vld [vmem:[#allocation7 + $0x408] sm:$0xff]
        %v2109 = vld [vmem:[#allocation7 + $0x410] sm:$0xff]
        %v2110 = vld [vmem:[#allocation7 + $0x418] sm:$0xff]
        %v2111 = vld [vmem:[#allocation7 + $0x420] sm:$0xff]
        %v2112 = vld [vmem:[#allocation7 + $0x428] sm:$0xff]
        %v2113 = vld [vmem:[#allocation7 + $0x430] sm:$0xff]
        %v2114 = vld [vmem:[#allocation7 + $0x438] sm:$0xff]
        %v2115 = vld [vmem:[#allocation7 + $0x440] sm:$0xff]
        %v2116 = vld [vmem:[#allocation7 + $0x448] sm:$0xff]
        %v2117 = vld [vmem:[#allocation7 + $0x450] sm:$0xff]
        %v2118 = vld [vmem:[#allocation7 + $0x458] sm:$0xff]
        %v2119 = vld [vmem:[#allocation7 + $0x460] sm:$0xff]
        %v2120 = vld [vmem:[#allocation7 + $0x468] sm:$0xff]
        %v2121 = vld [vmem:[#allocation7 + $0x470] sm:$0xff]
        %v2122 = vld [vmem:[#allocation7 + $0x478] sm:$0xff]
        %v2123 = vld [vmem:[#allocation7 + $0x480] sm:$0xff]
        %v2124 = vld [vmem:[#allocation7 + $0x488] sm:$0xff]
        %v2125 = vld [vmem:[#allocation7 + $0x490] sm:$0xff]
        %v2126 = vld [vmem:[#allocation7 + $0x498] sm:$0xff]
        %v2127 = vld [vmem:[#allocation7 + $0x4a0] sm:$0xff]
        %v2128 = vld [vmem:[#allocation7 + $0x4a8] sm:$0xff]
        %v2129 = vld [vmem:[#allocation7 + $0x4b0] sm:$0xff]
        %v2130 = vld [vmem:[#allocation7 + $0x4b8] sm:$0xff]
        %v2131 = vld [vmem:[#allocation7 + $0x4c0] sm:$0xff]
        %v2132 = vld [vmem:[#allocation7 + $0x4c8] sm:$0xff]
        %v2133 = vld [vmem:[#allocation7 + $0x4d0] sm:$0xff]
        %v2134 = vld [vmem:[#allocation7 + $0x4d8] sm:$0xff]
        %v2135 = vld [vmem:[#allocation7 + $0x4e0] sm:$0xff]
        %v2136 = vld [vmem:[#allocation7 + $0x4e8] sm:$0xff]
        %v2137 = vld [vmem:[#allocation7 + $0x4f0] sm:$0xff]
        %v2138 = vld [vmem:[#allocation7 + $0x4f8] sm:$0xff]
        %v2139 = vld [vmem:[#allocation7 + $0x500] sm:$0xff]
        %v2140 = vld [vmem:[#allocation7 + $0x508] sm:$0xff]
        %v2141 = vld [vmem:[#allocation7 + $0x510] sm:$0xff]
        %v2142 = vld [vmem:[#allocation7 + $0x518] sm:$0xff]
        %v2143 = vld [vmem:[#allocation7 + $0x520] sm:$0xff]
        %v2144 = vld [vmem:[#allocation7 + $0x528] sm:$0xff]
        %v2145 = vld [vmem:[#allocation7 + $0x530] sm:$0xff]
        %v2146 = vld [vmem:[#allocation7 + $0x538] sm:$0xff]
        %v2147 = vld [vmem:[#allocation7 + $0x540] sm:$0xff]
        %v2148 = vld [vmem:[#allocation7 + $0x548] sm:$0xff]
        %v2149 = vld [vmem:[#allocation7 + $0x550] sm:$0xff]
        %v2150 = vld [vmem:[#allocation7 + $0x558] sm:$0xff]
        %v2151 = vld [vmem:[#allocation7 + $0x560] sm:$0xff]
        %v2152 = vld [vmem:[#allocation7 + $0x568] sm:$0xff]
        %v2153 = vld [vmem:[#allocation7 + $0x570] sm:$0xff]
        %v2154 = vld [vmem:[#allocation7 + $0x578] sm:$0xff]
        %v2155 = vld [vmem:[#allocation7 + $0x580] sm:$0xff]
        %v2156 = vld [vmem:[#allocation7 + $0x588] sm:$0xff]
        %v2157 = vld [vmem:[#allocation7 + $0x590] sm:$0xff]
        %v2158 = vld [vmem:[#allocation7 + $0x598] sm:$0xff]
        %v2159 = vld [vmem:[#allocation7 + $0x5a0] sm:$0xff]
        %v2160 = vld [vmem:[#allocation7 + $0x5a8] sm:$0xff]
        %v2161 = vld [vmem:[#allocation7 + $0x5b0] sm:$0xff]
        %v2162 = vld [vmem:[#allocation7 + $0x5b8] sm:$0xff]
        %v2163 = vld [vmem:[#allocation7 + $0x5c0] sm:$0xff]
        %v2164 = vld [vmem:[#allocation7 + $0x5c8] sm:$0xff]
        %v2165 = vld [vmem:[#allocation7 + $0x5d0] sm:$0xff]
        %v2166 = vld [vmem:[#allocation7 + $0x5d8] sm:$0xff]
        %v2167 = vld [vmem:[#allocation7 + $0x5e0] sm:$0xff]
        %v2168 = vld [vmem:[#allocation7 + $0x5e8] sm:$0xff]
        %v2169 = vld [vmem:[#allocation7 + $0x5f0] sm:$0xff]
        %v2170 = vld [vmem:[#allocation7 + $0x5f8] sm:$0xff]
        %v2171 = vld [vmem:[#allocation7 + $0x600] sm:$0xff]
        %v2172 = vld [vmem:[#allocation7 + $0x608] sm:$0xff]
        %v2173 = vld [vmem:[#allocation7 + $0x610] sm:$0xff]
        %v2174 = vld [vmem:[#allocation7 + $0x618] sm:$0xff]
        %v2175 = vld [vmem:[#allocation7 + $0x620] sm:$0xff]
        %v2176 = vld [vmem:[#allocation7 + $0x628] sm:$0xff]
        %v2177 = vld [vmem:[#allocation7 + $0x630] sm:$0xff]
        %v2178 = vld [vmem:[#allocation7 + $0x638] sm:$0xff]
        %v2179 = vld [vmem:[#allocation7 + $0x640] sm:$0xff]
        %v2180 = vld [vmem:[#allocation7 + $0x648] sm:$0xff]
        %v2181 = vld [vmem:[#allocation7 + $0x650] sm:$0xff]
        %v2182 = vld [vmem:[#allocation7 + $0x658] sm:$0xff]
        %v2183 = vld [vmem:[#allocation7 + $0x660] sm:$0xff]
        %v2184 = vld [vmem:[#allocation7 + $0x668] sm:$0xff]
        %v2185 = vld [vmem:[#allocation7 + $0x670] sm:$0xff]
        %v2186 = vld [vmem:[#allocation7 + $0x678] sm:$0xff]
        %v2187 = vld [vmem:[#allocation7 + $0x680] sm:$0xff]
        %v2188 = vld [vmem:[#allocation7 + $0x688] sm:$0xff]
        %v2189 = vld [vmem:[#allocation7 + $0x690] sm:$0xff]
        %v2190 = vld [vmem:[#allocation7 + $0x698] sm:$0xff]
        %v2191 = vld [vmem:[#allocation7 + $0x6a0] sm:$0xff]
        %v2192 = vld [vmem:[#allocation7 + $0x6a8] sm:$0xff]
        %v2193 = vld [vmem:[#allocation7 + $0x6b0] sm:$0xff]
        %v2194 = vld [vmem:[#allocation7 + $0x6b8] sm:$0xff]
        %v2195 = vld [vmem:[#allocation7 + $0x6c0] sm:$0xff]
        %v2196 = vld [vmem:[#allocation7 + $0x6c8] sm:$0xff]
        %v2197 = vld [vmem:[#allocation7 + $0x6d0] sm:$0xff]
        %v2198 = vld [vmem:[#allocation7 + $0x6d8] sm:$0xff]
        %v2199 = vld [vmem:[#allocation7 + $0x6e0] sm:$0xff]
        %v2200 = vld [vmem:[#allocation7 + $0x6e8] sm:$0xff]
        %v2201 = vld [vmem:[#allocation7 + $0x6f0] sm:$0xff]
        %v2202 = vld [vmem:[#allocation7 + $0x6f8] sm:$0xff]
        %v2203 = vld [vmem:[#allocation7 + $0x700] sm:$0xff]
        %v2204 = vld [vmem:[#allocation7 + $0x708] sm:$0xff]
        %v2205 = vld [vmem:[#allocation7 + $0x710] sm:$0xff]
        %v2206 = vld [vmem:[#allocation7 + $0x718] sm:$0xff]
        %v2207 = vld [vmem:[#allocation7 + $0x720] sm:$0xff]
        %v2208 = vld [vmem:[#allocation7 + $0x728] sm:$0xff]
        %v2209 = vld [vmem:[#allocation7 + $0x730] sm:$0xff]
        %v2210 = vld [vmem:[#allocation7 + $0x738] sm:$0xff]
        %v2211 = vld [vmem:[#allocation7 + $0x740] sm:$0xff]
        %v2212 = vld [vmem:[#allocation7 + $0x748] sm:$0xff]
        %v2213 = vld [vmem:[#allocation7 + $0x750] sm:$0xff]
        %v2214 = vld [vmem:[#allocation7 + $0x758] sm:$0xff]
        %v2215 = vld [vmem:[#allocation7 + $0x760] sm:$0xff]
        %v2216 = vld [vmem:[#allocation7 + $0x768] sm:$0xff]
        %v2217 = vld [vmem:[#allocation7 + $0x770] sm:$0xff]
        %v2218 = vld [vmem:[#allocation7 + $0x778] sm:$0xff]
        %v2219 = vld [vmem:[#allocation7 + $0x780] sm:$0xff]
        %v2220 = vld [vmem:[#allocation7 + $0x788] sm:$0xff]
        %v2221 = vld [vmem:[#allocation7 + $0x790] sm:$0xff]
        %v2222 = vld [vmem:[#allocation7 + $0x798] sm:$0xff]
        %v2223 = vld [vmem:[#allocation7 + $0x7a0] sm:$0xff]
        %v2224 = vld [vmem:[#allocation7 + $0x7a8] sm:$0xff]
        %v2225 = vld [vmem:[#allocation7 + $0x7b0] sm:$0xff]
        %v2226 = vld [vmem:[#allocation7 + $0x7b8] sm:$0xff]
        %v2227 = vld [vmem:[#allocation7 + $0x7c0] sm:$0xff]
        %v2228 = vld [vmem:[#allocation7 + $0x7c8] sm:$0xff]
        %v2229 = vld [vmem:[#allocation7 + $0x7d0] sm:$0xff]
        %v2230 = vld [vmem:[#allocation7 + $0x7d8] sm:$0xff]
        %v2231 = vld [vmem:[#allocation7 + $0x7e0] sm:$0xff]
        %v2232 = vld [vmem:[#allocation7 + $0x7e8] sm:$0xff]
        %v2233 = vld [vmem:[#allocation7 + $0x7f0] sm:$0xff]
        %v2234 = vld [vmem:[#allocation7 + $0x7f8] sm:$0xff]
        %v2235 = vld [vmem:[#allocation7 + $0x800] sm:$0xff]
        %v2236 = vld [vmem:[#allocation7 + $0x808] sm:$0xff]
        %v2237 = vld [vmem:[#allocation7 + $0x810] sm:$0xff]
        %v2238 = vld [vmem:[#allocation7 + $0x818] sm:$0xff]
        %v2239 = vld [vmem:[#allocation7 + $0x820] sm:$0xff]
        %v2240 = vld [vmem:[#allocation7 + $0x828] sm:$0xff]
        %v2241 = vld [vmem:[#allocation7 + $0x830] sm:$0xff]
        %v2242 = vld [vmem:[#allocation7 + $0x838] sm:$0xff]
        %v2243 = vld [vmem:[#allocation7 + $0x840] sm:$0xff]
        %v2244 = vld [vmem:[#allocation7 + $0x848] sm:$0xff]
        %v2245 = vld [vmem:[#allocation7 + $0x850] sm:$0xff]
        %v2246 = vld [vmem:[#allocation7 + $0x858] sm:$0xff]
        %v2247 = vld [vmem:[#allocation7 + $0x860] sm:$0xff]
        %v2248 = vld [vmem:[#allocation7 + $0x868] sm:$0xff]
        %v2249 = vld [vmem:[#allocation7 + $0x870] sm:$0xff]
        %v2250 = vld [vmem:[#allocation7 + $0x878] sm:$0xff]
        %v2251 = vld [vmem:[#allocation7 + $0x880] sm:$0xff]
        %v2252 = vld [vmem:[#allocation7 + $0x888] sm:$0xff]
        %v2253 = vld [vmem:[#allocation7 + $0x890] sm:$0xff]
        %v2254 = vld [vmem:[#allocation7 + $0x898] sm:$0xff]
        %v2255 = vld [vmem:[#allocation7 + $0x8a0] sm:$0xff]
        %v2256 = vld [vmem:[#allocation7 + $0x8a8] sm:$0xff]
        %v2257 = vld [vmem:[#allocation7 + $0x8b0] sm:$0xff]
        %v2258 = vld [vmem:[#allocation7 + $0x8b8] sm:$0xff]
        %v2259 = vld [vmem:[#allocation7 + $0x8c0] sm:$0xff]
        %v2260 = vld [vmem:[#allocation7 + $0x8c8] sm:$0xff]
        %v2261 = vld [vmem:[#allocation7 + $0x8d0] sm:$0xff]
        %v2262 = vld [vmem:[#allocation7 + $0x8d8] sm:$0xff]
        %v2263 = vld [vmem:[#allocation7 + $0x8e0] sm:$0xff]
        %v2264 = vld [vmem:[#allocation7 + $0x8e8] sm:$0xff]
        %v2265 = vld [vmem:[#allocation7 + $0x8f0] sm:$0xff]
        %v2266 = vld [vmem:[#allocation7 + $0x8f8] sm:$0xff]
        %v2267 = vld [vmem:[#allocation7 + $0x900] sm:$0xff]
        %v2268 = vld [vmem:[#allocation7 + $0x908] sm:$0xff]
        %v2269 = vld [vmem:[#allocation7 + $0x910] sm:$0xff]
        %v2270 = vld [vmem:[#allocation7 + $0x918] sm:$0xff]
        %v2271 = vld [vmem:[#allocation7 + $0x920] sm:$0xff]
        %v2272 = vld [vmem:[#allocation7 + $0x928] sm:$0xff]
        %v2273 = vld [vmem:[#allocation7 + $0x930] sm:$0xff]
        %v2274 = vld [vmem:[#allocation7 + $0x938] sm:$0xff]
        %v2275 = vld [vmem:[#allocation7 + $0x940] sm:$0xff]
        %v2276 = vld [vmem:[#allocation7 + $0x948] sm:$0xff]
        %v2277 = vld [vmem:[#allocation7 + $0x950] sm:$0xff]
        %v2278 = vld [vmem:[#allocation7 + $0x958] sm:$0xff]
        %v2279 = vld [vmem:[#allocation7 + $0x960] sm:$0xff]
        %v2280 = vld [vmem:[#allocation7 + $0x968] sm:$0xff]
        %v2281 = vld [vmem:[#allocation7 + $0x970] sm:$0xff]
        %v2282 = vld [vmem:[#allocation7 + $0x978] sm:$0xff]
        %v2283 = vld [vmem:[#allocation7 + $0x980] sm:$0xff]
        %v2284 = vld [vmem:[#allocation7 + $0x988] sm:$0xff]
        %v2285 = vld [vmem:[#allocation7 + $0x990] sm:$0xff]
        %v2286 = vld [vmem:[#allocation7 + $0x998] sm:$0xff]
        %v2287 = vld [vmem:[#allocation7 + $0x9a0] sm:$0xff]
        %v2288 = vld [vmem:[#allocation7 + $0x9a8] sm:$0xff]
        %v2289 = vld [vmem:[#allocation7 + $0x9b0] sm:$0xff]
        %v2290 = vld [vmem:[#allocation7 + $0x9b8] sm:$0xff]
        %v2291 = vld [vmem:[#allocation7 + $0x9c0] sm:$0xff]
        %v2292 = vld [vmem:[#allocation7 + $0x9c8] sm:$0xff]
        %v2293 = vld [vmem:[#allocation7 + $0x9d0] sm:$0xff]
        %v2294 = vld [vmem:[#allocation7 + $0x9d8] sm:$0xff]
        %v2295 = vld [vmem:[#allocation7 + $0x9e0] sm:$0xff]
        %v2296 = vld [vmem:[#allocation7 + $0x9e8] sm:$0xff]
        %v2297 = vld [vmem:[#allocation7 + $0x9f0] sm:$0xff]
        %v2298 = vld [vmem:[#allocation7 + $0x9f8] sm:$0xff]
        %v2299 = vld [vmem:[#allocation7 + $0xa00] sm:$0xff]
        %v2300 = vld [vmem:[#allocation7 + $0xa08] sm:$0xff]
        %v2301 = vld [vmem:[#allocation7 + $0xa10] sm:$0xff]
        %v2302 = vld [vmem:[#allocation7 + $0xa18] sm:$0xff]
        %v2303 = vld [vmem:[#allocation7 + $0xa20] sm:$0xff]
        %v2304 = vld [vmem:[#allocation7 + $0xa28] sm:$0xff]
        %v2305 = vld [vmem:[#allocation7 + $0xa30] sm:$0xff]
        %v2306 = vld [vmem:[#allocation7 + $0xa38] sm:$0xff]
        %v2307 = vld [vmem:[#allocation7 + $0xa40] sm:$0xff]
        %v2308 = vld [vmem:[#allocation7 + $0xa48] sm:$0xff]
        %v2309 = vld [vmem:[#allocation7 + $0xa50] sm:$0xff]
        %v2310 = vld [vmem:[#allocation7 + $0xa58] sm:$0xff]
        %v2311 = vld [vmem:[#allocation7 + $0xa60] sm:$0xff]
        %v2312 = vld [vmem:[#allocation7 + $0xa68] sm:$0xff]
        %v2313 = vld [vmem:[#allocation7 + $0xa70] sm:$0xff]
        %v2314 = vld [vmem:[#allocation7 + $0xa78] sm:$0xff]
        %v2315 = vld [vmem:[#allocation7 + $0xa80] sm:$0xff]
        %v2316 = vld [vmem:[#allocation7 + $0xa88] sm:$0xff]
        %v2317 = vld [vmem:[#allocation7 + $0xa90] sm:$0xff]
        %v2318 = vld [vmem:[#allocation7 + $0xa98] sm:$0xff]
        %v2319 = vld [vmem:[#allocation7 + $0xaa0] sm:$0xff]
        %v2320 = vld [vmem:[#allocation7 + $0xaa8] sm:$0xff]
        %v2321 = vld [vmem:[#allocation7 + $0xab0] sm:$0xff]
        %v2322 = vld [vmem:[#allocation7 + $0xab8] sm:$0xff]
        %v2323 = vld [vmem:[#allocation7 + $0xac0] sm:$0xff]
        %v2324 = vld [vmem:[#allocation7 + $0xac8] sm:$0xff]
        %v2325 = vld [vmem:[#allocation7 + $0xad0] sm:$0xff]
        %v2326 = vld [vmem:[#allocation7 + $0xad8] sm:$0xff]
        %v2327 = vld [vmem:[#allocation7 + $0xae0] sm:$0xff]
        %v2328 = vld [vmem:[#allocation7 + $0xae8] sm:$0xff]
        %v2329 = vld [vmem:[#allocation7 + $0xaf0] sm:$0xff]
        %v2330 = vld [vmem:[#allocation7 + $0xaf8] sm:$0xff]
        %v2331 = vld [vmem:[#allocation7 + $0xb00] sm:$0xff]
        %v2332 = vld [vmem:[#allocation7 + $0xb08] sm:$0xff]
        %v2333 = vld [vmem:[#allocation7 + $0xb10] sm:$0xff]
        %v2334 = vld [vmem:[#allocation7 + $0xb18] sm:$0xff]
        %v2335 = vld [vmem:[#allocation7 + $0xb20] sm:$0xff]
        %v2336 = vld [vmem:[#allocation7 + $0xb28] sm:$0xff]
        %v2337 = vld [vmem:[#allocation7 + $0xb30] sm:$0xff]
        %v2338 = vld [vmem:[#allocation7 + $0xb38] sm:$0xff]
        %v2339 = vld [vmem:[#allocation7 + $0xb40] sm:$0xff]
        %v2340 = vld [vmem:[#allocation7 + $0xb48] sm:$0xff]
        %v2341 = vld [vmem:[#allocation7 + $0xb50] sm:$0xff]
        %v2342 = vld [vmem:[#allocation7 + $0xb58] sm:$0xff]
        %v2343 = vld [vmem:[#allocation7 + $0xb60] sm:$0xff]
        %v2344 = vld [vmem:[#allocation7 + $0xb68] sm:$0xff]
        %v2345 = vld [vmem:[#allocation7 + $0xb70] sm:$0xff]
        %v2346 = vld [vmem:[#allocation7 + $0xb78] sm:$0xff]
        %v2347 = vld [vmem:[#allocation7 + $0xb80] sm:$0xff]
        %v2348 = vld [vmem:[#allocation7 + $0xb88] sm:$0xff]
        %v2349 = vld [vmem:[#allocation7 + $0xb90] sm:$0xff]
        %v2350 = vld [vmem:[#allocation7 + $0xb98] sm:$0xff]
        %v2351 = vld [vmem:[#allocation7 + $0xba0] sm:$0xff]
        %v2352 = vld [vmem:[#allocation7 + $0xba8] sm:$0xff]
        %v2353 = vld [vmem:[#allocation7 + $0xbb0] sm:$0xff]
        %v2354 = vld [vmem:[#allocation7 + $0xbb8] sm:$0xff]
        %v2355 = vld [vmem:[#allocation7 + $0xbc0] sm:$0xff]
        %v2356 = vld [vmem:[#allocation7 + $0xbc8] sm:$0xff]
        %v2357 = vld [vmem:[#allocation7 + $0xbd0] sm:$0xff]
        %v2358 = vld [vmem:[#allocation7 + $0xbd8] sm:$0xff]
        %v2359 = vld [vmem:[#allocation7 + $0xbe0] sm:$0xff]
        %v2360 = vld [vmem:[#allocation7 + $0xbe8] sm:$0xff]
        %v2361 = vld [vmem:[#allocation7 + $0xbf0] sm:$0xff]
        %v2362 = vld [vmem:[#allocation7 + $0xbf8] sm:$0xff]
        %v2363 = vld [vmem:[#allocation7 + $0xc00] sm:$0xff]
        %v2364 = vld [vmem:[#allocation7 + $0xc08] sm:$0xff]
        %v2365 = vld [vmem:[#allocation7 + $0xc10] sm:$0xff]
        %v2366 = vld [vmem:[#allocation7 + $0xc18] sm:$0xff]
        %v2367 = vld [vmem:[#allocation7 + $0xc20] sm:$0xff]
        %v2368 = vld [vmem:[#allocation7 + $0xc28] sm:$0xff]
        %v2369 = vld [vmem:[#allocation7 + $0xc30] sm:$0xff]
        %v2370 = vld [vmem:[#allocation7 + $0xc38] sm:$0xff]
        %v2371 = vld [vmem:[#allocation7 + $0xc40] sm:$0xff]
        %v2372 = vld [vmem:[#allocation7 + $0xc48] sm:$0xff]
        %v2373 = vld [vmem:[#allocation7 + $0xc50] sm:$0xff]
        %v2374 = vld [vmem:[#allocation7 + $0xc58] sm:$0xff]
        %v2375 = vld [vmem:[#allocation7 + $0xc60] sm:$0xff]
        %v2376 = vld [vmem:[#allocation7 + $0xc68] sm:$0xff]
        %v2377 = vld [vmem:[#allocation7 + $0xc70] sm:$0xff]
        %v2378 = vld [vmem:[#allocation7 + $0xc78] sm:$0xff]
        %v2379 = vld [vmem:[#allocation7 + $0xc80] sm:$0xff]
        %v2380 = vld [vmem:[#allocation7 + $0xc88] sm:$0xff]
        %v2381 = vld [vmem:[#allocation7 + $0xc90] sm:$0xff]
        %v2382 = vld [vmem:[#allocation7 + $0xc98] sm:$0xff]
        %v2383 = vld [vmem:[#allocation7 + $0xca0] sm:$0xff]
        %v2384 = vld [vmem:[#allocation7 + $0xca8] sm:$0xff]
        %v2385 = vld [vmem:[#allocation7 + $0xcb0] sm:$0xff]
        %v2386 = vld [vmem:[#allocation7 + $0xcb8] sm:$0xff]
        %v2387 = vld [vmem:[#allocation7 + $0xcc0] sm:$0xff]
        %v2388 = vld [vmem:[#allocation7 + $0xcc8] sm:$0xff]
        %v2389 = vld [vmem:[#allocation7 + $0xcd0] sm:$0xff]
        %v2390 = vld [vmem:[#allocation7 + $0xcd8] sm:$0xff]
        %v2391 = vld [vmem:[#allocation7 + $0xce0] sm:$0xff]
        %v2392 = vld [vmem:[#allocation7 + $0xce8] sm:$0xff]
        %v2393 = vld [vmem:[#allocation7 + $0xcf0] sm:$0xff]
        %v2394 = vld [vmem:[#allocation7 + $0xcf8] sm:$0xff]
        %v2395 = vld [vmem:[#allocation7 + $0xd00] sm:$0xff]
        %v2396 = vld [vmem:[#allocation7 + $0xd08] sm:$0xff]
        %v2397 = vld [vmem:[#allocation7 + $0xd10] sm:$0xff]
        %v2398 = vld [vmem:[#allocation7 + $0xd18] sm:$0xff]
        %v2399 = vld [vmem:[#allocation7 + $0xd20] sm:$0xff]
        %v2400 = vld [vmem:[#allocation7 + $0xd28] sm:$0xff]
        %v2401 = vld [vmem:[#allocation7 + $0xd30] sm:$0xff]
        %v2402 = vld [vmem:[#allocation7 + $0xd38] sm:$0xff]
        %v2403 = vld [vmem:[#allocation7 + $0xd40] sm:$0xff]
        %v2404 = vld [vmem:[#allocation7 + $0xd48] sm:$0xff]
        %v2405 = vld [vmem:[#allocation7 + $0xd50] sm:$0xff]
        %v2406 = vld [vmem:[#allocation7 + $0xd58] sm:$0xff]
        %v2407 = vld [vmem:[#allocation7 + $0xd60] sm:$0xff]
        %v2408 = vld [vmem:[#allocation7 + $0xd68] sm:$0xff]
        %v2409 = vld [vmem:[#allocation7 + $0xd70] sm:$0xff]
        %v2410 = vld [vmem:[#allocation7 + $0xd78] sm:$0xff]
        %v2411 = vld [vmem:[#allocation7 + $0xd80] sm:$0xff]
        %v2412 = vld [vmem:[#allocation7 + $0xd88] sm:$0xff]
        %v2413 = vld [vmem:[#allocation7 + $0xd90] sm:$0xff]
        %v2414 = vld [vmem:[#allocation7 + $0xd98] sm:$0xff]
        %v2415 = vld [vmem:[#allocation7 + $0xda0] sm:$0xff]
        %v2416 = vld [vmem:[#allocation7 + $0xda8] sm:$0xff]
        %v2417 = vld [vmem:[#allocation7 + $0xdb0] sm:$0xff]
        %v2418 = vld [vmem:[#allocation7 + $0xdb8] sm:$0xff]
        %v2419 = vld [vmem:[#allocation7 + $0xdc0] sm:$0xff]
        %v2420 = vld [vmem:[#allocation7 + $0xdc8] sm:$0xff]
        %v2421 = vld [vmem:[#allocation7 + $0xdd0] sm:$0xff]
        %v2422 = vld [vmem:[#allocation7 + $0xdd8] sm:$0xff]
        %v2423 = vld [vmem:[#allocation7 + $0xde0] sm:$0xff]
        %v2424 = vld [vmem:[#allocation7 + $0xde8] sm:$0xff]
        %v2425 = vld [vmem:[#allocation7 + $0xdf0] sm:$0xff]
        %v2426 = vld [vmem:[#allocation7 + $0xdf8] sm:$0xff]
        %v2427 = vld [vmem:[#allocation7 + $0xe00] sm:$0xff]
        %v2428 = vld [vmem:[#allocation7 + $0xe08] sm:$0xff]
        %v2429 = vld [vmem:[#allocation7 + $0xe10] sm:$0xff]
        %v2430 = vld [vmem:[#allocation7 + $0xe18] sm:$0xff]
        %v2431 = vld [vmem:[#allocation7 + $0xe20] sm:$0xff]
        %v2432 = vld [vmem:[#allocation7 + $0xe28] sm:$0xff]
        %v2433 = vld [vmem:[#allocation7 + $0xe30] sm:$0xff]
        %v2434 = vld [vmem:[#allocation7 + $0xe38] sm:$0xff]
        %v2435 = vld [vmem:[#allocation7 + $0xe40] sm:$0xff]
        %v2436 = vld [vmem:[#allocation7 + $0xe48] sm:$0xff]
        %v2437 = vld [vmem:[#allocation7 + $0xe50] sm:$0xff]
        %v2438 = vld [vmem:[#allocation7 + $0xe58] sm:$0xff]
        %v2439 = vld [vmem:[#allocation7 + $0xe60] sm:$0xff]
        %v2440 = vld [vmem:[#allocation7 + $0xe68] sm:$0xff]
        %v2441 = vld [vmem:[#allocation7 + $0xe70] sm:$0xff]
        %v2442 = vld [vmem:[#allocation7 + $0xe78] sm:$0xff]
        %v2443 = vld [vmem:[#allocation7 + $0xe80] sm:$0xff]
        %v2444 = vld [vmem:[#allocation7 + $0xe88] sm:$0xff]
        %v2445 = vld [vmem:[#allocation7 + $0xe90] sm:$0xff]
        %v2446 = vld [vmem:[#allocation7 + $0xe98] sm:$0xff]
        %v2447 = vld [vmem:[#allocation7 + $0xea0] sm:$0xff]
        %v2448 = vld [vmem:[#allocation7 + $0xea8] sm:$0xff]
        %v2449 = vld [vmem:[#allocation7 + $0xeb0] sm:$0xff]
        %v2450 = vld [vmem:[#allocation7 + $0xeb8] sm:$0xff]
        %v2451 = vld [vmem:[#allocation7 + $0xec0] sm:$0xff]
        %v2452 = vld [vmem:[#allocation7 + $0xec8] sm:$0xff]
        %v2453 = vld [vmem:[#allocation7 + $0xed0] sm:$0xff]
        %v2454 = vld [vmem:[#allocation7 + $0xed8] sm:$0xff]
        %v2455 = vld [vmem:[#allocation7 + $0xee0] sm:$0xff]
        %v2456 = vld [vmem:[#allocation7 + $0xee8] sm:$0xff]
        %v2457 = vld [vmem:[#allocation7 + $0xef0] sm:$0xff]
        %v2458 = vld [vmem:[#allocation7 + $0xef8] sm:$0xff]
        %v2459 = vld [vmem:[#allocation7 + $0xf00] sm:$0xff]
        %v2460 = vld [vmem:[#allocation7 + $0xf08] sm:$0xff]
        %v2461 = vld [vmem:[#allocation7 + $0xf10] sm:$0xff]
        %v2462 = vld [vmem:[#allocation7 + $0xf18] sm:$0xff]
        %v2463 = vld [vmem:[#allocation7 + $0xf20] sm:$0xff]
        %v2464 = vld [vmem:[#allocation7 + $0xf28] sm:$0xff]
        %v2465 = vld [vmem:[#allocation7 + $0xf30] sm:$0xff]
        %v2466 = vld [vmem:[#allocation7 + $0xf38] sm:$0xff]
        %v2467 = vld [vmem:[#allocation7 + $0xf40] sm:$0xff]
        %v2468 = vld [vmem:[#allocation7 + $0xf48] sm:$0xff]
        %v2469 = vld [vmem:[#allocation7 + $0xf50] sm:$0xff]
        %v2470 = vld [vmem:[#allocation7 + $0xf58] sm:$0xff]
        %v2471 = vld [vmem:[#allocation7 + $0xf60] sm:$0xff]
        %v2472 = vld [vmem:[#allocation7 + $0xf68] sm:$0xff]
        %v2473 = vld [vmem:[#allocation7 + $0xf70] sm:$0xff]
        %v2474 = vld [vmem:[#allocation7 + $0xf78] sm:$0xff]
        %v2475 = vld [vmem:[#allocation7 + $0xf80] sm:$0xff]
        %v2476 = vld [vmem:[#allocation7 + $0xf88] sm:$0xff]
        %v2477 = vld [vmem:[#allocation7 + $0xf90] sm:$0xff]
        %v2478 = vld [vmem:[#allocation7 + $0xf98] sm:$0xff]
        %v2479 = vld [vmem:[#allocation7 + $0xfa0] sm:$0xff]
        %v2480 = vld [vmem:[#allocation7 + $0xfa8] sm:$0xff]
        %v2481 = vld [vmem:[#allocation7 + $0xfb0] sm:$0xff]
        %v2482 = vld [vmem:[#allocation7 + $0xfb8] sm:$0xff]
        %v2483 = vld [vmem:[#allocation7 + $0xfc0] sm:$0xff]
        %v2484 = vld [vmem:[#allocation7 + $0xfc8] sm:$0xff]
        %v2485 = vld [vmem:[#allocation7 + $0xfd0] sm:$0xff]
        %v2486 = vld [vmem:[#allocation7 + $0xfd8] sm:$0xff]
        %v2487 = vld [vmem:[#allocation7 + $0xfe0] sm:$0xff]
        %v2488 = vld [vmem:[#allocation7 + $0xfe8] sm:$0xff]
        %v2489 = vld [vmem:[#allocation7 + $0xff0] sm:$0xff]
        %v2490 = vld [vmem:[#allocation7 + $0xff8] sm:$0xff]
        %v2491 = vld [vmem:[#allocation7 + $0x1000] sm:$0xff]
        %v2492 = vld [vmem:[#allocation7 + $0x1008] sm:$0xff]
        %v2493 = vld [vmem:[#allocation7 + $0x1010] sm:$0xff]
        %v2494 = vld [vmem:[#allocation7 + $0x1018] sm:$0xff]
        %v2495 = vld [vmem:[#allocation7 + $0x1020] sm:$0xff]
        %v2496 = vld [vmem:[#allocation7 + $0x1028] sm:$0xff]
        %v2497 = vld [vmem:[#allocation7 + $0x1030] sm:$0xff]
        %v2498 = vld [vmem:[#allocation7 + $0x1038] sm:$0xff]
        %v2499 = vld [vmem:[#allocation7 + $0x1040] sm:$0xff]
        %v2500 = vld [vmem:[#allocation7 + $0x1048] sm:$0xff]
        %v2501 = vld [vmem:[#allocation7 + $0x1050] sm:$0xff]
        %v2502 = vld [vmem:[#allocation7 + $0x1058] sm:$0xff]
        %v2503 = vld [vmem:[#allocation7 + $0x1060] sm:$0xff]
        %v2504 = vld [vmem:[#allocation7 + $0x1068] sm:$0xff]
        %v2505 = vld [vmem:[#allocation7 + $0x1070] sm:$0xff]
        %v2506 = vld [vmem:[#allocation7 + $0x1078] sm:$0xff]
        %v2507 = vld [vmem:[#allocation7 + $0x1080] sm:$0xff]
        %v2508 = vld [vmem:[#allocation7 + $0x1088] sm:$0xff]
        %v2509 = vld [vmem:[#allocation7 + $0x1090] sm:$0xff]
        %v2510 = vld [vmem:[#allocation7 + $0x1098] sm:$0xff]
        %v2511 = vld [vmem:[#allocation7 + $0x10a0] sm:$0xff]
        %v2512 = vld [vmem:[#allocation7 + $0x10a8] sm:$0xff]
        %v2513 = vld [vmem:[#allocation7 + $0x10b0] sm:$0xff]
        %v2514 = vld [vmem:[#allocation7 + $0x10b8] sm:$0xff]
        %v2515 = vld [vmem:[#allocation7 + $0x10c0] sm:$0xff]
        %v2516 = vld [vmem:[#allocation7 + $0x10c8] sm:$0xff]
        %v2517 = vld [vmem:[#allocation7 + $0x10d0] sm:$0xff]
        %v2518 = vld [vmem:[#allocation7 + $0x10d8] sm:$0xff]
        %v2519 = vld [vmem:[#allocation7 + $0x10e0] sm:$0xff]
        %v2520 = vld [vmem:[#allocation7 + $0x10e8] sm:$0xff]
        %v2521 = vld [vmem:[#allocation7 + $0x10f0] sm:$0xff]
        %v2522 = vld [vmem:[#allocation7 + $0x10f8] sm:$0xff]
        %v2523 = vld [vmem:[#allocation7 + $0x1100] sm:$0xff]
        %v2524 = vld [vmem:[#allocation7 + $0x1108] sm:$0xff]
        %v2525 = vld [vmem:[#allocation7 + $0x1110] sm:$0xff]
        %v2526 = vld [vmem:[#allocation7 + $0x1118] sm:$0xff]
        %v2527 = vld [vmem:[#allocation7 + $0x1120] sm:$0xff]
        %v2528 = vld [vmem:[#allocation7 + $0x1128] sm:$0xff]
        %v2529 = vld [vmem:[#allocation7 + $0x1130] sm:$0xff]
        %v2530 = vld [vmem:[#allocation7 + $0x1138] sm:$0xff]
        %v2531 = vld [vmem:[#allocation7 + $0x1140] sm:$0xff]
        %v2532 = vld [vmem:[#allocation7 + $0x1148] sm:$0xff]
        %v2533 = vld [vmem:[#allocation7 + $0x1150] sm:$0xff]
        %v2534 = vld [vmem:[#allocation7 + $0x1158] sm:$0xff]
        %v2535 = vld [vmem:[#allocation7 + $0x1160] sm:$0xff]
        %v2536 = vld [vmem:[#allocation7 + $0x1168] sm:$0xff]
        %v2537 = vld [vmem:[#allocation7 + $0x1170] sm:$0xff]
        %v2538 = vld [vmem:[#allocation7 + $0x1178] sm:$0xff]
        %v2539 = vld [vmem:[#allocation7 + $0x1180] sm:$0xff]
        %v2540 = vld [vmem:[#allocation7 + $0x1188] sm:$0xff]
        %v2541 = vld [vmem:[#allocation7 + $0x1190] sm:$0xff]
        %v2542 = vld [vmem:[#allocation7 + $0x1198] sm:$0xff]
        %v2543 = vld [vmem:[#allocation7 + $0x11a0] sm:$0xff]
        %v2544 = vld [vmem:[#allocation7 + $0x11a8] sm:$0xff]
        %v2545 = vld [vmem:[#allocation7 + $0x11b0] sm:$0xff]
        %v2546 = vld [vmem:[#allocation7 + $0x11b8] sm:$0xff]
        %v2547 = vld [vmem:[#allocation7 + $0x11c0] sm:$0xff]
        %v2548 = vld [vmem:[#allocation7 + $0x11c8] sm:$0xff]
        %v2549 = vld [vmem:[#allocation7 + $0x11d0] sm:$0xff]
        %v2550 = vld [vmem:[#allocation7 + $0x11d8] sm:$0xff]
        %v2551 = vld [vmem:[#allocation7 + $0x11e0] sm:$0xff]
        %v2552 = vld [vmem:[#allocation7 + $0x11e8] sm:$0xff]
        %v2553 = vld [vmem:[#allocation7 + $0x11f0] sm:$0xff]
        %v2554 = vld [vmem:[#allocation7 + $0x11f8] sm:$0xff]
        %v2555 = vld [vmem:[#allocation7 + $0x1200] sm:$0xff]
        %v2556 = vld [vmem:[#allocation7 + $0x1208] sm:$0xff]
        %v2557 = vld [vmem:[#allocation7 + $0x1210] sm:$0xff]
        %v2558 = vld [vmem:[#allocation7 + $0x1218] sm:$0xff]
        %v2559 = vld [vmem:[#allocation7 + $0x1220] sm:$0xff]
        %v2560 = vld [vmem:[#allocation7 + $0x1228] sm:$0xff]
        %v2561 = vld [vmem:[#allocation7 + $0x1230] sm:$0xff]
        %v2562 = vld [vmem:[#allocation7 + $0x1238] sm:$0xff]
        %v2563 = vld [vmem:[#allocation7 + $0x1240] sm:$0xff]
        %v2564 = vld [vmem:[#allocation7 + $0x1248] sm:$0xff]
        %v2565 = vld [vmem:[#allocation7 + $0x1250] sm:$0xff]
        %v2566 = vld [vmem:[#allocation7 + $0x1258] sm:$0xff]
        %v2567 = vld [vmem:[#allocation7 + $0x1260] sm:$0xff]
        %v2568 = vld [vmem:[#allocation7 + $0x1268] sm:$0xff]
        %v2569 = vld [vmem:[#allocation7 + $0x1270] sm:$0xff]
        %v2570 = vld [vmem:[#allocation7 + $0x1278] sm:$0xff]
        %v2571 = vld [vmem:[#allocation7 + $0x1280] sm:$0xff]
        %v2572 = vld [vmem:[#allocation7 + $0x1288] sm:$0xff]
        %v2573 = vld [vmem:[#allocation7 + $0x1290] sm:$0xff]
        %v2574 = vld [vmem:[#allocation7 + $0x1298] sm:$0xff]
        %v2575 = vld [vmem:[#allocation7 + $0x12a0] sm:$0xff]
        %v2576 = vld [vmem:[#allocation7 + $0x12a8] sm:$0xff]
        %v2577 = vld [vmem:[#allocation7 + $0x12b0] sm:$0xff]
        %v2578 = vld [vmem:[#allocation7 + $0x12b8] sm:$0xff]
        %v2579 = vld [vmem:[#allocation7 + $0x12c0] sm:$0xff]
        %v2580 = vld [vmem:[#allocation7 + $0x12c8] sm:$0xff]
        %v2581 = vld [vmem:[#allocation7 + $0x12d0] sm:$0xff]
        %v2582 = vld [vmem:[#allocation7 + $0x12d8] sm:$0xff]
        %v2583 = vld [vmem:[#allocation7 + $0x12e0] sm:$0xff]
        %v2584 = vld [vmem:[#allocation7 + $0x12e8] sm:$0xff]
        %v2585 = vld [vmem:[#allocation7 + $0x12f0] sm:$0xff]
        %v2586 = vld [vmem:[#allocation7 + $0x12f8] sm:$0xff]
        %v2587 = vld [vmem:[#allocation7 + $0x1300] sm:$0xff]
        %v2588 = vld [vmem:[#allocation7 + $0x1308] sm:$0xff]
        %v2589 = vld [vmem:[#allocation7 + $0x1310] sm:$0xff]
        %v2590 = vld [vmem:[#allocation7 + $0x1318] sm:$0xff]
        %v2591 = vld [vmem:[#allocation7 + $0x1320] sm:$0xff]
        %v2592 = vld [vmem:[#allocation7 + $0x1328] sm:$0xff]
        %v2593 = vld [vmem:[#allocation7 + $0x1330] sm:$0xff]
        %v2594 = vld [vmem:[#allocation7 + $0x1338] sm:$0xff]
        %v2595 = vld [vmem:[#allocation7 + $0x1340] sm:$0xff]
        %v2596 = vld [vmem:[#allocation7 + $0x1348] sm:$0xff]
        %v2597 = vld [vmem:[#allocation7 + $0x1350] sm:$0xff]
        %v2598 = vld [vmem:[#allocation7 + $0x1358] sm:$0xff]
        %v2599 = vld [vmem:[#allocation7 + $0x1360] sm:$0xff]
        %v2600 = vld [vmem:[#allocation7 + $0x1368] sm:$0xff]
        %v2601 = vld [vmem:[#allocation7 + $0x1370] sm:$0xff]
        %v2602 = vld [vmem:[#allocation7 + $0x1378] sm:$0xff]
        %v2603 = vld [vmem:[#allocation7 + $0x1380] sm:$0xff]
        %v2604 = vld [vmem:[#allocation7 + $0x1388] sm:$0xff]
        %v2605 = vld [vmem:[#allocation7 + $0x1390] sm:$0xff]
        %v2606 = vld [vmem:[#allocation7 + $0x1398] sm:$0xff]
        %v2607 = vld [vmem:[#allocation7 + $0x13a0] sm:$0xff]
        %v2608 = vld [vmem:[#allocation7 + $0x13a8] sm:$0xff]
        %v2609 = vld [vmem:[#allocation7 + $0x13b0] sm:$0xff]
        %v2610 = vld [vmem:[#allocation7 + $0x13b8] sm:$0xff]
        %v2611 = vld [vmem:[#allocation7 + $0x13c0] sm:$0xff]
        %v2612 = vld [vmem:[#allocation7 + $0x13c8] sm:$0xff]
        %v2613 = vld [vmem:[#allocation7 + $0x13d0] sm:$0xff]
        %v2614 = vld [vmem:[#allocation7 + $0x13d8] sm:$0xff]
        %v2615 = vld [vmem:[#allocation7 + $0x13e0] sm:$0xff]
        %v2616 = vld [vmem:[#allocation7 + $0x13e8] sm:$0xff]
        %v2617 = vld [vmem:[#allocation7 + $0x13f0] sm:$0xff]
        %v2618 = vld [vmem:[#allocation7 + $0x13f8] sm:$0xff]
        %v2619 = vld [vmem:[#allocation7 + $0x1400] sm:$0xff]
        %v2620 = vld [vmem:[#allocation7 + $0x1408] sm:$0xff]
        %v2621 = vld [vmem:[#allocation7 + $0x1410] sm:$0xff]
        %v2622 = vld [vmem:[#allocation7 + $0x1418] sm:$0xff]
        %v2623 = vld [vmem:[#allocation7 + $0x1420] sm:$0xff]
        %v2624 = vld [vmem:[#allocation7 + $0x1428] sm:$0xff]
        %v2625 = vld [vmem:[#allocation7 + $0x1430] sm:$0xff]
        %v2626 = vld [vmem:[#allocation7 + $0x1438] sm:$0xff]
        %v2627 = vld [vmem:[#allocation7 + $0x1440] sm:$0xff]
        %v2628 = vld [vmem:[#allocation7 + $0x1448] sm:$0xff]
        %v2629 = vld [vmem:[#allocation7 + $0x1450] sm:$0xff]
        %v2630 = vld [vmem:[#allocation7 + $0x1458] sm:$0xff]
        %v2631 = vld [vmem:[#allocation7 + $0x1460] sm:$0xff]
        %v2632 = vld [vmem:[#allocation7 + $0x1468] sm:$0xff]
        %v2633 = vld [vmem:[#allocation7 + $0x1470] sm:$0xff]
        %v2634 = vld [vmem:[#allocation7 + $0x1478] sm:$0xff]
        %v2635 = vld [vmem:[#allocation7 + $0x1480] sm:$0xff]
        %v2636 = vld [vmem:[#allocation7 + $0x1488] sm:$0xff]
        %v2637 = vld [vmem:[#allocation7 + $0x1490] sm:$0xff]
        %v2638 = vld [vmem:[#allocation7 + $0x1498] sm:$0xff]
        %v2639 = vld [vmem:[#allocation7 + $0x14a0] sm:$0xff]
        %v2640 = vld [vmem:[#allocation7 + $0x14a8] sm:$0xff]
        %v2641 = vld [vmem:[#allocation7 + $0x14b0] sm:$0xff]
        %v2642 = vld [vmem:[#allocation7 + $0x14b8] sm:$0xff]
        %v2643 = vld [vmem:[#allocation7 + $0x14c0] sm:$0xff]
        %v2644 = vld [vmem:[#allocation7 + $0x14c8] sm:$0xff]
        %v2645 = vld [vmem:[#allocation7 + $0x14d0] sm:$0xff]
        %v2646 = vld [vmem:[#allocation7 + $0x14d8] sm:$0xff]
        %v2647 = vld [vmem:[#allocation7 + $0x14e0] sm:$0xff]
        %v2648 = vld [vmem:[#allocation7 + $0x14e8] sm:$0xff]
        %v2649 = vld [vmem:[#allocation7 + $0x14f0] sm:$0xff]
        %v2650 = vld [vmem:[#allocation7 + $0x14f8] sm:$0xff]
        %v2651 = vld [vmem:[#allocation7 + $0x1500] sm:$0xff]
        %v2652 = vld [vmem:[#allocation7 + $0x1508] sm:$0xff]
        %v2653 = vld [vmem:[#allocation7 + $0x1510] sm:$0xff]
        %v2654 = vld [vmem:[#allocation7 + $0x1518] sm:$0xff]
        %v2655 = vld [vmem:[#allocation7 + $0x1520] sm:$0xff]
        %v2656 = vld [vmem:[#allocation7 + $0x1528] sm:$0xff]
        %v2657 = vld [vmem:[#allocation7 + $0x1530] sm:$0xff]
        %v2658 = vld [vmem:[#allocation7 + $0x1538] sm:$0xff]
        %v2659 = vld [vmem:[#allocation7 + $0x1540] sm:$0xff]
        %v2660 = vld [vmem:[#allocation7 + $0x1548] sm:$0xff]
        %v2661 = vld [vmem:[#allocation7 + $0x1550] sm:$0xff]
        %v2662 = vld [vmem:[#allocation7 + $0x1558] sm:$0xff]
        %v2663 = vld [vmem:[#allocation7 + $0x1560] sm:$0xff]
        %v2664 = vld [vmem:[#allocation7 + $0x1568] sm:$0xff]
        %v2665 = vld [vmem:[#allocation7 + $0x1570] sm:$0xff]
        %v2666 = vld [vmem:[#allocation7 + $0x1578] sm:$0xff]
        %v2667 = vld [vmem:[#allocation7 + $0x1580] sm:$0xff]
        %v2668 = vld [vmem:[#allocation7 + $0x1588] sm:$0xff]
        %v2669 = vld [vmem:[#allocation7 + $0x1590] sm:$0xff]
        %v2670 = vld [vmem:[#allocation7 + $0x1598] sm:$0xff]
        %v2671 = vld [vmem:[#allocation7 + $0x15a0] sm:$0xff]
        %v2672 = vld [vmem:[#allocation7 + $0x15a8] sm:$0xff]
        %v2673 = vld [vmem:[#allocation7 + $0x15b0] sm:$0xff]
        %v2674 = vld [vmem:[#allocation7 + $0x15b8] sm:$0xff]
        %v2675 = vld [vmem:[#allocation7 + $0x15c0] sm:$0xff]
        %v2676 = vld [vmem:[#allocation7 + $0x15c8] sm:$0xff]
        %v2677 = vld [vmem:[#allocation7 + $0x15d0] sm:$0xff]
        %v2678 = vld [vmem:[#allocation7 + $0x15d8] sm:$0xff]
        %v2679 = vld [vmem:[#allocation7 + $0x15e0] sm:$0xff]
        %v2680 = vld [vmem:[#allocation7 + $0x15e8] sm:$0xff]
        %v2681 = vld [vmem:[#allocation7 + $0x15f0] sm:$0xff]
        %v2682 = vld [vmem:[#allocation7 + $0x15f8] sm:$0xff]
        %v2683 = vld [vmem:[#allocation7 + $0x1600] sm:$0xff]
        %v2684 = vld [vmem:[#allocation7 + $0x1608] sm:$0xff]
        %v2685 = vld [vmem:[#allocation7 + $0x1610] sm:$0xff]
        %v2686 = vld [vmem:[#allocation7 + $0x1618] sm:$0xff]
        %v2687 = vld [vmem:[#allocation7 + $0x1620] sm:$0xff]
        %v2688 = vld [vmem:[#allocation7 + $0x1628] sm:$0xff]
        %v2689 = vld [vmem:[#allocation7 + $0x1630] sm:$0xff]
        %v2690 = vld [vmem:[#allocation7 + $0x1638] sm:$0xff]
        %v2691 = vld [vmem:[#allocation7 + $0x1640] sm:$0xff]
        %v2692 = vld [vmem:[#allocation7 + $0x1648] sm:$0xff]
        %v2693 = vld [vmem:[#allocation7 + $0x1650] sm:$0xff]
        %v2694 = vld [vmem:[#allocation7 + $0x1658] sm:$0xff]
        %v2695 = vld [vmem:[#allocation7 + $0x1660] sm:$0xff]
        %v2696 = vld [vmem:[#allocation7 + $0x1668] sm:$0xff]
        %v2697 = vld [vmem:[#allocation7 + $0x1670] sm:$0xff]
        %v2698 = vld [vmem:[#allocation7 + $0x1678] sm:$0xff]
        %v2699 = vld [vmem:[#allocation7 + $0x1680] sm:$0xff]
        %v2700 = vld [vmem:[#allocation7 + $0x1688] sm:$0xff]
        %v2701 = vld [vmem:[#allocation7 + $0x1690] sm:$0xff]
        %v2702 = vld [vmem:[#allocation7 + $0x1698] sm:$0xff]
        %v2703 = vld [vmem:[#allocation7 + $0x16a0] sm:$0xff]
        %v2704 = vld [vmem:[#allocation7 + $0x16a8] sm:$0xff]
        %v2705 = vld [vmem:[#allocation7 + $0x16b0] sm:$0xff]
        %v2706 = vld [vmem:[#allocation7 + $0x16b8] sm:$0xff]
        %v2707 = vld [vmem:[#allocation7 + $0x16c0] sm:$0xff]
        %v2708 = vld [vmem:[#allocation7 + $0x16c8] sm:$0xff]
        %v2709 = vld [vmem:[#allocation7 + $0x16d0] sm:$0xff]
        %v2710 = vld [vmem:[#allocation7 + $0x16d8] sm:$0xff]
        %v2711 = vld [vmem:[#allocation7 + $0x16e0] sm:$0xff]
        %v2712 = vld [vmem:[#allocation7 + $0x16e8] sm:$0xff]
        %v2713 = vld [vmem:[#allocation7 + $0x16f0] sm:$0xff]
        %v2714 = vld [vmem:[#allocation7 + $0x16f8] sm:$0xff]
        %v2715 = vld [vmem:[#allocation7 + $0x1700] sm:$0xff]
        %v2716 = vld [vmem:[#allocation7 + $0x1708] sm:$0xff]
        %v2717 = vld [vmem:[#allocation7 + $0x1710] sm:$0xff]
        %v2718 = vld [vmem:[#allocation7 + $0x1718] sm:$0xff]
        %v2719 = vld [vmem:[#allocation7 + $0x1720] sm:$0xff]
        %v2720 = vld [vmem:[#allocation7 + $0x1728] sm:$0xff]
        %v2721 = vld [vmem:[#allocation7 + $0x1730] sm:$0xff]
        %v2722 = vld [vmem:[#allocation7 + $0x1738] sm:$0xff]
        %v2723 = vld [vmem:[#allocation7 + $0x1740] sm:$0xff]
        %v2724 = vld [vmem:[#allocation7 + $0x1748] sm:$0xff]
        %v2725 = vld [vmem:[#allocation7 + $0x1750] sm:$0xff]
        %v2726 = vld [vmem:[#allocation7 + $0x1758] sm:$0xff]
        %v2727 = vld [vmem:[#allocation7 + $0x1760] sm:$0xff]
        %v2728 = vld [vmem:[#allocation7 + $0x1768] sm:$0xff]
        %v2729 = vld [vmem:[#allocation7 + $0x1770] sm:$0xff]
        %v2730 = vld [vmem:[#allocation7 + $0x1778] sm:$0xff]
        %v2731 = vld [vmem:[#allocation7 + $0x1780] sm:$0xff]
        %v2732 = vld [vmem:[#allocation7 + $0x1788] sm:$0xff]
        %v2733 = vld [vmem:[#allocation7 + $0x1790] sm:$0xff]
        %v2734 = vld [vmem:[#allocation7 + $0x1798] sm:$0xff]
        %v2735 = vld [vmem:[#allocation7 + $0x17a0] sm:$0xff]
        %v2736 = vld [vmem:[#allocation7 + $0x17a8] sm:$0xff]
        %v2737 = vld [vmem:[#allocation7 + $0x17b0] sm:$0xff]
        %v2738 = vld [vmem:[#allocation7 + $0x17b8] sm:$0xff]
        %v2739 = vld [vmem:[#allocation7 + $0x17c0] sm:$0xff]
        %v2740 = vld [vmem:[#allocation7 + $0x17c8] sm:$0xff]
        %v2741 = vld [vmem:[#allocation7 + $0x17d0] sm:$0xff]
        %v2742 = vld [vmem:[#allocation7 + $0x17d8] sm:$0xff]
        %v2743 = vld [vmem:[#allocation7 + $0x17e0] sm:$0xff]
        %v2744 = vld [vmem:[#allocation7 + $0x17e8] sm:$0xff]
        %v2745 = vld [vmem:[#allocation7 + $0x17f0] sm:$0xff]
        %v2746 = vld [vmem:[#allocation7 + $0x17f8] sm:$0xff]
        %v2747 = vld [vmem:[#allocation7 + $0x1800] sm:$0xff]
        %v2748 = vld [vmem:[#allocation7 + $0x1808] sm:$0xff]
        %v2749 = vld [vmem:[#allocation7 + $0x1810] sm:$0xff]
        %v2750 = vld [vmem:[#allocation7 + $0x1818] sm:$0xff]
        %v2751 = vld [vmem:[#allocation7 + $0x1820] sm:$0xff]
        %v2752 = vld [vmem:[#allocation7 + $0x1828] sm:$0xff]
        %v2753 = vld [vmem:[#allocation7 + $0x1830] sm:$0xff]
        %v2754 = vld [vmem:[#allocation7 + $0x1838] sm:$0xff]
        %v2755 = vld [vmem:[#allocation7 + $0x1840] sm:$0xff]
        %v2756 = vld [vmem:[#allocation7 + $0x1848] sm:$0xff]
        %v2757 = vld [vmem:[#allocation7 + $0x1850] sm:$0xff]
        %v2758 = vld [vmem:[#allocation7 + $0x1858] sm:$0xff]
        %v2759 = vld [vmem:[#allocation7 + $0x1860] sm:$0xff]
        %v2760 = vld [vmem:[#allocation7 + $0x1868] sm:$0xff]
        %v2761 = vld [vmem:[#allocation7 + $0x1870] sm:$0xff]
        %v2762 = vld [vmem:[#allocation7 + $0x1878] sm:$0xff]
        %v2763 = vld [vmem:[#allocation7 + $0x1880] sm:$0xff]
        %v2764 = vld [vmem:[#allocation7 + $0x1888] sm:$0xff]
        %v2765 = vld [vmem:[#allocation7 + $0x1890] sm:$0xff]
        %v2766 = vld [vmem:[#allocation7 + $0x1898] sm:$0xff]
        %v2767 = vld [vmem:[#allocation7 + $0x18a0] sm:$0xff]
        %v2768 = vld [vmem:[#allocation7 + $0x18a8] sm:$0xff]
        %v2769 = vld [vmem:[#allocation7 + $0x18b0] sm:$0xff]
        %v2770 = vld [vmem:[#allocation7 + $0x18b8] sm:$0xff]
        %v2771 = vld [vmem:[#allocation7 + $0x18c0] sm:$0xff]
        %v2772 = vld [vmem:[#allocation7 + $0x18c8] sm:$0xff]
        %v2773 = vld [vmem:[#allocation7 + $0x18d0] sm:$0xff]
        %v2774 = vld [vmem:[#allocation7 + $0x18d8] sm:$0xff]
        %v2775 = vld [vmem:[#allocation7 + $0x18e0] sm:$0xff]
        %v2776 = vld [vmem:[#allocation7 + $0x18e8] sm:$0xff]
        %v2777 = vld [vmem:[#allocation7 + $0x18f0] sm:$0xff]
        %v2778 = vld [vmem:[#allocation7 + $0x18f8] sm:$0xff]
        %v2779 = vld [vmem:[#allocation7 + $0x1900] sm:$0xff]
        %v2780 = vld [vmem:[#allocation7 + $0x1908] sm:$0xff]
        %v2781 = vld [vmem:[#allocation7 + $0x1910] sm:$0xff]
        %v2782 = vld [vmem:[#allocation7 + $0x1918] sm:$0xff]
        %v2783 = vld [vmem:[#allocation7 + $0x1920] sm:$0xff]
        %v2784 = vld [vmem:[#allocation7 + $0x1928] sm:$0xff]
        %v2785 = vld [vmem:[#allocation7 + $0x1930] sm:$0xff]
        %v2786 = vld [vmem:[#allocation7 + $0x1938] sm:$0xff]
        %v2787 = vld [vmem:[#allocation7 + $0x1940] sm:$0xff]
        %v2788 = vld [vmem:[#allocation7 + $0x1948] sm:$0xff]
        %v2789 = vld [vmem:[#allocation7 + $0x1950] sm:$0xff]
        %v2790 = vld [vmem:[#allocation7 + $0x1958] sm:$0xff]
        %v2791 = vld [vmem:[#allocation7 + $0x1960] sm:$0xff]
        %v2792 = vld [vmem:[#allocation7 + $0x1968] sm:$0xff]
        %v2793 = vld [vmem:[#allocation7 + $0x1970] sm:$0xff]
        %v2794 = vld [vmem:[#allocation7 + $0x1978] sm:$0xff]
        %v2795 = vld [vmem:[#allocation7 + $0x1980] sm:$0xff]
        %v2796 = vld [vmem:[#allocation7 + $0x1988] sm:$0xff]
        %v2797 = vld [vmem:[#allocation7 + $0x1990] sm:$0xff]
        %v2798 = vld [vmem:[#allocation7 + $0x1998] sm:$0xff]
        %v2799 = vld [vmem:[#allocation7 + $0x19a0] sm:$0xff]
        %v2800 = vld [vmem:[#allocation7 + $0x19a8] sm:$0xff]
        %v2801 = vld [vmem:[#allocation7 + $0x19b0] sm:$0xff]
        %v2802 = vld [vmem:[#allocation7 + $0x19b8] sm:$0xff]
        %v2803 = vld [vmem:[#allocation7 + $0x19c0] sm:$0xff]
        %v2804 = vld [vmem:[#allocation7 + $0x19c8] sm:$0xff]
        %v2805 = vld [vmem:[#allocation7 + $0x19d0] sm:$0xff]
        %v2806 = vld [vmem:[#allocation7 + $0x19d8] sm:$0xff]
        %v2807 = vld [vmem:[#allocation7 + $0x19e0] sm:$0xff]
        %v2808 = vld [vmem:[#allocation7 + $0x19e8] sm:$0xff]
        %v2809 = vld [vmem:[#allocation7 + $0x19f0] sm:$0xff]
        %v2810 = vld [vmem:[#allocation7 + $0x19f8] sm:$0xff]
        %v2811 = vld [vmem:[#allocation7 + $0x1a00] sm:$0xff]
        %v2812 = vld [vmem:[#allocation7 + $0x1a08] sm:$0xff]
        %v2813 = vld [vmem:[#allocation7 + $0x1a10] sm:$0xff]
        %v2814 = vld [vmem:[#allocation7 + $0x1a18] sm:$0xff]
        %v2815 = vld [vmem:[#allocation7 + $0x1a20] sm:$0xff]
        %v2816 = vld [vmem:[#allocation7 + $0x1a28] sm:$0xff]
        %v2817 = vld [vmem:[#allocation7 + $0x1a30] sm:$0xff]
        %v2818 = vld [vmem:[#allocation7 + $0x1a38] sm:$0xff]
        %v2819 = vld [vmem:[#allocation7 + $0x1a40] sm:$0xff]
        %v2820 = vld [vmem:[#allocation7 + $0x1a48] sm:$0xff]
        %v2821 = vld [vmem:[#allocation7 + $0x1a50] sm:$0xff]
        %v2822 = vld [vmem:[#allocation7 + $0x1a58] sm:$0xff]
        %v2823 = vld [vmem:[#allocation7 + $0x1a60] sm:$0xff]
        %v2824 = vld [vmem:[#allocation7 + $0x1a68] sm:$0xff]
        %v2825 = vld [vmem:[#allocation7 + $0x1a70] sm:$0xff]
        %v2826 = vld [vmem:[#allocation7 + $0x1a78] sm:$0xff]
        %v2827 = vld [vmem:[#allocation7 + $0x1a80] sm:$0xff]
        %v2828 = vld [vmem:[#allocation7 + $0x1a88] sm:$0xff]
        %v2829 = vld [vmem:[#allocation7 + $0x1a90] sm:$0xff]
        %v2830 = vld [vmem:[#allocation7 + $0x1a98] sm:$0xff]
        %v2831 = vld [vmem:[#allocation7 + $0x1aa0] sm:$0xff]
        %v2832 = vld [vmem:[#allocation7 + $0x1aa8] sm:$0xff]
        %v2833 = vld [vmem:[#allocation7 + $0x1ab0] sm:$0xff]
        %v2834 = vld [vmem:[#allocation7 + $0x1ab8] sm:$0xff]
        %v2835 = vld [vmem:[#allocation7 + $0x1ac0] sm:$0xff]
        %v2836 = vld [vmem:[#allocation7 + $0x1ac8] sm:$0xff]
        %v2837 = vld [vmem:[#allocation7 + $0x1ad0] sm:$0xff]
        %v2838 = vld [vmem:[#allocation7 + $0x1ad8] sm:$0xff]
        %v2839 = vld [vmem:[#allocation7 + $0x1ae0] sm:$0xff]
        %v2840 = vld [vmem:[#allocation7 + $0x1ae8] sm:$0xff]
        %v2841 = vld [vmem:[#allocation7 + $0x1af0] sm:$0xff]
        %v2842 = vld [vmem:[#allocation7 + $0x1af8] sm:$0xff]
        %v2843 = vld [vmem:[#allocation7 + $0x1b00] sm:$0xff]
        %v2844 = vld [vmem:[#allocation7 + $0x1b08] sm:$0xff]
        %v2845 = vld [vmem:[#allocation7 + $0x1b10] sm:$0xff]
        %v2846 = vld [vmem:[#allocation7 + $0x1b18] sm:$0xff]
        %v2847 = vld [vmem:[#allocation7 + $0x1b20] sm:$0xff]
        %v2848 = vld [vmem:[#allocation7 + $0x1b28] sm:$0xff]
        %v2849 = vld [vmem:[#allocation7 + $0x1b30] sm:$0xff]
        %v2850 = vld [vmem:[#allocation7 + $0x1b38] sm:$0xff]
        %v2851 = vld [vmem:[#allocation7 + $0x1b40] sm:$0xff]
        %v2852 = vld [vmem:[#allocation7 + $0x1b48] sm:$0xff]
        %v2853 = vld [vmem:[#allocation7 + $0x1b50] sm:$0xff]
        %v2854 = vld [vmem:[#allocation7 + $0x1b58] sm:$0xff]
        %v2855 = vld [vmem:[#allocation7 + $0x1b60] sm:$0xff]
        %v2856 = vld [vmem:[#allocation7 + $0x1b68] sm:$0xff]
        %v2857 = vld [vmem:[#allocation7 + $0x1b70] sm:$0xff]
        %v2858 = vld [vmem:[#allocation7 + $0x1b78] sm:$0xff]
        %v2859 = vld [vmem:[#allocation7 + $0x1b80] sm:$0xff]
        %v2860 = vld [vmem:[#allocation7 + $0x1b88] sm:$0xff]
        %v2861 = vld [vmem:[#allocation7 + $0x1b90] sm:$0xff]
        %v2862 = vld [vmem:[#allocation7 + $0x1b98] sm:$0xff]
        %v2863 = vld [vmem:[#allocation7 + $0x1ba0] sm:$0xff]
        %v2864 = vld [vmem:[#allocation7 + $0x1ba8] sm:$0xff]
        %v2865 = vld [vmem:[#allocation7 + $0x1bb0] sm:$0xff]
        %v2866 = vld [vmem:[#allocation7 + $0x1bb8] sm:$0xff]
        %v2867 = vld [vmem:[#allocation7 + $0x1bc0] sm:$0xff]
        %v2868 = vld [vmem:[#allocation7 + $0x1bc8] sm:$0xff]
        %v2869 = vld [vmem:[#allocation7 + $0x1bd0] sm:$0xff]
        %v2870 = vld [vmem:[#allocation7 + $0x1bd8] sm:$0xff]
        %v2871 = vld [vmem:[#allocation7 + $0x1be0] sm:$0xff]
        %v2872 = vld [vmem:[#allocation7 + $0x1be8] sm:$0xff]
        %v2873 = vld [vmem:[#allocation7 + $0x1bf0] sm:$0xff]
        %v2874 = vld [vmem:[#allocation7 + $0x1bf8] sm:$0xff]
        %v2875 = vld [vmem:[#allocation7 + $0x1c00] sm:$0xff]
        %v2876 = vld [vmem:[#allocation7 + $0x1c08] sm:$0xff]
        %v2877 = vld [vmem:[#allocation7 + $0x1c10] sm:$0xff]
        %v2878 = vld [vmem:[#allocation7 + $0x1c18] sm:$0xff]
        %v2879 = vld [vmem:[#allocation7 + $0x1c20] sm:$0xff]
        %v2880 = vld [vmem:[#allocation7 + $0x1c28] sm:$0xff]
        %v2881 = vld [vmem:[#allocation7 + $0x1c30] sm:$0xff]
        %v2882 = vld [vmem:[#allocation7 + $0x1c38] sm:$0xff]
        %v2883 = vld [vmem:[#allocation7 + $0x1c40] sm:$0xff]
        %v2884 = vld [vmem:[#allocation7 + $0x1c48] sm:$0xff]
        %v2885 = vld [vmem:[#allocation7 + $0x1c50] sm:$0xff]
        %v2886 = vld [vmem:[#allocation7 + $0x1c58] sm:$0xff]
        %v2887 = vld [vmem:[#allocation7 + $0x1c60] sm:$0xff]
        %v2888 = vld [vmem:[#allocation7 + $0x1c68] sm:$0xff]
        %v2889 = vld [vmem:[#allocation7 + $0x1c70] sm:$0xff]
        %v2890 = vld [vmem:[#allocation7 + $0x1c78] sm:$0xff]
        %v2891 = vld [vmem:[#allocation7 + $0x1c80] sm:$0xff]
        %v2892 = vld [vmem:[#allocation7 + $0x1c88] sm:$0xff]
        %v2893 = vld [vmem:[#allocation7 + $0x1c90] sm:$0xff]
        %v2894 = vld [vmem:[#allocation7 + $0x1c98] sm:$0xff]
        %v2895 = vld [vmem:[#allocation7 + $0x1ca0] sm:$0xff]
        %v2896 = vld [vmem:[#allocation7 + $0x1ca8] sm:$0xff]
        %v2897 = vld [vmem:[#allocation7 + $0x1cb0] sm:$0xff]
        %v2898 = vld [vmem:[#allocation7 + $0x1cb8] sm:$0xff]
        %v2899 = vld [vmem:[#allocation7 + $0x1cc0] sm:$0xff]
        %v2900 = vld [vmem:[#allocation7 + $0x1cc8] sm:$0xff]
        %v2901 = vld [vmem:[#allocation7 + $0x1cd0] sm:$0xff]
        %v2902 = vld [vmem:[#allocation7 + $0x1cd8] sm:$0xff]
        %v2903 = vld [vmem:[#allocation7 + $0x1ce0] sm:$0xff]
        %v2904 = vld [vmem:[#allocation7 + $0x1ce8] sm:$0xff]
        %v2905 = vld [vmem:[#allocation7 + $0x1cf0] sm:$0xff]
        %v2906 = vld [vmem:[#allocation7 + $0x1cf8] sm:$0xff]
        %v2907 = vld [vmem:[#allocation7 + $0x1d00] sm:$0xff]
        %v2908 = vld [vmem:[#allocation7 + $0x1d08] sm:$0xff]
        %v2909 = vld [vmem:[#allocation7 + $0x1d10] sm:$0xff]
        %v2910 = vld [vmem:[#allocation7 + $0x1d18] sm:$0xff]
        %v2911 = vld [vmem:[#allocation7 + $0x1d20] sm:$0xff]
        %v2912 = vld [vmem:[#allocation7 + $0x1d28] sm:$0xff]
        %v2913 = vld [vmem:[#allocation7 + $0x1d30] sm:$0xff]
        %v2914 = vld [vmem:[#allocation7 + $0x1d38] sm:$0xff]
        %v2915 = vld [vmem:[#allocation7 + $0x1d40] sm:$0xff]
        %v2916 = vld [vmem:[#allocation7 + $0x1d48] sm:$0xff]
        %v2917 = vld [vmem:[#allocation7 + $0x1d50] sm:$0xff]
        %v2918 = vld [vmem:[#allocation7 + $0x1d58] sm:$0xff]
        %v2919 = vld [vmem:[#allocation7 + $0x1d60] sm:$0xff]
        %v2920 = vld [vmem:[#allocation7 + $0x1d68] sm:$0xff]
        %v2921 = vld [vmem:[#allocation7 + $0x1d70] sm:$0xff]
        %v2922 = vld [vmem:[#allocation7 + $0x1d78] sm:$0xff]
        %v2923 = vld [vmem:[#allocation7 + $0x1d80] sm:$0xff]
        %v2924 = vld [vmem:[#allocation7 + $0x1d88] sm:$0xff]
        %v2925 = vld [vmem:[#allocation7 + $0x1d90] sm:$0xff]
        %v2926 = vld [vmem:[#allocation7 + $0x1d98] sm:$0xff]
        %v2927 = vld [vmem:[#allocation7 + $0x1da0] sm:$0xff]
        %v2928 = vld [vmem:[#allocation7 + $0x1da8] sm:$0xff]
        %v2929 = vld [vmem:[#allocation7 + $0x1db0] sm:$0xff]
        %v2930 = vld [vmem:[#allocation7 + $0x1db8] sm:$0xff]
        %v2931 = vld [vmem:[#allocation7 + $0x1dc0] sm:$0xff]
        %v2932 = vld [vmem:[#allocation7 + $0x1dc8] sm:$0xff]
        %v2933 = vld [vmem:[#allocation7 + $0x1dd0] sm:$0xff]
        %v2934 = vld [vmem:[#allocation7 + $0x1dd8] sm:$0xff]
        %v2935 = vld [vmem:[#allocation7 + $0x1de0] sm:$0xff]
        %v2936 = vld [vmem:[#allocation7 + $0x1de8] sm:$0xff]
        %v2937 = vld [vmem:[#allocation7 + $0x1df0] sm:$0xff]
        %v2938 = vld [vmem:[#allocation7 + $0x1df8] sm:$0xff]
        %v2939 = vld [vmem:[#allocation7 + $0x1e00] sm:$0xff]
        %v2940 = vld [vmem:[#allocation7 + $0x1e08] sm:$0xff]
        %v2941 = vld [vmem:[#allocation7 + $0x1e10] sm:$0xff]
        %v2942 = vld [vmem:[#allocation7 + $0x1e18] sm:$0xff]
        %v2943 = vld [vmem:[#allocation7 + $0x1e20] sm:$0xff]
        %v2944 = vld [vmem:[#allocation7 + $0x1e28] sm:$0xff]
        %v2945 = vld [vmem:[#allocation7 + $0x1e30] sm:$0xff]
        %v2946 = vld [vmem:[#allocation7 + $0x1e38] sm:$0xff]
        %v2947 = vld [vmem:[#allocation7 + $0x1e40] sm:$0xff]
        %v2948 = vld [vmem:[#allocation7 + $0x1e48] sm:$0xff]
        %v2949 = vld [vmem:[#allocation7 + $0x1e50] sm:$0xff]
        %v2950 = vld [vmem:[#allocation7 + $0x1e58] sm:$0xff]
        %v2951 = vld [vmem:[#allocation7 + $0x1e60] sm:$0xff]
        %v2952 = vld [vmem:[#allocation7 + $0x1e68] sm:$0xff]
        %v2953 = vld [vmem:[#allocation7 + $0x1e70] sm:$0xff]
        %v2954 = vld [vmem:[#allocation7 + $0x1e78] sm:$0xff]
        %v2955 = vld [vmem:[#allocation7 + $0x1e80] sm:$0xff]
        %v2956 = vld [vmem:[#allocation7 + $0x1e88] sm:$0xff]
        %v2957 = vld [vmem:[#allocation7 + $0x1e90] sm:$0xff]
        %v2958 = vld [vmem:[#allocation7 + $0x1e98] sm:$0xff]
        %v2959 = vld [vmem:[#allocation7 + $0x1ea0] sm:$0xff]
        %v2960 = vld [vmem:[#allocation7 + $0x1ea8] sm:$0xff]
        %v2961 = vld [vmem:[#allocation7 + $0x1eb0] sm:$0xff]
        %v2962 = vld [vmem:[#allocation7 + $0x1eb8] sm:$0xff]
        %v2963 = vld [vmem:[#allocation7 + $0x1ec0] sm:$0xff]
        %v2964 = vld [vmem:[#allocation7 + $0x1ec8] sm:$0xff]
        %v2965 = vld [vmem:[#allocation7 + $0x1ed0] sm:$0xff]
        %v2966 = vld [vmem:[#allocation7 + $0x1ed8] sm:$0xff]
        %v2967 = vld [vmem:[#allocation7 + $0x1ee0] sm:$0xff]
        %v2968 = vld [vmem:[#allocation7 + $0x1ee8] sm:$0xff]
        %v2969 = vld [vmem:[#allocation7 + $0x1ef0] sm:$0xff]
        %v2970 = vld [vmem:[#allocation7 + $0x1ef8] sm:$0xff]
        %v2971 = vld [vmem:[#allocation7 + $0x1f00] sm:$0xff]
        %v2972 = vld [vmem:[#allocation7 + $0x1f08] sm:$0xff]
        %v2973 = vld [vmem:[#allocation7 + $0x1f10] sm:$0xff]
        %v2974 = vld [vmem:[#allocation7 + $0x1f18] sm:$0xff]
        %v2975 = vld [vmem:[#allocation7 + $0x1f20] sm:$0xff]
        %v2976 = vld [vmem:[#allocation7 + $0x1f28] sm:$0xff]
        %v2977 = vld [vmem:[#allocation7 + $0x1f30] sm:$0xff]
        %v2978 = vld [vmem:[#allocation7 + $0x1f38] sm:$0xff]
        %v2979 = vld [vmem:[#allocation7 + $0x1f40] sm:$0xff]
        %v2980 = vld [vmem:[#allocation7 + $0x1f48] sm:$0xff]
        %v2981 = vld [vmem:[#allocation7 + $0x1f50] sm:$0xff]
        %v2982 = vld [vmem:[#allocation7 + $0x1f58] sm:$0xff]
        %v2983 = vld [vmem:[#allocation7 + $0x1f60] sm:$0xff]
        %v2984 = vld [vmem:[#allocation7 + $0x1f68] sm:$0xff]
        %v2985 = vld [vmem:[#allocation7 + $0x1f70] sm:$0xff]
        %v2986 = vld [vmem:[#allocation7 + $0x1f78] sm:$0xff]
        %v2987 = vld [vmem:[#allocation7 + $0x1f80] sm:$0xff]
        %v2988 = vld [vmem:[#allocation7 + $0x1f88] sm:$0xff]
        %v2989 = vld [vmem:[#allocation7 + $0x1f90] sm:$0xff]
        %v2990 = vld [vmem:[#allocation7 + $0x1f98] sm:$0xff]
        %v2991 = vld [vmem:[#allocation7 + $0x1fa0] sm:$0xff]
        %v2992 = vld [vmem:[#allocation7 + $0x1fa8] sm:$0xff]
        %v2993 = vld [vmem:[#allocation7 + $0x1fb0] sm:$0xff]
        %v2994 = vld [vmem:[#allocation7 + $0x1fb8] sm:$0xff]
        %v2995 = vld [vmem:[#allocation7 + $0x1fc0] sm:$0xff]
        %v2996 = vld [vmem:[#allocation7 + $0x1fc8] sm:$0xff]
        %v2997 = vld [vmem:[#allocation7 + $0x1fd0] sm:$0xff]
        %v2998 = vld [vmem:[#allocation7 + $0x1fd8] sm:$0xff]
        %v2999 = vld [vmem:[#allocation7 + $0x1fe0] sm:$0xff]
        %v3000 = vld [vmem:[#allocation7 + $0x1fe8] sm:$0xff]
        %v3001 = vld [vmem:[#allocation7 + $0x1ff0] sm:$0xff]
        %v3002 = vld [vmem:[#allocation7 + $0x1ff8] sm:$0xff]
        %v3003 = vld [vmem:[#allocation7 + $0x2000] sm:$0xff]
        %v3004 = vld [vmem:[#allocation7 + $0x2008] sm:$0xff]
        %v3005 = vld [vmem:[#allocation7 + $0x2010] sm:$0xff]
        %v3006 = vld [vmem:[#allocation7 + $0x2018] sm:$0xff]
        %v3007 = vld [vmem:[#allocation7 + $0x2020] sm:$0xff]
        %v3008 = vld [vmem:[#allocation7 + $0x2028] sm:$0xff]
        %v3009 = vld [vmem:[#allocation7 + $0x2030] sm:$0xff]
        %v3010 = vld [vmem:[#allocation7 + $0x2038] sm:$0xff]
        %v3011 = vld [vmem:[#allocation7 + $0x2040] sm:$0xff]
        %v3012 = vld [vmem:[#allocation7 + $0x2048] sm:$0xff]
        %v3013 = vld [vmem:[#allocation7 + $0x2050] sm:$0xff]
        %v3014 = vld [vmem:[#allocation7 + $0x2058] sm:$0xff]
        %v3015 = vld [vmem:[#allocation7 + $0x2060] sm:$0xff]
        %v3016 = vld [vmem:[#allocation7 + $0x2068] sm:$0xff]
        %v3017 = vld [vmem:[#allocation7 + $0x2070] sm:$0xff]
        %v3018 = vld [vmem:[#allocation7 + $0x2078] sm:$0xff]
        %v3019 = vld [vmem:[#allocation7 + $0x2080] sm:$0xff]
        %v3020 = vld [vmem:[#allocation7 + $0x2088] sm:$0xff]
        %v3021 = vld [vmem:[#allocation7 + $0x2090] sm:$0xff]
        %v3022 = vld [vmem:[#allocation7 + $0x2098] sm:$0xff]
        %v3023 = vld [vmem:[#allocation7 + $0x20a0] sm:$0xff]
        %v3024 = vld [vmem:[#allocation7 + $0x20a8] sm:$0xff]
        %v3025 = vld [vmem:[#allocation7 + $0x20b0] sm:$0xff]
        %v3026 = vld [vmem:[#allocation7 + $0x20b8] sm:$0xff]
        %v3027 = vld [vmem:[#allocation7 + $0x20c0] sm:$0xff]
        %v3028 = vld [vmem:[#allocation7 + $0x20c8] sm:$0xff]
        %v3029 = vld [vmem:[#allocation7 + $0x20d0] sm:$0xff]
        %v3030 = vld [vmem:[#allocation7 + $0x20d8] sm:$0xff]
        %v3031 = vld [vmem:[#allocation7 + $0x20e0] sm:$0xff]
        %v3032 = vld [vmem:[#allocation7 + $0x20e8] sm:$0xff]
        %v3033 = vld [vmem:[#allocation7 + $0x20f0] sm:$0xff]
        %v3034 = vld [vmem:[#allocation7 + $0x20f8] sm:$0xff]
        %v3035 = vld [vmem:[#allocation7 + $0x2100] sm:$0xff]
        %v3036 = vld [vmem:[#allocation7 + $0x2108] sm:$0xff]
        %v3037 = vld [vmem:[#allocation7 + $0x2110] sm:$0xff]
        %v3038 = vld [vmem:[#allocation7 + $0x2118] sm:$0xff]
        %v3039 = vld [vmem:[#allocation7 + $0x2120] sm:$0xff]
        %v3040 = vld [vmem:[#allocation7 + $0x2128] sm:$0xff]
        %v3041 = vld [vmem:[#allocation7 + $0x2130] sm:$0xff]
        %v3042 = vld [vmem:[#allocation7 + $0x2138] sm:$0xff]
        %v3043 = vld [vmem:[#allocation7 + $0x2140] sm:$0xff]
        %v3044 = vld [vmem:[#allocation7 + $0x2148] sm:$0xff]
        %v3045 = vld [vmem:[#allocation7 + $0x2150] sm:$0xff]
        %v3046 = vld [vmem:[#allocation7 + $0x2158] sm:$0xff]
        %v3047 = vld [vmem:[#allocation7 + $0x2160] sm:$0xff]
        %v3048 = vld [vmem:[#allocation7 + $0x2168] sm:$0xff]
        %v3049 = vld [vmem:[#allocation7 + $0x2170] sm:$0xff]
        %v3050 = vld [vmem:[#allocation7 + $0x2178] sm:$0xff]
        %v3051 = vld [vmem:[#allocation7 + $0x2180] sm:$0xff]
        %v3052 = vld [vmem:[#allocation7 + $0x2188] sm:$0xff]
        %v3053 = vld [vmem:[#allocation7 + $0x2190] sm:$0xff]
        %v3054 = vld [vmem:[#allocation7 + $0x2198] sm:$0xff]
        %v3055 = vld [vmem:[#allocation7 + $0x21a0] sm:$0xff]
        %v3056 = vld [vmem:[#allocation7 + $0x21a8] sm:$0xff]
        %v3057 = vld [vmem:[#allocation7 + $0x21b0] sm:$0xff]
        %v3058 = vld [vmem:[#allocation7 + $0x21b8] sm:$0xff]
        %v3059 = vld [vmem:[#allocation7 + $0x21c0] sm:$0xff]
        %v3060 = vld [vmem:[#allocation7 + $0x21c8] sm:$0xff]
        %v3061 = vld [vmem:[#allocation7 + $0x21d0] sm:$0xff]
        %v3062 = vld [vmem:[#allocation7 + $0x21d8] sm:$0xff]
        %v3063 = vld [vmem:[#allocation7 + $0x21e0] sm:$0xff]
        %v3064 = vld [vmem:[#allocation7 + $0x21e8] sm:$0xff]
        %v3065 = vld [vmem:[#allocation7 + $0x21f0] sm:$0xff]
        %v3066 = vld [vmem:[#allocation7 + $0x21f8] sm:$0xff]
        %v3067 = vld [vmem:[#allocation7 + $0x2200] sm:$0xff]
        %v3068 = vld [vmem:[#allocation7 + $0x2208] sm:$0xff]
        %v3069 = vld [vmem:[#allocation7 + $0x2210] sm:$0xff]
        %v3070 = vld [vmem:[#allocation7 + $0x2218] sm:$0xff]
        %v3071 = vld [vmem:[#allocation7 + $0x2220] sm:$0xff]
        %v3072 = vld [vmem:[#allocation7 + $0x2228] sm:$0xff]
        %v3073 = vld [vmem:[#allocation7 + $0x2230] sm:$0xff]
        %v3074 = vld [vmem:[#allocation7 + $0x2238] sm:$0xff]
        %v3075 = vld [vmem:[#allocation7 + $0x2240] sm:$0xff]
        %v3076 = vld [vmem:[#allocation7 + $0x2248] sm:$0xff]
        %v3077 = vld [vmem:[#allocation7 + $0x2250] sm:$0xff]
        %v3078 = vld [vmem:[#allocation7 + $0x2258] sm:$0xff]
        %v3079 = vld [vmem:[#allocation7 + $0x2260] sm:$0xff]
        %v3080 = vld [vmem:[#allocation7 + $0x2268] sm:$0xff]
        %v3081 = vld [vmem:[#allocation7 + $0x2270] sm:$0xff]
        %v3082 = vld [vmem:[#allocation7 + $0x2278] sm:$0xff]
        %v3083 = vld [vmem:[#allocation7 + $0x2280] sm:$0xff]
        %v3084 = vld [vmem:[#allocation7 + $0x2288] sm:$0xff]
        %v3085 = vld [vmem:[#allocation7 + $0x2290] sm:$0xff]
        %v3086 = vld [vmem:[#allocation7 + $0x2298] sm:$0xff]
        %v3087 = vld [vmem:[#allocation7 + $0x22a0] sm:$0xff]
        %v3088 = vld [vmem:[#allocation7 + $0x22a8] sm:$0xff]
        %v3089 = vld [vmem:[#allocation7 + $0x22b0] sm:$0xff]
        %v3090 = vld [vmem:[#allocation7 + $0x22b8] sm:$0xff]
        %v3091 = vld [vmem:[#allocation7 + $0x22c0] sm:$0xff]
        %v3092 = vld [vmem:[#allocation7 + $0x22c8] sm:$0xff]
        %v3093 = vld [vmem:[#allocation7 + $0x22d0] sm:$0xff]
        %v3094 = vld [vmem:[#allocation7 + $0x22d8] sm:$0xff]
        %v3095 = vld [vmem:[#allocation7 + $0x22e0] sm:$0xff]
        %v3096 = vld [vmem:[#allocation7 + $0x22e8] sm:$0xff]
        %v3097 = vld [vmem:[#allocation7 + $0x22f0] sm:$0xff]
        %v3098 = vld [vmem:[#allocation7 + $0x22f8] sm:$0xff]
        %v3099 = vld [vmem:[#allocation7 + $0x2300] sm:$0xff]
        %v3100 = vld [vmem:[#allocation7 + $0x2308] sm:$0xff]
        %v3101 = vld [vmem:[#allocation7 + $0x2310] sm:$0xff]
        %v3102 = vld [vmem:[#allocation7 + $0x2318] sm:$0xff]
        %v3103 = vld [vmem:[#allocation7 + $0x2320] sm:$0xff]
        %v3104 = vld [vmem:[#allocation7 + $0x2328] sm:$0xff]
        %v3105 = vld [vmem:[#allocation7 + $0x2330] sm:$0xff]
        %v3106 = vld [vmem:[#allocation7 + $0x2338] sm:$0xff]
        %v3107 = vld [vmem:[#allocation7 + $0x2340] sm:$0xff]
        %v3108 = vld [vmem:[#allocation7 + $0x2348] sm:$0xff]
        %v3109 = vld [vmem:[#allocation7 + $0x2350] sm:$0xff]
        %v3110 = vld [vmem:[#allocation7 + $0x2358] sm:$0xff]
        %v3111 = vld [vmem:[#allocation7 + $0x2360] sm:$0xff]
        %v3112 = vld [vmem:[#allocation7 + $0x2368] sm:$0xff]
        %v3113 = vld [vmem:[#allocation7 + $0x2370] sm:$0xff]
        %v3114 = vld [vmem:[#allocation7 + $0x2378] sm:$0xff]
        %v3115 = vld [vmem:[#allocation7 + $0x2380] sm:$0xff]
        %v3116 = vld [vmem:[#allocation7 + $0x2388] sm:$0xff]
        %v3117 = vld [vmem:[#allocation7 + $0x2390] sm:$0xff]
        %v3118 = vld [vmem:[#allocation7 + $0x2398] sm:$0xff]
        %v3119 = vld [vmem:[#allocation7 + $0x23a0] sm:$0xff]
        %v3120 = vld [vmem:[#allocation7 + $0x23a8] sm:$0xff]
        %v3121 = vld [vmem:[#allocation7 + $0x23b0] sm:$0xff]
        %v3122 = vld [vmem:[#allocation7 + $0x23b8] sm:$0xff]
        %v3123 = vld [vmem:[#allocation7 + $0x23c0] sm:$0xff]
        %v3124 = vld [vmem:[#allocation7 + $0x23c8] sm:$0xff]
        %v3125 = vld [vmem:[#allocation7 + $0x23d0] sm:$0xff]
        %v3126 = vld [vmem:[#allocation7 + $0x23d8] sm:$0xff]
        %v3127 = vld [vmem:[#allocation7 + $0x23e0] sm:$0xff]
        %v3128 = vld [vmem:[#allocation7 + $0x23e8] sm:$0xff]
        %v3129 = vld [vmem:[#allocation7 + $0x23f0] sm:$0xff]
        %v3130 = vld [vmem:[#allocation7 + $0x23f8] sm:$0xff]
        %v3131 = vld [vmem:[#allocation8] sm:$0xff]
        %v3132 = vld [vmem:[#allocation8 + $0x8] sm:$0xf]
        %v3135 = vlaneseq
        %v3136 = vshrl.u32 %v3135, 7
        %v3137 = vsub.s32 0, %v3136
        %v3138 = vrot.slane %v3131, %v3137
        %v3139 = vlaneseq
        %v3140 = vshrl.u32 %v3139, 7
        %v3141 = vsub.s32 1, %v3140
        %v3142 = vrot.slane %v3131, %v3141
        %v3143 = vlaneseq
        %v3144 = vshrl.u32 %v3143, 7
        %v3145 = vsub.s32 2, %v3144
        %v3146 = vrot.slane %v3131, %v3145
        %v3147 = vlaneseq
        %v3148 = vshrl.u32 %v3147, 7
        %v3149 = vsub.s32 3, %v3148
        %v3150 = vrot.slane %v3131, %v3149
        %v3151 = vlaneseq
        %v3152 = vshrl.u32 %v3151, 7
        %v3153 = vsub.s32 4, %v3152
        %v3154 = vrot.slane %v3131, %v3153
        %v3155 = vlaneseq
        %v3156 = vshrl.u32 %v3155, 7
        %v3157 = vsub.s32 5, %v3156
        %v3158 = vrot.slane %v3131, %v3157
        %v3159 = vlaneseq
        %v3160 = vshrl.u32 %v3159, 7
        %v3161 = vsub.s32 6, %v3160
        %v3162 = vrot.slane %v3131, %v3161
        %v3163 = vlaneseq
        %v3164 = vshrl.u32 %v3163, 7
        %v3165 = vsub.s32 7, %v3164
        %v3166 = vrot.slane %v3131, %v3165
        %v3167 = vlaneseq
        %v3168 = vshrl.u32 %v3167, 7
        %v3169 = vsub.s32 0, %v3168
        %v3170 = vrot.slane %v3132, %v3169
        %v3171 = vlaneseq
        %v3172 = vshrl.u32 %v3171, 7
        %v3173 = vsub.s32 1, %v3172
        %v3174 = vrot.slane %v3132, %v3173
        %v3175 = vlaneseq
        %v3176 = vshrl.u32 %v3175, 7
        %v3177 = vsub.s32 2, %v3176
        %v3178 = vrot.slane %v3132, %v3177
        %v3179 = vlaneseq
        %v3180 = vshrl.u32 %v3179, 7
        %v3181 = vsub.s32 3, %v3180
        %v3182 = vrot.slane %v3132, %v3181
        %3195 = vmatprep.subr.mxu0 %v1980
        %3196 = vmatpush1.msra.mxu0 %v1979
        %3197 = vmatprep.subr.mxu0 %v1992
        %3198 = vmatpush1.msra.mxu0 %v1991
        %3199 = vmatprep.subr.mxu0 %v2004
        %3200 = vmatpush1.msra.mxu0 %v2003
        %3201 = vmatprep.subr.mxu0 %v2016
        %3202 = vmatpush1.msra.mxu0 %v2015
        %3203 = vmatprep.subr.mxu0 %v2028
        %3204 = vmatpush1.msra.mxu0 %v2027
        %3205 = vmatprep.subr.mxu0 %v2040
        %3206 = vmatpush1.msra.mxu0 %v2039
        %3207 = vmatprep.subr.mxu0 %v2052
        %3208 = vmatpush1.msra.mxu0 %v2051
        %3209 = vmatprep.subr.mxu0 %v2064
        %3210 = vmatpush1.msra.mxu0 %v2063
        %3211 = vmatprep.subr.mxu0 %v2076
        %3212 = vmatpush1.msra.mxu0 %v2075
        %3213 = vmatprep.subr.mxu0 %v2088
        %3214 = vmatpush1.msra.mxu0 %v2087
        %3215 = vmatprep.subr.mxu0 %v2100
        %3216 = vmatpush1.msra.mxu0 %v2099
        %3217 = vmatprep.subr.mxu0 %v2112
        %3218 = vmatpush1.msra.mxu0 %v2111
        %3219 = vmatprep.subr.mxu0 %v2124
        %3220 = vmatpush1.msra.mxu0 %v2123
        %3221 = vmatprep.subr.mxu0 %v2136
        %3222 = vmatpush1.msra.mxu0 %v2135
        %3223 = vmatprep.subr.mxu0 %v2148
        %3224 = vmatpush1.msra.mxu0 %v2147
        %3225 = vmatprep.subr.mxu0 %v2160
        %3226 = vmatpush1.msra.mxu0 %v2159
        %3227 = vmatprep.subr.mxu0 %v2172
        %3228 = vmatpush1.msra.mxu0 %v2171
        %3229 = vmatprep.subr.mxu0 %v2184
        %3230 = vmatpush1.msra.mxu0 %v2183
        %3231 = vmatprep.subr.mxu0 %v2196
        %3232 = vmatpush1.msra.mxu0 %v2195
        %3233 = vmatprep.subr.mxu0 %v2208
        %3234 = vmatpush1.msra.mxu0 %v2207
        %3235 = vmatprep.subr.mxu0 %v2220
        %3236 = vmatpush1.msra.mxu0 %v2219
        %3237 = vmatprep.subr.mxu0 %v2232
        %3238 = vmatpush1.msra.mxu0 %v2231
        %3239 = vmatprep.subr.mxu0 %v2244
        %3240 = vmatpush1.msra.mxu0 %v2243
        %3241 = vmatprep.subr.mxu0 %v2256
        %3242 = vmatpush1.msra.mxu0 %v2255
        %3243 = vmatprep.subr.mxu0 %v2268
        %3244 = vmatpush1.msra.mxu0 %v2267
        %3245 = vmatprep.subr.mxu0 %v2280
        %3246 = vmatpush1.msra.mxu0 %v2279
        %3247 = vmatprep.subr.mxu0 %v2292
        %3248 = vmatpush1.msra.mxu0 %v2291
        %3249 = vmatprep.subr.mxu0 %v2304
        %3250 = vmatpush1.msra.mxu0 %v2303
        %3251 = vmatprep.subr.mxu0 %v2316
        %3252 = vmatpush1.msra.mxu0 %v2315
        %3253 = vmatprep.subr.mxu0 %v2328
        %3254 = vmatpush1.msra.mxu0 %v2327
        %3255 = vmatprep.subr.mxu0 %v2340
        %3256 = vmatpush1.msra.mxu0 %v2339
        %3257 = vmatprep.subr.mxu0 %v2352
        %3258 = vmatpush1.msra.mxu0 %v2351
        %3259 = vmatprep.mubr.f32.mxu0 %v721
        %3260 = vmatmul.mubr.f32.gmra.mrb[0].mxu0 %v720
        %v3261 = vpop.f32.mrb[0].mxu0
        %v3262 = vadd.f32 %v3138, %v3261
        %v3263 = vpop.f32.mrb[0].mxu0
        %v3264 = vadd.f32 %v3142, %v3263
        %3265 = vmatprep.mubr.f32.mxu0 %v727
        %3266 = vmatmul.mubr.f32.gmra.mrb[0].mxu0 %v726
        %v3267 = vpop.f32.mrb[0].mxu0
        %v3268 = vadd.f32 %v3138, %v3267
        %v3269 = vpop.f32.mrb[0].mxu0
        %v3270 = vadd.f32 %v3142, %v3269
        %3271 = vdwg.mxu0
        %3272 = vmatprep.subr.mxu0 %v2364
        %3273 = vmatpush1.msra.mxu0 %v2363
        %3274 = vmatprep.subr.mxu0 %v2376
        %3275 = vmatpush1.msra.mxu0 %v2375
        %3276 = vmatprep.subr.mxu0 %v2388
        %3277 = vmatpush1.msra.mxu0 %v2387
        %3278 = vmatprep.subr.mxu0 %v2400
        %3279 = vmatpush1.msra.mxu0 %v2399
        %3280 = vmatprep.subr.mxu0 %v2412
        %3281 = vmatpush1.msra.mxu0 %v2411
        %3282 = vmatprep.subr.mxu0 %v2424
        %3283 = vmatpush1.msra.mxu0 %v2423
        %3284 = vmatprep.subr.mxu0 %v2436
        %3285 = vmatpush1.msra.mxu0 %v2435
        %3286 = vmatprep.subr.mxu0 %v2448
        %3287 = vmatpush1.msra.mxu0 %v2447
        %3288 = vmatprep.subr.mxu0 %v2460
        %3289 = vmatpush1.msra.mxu0 %v2459
        %3290 = vmatprep.subr.mxu0 %v2472
        %3291 = vmatpush1.msra.mxu0 %v2471
        %3292 = vmatprep.subr.mxu0 %v2484
        %3293 = vmatpush1.msra.mxu0 %v2483
        %3294 = vmatprep.subr.mxu0 %v2496
        %3295 = vmatpush1.msra.mxu0 %v2495
        %3296 = vmatprep.subr.mxu0 %v2508
        %3297 = vmatpush1.msra.mxu0 %v2507
        %3298 = vmatprep.subr.mxu0 %v2520
        %3299 = vmatpush1.msra.mxu0 %v2519
        %3300 = vmatprep.subr.mxu0 %v2532
        %3301 = vmatpush1.msra.mxu0 %v2531
        %3302 = vmatprep.subr.mxu0 %v2544
        %3303 = vmatpush1.msra.mxu0 %v2543
        %3304 = vmatprep.subr.mxu0 %v2556
        %3305 = vmatpush1.msra.mxu0 %v2555
        %3306 = vmatprep.subr.mxu0 %v2568
        %3307 = vmatpush1.msra.mxu0 %v2567
        %3308 = vmatprep.subr.mxu0 %v2580
        %3309 = vmatpush1.msra.mxu0 %v2579
        %3310 = vmatprep.subr.mxu0 %v2592
        %3311 = vmatpush1.msra.mxu0 %v2591
        %3312 = vmatprep.subr.mxu0 %v2604
        %3313 = vmatpush1.msra.mxu0 %v2603
        %3314 = vmatprep.subr.mxu0 %v2616
        %3315 = vmatpush1.msra.mxu0 %v2615
        %3316 = vmatprep.subr.mxu0 %v2628
        %3317 = vmatpush1.msra.mxu0 %v2627
        %3318 = vmatprep.subr.mxu0 %v2640
        %3319 = vmatpush1.msra.mxu0 %v2639
        %3320 = vmatprep.subr.mxu0 %v2652
        %3321 = vmatpush1.msra.mxu0 %v2651
        %3322 = vmatprep.subr.mxu0 %v2664
        %3323 = vmatpush1.msra.mxu0 %v2663
        %3324 = vmatprep.subr.mxu0 %v2676
        %3325 = vmatpush1.msra.mxu0 %v2675
        %3326 = vmatprep.subr.mxu0 %v2688
        %3327 = vmatpush1.msra.mxu0 %v2687
        %3328 = vmatprep.subr.mxu0 %v2700
        %3329 = vmatpush1.msra.mxu0 %v2699
        %3330 = vmatprep.subr.mxu0 %v2712
        %3331 = vmatpush1.msra.mxu0 %v2711
        %3332 = vmatprep.subr.mxu0 %v2724
        %3333 = vmatpush1.msra.mxu0 %v2723
        %3334 = vmatprep.subr.mxu0 %v2736
        %3335 = vmatpush1.msra.mxu0 %v2735
        %3336 = vmatprep.mubr.f32.mxu0 %v723
        %3337 = vmatmul.mubr.f32.gmra.mrb[0].mxu0 %v722
        %v3338 = vpop.f32.mrb[0].mxu0
        %v3339 = vadd.f32 %v3262, %v3338
        %v3340 = vpop.f32.mrb[0].mxu0
        %v3341 = vadd.f32 %v3264, %v3340
        %3342 = vmatprep.mubr.f32.mxu0 %v729
        %3343 = vmatmul.mubr.f32.gmra.mrb[0].mxu0 %v728
        %v3344 = vpop.f32.mrb[0].mxu0
        %v3345 = vadd.f32 %v3268, %v3344
        %v3346 = vpop.f32.mrb[0].mxu0
        %v3347 = vadd.f32 %v3270, %v3346
        %3348 = vdwg.mxu0
        %3349 = vmatprep.subr.mxu0 %v2748
        %3350 = vmatpush1.msra.mxu0 %v2747
        %3351 = vmatprep.subr.mxu0 %v2760
        %3352 = vmatpush1.msra.mxu0 %v2759
        %3353 = vmatprep.subr.mxu0 %v2772
        %3354 = vmatpush1.msra.mxu0 %v2771
        %3355 = vmatprep.subr.mxu0 %v2784
        %3356 = vmatpush1.msra.mxu0 %v2783
        %3357 = vmatprep.subr.mxu0 %v2796
        %3358 = vmatpush1.msra.mxu0 %v2795
        %3359 = vmatprep.subr.mxu0 %v2808
        %3360 = vmatpush1.msra.mxu0 %v2807
        %3361 = vmatprep.subr.mxu0 %v2820
        %3362 = vmatpush1.msra.mxu0 %v2819
        %3363 = vmatprep.subr.mxu0 %v2832
        %3364 = vmatpush1.msra.mxu0 %v2831
        %3365 = vmatprep.subr.mxu0 %v2844
        %3366 = vmatpush1.msra.mxu0 %v2843
        %3367 = vmatprep.subr.mxu0 %v2856
        %3368 = vmatpush1.msra.mxu0 %v2855
        %3369 = vmatprep.subr.mxu0 %v2868
        %3370 = vmatpush1.msra.mxu0 %v2867
        %3371 = vmatprep.subr.mxu0 %v2880
        %3372 = vmatpush1.msra.mxu0 %v2879
        %3373 = vmatprep.subr.mxu0 %v2892
        %3374 = vmatpush1.msra.mxu0 %v2891
        %3375 = vmatprep.subr.mxu0 %v2904
        %3376 = vmatpush1.msra.mxu0 %v2903
        %3377 = vmatprep.subr.mxu0 %v2916
        %3378 = vmatpush1.msra.mxu0 %v2915
        %3379 = vmatprep.subr.mxu0 %v2928
        %3380 = vmatpush1.msra.mxu0 %v2927
        %3381 = vmatprep.subr.mxu0 %v2940
        %3382 = vmatpush1.msra.mxu0 %v2939
        %3383 = vmatprep.subr.mxu0 %v2952
        %3384 = vmatpush1.msra.mxu0 %v2951
        %3385 = vmatprep.subr.mxu0 %v2964
        %3386 = vmatpush1.msra.mxu0 %v2963
        %3387 = vmatprep.subr.mxu0 %v2976
        %3388 = vmatpush1.msra.mxu0 %v2975
        %3389 = vmatprep.subr.mxu0 %v2988
        %3390 = vmatpush1.msra.mxu0 %v2987
        %3391 = vmatprep.subr.mxu0 %v3000
        %3392 = vmatpush1.msra.mxu0 %v2999
        %3393 = vmatprep.subr.mxu0 %v3012
        %3394 = vmatpush1.msra.mxu0 %v3011
        %3395 = vmatprep.subr.mxu0 %v3024
        %3396 = vmatpush1.msra.mxu0 %v3023
        %3397 = vmatprep.subr.mxu0 %v3036
        %3398 = vmatpush1.msra.mxu0 %v3035
        %3399 = vmatprep.subr.mxu0 %v3048
        %3400 = vmatpush1.msra.mxu0 %v3047
        %3401 = vmatprep.subr.mxu0 %v3060
        %3402 = vmatpush1.msra.mxu0 %v3059
        %3403 = vmatprep.subr.mxu0 %v3072
        %3404 = vmatpush1.msra.mxu0 %v3071
        %3405 = vmatprep.subr.mxu0 %v3084
        %3406 = vmatpush1.msra.mxu0 %v3083
        %3407 = vmatprep.subr.mxu0 %v3096
        %3408 = vmatpush1.msra.mxu0 %v3095
        %3409 = vmatprep.subr.mxu0 %v3108
        %3410 = vmatpush1.msra.mxu0 %v3107
        %3411 = vmatprep.subr.mxu0 %v3120
        %3412 = vmatpush1.msra.mxu0 %v3119
        %3413 = vmatprep.mubr.f32.mxu0 %v725
        %3414 = vmatmul.mubr.f32.gmra.mrb[0].mxu0 %v724
        %v3415 = vpop.f32.mrb[0].mxu0
        %v3416 = vadd.f32 %v3339, %v3415
        %v3417 = vpop.f32.mrb[0].mxu0
        %v3418 = vadd.f32 %v3341, %v3417
        %3419 = vmatprep.mubr.f32.mxu0 %v731
        %3420 = vmatmul.mubr.f32.gmra.mrb[0].mxu0 %v730
        %v3421 = vpop.f32.mrb[0].mxu0
        %v3422 = vadd.f32 %v3345, %v3421
        %v3423 = vpop.f32.mrb[0].mxu0
        %v3424 = vadd.f32 %v3347, %v3423
        %3425 = vdwg.mxu0
        %3426 = vmatprep.subr.mxu0 %v1982
        %3427 = vmatpush1.msra.mxu0 %v1981
        %3428 = vmatprep.subr.mxu0 %v1994
        %3429 = vmatpush1.msra.mxu0 %v1993
        %3430 = vmatprep.subr.mxu0 %v2006
        %3431 = vmatpush1.msra.mxu0 %v2005
        %3432 = vmatprep.subr.mxu0 %v2018
        %3433 = vmatpush1.msra.mxu0 %v2017
        %3434 = vmatprep.subr.mxu0 %v2030
        %3435 = vmatpush1.msra.mxu0 %v2029
        %3436 = vmatprep.subr.mxu0 %v2042
        %3437 = vmatpush1.msra.mxu0 %v2041
        %3438 = vmatprep.subr.mxu0 %v2054
        %3439 = vmatpush1.msra.mxu0 %v2053
        %3440 = vmatprep.subr.mxu0 %v2066
        %3441 = vmatpush1.msra.mxu0 %v2065
        %3442 = vmatprep.subr.mxu0 %v2078
        %3443 = vmatpush1.msra.mxu0 %v2077
        %3444 = vmatprep.subr.mxu0 %v2090
        %3445 = vmatpush1.msra.mxu0 %v2089
        %3446 = vmatprep.subr.mxu0 %v2102
        %3447 = vmatpush1.msra.mxu0 %v2101
        %3448 = vmatprep.subr.mxu0 %v2114
        %3449 = vmatpush1.msra.mxu0 %v2113
        %3450 = vmatprep.subr.mxu0 %v2126
        %3451 = vmatpush1.msra.mxu0 %v2125
        %3452 = vmatprep.subr.mxu0 %v2138
        %3453 = vmatpush1.msra.mxu0 %v2137
        %3454 = vmatprep.subr.mxu0 %v2150
        %3455 = vmatpush1.msra.mxu0 %v2149
        %3456 = vmatprep.subr.mxu0 %v2162
        %3457 = vmatpush1.msra.mxu0 %v2161
        %3458 = vmatprep.subr.mxu0 %v2174
        %3459 = vmatpush1.msra.mxu0 %v2173
        %3460 = vmatprep.subr.mxu0 %v2186
        %3461 = vmatpush1.msra.mxu0 %v2185
        %3462 = vmatprep.subr.mxu0 %v2198
        %3463 = vmatpush1.msra.mxu0 %v2197
        %3464 = vmatprep.subr.mxu0 %v2210
        %3465 = vmatpush1.msra.mxu0 %v2209
        %3466 = vmatprep.subr.mxu0 %v2222
        %3467 = vmatpush1.msra.mxu0 %v2221
        %3468 = vmatprep.subr.mxu0 %v2234
        %3469 = vmatpush1.msra.mxu0 %v2233
        %3470 = vmatprep.subr.mxu0 %v2246
        %3471 = vmatpush1.msra.mxu0 %v2245
        %3472 = vmatprep.subr.mxu0 %v2258
        %3473 = vmatpush1.msra.mxu0 %v2257
        %3474 = vmatprep.subr.mxu0 %v2270
        %3475 = vmatpush1.msra.mxu0 %v2269
        %3476 = vmatprep.subr.mxu0 %v2282
        %3477 = vmatpush1.msra.mxu0 %v2281
        %3478 = vmatprep.subr.mxu0 %v2294
        %3479 = vmatpush1.msra.mxu0 %v2293
        %3480 = vmatprep.subr.mxu0 %v2306
        %3481 = vmatpush1.msra.mxu0 %v2305
        %3482 = vmatprep.subr.mxu0 %v2318
        %3483 = vmatpush1.msra.mxu0 %v2317
        %3484 = vmatprep.subr.mxu0 %v2330
        %3485 = vmatpush1.msra.mxu0 %v2329
        %3486 = vmatprep.subr.mxu0 %v2342
        %3487 = vmatpush1.msra.mxu0 %v2341
        %3488 = vmatprep.subr.mxu0 %v2354
        %3489 = vmatpush1.msra.mxu0 %v2353
        %3490 = vmatprep.mubr.f32.mxu0 %v721
        %3491 = vmatmul.mubr.f32.gmra.mrb[0].mxu0 %v720
        %v3492 = vpop.f32.mrb[0].mxu0
        %v3493 = vadd.f32 %v3146, %v3492
        %v3494 = vpop.f32.mrb[0].mxu0
        %v3495 = vadd.f32 %v3150, %v3494
        %3496 = vmatprep.mubr.f32.mxu0 %v727
        %3497 = vmatmul.mubr.f32.gmra.mrb[0].mxu0 %v726
        %v3498 = vpop.f32.mrb[0].mxu0
        %v3499 = vadd.f32 %v3146, %v3498
        %v3500 = vpop.f32.mrb[0].mxu0
        %v3501 = vadd.f32 %v3150, %v3500
        %3502 = vdwg.mxu0
        %3503 = vmatprep.subr.mxu0 %v2366
        %3504 = vmatpush1.msra.mxu0 %v2365
        %3505 = vmatprep.subr.mxu0 %v2378
        %3506 = vmatpush1.msra.mxu0 %v2377
        %3507 = vmatprep.subr.mxu0 %v2390
        %3508 = vmatpush1.msra.mxu0 %v2389
        %3509 = vmatprep.subr.mxu0 %v2402
        %3510 = vmatpush1.msra.mxu0 %v2401
        %3511 = vmatprep.subr.mxu0 %v2414
        %3512 = vmatpush1.msra.mxu0 %v2413
        %3513 = vmatprep.subr.mxu0 %v2426
        %3514 = vmatpush1.msra.mxu0 %v2425
        %3515 = vmatprep.subr.mxu0 %v2438
        %3516 = vmatpush1.msra.mxu0 %v2437
        %3517 = vmatprep.subr.mxu0 %v2450
        %3518 = vmatpush1.msra.mxu0 %v2449
        %3519 = vmatprep.subr.mxu0 %v2462
        %3520 = vmatpush1.msra.mxu0 %v2461
        %3521 = vmatprep.subr.mxu0 %v2474
        %3522 = vmatpush1.msra.mxu0 %v2473
        %3523 = vmatprep.subr.mxu0 %v2486
        %3524 = vmatpush1.msra.mxu0 %v2485
        %3525 = vmatprep.subr.mxu0 %v2498
        %3526 = vmatpush1.msra.mxu0 %v2497
        %3527 = vmatprep.subr.mxu0 %v2510
        %3528 = vmatpush1.msra.mxu0 %v2509
        %3529 = vmatprep.subr.mxu0 %v2522
        %3530 = vmatpush1.msra.mxu0 %v2521
        %3531 = vmatprep.subr.mxu0 %v2534
        %3532 = vmatpush1.msra.mxu0 %v2533
        %3533 = vmatprep.subr.mxu0 %v2546
        %3534 = vmatpush1.msra.mxu0 %v2545
        %3535 = vmatprep.subr.mxu0 %v2558
        %3536 = vmatpush1.msra.mxu0 %v2557
        %3537 = vmatprep.subr.mxu0 %v2570
        %3538 = vmatpush1.msra.mxu0 %v2569
        %3539 = vmatprep.subr.mxu0 %v2582
        %3540 = vmatpush1.msra.mxu0 %v2581
        %3541 = vmatprep.subr.mxu0 %v2594
        %3542 = vmatpush1.msra.mxu0 %v2593
        %3543 = vmatprep.subr.mxu0 %v2606
        %3544 = vmatpush1.msra.mxu0 %v2605
        %3545 = vmatprep.subr.mxu0 %v2618
        %3546 = vmatpush1.msra.mxu0 %v2617
        %3547 = vmatprep.subr.mxu0 %v2630
        %3548 = vmatpush1.msra.mxu0 %v2629
        %3549 = vmatprep.subr.mxu0 %v2642
        %3550 = vmatpush1.msra.mxu0 %v2641
        %3551 = vmatprep.subr.mxu0 %v2654
        %3552 = vmatpush1.msra.mxu0 %v2653
        %3553 = vmatprep.subr.mxu0 %v2666
        %3554 = vmatpush1.msra.mxu0 %v2665
        %3555 = vmatprep.subr.mxu0 %v2678
        %3556 = vmatpush1.msra.mxu0 %v2677
        %3557 = vmatprep.subr.mxu0 %v2690
        %3558 = vmatpush1.msra.mxu0 %v2689
        %3559 = vmatprep.subr.mxu0 %v2702
        %3560 = vmatpush1.msra.mxu0 %v2701
        %3561 = vmatprep.subr.mxu0 %v2714
        %3562 = vmatpush1.msra.mxu0 %v2713
        %3563 = vmatprep.subr.mxu0 %v2726
        %3564 = vmatpush1.msra.mxu0 %v2725
        %3565 = vmatprep.subr.mxu0 %v2738
        %3566 = vmatpush1.msra.mxu0 %v2737
        %3567 = vmatprep.mubr.f32.mxu0 %v723
        %3568 = vmatmul.mubr.f32.gmra.mrb[0].mxu0 %v722
        %v3569 = vpop.f32.mrb[0].mxu0
        %v3570 = vadd.f32 %v3493, %v3569
        %v3571 = vpop.f32.mrb[0].mxu0
        %v3572 = vadd.f32 %v3495, %v3571
        %3573 = vmatprep.mubr.f32.mxu0 %v729
        %3574 = vmatmul.mubr.f32.gmra.mrb[0].mxu0 %v728
        %v3575 = vpop.f32.mrb[0].mxu0
        %v3576 = vadd.f32 %v3499, %v3575
        %v3577 = vpop.f32.mrb[0].mxu0
        %v3578 = vadd.f32 %v3501, %v3577
        %3579 = vdwg.mxu0
        %3580 = vmatprep.subr.mxu0 %v2750
        %3581 = vmatpush1.msra.mxu0 %v2749
        %3582 = vmatprep.subr.mxu0 %v2762
        %3583 = vmatpush1.msra.mxu0 %v2761
        %3584 = vmatprep.subr.mxu0 %v2774
        %3585 = vmatpush1.msra.mxu0 %v2773
        %3586 = vmatprep.subr.mxu0 %v2786
        %3587 = vmatpush1.msra.mxu0 %v2785
        %3588 = vmatprep.subr.mxu0 %v2798
        %3589 = vmatpush1.msra.mxu0 %v2797
        %3590 = vmatprep.subr.mxu0 %v2810
        %3591 = vmatpush1.msra.mxu0 %v2809
        %3592 = vmatprep.subr.mxu0 %v2822
        %3593 = vmatpush1.msra.mxu0 %v2821
        %3594 = vmatprep.subr.mxu0 %v2834
        %3595 = vmatpush1.msra.mxu0 %v2833
        %3596 = vmatprep.subr.mxu0 %v2846
        %3597 = vmatpush1.msra.mxu0 %v2845
        %3598 = vmatprep.subr.mxu0 %v2858
        %3599 = vmatpush1.msra.mxu0 %v2857
        %3600 = vmatprep.subr.mxu0 %v2870
        %3601 = vmatpush1.msra.mxu0 %v2869
        %3602 = vmatprep.subr.mxu0 %v2882
        %3603 = vmatpush1.msra.mxu0 %v2881
        %3604 = vmatprep.subr.mxu0 %v2894
        %3605 = vmatpush1.msra.mxu0 %v2893
        %3606 = vmatprep.subr.mxu0 %v2906
        %3607 = vmatpush1.msra.mxu0 %v2905
        %3608 = vmatprep.subr.mxu0 %v2918
        %3609 = vmatpush1.msra.mxu0 %v2917
        %3610 = vmatprep.subr.mxu0 %v2930
        %3611 = vmatpush1.msra.mxu0 %v2929
        %3612 = vmatprep.subr.mxu0 %v2942
        %3613 = vmatpush1.msra.mxu0 %v2941
        %3614 = vmatprep.subr.mxu0 %v2954
        %3615 = vmatpush1.msra.mxu0 %v2953
        %3616 = vmatprep.subr.mxu0 %v2966
        %3617 = vmatpush1.msra.mxu0 %v2965
        %3618 = vmatprep.subr.mxu0 %v2978
        %3619 = vmatpush1.msra.mxu0 %v2977
        %3620 = vmatprep.subr.mxu0 %v2990
        %3621 = vmatpush1.msra.mxu0 %v2989
        %3622 = vmatprep.subr.mxu0 %v3002
        %3623 = vmatpush1.msra.mxu0 %v3001
        %3624 = vmatprep.subr.mxu0 %v3014
        %3625 = vmatpush1.msra.mxu0 %v3013
        %3626 = vmatprep.subr.mxu0 %v3026
        %3627 = vmatpush1.msra.mxu0 %v3025
        %3628 = vmatprep.subr.mxu0 %v3038
        %3629 = vmatpush1.msra.mxu0 %v3037
        %3630 = vmatprep.subr.mxu0 %v3050
        %3631 = vmatpush1.msra.mxu0 %v3049
        %3632 = vmatprep.subr.mxu0 %v3062
        %3633 = vmatpush1.msra.mxu0 %v3061
        %3634 = vmatprep.subr.mxu0 %v3074
        %3635 = vmatpush1.msra.mxu0 %v3073
        %3636 = vmatprep.subr.mxu0 %v3086
        %3637 = vmatpush1.msra.mxu0 %v3085
        %3638 = vmatprep.subr.mxu0 %v3098
        %3639 = vmatpush1.msra.mxu0 %v3097
        %3640 = vmatprep.subr.mxu0 %v3110
        %3641 = vmatpush1.msra.mxu0 %v3109
        %3642 = vmatprep.subr.mxu0 %v3122
        %3643 = vmatpush1.msra.mxu0 %v3121
        %3644 = vmatprep.mubr.f32.mxu0 %v725
        %3645 = vmatmul.mubr.f32.gmra.mrb[0].mxu0 %v724
        %v3646 = vpop.f32.mrb[0].mxu0
        %v3647 = vadd.f32 %v3570, %v3646
        %v3648 = vpop.f32.mrb[0].mxu0
        %v3649 = vadd.f32 %v3572, %v3648
        %3650 = vmatprep.mubr.f32.mxu0 %v731
        %3651 = vmatmul.mubr.f32.gmra.mrb[0].mxu0 %v730
        %v3652 = vpop.f32.mrb[0].mxu0
        %v3653 = vadd.f32 %v3576, %v3652
        %v3654 = vpop.f32.mrb[0].mxu0
        %v3655 = vadd.f32 %v3578, %v3654
        %3656 = vdwg.mxu0
        %3657 = vmatprep.subr.mxu0 %v1984
        %3658 = vmatpush1.msra.mxu0 %v1983
        %3659 = vmatprep.subr.mxu0 %v1996
        %3660 = vmatpush1.msra.mxu0 %v1995
        %3661 = vmatprep.subr.mxu0 %v2008
        %3662 = vmatpush1.msra.mxu0 %v2007
        %3663 = vmatprep.subr.mxu0 %v2020
        %3664 = vmatpush1.msra.mxu0 %v2019
        %3665 = vmatprep.subr.mxu0 %v2032
        %3666 = vmatpush1.msra.mxu0 %v2031
        %3667 = vmatprep.subr.mxu0 %v2044
        %3668 = vmatpush1.msra.mxu0 %v2043
        %3669 = vmatprep.subr.mxu0 %v2056
        %3670 = vmatpush1.msra.mxu0 %v2055
        %3671 = vmatprep.subr.mxu0 %v2068
        %3672 = vmatpush1.msra.mxu0 %v2067
        %3673 = vmatprep.subr.mxu0 %v2080
        %3674 = vmatpush1.msra.mxu0 %v2079
        %3675 = vmatprep.subr.mxu0 %v2092
        %3676 = vmatpush1.msra.mxu0 %v2091
        %3677 = vmatprep.subr.mxu0 %v2104
        %3678 = vmatpush1.msra.mxu0 %v2103
        %3679 = vmatprep.subr.mxu0 %v2116
        %3680 = vmatpush1.msra.mxu0 %v2115
        %3681 = vmatprep.subr.mxu0 %v2128
        %3682 = vmatpush1.msra.mxu0 %v2127
        %3683 = vmatprep.subr.mxu0 %v2140
        %3684 = vmatpush1.msra.mxu0 %v2139
        %3685 = vmatprep.subr.mxu0 %v2152
        %3686 = vmatpush1.msra.mxu0 %v2151
        %3687 = vmatprep.subr.mxu0 %v2164
        %3688 = vmatpush1.msra.mxu0 %v2163
        %3689 = vmatprep.subr.mxu0 %v2176
        %3690 = vmatpush1.msra.mxu0 %v2175
        %3691 = vmatprep.subr.mxu0 %v2188
        %3692 = vmatpush1.msra.mxu0 %v2187
        %3693 = vmatprep.subr.mxu0 %v2200
        %3694 = vmatpush1.msra.mxu0 %v2199
        %3695 = vmatprep.subr.mxu0 %v2212
        %3696 = vmatpush1.msra.mxu0 %v2211
        %3697 = vmatprep.subr.mxu0 %v2224
        %3698 = vmatpush1.msra.mxu0 %v2223
        %3699 = vmatprep.subr.mxu0 %v2236
        %3700 = vmatpush1.msra.mxu0 %v2235
        %3701 = vmatprep.subr.mxu0 %v2248
        %3702 = vmatpush1.msra.mxu0 %v2247
        %3703 = vmatprep.subr.mxu0 %v2260
        %3704 = vmatpush1.msra.mxu0 %v2259
        %3705 = vmatprep.subr.mxu0 %v2272
        %3706 = vmatpush1.msra.mxu0 %v2271
        %3707 = vmatprep.subr.mxu0 %v2284
        %3708 = vmatpush1.msra.mxu0 %v2283
        %3709 = vmatprep.subr.mxu0 %v2296
        %3710 = vmatpush1.msra.mxu0 %v2295
        %3711 = vmatprep.subr.mxu0 %v2308
        %3712 = vmatpush1.msra.mxu0 %v2307
        %3713 = vmatprep.subr.mxu0 %v2320
        %3714 = vmatpush1.msra.mxu0 %v2319
        %3715 = vmatprep.subr.mxu0 %v2332
        %3716 = vmatpush1.msra.mxu0 %v2331
        %3717 = vmatprep.subr.mxu0 %v2344
        %3718 = vmatpush1.msra.mxu0 %v2343
        %3719 = vmatprep.subr.mxu0 %v2356
        %3720 = vmatpush1.msra.mxu0 %v2355
        %3721 = vmatprep.mubr.f32.mxu0 %v721
        %3722 = vmatmul.mubr.f32.gmra.mrb[0].mxu0 %v720
        %v3723 = vpop.f32.mrb[0].mxu0
        %v3724 = vadd.f32 %v3154, %v3723
        %v3725 = vpop.f32.mrb[0].mxu0
        %v3726 = vadd.f32 %v3158, %v3725
        %3727 = vmatprep.mubr.f32.mxu0 %v727
        %3728 = vmatmul.mubr.f32.gmra.mrb[0].mxu0 %v726
        %v3729 = vpop.f32.mrb[0].mxu0
        %v3730 = vadd.f32 %v3154, %v3729
        %v3731 = vpop.f32.mrb[0].mxu0
        %v3732 = vadd.f32 %v3158, %v3731
        %3733 = vdwg.mxu0
        %3734 = vmatprep.subr.mxu0 %v2368
        %3735 = vmatpush1.msra.mxu0 %v2367
        %3736 = vmatprep.subr.mxu0 %v2380
        %3737 = vmatpush1.msra.mxu0 %v2379
        %3738 = vmatprep.subr.mxu0 %v2392
        %3739 = vmatpush1.msra.mxu0 %v2391
        %3740 = vmatprep.subr.mxu0 %v2404
        %3741 = vmatpush1.msra.mxu0 %v2403
        %3742 = vmatprep.subr.mxu0 %v2416
        %3743 = vmatpush1.msra.mxu0 %v2415
        %3744 = vmatprep.subr.mxu0 %v2428
        %3745 = vmatpush1.msra.mxu0 %v2427
        %3746 = vmatprep.subr.mxu0 %v2440
        %3747 = vmatpush1.msra.mxu0 %v2439
        %3748 = vmatprep.subr.mxu0 %v2452
        %3749 = vmatpush1.msra.mxu0 %v2451
        %3750 = vmatprep.subr.mxu0 %v2464
        %3751 = vmatpush1.msra.mxu0 %v2463
        %3752 = vmatprep.subr.mxu0 %v2476
        %3753 = vmatpush1.msra.mxu0 %v2475
        %3754 = vmatprep.subr.mxu0 %v2488
        %3755 = vmatpush1.msra.mxu0 %v2487
        %3756 = vmatprep.subr.mxu0 %v2500
        %3757 = vmatpush1.msra.mxu0 %v2499
        %3758 = vmatprep.subr.mxu0 %v2512
        %3759 = vmatpush1.msra.mxu0 %v2511
        %3760 = vmatprep.subr.mxu0 %v2524
        %3761 = vmatpush1.msra.mxu0 %v2523
        %3762 = vmatprep.subr.mxu0 %v2536
        %3763 = vmatpush1.msra.mxu0 %v2535
        %3764 = vmatprep.subr.mxu0 %v2548
        %3765 = vmatpush1.msra.mxu0 %v2547
        %3766 = vmatprep.subr.mxu0 %v2560
        %3767 = vmatpush1.msra.mxu0 %v2559
        %3768 = vmatprep.subr.mxu0 %v2572
        %3769 = vmatpush1.msra.mxu0 %v2571
        %3770 = vmatprep.subr.mxu0 %v2584
        %3771 = vmatpush1.msra.mxu0 %v2583
        %3772 = vmatprep.subr.mxu0 %v2596
        %3773 = vmatpush1.msra.mxu0 %v2595
        %3774 = vmatprep.subr.mxu0 %v2608
        %3775 = vmatpush1.msra.mxu0 %v2607
        %3776 = vmatprep.subr.mxu0 %v2620
        %3777 = vmatpush1.msra.mxu0 %v2619
        %3778 = vmatprep.subr.mxu0 %v2632
        %3779 = vmatpush1.msra.mxu0 %v2631
        %3780 = vmatprep.subr.mxu0 %v2644
        %3781 = vmatpush1.msra.mxu0 %v2643
        %3782 = vmatprep.subr.mxu0 %v2656
        %3783 = vmatpush1.msra.mxu0 %v2655
        %3784 = vmatprep.subr.mxu0 %v2668
        %3785 = vmatpush1.msra.mxu0 %v2667
        %3786 = vmatprep.subr.mxu0 %v2680
        %3787 = vmatpush1.msra.mxu0 %v2679
        %3788 = vmatprep.subr.mxu0 %v2692
        %3789 = vmatpush1.msra.mxu0 %v2691
        %3790 = vmatprep.subr.mxu0 %v2704
        %3791 = vmatpush1.msra.mxu0 %v2703
        %3792 = vmatprep.subr.mxu0 %v2716
        %3793 = vmatpush1.msra.mxu0 %v2715
        %3794 = vmatprep.subr.mxu0 %v2728
        %3795 = vmatpush1.msra.mxu0 %v2727
        %3796 = vmatprep.subr.mxu0 %v2740
        %3797 = vmatpush1.msra.mxu0 %v2739
        %3798 = vmatprep.mubr.f32.mxu0 %v723
        %3799 = vmatmul.mubr.f32.gmra.mrb[0].mxu0 %v722
        %v3800 = vpop.f32.mrb[0].mxu0
        %v3801 = vadd.f32 %v3724, %v3800
        %v3802 = vpop.f32.mrb[0].mxu0
        %v3803 = vadd.f32 %v3726, %v3802
        %3804 = vmatprep.mubr.f32.mxu0 %v729
        %3805 = vmatmul.mubr.f32.gmra.mrb[0].mxu0 %v728
        %v3806 = vpop.f32.mrb[0].mxu0
        %v3807 = vadd.f32 %v3730, %v3806
        %v3808 = vpop.f32.mrb[0].mxu0
        %v3809 = vadd.f32 %v3732, %v3808
        %3810 = vdwg.mxu0
        %3811 = vmatprep.subr.mxu0 %v2752
        %3812 = vmatpush1.msra.mxu0 %v2751
        %3813 = vmatprep.subr.mxu0 %v2764
        %3814 = vmatpush1.msra.mxu0 %v2763
        %3815 = vmatprep.subr.mxu0 %v2776
        %3816 = vmatpush1.msra.mxu0 %v2775
        %3817 = vmatprep.subr.mxu0 %v2788
        %3818 = vmatpush1.msra.mxu0 %v2787
        %3819 = vmatprep.subr.mxu0 %v2800
        %3820 = vmatpush1.msra.mxu0 %v2799
        %3821 = vmatprep.subr.mxu0 %v2812
        %3822 = vmatpush1.msra.mxu0 %v2811
        %3823 = vmatprep.subr.mxu0 %v2824
        %3824 = vmatpush1.msra.mxu0 %v2823
        %3825 = vmatprep.subr.mxu0 %v2836
        %3826 = vmatpush1.msra.mxu0 %v2835
        %3827 = vmatprep.subr.mxu0 %v2848
        %3828 = vmatpush1.msra.mxu0 %v2847
        %3829 = vmatprep.subr.mxu0 %v2860
        %3830 = vmatpush1.msra.mxu0 %v2859
        %3831 = vmatprep.subr.mxu0 %v2872
        %3832 = vmatpush1.msra.mxu0 %v2871
        %3833 = vmatprep.subr.mxu0 %v2884
        %3834 = vmatpush1.msra.mxu0 %v2883
        %3835 = vmatprep.subr.mxu0 %v2896
        %3836 = vmatpush1.msra.mxu0 %v2895
        %3837 = vmatprep.subr.mxu0 %v2908
        %3838 = vmatpush1.msra.mxu0 %v2907
        %3839 = vmatprep.subr.mxu0 %v2920
        %3840 = vmatpush1.msra.mxu0 %v2919
        %3841 = vmatprep.subr.mxu0 %v2932
        %3842 = vmatpush1.msra.mxu0 %v2931
        %3843 = vmatprep.subr.mxu0 %v2944
        %3844 = vmatpush1.msra.mxu0 %v2943
        %3845 = vmatprep.subr.mxu0 %v2956
        %3846 = vmatpush1.msra.mxu0 %v2955
        %3847 = vmatprep.subr.mxu0 %v2968
        %3848 = vmatpush1.msra.mxu0 %v2967
        %3849 = vmatprep.subr.mxu0 %v2980
        %3850 = vmatpush1.msra.mxu0 %v2979
        %3851 = vmatprep.subr.mxu0 %v2992
        %3852 = vmatpush1.msra.mxu0 %v2991
        %3853 = vmatprep.subr.mxu0 %v3004
        %3854 = vmatpush1.msra.mxu0 %v3003
        %3855 = vmatprep.subr.mxu0 %v3016
        %3856 = vmatpush1.msra.mxu0 %v3015
        %3857 = vmatprep.subr.mxu0 %v3028
        %3858 = vmatpush1.msra.mxu0 %v3027
        %3859 = vmatprep.subr.mxu0 %v3040
        %3860 = vmatpush1.msra.mxu0 %v3039
        %3861 = vmatprep.subr.mxu0 %v3052
        %3862 = vmatpush1.msra.mxu0 %v3051
        %3863 = vmatprep.subr.mxu0 %v3064
        %3864 = vmatpush1.msra.mxu0 %v3063
        %3865 = vmatprep.subr.mxu0 %v3076
        %3866 = vmatpush1.msra.mxu0 %v3075
        %3867 = vmatprep.subr.mxu0 %v3088
        %3868 = vmatpush1.msra.mxu0 %v3087
        %3869 = vmatprep.subr.mxu0 %v3100
        %3870 = vmatpush1.msra.mxu0 %v3099
        %3871 = vmatprep.subr.mxu0 %v3112
        %3872 = vmatpush1.msra.mxu0 %v3111
        %3873 = vmatprep.subr.mxu0 %v3124
        %3874 = vmatpush1.msra.mxu0 %v3123
        %3875 = vmatprep.mubr.f32.mxu0 %v725
        %3876 = vmatmul.mubr.f32.gmra.mrb[0].mxu0 %v724
        %v3877 = vpop.f32.mrb[0].mxu0
        %v3878 = vadd.f32 %v3801, %v3877
        %v3879 = vpop.f32.mrb[0].mxu0
        %v3880 = vadd.f32 %v3803, %v3879
        %3881 = vmatprep.mubr.f32.mxu0 %v731
        %3882 = vmatmul.mubr.f32.gmra.mrb[0].mxu0 %v730
        %v3883 = vpop.f32.mrb[0].mxu0
        %v3884 = vadd.f32 %v3807, %v3883
        %v3885 = vpop.f32.mrb[0].mxu0
        %v3886 = vadd.f32 %v3809, %v3885
        %3887 = vdwg.mxu0
        %3888 = vmatprep.subr.mxu0 %v1986
        %3889 = vmatpush1.msra.mxu0 %v1985
        %3890 = vmatprep.subr.mxu0 %v1998
        %3891 = vmatpush1.msra.mxu0 %v1997
        %3892 = vmatprep.subr.mxu0 %v2010
        %3893 = vmatpush1.msra.mxu0 %v2009
        %3894 = vmatprep.subr.mxu0 %v2022
        %3895 = vmatpush1.msra.mxu0 %v2021
        %3896 = vmatprep.subr.mxu0 %v2034
        %3897 = vmatpush1.msra.mxu0 %v2033
        %3898 = vmatprep.subr.mxu0 %v2046
        %3899 = vmatpush1.msra.mxu0 %v2045
        %3900 = vmatprep.subr.mxu0 %v2058
        %3901 = vmatpush1.msra.mxu0 %v2057
        %3902 = vmatprep.subr.mxu0 %v2070
        %3903 = vmatpush1.msra.mxu0 %v2069
        %3904 = vmatprep.subr.mxu0 %v2082
        %3905 = vmatpush1.msra.mxu0 %v2081
        %3906 = vmatprep.subr.mxu0 %v2094
        %3907 = vmatpush1.msra.mxu0 %v2093
        %3908 = vmatprep.subr.mxu0 %v2106
        %3909 = vmatpush1.msra.mxu0 %v2105
        %3910 = vmatprep.subr.mxu0 %v2118
        %3911 = vmatpush1.msra.mxu0 %v2117
        %3912 = vmatprep.subr.mxu0 %v2130
        %3913 = vmatpush1.msra.mxu0 %v2129
        %3914 = vmatprep.subr.mxu0 %v2142
        %3915 = vmatpush1.msra.mxu0 %v2141
        %3916 = vmatprep.subr.mxu0 %v2154
        %3917 = vmatpush1.msra.mxu0 %v2153
        %3918 = vmatprep.subr.mxu0 %v2166
        %3919 = vmatpush1.msra.mxu0 %v2165
        %3920 = vmatprep.subr.mxu0 %v2178
        %3921 = vmatpush1.msra.mxu0 %v2177
        %3922 = vmatprep.subr.mxu0 %v2190
        %3923 = vmatpush1.msra.mxu0 %v2189
        %3924 = vmatprep.subr.mxu0 %v2202
        %3925 = vmatpush1.msra.mxu0 %v2201
        %3926 = vmatprep.subr.mxu0 %v2214
        %3927 = vmatpush1.msra.mxu0 %v2213
        %3928 = vmatprep.subr.mxu0 %v2226
        %3929 = vmatpush1.msra.mxu0 %v2225
        %3930 = vmatprep.subr.mxu0 %v2238
        %3931 = vmatpush1.msra.mxu0 %v2237
        %3932 = vmatprep.subr.mxu0 %v2250
        %3933 = vmatpush1.msra.mxu0 %v2249
        %3934 = vmatprep.subr.mxu0 %v2262
        %3935 = vmatpush1.msra.mxu0 %v2261
        %3936 = vmatprep.subr.mxu0 %v2274
        %3937 = vmatpush1.msra.mxu0 %v2273
        %3938 = vmatprep.subr.mxu0 %v2286
        %3939 = vmatpush1.msra.mxu0 %v2285
        %3940 = vmatprep.subr.mxu0 %v2298
        %3941 = vmatpush1.msra.mxu0 %v2297
        %3942 = vmatprep.subr.mxu0 %v2310
        %3943 = vmatpush1.msra.mxu0 %v2309
        %3944 = vmatprep.subr.mxu0 %v2322
        %3945 = vmatpush1.msra.mxu0 %v2321
        %3946 = vmatprep.subr.mxu0 %v2334
        %3947 = vmatpush1.msra.mxu0 %v2333
        %3948 = vmatprep.subr.mxu0 %v2346
        %3949 = vmatpush1.msra.mxu0 %v2345
        %3950 = vmatprep.subr.mxu0 %v2358
        %3951 = vmatpush1.msra.mxu0 %v2357
        %3952 = vmatprep.mubr.f32.mxu0 %v721
        %3953 = vmatmul.mubr.f32.gmra.mrb[0].mxu0 %v720
        %v3954 = vpop.f32.mrb[0].mxu0
        %v3955 = vadd.f32 %v3162, %v3954
        %v3956 = vpop.f32.mrb[0].mxu0
        %v3957 = vadd.f32 %v3166, %v3956
        %3958 = vmatprep.mubr.f32.mxu0 %v727
        %3959 = vmatmul.mubr.f32.gmra.mrb[0].mxu0 %v726
        %v3960 = vpop.f32.mrb[0].mxu0
        %v3961 = vadd.f32 %v3162, %v3960
        %v3962 = vpop.f32.mrb[0].mxu0
        %v3963 = vadd.f32 %v3166, %v3962
        %3964 = vdwg.mxu0
        %3965 = vmatprep.subr.mxu0 %v2370
        %3966 = vmatpush1.msra.mxu0 %v2369
        %3967 = vmatprep.subr.mxu0 %v2382
        %3968 = vmatpush1.msra.mxu0 %v2381
        %3969 = vmatprep.subr.mxu0 %v2394
        %3970 = vmatpush1.msra.mxu0 %v2393
        %3971 = vmatprep.subr.mxu0 %v2406
        %3972 = vmatpush1.msra.mxu0 %v2405
        %3973 = vmatprep.subr.mxu0 %v2418
        %3974 = vmatpush1.msra.mxu0 %v2417
        %3975 = vmatprep.subr.mxu0 %v2430
        %3976 = vmatpush1.msra.mxu0 %v2429
        %3977 = vmatprep.subr.mxu0 %v2442
        %3978 = vmatpush1.msra.mxu0 %v2441
        %3979 = vmatprep.subr.mxu0 %v2454
        %3980 = vmatpush1.msra.mxu0 %v2453
        %3981 = vmatprep.subr.mxu0 %v2466
        %3982 = vmatpush1.msra.mxu0 %v2465
        %3983 = vmatprep.subr.mxu0 %v2478
        %3984 = vmatpush1.msra.mxu0 %v2477
        %3985 = vmatprep.subr.mxu0 %v2490
        %3986 = vmatpush1.msra.mxu0 %v2489
        %3987 = vmatprep.subr.mxu0 %v2502
        %3988 = vmatpush1.msra.mxu0 %v2501
        %3989 = vmatprep.subr.mxu0 %v2514
        %3990 = vmatpush1.msra.mxu0 %v2513
        %3991 = vmatprep.subr.mxu0 %v2526
        %3992 = vmatpush1.msra.mxu0 %v2525
        %3993 = vmatprep.subr.mxu0 %v2538
        %3994 = vmatpush1.msra.mxu0 %v2537
        %3995 = vmatprep.subr.mxu0 %v2550
        %3996 = vmatpush1.msra.mxu0 %v2549
        %3997 = vmatprep.subr.mxu0 %v2562
        %3998 = vmatpush1.msra.mxu0 %v2561
        %3999 = vmatprep.subr.mxu0 %v2574
        %4000 = vmatpush1.msra.mxu0 %v2573
        %4001 = vmatprep.subr.mxu0 %v2586
        %4002 = vmatpush1.msra.mxu0 %v2585
        %4003 = vmatprep.subr.mxu0 %v2598
        %4004 = vmatpush1.msra.mxu0 %v2597
        %4005 = vmatprep.subr.mxu0 %v2610
        %4006 = vmatpush1.msra.mxu0 %v2609
        %4007 = vmatprep.subr.mxu0 %v2622
        %4008 = vmatpush1.msra.mxu0 %v2621
        %4009 = vmatprep.subr.mxu0 %v2634
        %4010 = vmatpush1.msra.mxu0 %v2633
        %4011 = vmatprep.subr.mxu0 %v2646
        %4012 = vmatpush1.msra.mxu0 %v2645
        %4013 = vmatprep.subr.mxu0 %v2658
        %4014 = vmatpush1.msra.mxu0 %v2657
        %4015 = vmatprep.subr.mxu0 %v2670
        %4016 = vmatpush1.msra.mxu0 %v2669
        %4017 = vmatprep.subr.mxu0 %v2682
        %4018 = vmatpush1.msra.mxu0 %v2681
        %4019 = vmatprep.subr.mxu0 %v2694
        %4020 = vmatpush1.msra.mxu0 %v2693
        %4021 = vmatprep.subr.mxu0 %v2706
        %4022 = vmatpush1.msra.mxu0 %v2705
        %4023 = vmatprep.subr.mxu0 %v2718
        %4024 = vmatpush1.msra.mxu0 %v2717
        %4025 = vmatprep.subr.mxu0 %v2730
        %4026 = vmatpush1.msra.mxu0 %v2729
        %4027 = vmatprep.subr.mxu0 %v2742
        %4028 = vmatpush1.msra.mxu0 %v2741
        %4029 = vmatprep.mubr.f32.mxu0 %v723
        %4030 = vmatmul.mubr.f32.gmra.mrb[0].mxu0 %v722
        %v4031 = vpop.f32.mrb[0].mxu0
        %v4032 = vadd.f32 %v3955, %v4031
        %v4033 = vpop.f32.mrb[0].mxu0
        %v4034 = vadd.f32 %v3957, %v4033
        %4035 = vmatprep.mubr.f32.mxu0 %v729
        %4036 = vmatmul.mubr.f32.gmra.mrb[0].mxu0 %v728
        %v4037 = vpop.f32.mrb[0].mxu0
        %v4038 = vadd.f32 %v3961, %v4037
        %v4039 = vpop.f32.mrb[0].mxu0
        %v4040 = vadd.f32 %v3963, %v4039
        %4041 = vdwg.mxu0
        %4042 = vmatprep.subr.mxu0 %v2754
        %4043 = vmatpush1.msra.mxu0 %v2753
        %4044 = vmatprep.subr.mxu0 %v2766
        %4045 = vmatpush1.msra.mxu0 %v2765
        %4046 = vmatprep.subr.mxu0 %v2778
        %4047 = vmatpush1.msra.mxu0 %v2777
        %4048 = vmatprep.subr.mxu0 %v2790
        %4049 = vmatpush1.msra.mxu0 %v2789
        %4050 = vmatprep.subr.mxu0 %v2802
        %4051 = vmatpush1.msra.mxu0 %v2801
        %4052 = vmatprep.subr.mxu0 %v2814
        %4053 = vmatpush1.msra.mxu0 %v2813
        %4054 = vmatprep.subr.mxu0 %v2826
        %4055 = vmatpush1.msra.mxu0 %v2825
        %4056 = vmatprep.subr.mxu0 %v2838
        %4057 = vmatpush1.msra.mxu0 %v2837
        %4058 = vmatprep.subr.mxu0 %v2850
        %4059 = vmatpush1.msra.mxu0 %v2849
        %4060 = vmatprep.subr.mxu0 %v2862
        %4061 = vmatpush1.msra.mxu0 %v2861
        %4062 = vmatprep.subr.mxu0 %v2874
        %4063 = vmatpush1.msra.mxu0 %v2873
        %4064 = vmatprep.subr.mxu0 %v2886
        %4065 = vmatpush1.msra.mxu0 %v2885
        %4066 = vmatprep.subr.mxu0 %v2898
        %4067 = vmatpush1.msra.mxu0 %v2897
        %4068 = vmatprep.subr.mxu0 %v2910
        %4069 = vmatpush1.msra.mxu0 %v2909
        %4070 = vmatprep.subr.mxu0 %v2922
        %4071 = vmatpush1.msra.mxu0 %v2921
        %4072 = vmatprep.subr.mxu0 %v2934
        %4073 = vmatpush1.msra.mxu0 %v2933
        %4074 = vmatprep.subr.mxu0 %v2946
        %4075 = vmatpush1.msra.mxu0 %v2945
        %4076 = vmatprep.subr.mxu0 %v2958
        %4077 = vmatpush1.msra.mxu0 %v2957
        %4078 = vmatprep.subr.mxu0 %v2970
        %4079 = vmatpush1.msra.mxu0 %v2969
        %4080 = vmatprep.subr.mxu0 %v2982
        %4081 = vmatpush1.msra.mxu0 %v2981
        %4082 = vmatprep.subr.mxu0 %v2994
        %4083 = vmatpush1.msra.mxu0 %v2993
        %4084 = vmatprep.subr.mxu0 %v3006
        %4085 = vmatpush1.msra.mxu0 %v3005
        %4086 = vmatprep.subr.mxu0 %v3018
        %4087 = vmatpush1.msra.mxu0 %v3017
        %4088 = vmatprep.subr.mxu0 %v3030
        %4089 = vmatpush1.msra.mxu0 %v3029
        %4090 = vmatprep.subr.mxu0 %v3042
        %4091 = vmatpush1.msra.mxu0 %v3041
        %4092 = vmatprep.subr.mxu0 %v3054
        %4093 = vmatpush1.msra.mxu0 %v3053
        %4094 = vmatprep.subr.mxu0 %v3066
        %4095 = vmatpush1.msra.mxu0 %v3065
        %4096 = vmatprep.subr.mxu0 %v3078
        %4097 = vmatpush1.msra.mxu0 %v3077
        %4098 = vmatprep.subr.mxu0 %v3090
        %4099 = vmatpush1.msra.mxu0 %v3089
        %4100 = vmatprep.subr.mxu0 %v3102
        %4101 = vmatpush1.msra.mxu0 %v3101
        %4102 = vmatprep.subr.mxu0 %v3114
        %4103 = vmatpush1.msra.mxu0 %v3113
        %4104 = vmatprep.subr.mxu0 %v3126
        %4105 = vmatpush1.msra.mxu0 %v3125
        %4106 = vmatprep.mubr.f32.mxu0 %v725
        %4107 = vmatmul.mubr.f32.gmra.mrb[0].mxu0 %v724
        %v4108 = vpop.f32.mrb[0].mxu0
        %v4109 = vadd.f32 %v4032, %v4108
        %v4110 = vpop.f32.mrb[0].mxu0
        %v4111 = vadd.f32 %v4034, %v4110
        %4112 = vmatprep.mubr.f32.mxu0 %v731
        %4113 = vmatmul.mubr.f32.gmra.mrb[0].mxu0 %v730
        %v4114 = vpop.f32.mrb[0].mxu0
        %v4115 = vadd.f32 %v4038, %v4114
        %v4116 = vpop.f32.mrb[0].mxu0
        %v4117 = vadd.f32 %v4040, %v4116
        %4118 = vdwg.mxu0
        %4119 = vmatprep.subr.mxu0 %v1988
        %4120 = vmatpush1.msra.mxu0 %v1987
        %4121 = vmatprep.subr.mxu0 %v2000
        %4122 = vmatpush1.msra.mxu0 %v1999
        %4123 = vmatprep.subr.mxu0 %v2012
        %4124 = vmatpush1.msra.mxu0 %v2011
        %4125 = vmatprep.subr.mxu0 %v2024
        %4126 = vmatpush1.msra.mxu0 %v2023
        %4127 = vmatprep.subr.mxu0 %v2036
        %4128 = vmatpush1.msra.mxu0 %v2035
        %4129 = vmatprep.subr.mxu0 %v2048
        %4130 = vmatpush1.msra.mxu0 %v2047
        %4131 = vmatprep.subr.mxu0 %v2060
        %4132 = vmatpush1.msra.mxu0 %v2059
        %4133 = vmatprep.subr.mxu0 %v2072
        %4134 = vmatpush1.msra.mxu0 %v2071
        %4135 = vmatprep.subr.mxu0 %v2084
        %4136 = vmatpush1.msra.mxu0 %v2083
        %4137 = vmatprep.subr.mxu0 %v2096
        %4138 = vmatpush1.msra.mxu0 %v2095
        %4139 = vmatprep.subr.mxu0 %v2108
        %4140 = vmatpush1.msra.mxu0 %v2107
        %4141 = vmatprep.subr.mxu0 %v2120
        %4142 = vmatpush1.msra.mxu0 %v2119
        %4143 = vmatprep.subr.mxu0 %v2132
        %4144 = vmatpush1.msra.mxu0 %v2131
        %4145 = vmatprep.subr.mxu0 %v2144
        %4146 = vmatpush1.msra.mxu0 %v2143
        %4147 = vmatprep.subr.mxu0 %v2156
        %4148 = vmatpush1.msra.mxu0 %v2155
        %4149 = vmatprep.subr.mxu0 %v2168
        %4150 = vmatpush1.msra.mxu0 %v2167
        %4151 = vmatprep.subr.mxu0 %v2180
        %4152 = vmatpush1.msra.mxu0 %v2179
        %4153 = vmatprep.subr.mxu0 %v2192
        %4154 = vmatpush1.msra.mxu0 %v2191
        %4155 = vmatprep.subr.mxu0 %v2204
        %4156 = vmatpush1.msra.mxu0 %v2203
        %4157 = vmatprep.subr.mxu0 %v2216
        %4158 = vmatpush1.msra.mxu0 %v2215
        %4159 = vmatprep.subr.mxu0 %v2228
        %4160 = vmatpush1.msra.mxu0 %v2227
        %4161 = vmatprep.subr.mxu0 %v2240
        %4162 = vmatpush1.msra.mxu0 %v2239
        %4163 = vmatprep.subr.mxu0 %v2252
        %4164 = vmatpush1.msra.mxu0 %v2251
        %4165 = vmatprep.subr.mxu0 %v2264
        %4166 = vmatpush1.msra.mxu0 %v2263
        %4167 = vmatprep.subr.mxu0 %v2276
        %4168 = vmatpush1.msra.mxu0 %v2275
        %4169 = vmatprep.subr.mxu0 %v2288
        %4170 = vmatpush1.msra.mxu0 %v2287
        %4171 = vmatprep.subr.mxu0 %v2300
        %4172 = vmatpush1.msra.mxu0 %v2299
        %4173 = vmatprep.subr.mxu0 %v2312
        %4174 = vmatpush1.msra.mxu0 %v2311
        %4175 = vmatprep.subr.mxu0 %v2324
        %4176 = vmatpush1.msra.mxu0 %v2323
        %4177 = vmatprep.subr.mxu0 %v2336
        %4178 = vmatpush1.msra.mxu0 %v2335
        %4179 = vmatprep.subr.mxu0 %v2348
        %4180 = vmatpush1.msra.mxu0 %v2347
        %4181 = vmatprep.subr.mxu0 %v2360
        %4182 = vmatpush1.msra.mxu0 %v2359
        %4183 = vmatprep.mubr.f32.mxu0 %v721
        %4184 = vmatmul.mubr.f32.gmra.mrb[0].mxu0 %v720
        %v4185 = vpop.f32.mrb[0].mxu0
        %v4186 = vadd.f32 %v3170, %v4185
        %v4187 = vpop.f32.mrb[0].mxu0
        %v4188 = vadd.f32 %v3174, %v4187
        %4189 = vmatprep.mubr.f32.mxu0 %v727
        %4190 = vmatmul.mubr.f32.gmra.mrb[0].mxu0 %v726
        %v4191 = vpop.f32.mrb[0].mxu0
        %v4192 = vadd.f32 %v3170, %v4191
        %v4193 = vpop.f32.mrb[0].mxu0
        %v4194 = vadd.f32 %v3174, %v4193
        %4195 = vdwg.mxu0
        %4196 = vmatprep.subr.mxu0 %v2372
        %4197 = vmatpush1.msra.mxu0 %v2371
        %4198 = vmatprep.subr.mxu0 %v2384
        %4199 = vmatpush1.msra.mxu0 %v2383
        %4200 = vmatprep.subr.mxu0 %v2396
        %4201 = vmatpush1.msra.mxu0 %v2395
        %4202 = vmatprep.subr.mxu0 %v2408
        %4203 = vmatpush1.msra.mxu0 %v2407
        %4204 = vmatprep.subr.mxu0 %v2420
        %4205 = vmatpush1.msra.mxu0 %v2419
        %4206 = vmatprep.subr.mxu0 %v2432
        %4207 = vmatpush1.msra.mxu0 %v2431
        %4208 = vmatprep.subr.mxu0 %v2444
        %4209 = vmatpush1.msra.mxu0 %v2443
        %4210 = vmatprep.subr.mxu0 %v2456
        %4211 = vmatpush1.msra.mxu0 %v2455
        %4212 = vmatprep.subr.mxu0 %v2468
        %4213 = vmatpush1.msra.mxu0 %v2467
        %4214 = vmatprep.subr.mxu0 %v2480
        %4215 = vmatpush1.msra.mxu0 %v2479
        %4216 = vmatprep.subr.mxu0 %v2492
        %4217 = vmatpush1.msra.mxu0 %v2491
        %4218 = vmatprep.subr.mxu0 %v2504
        %4219 = vmatpush1.msra.mxu0 %v2503
        %4220 = vmatprep.subr.mxu0 %v2516
        %4221 = vmatpush1.msra.mxu0 %v2515
        %4222 = vmatprep.subr.mxu0 %v2528
        %4223 = vmatpush1.msra.mxu0 %v2527
        %4224 = vmatprep.subr.mxu0 %v2540
        %4225 = vmatpush1.msra.mxu0 %v2539
        %4226 = vmatprep.subr.mxu0 %v2552
        %4227 = vmatpush1.msra.mxu0 %v2551
        %4228 = vmatprep.subr.mxu0 %v2564
        %4229 = vmatpush1.msra.mxu0 %v2563
        %4230 = vmatprep.subr.mxu0 %v2576
        %4231 = vmatpush1.msra.mxu0 %v2575
        %4232 = vmatprep.subr.mxu0 %v2588
        %4233 = vmatpush1.msra.mxu0 %v2587
        %4234 = vmatprep.subr.mxu0 %v2600
        %4235 = vmatpush1.msra.mxu0 %v2599
        %4236 = vmatprep.subr.mxu0 %v2612
        %4237 = vmatpush1.msra.mxu0 %v2611
        %4238 = vmatprep.subr.mxu0 %v2624
        %4239 = vmatpush1.msra.mxu0 %v2623
        %4240 = vmatprep.subr.mxu0 %v2636
        %4241 = vmatpush1.msra.mxu0 %v2635
        %4242 = vmatprep.subr.mxu0 %v2648
        %4243 = vmatpush1.msra.mxu0 %v2647
        %4244 = vmatprep.subr.mxu0 %v2660
        %4245 = vmatpush1.msra.mxu0 %v2659
        %4246 = vmatprep.subr.mxu0 %v2672
        %4247 = vmatpush1.msra.mxu0 %v2671
        %4248 = vmatprep.subr.mxu0 %v2684
        %4249 = vmatpush1.msra.mxu0 %v2683
        %4250 = vmatprep.subr.mxu0 %v2696
        %4251 = vmatpush1.msra.mxu0 %v2695
        %4252 = vmatprep.subr.mxu0 %v2708
        %4253 = vmatpush1.msra.mxu0 %v2707
        %4254 = vmatprep.subr.mxu0 %v2720
        %4255 = vmatpush1.msra.mxu0 %v2719
        %4256 = vmatprep.subr.mxu0 %v2732
        %4257 = vmatpush1.msra.mxu0 %v2731
        %4258 = vmatprep.subr.mxu0 %v2744
        %4259 = vmatpush1.msra.mxu0 %v2743
        %4260 = vmatprep.mubr.f32.mxu0 %v723
        %4261 = vmatmul.mubr.f32.gmra.mrb[0].mxu0 %v722
        %v4262 = vpop.f32.mrb[0].mxu0
        %v4263 = vadd.f32 %v4186, %v4262
        %v4264 = vpop.f32.mrb[0].mxu0
        %v4265 = vadd.f32 %v4188, %v4264
        %4266 = vmatprep.mubr.f32.mxu0 %v729
        %4267 = vmatmul.mubr.f32.gmra.mrb[0].mxu0 %v728
        %v4268 = vpop.f32.mrb[0].mxu0
        %v4269 = vadd.f32 %v4192, %v4268
        %v4270 = vpop.f32.mrb[0].mxu0
        %v4271 = vadd.f32 %v4194, %v4270
        %4272 = vdwg.mxu0
        %4273 = vmatprep.subr.mxu0 %v2756
        %4274 = vmatpush1.msra.mxu0 %v2755
        %4275 = vmatprep.subr.mxu0 %v2768
        %4276 = vmatpush1.msra.mxu0 %v2767
        %4277 = vmatprep.subr.mxu0 %v2780
        %4278 = vmatpush1.msra.mxu0 %v2779
        %4279 = vmatprep.subr.mxu0 %v2792
        %4280 = vmatpush1.msra.mxu0 %v2791
        %4281 = vmatprep.subr.mxu0 %v2804
        %4282 = vmatpush1.msra.mxu0 %v2803
        %4283 = vmatprep.subr.mxu0 %v2816
        %4284 = vmatpush1.msra.mxu0 %v2815
        %4285 = vmatprep.subr.mxu0 %v2828
        %4286 = vmatpush1.msra.mxu0 %v2827
        %4287 = vmatprep.subr.mxu0 %v2840
        %4288 = vmatpush1.msra.mxu0 %v2839
        %4289 = vmatprep.subr.mxu0 %v2852
        %4290 = vmatpush1.msra.mxu0 %v2851
        %4291 = vmatprep.subr.mxu0 %v2864
        %4292 = vmatpush1.msra.mxu0 %v2863
        %4293 = vmatprep.subr.mxu0 %v2876
        %4294 = vmatpush1.msra.mxu0 %v2875
        %4295 = vmatprep.subr.mxu0 %v2888
        %4296 = vmatpush1.msra.mxu0 %v2887
        %4297 = vmatprep.subr.mxu0 %v2900
        %4298 = vmatpush1.msra.mxu0 %v2899
        %4299 = vmatprep.subr.mxu0 %v2912
        %4300 = vmatpush1.msra.mxu0 %v2911
        %4301 = vmatprep.subr.mxu0 %v2924
        %4302 = vmatpush1.msra.mxu0 %v2923
        %4303 = vmatprep.subr.mxu0 %v2936
        %4304 = vmatpush1.msra.mxu0 %v2935
        %4305 = vmatprep.subr.mxu0 %v2948
        %4306 = vmatpush1.msra.mxu0 %v2947
        %4307 = vmatprep.subr.mxu0 %v2960
        %4308 = vmatpush1.msra.mxu0 %v2959
        %4309 = vmatprep.subr.mxu0 %v2972
        %4310 = vmatpush1.msra.mxu0 %v2971
        %4311 = vmatprep.subr.mxu0 %v2984
        %4312 = vmatpush1.msra.mxu0 %v2983
        %4313 = vmatprep.subr.mxu0 %v2996
        %4314 = vmatpush1.msra.mxu0 %v2995
        %4315 = vmatprep.subr.mxu0 %v3008
        %4316 = vmatpush1.msra.mxu0 %v3007
        %4317 = vmatprep.subr.mxu0 %v3020
        %4318 = vmatpush1.msra.mxu0 %v3019
        %4319 = vmatprep.subr.mxu0 %v3032
        %4320 = vmatpush1.msra.mxu0 %v3031
        %4321 = vmatprep.subr.mxu0 %v3044
        %4322 = vmatpush1.msra.mxu0 %v3043
        %4323 = vmatprep.subr.mxu0 %v3056
        %4324 = vmatpush1.msra.mxu0 %v3055
        %4325 = vmatprep.subr.mxu0 %v3068
        %4326 = vmatpush1.msra.mxu0 %v3067
        %4327 = vmatprep.subr.mxu0 %v3080
        %4328 = vmatpush1.msra.mxu0 %v3079
        %4329 = vmatprep.subr.mxu0 %v3092
        %4330 = vmatpush1.msra.mxu0 %v3091
        %4331 = vmatprep.subr.mxu0 %v3104
        %4332 = vmatpush1.msra.mxu0 %v3103
        %4333 = vmatprep.subr.mxu0 %v3116
        %4334 = vmatpush1.msra.mxu0 %v3115
        %4335 = vmatprep.subr.mxu0 %v3128
        %4336 = vmatpush1.msra.mxu0 %v3127
        %4337 = vmatprep.mubr.f32.mxu0 %v725
        %4338 = vmatmul.mubr.f32.gmra.mrb[0].mxu0 %v724
        %v4339 = vpop.f32.mrb[0].mxu0
        %v4340 = vadd.f32 %v4263, %v4339
        %v4341 = vpop.f32.mrb[0].mxu0
        %v4342 = vadd.f32 %v4265, %v4341
        %4343 = vmatprep.mubr.f32.mxu0 %v731
        %4344 = vmatmul.mubr.f32.gmra.mrb[0].mxu0 %v730
        %v4345 = vpop.f32.mrb[0].mxu0
        %v4346 = vadd.f32 %v4269, %v4345
        %v4347 = vpop.f32.mrb[0].mxu0
        %v4348 = vadd.f32 %v4271, %v4347
        %4349 = vdwg.mxu0
        %4350 = vmatprep.subr.mxu0 %v1990
        %4351 = vmatpush1.msra.mxu0 %v1989
        %4352 = vmatprep.subr.mxu0 %v2002
        %4353 = vmatpush1.msra.mxu0 %v2001
        %4354 = vmatprep.subr.mxu0 %v2014
        %4355 = vmatpush1.msra.mxu0 %v2013
        %4356 = vmatprep.subr.mxu0 %v2026
        %4357 = vmatpush1.msra.mxu0 %v2025
        %4358 = vmatprep.subr.mxu0 %v2038
        %4359 = vmatpush1.msra.mxu0 %v2037
        %4360 = vmatprep.subr.mxu0 %v2050
        %4361 = vmatpush1.msra.mxu0 %v2049
        %4362 = vmatprep.subr.mxu0 %v2062
        %4363 = vmatpush1.msra.mxu0 %v2061
        %4364 = vmatprep.subr.mxu0 %v2074
        %4365 = vmatpush1.msra.mxu0 %v2073
        %4366 = vmatprep.subr.mxu0 %v2086
        %4367 = vmatpush1.msra.mxu0 %v2085
        %4368 = vmatprep.subr.mxu0 %v2098
        %4369 = vmatpush1.msra.mxu0 %v2097
        %4370 = vmatprep.subr.mxu0 %v2110
        %4371 = vmatpush1.msra.mxu0 %v2109
        %4372 = vmatprep.subr.mxu0 %v2122
        %4373 = vmatpush1.msra.mxu0 %v2121
        %4374 = vmatprep.subr.mxu0 %v2134
        %4375 = vmatpush1.msra.mxu0 %v2133
        %4376 = vmatprep.subr.mxu0 %v2146
        %4377 = vmatpush1.msra.mxu0 %v2145
        %4378 = vmatprep.subr.mxu0 %v2158
        %4379 = vmatpush1.msra.mxu0 %v2157
        %4380 = vmatprep.subr.mxu0 %v2170
        %4381 = vmatpush1.msra.mxu0 %v2169
        %4382 = vmatprep.subr.mxu0 %v2182
        %4383 = vmatpush1.msra.mxu0 %v2181
        %4384 = vmatprep.subr.mxu0 %v2194
        %4385 = vmatpush1.msra.mxu0 %v2193
        %4386 = vmatprep.subr.mxu0 %v2206
        %4387 = vmatpush1.msra.mxu0 %v2205
        %4388 = vmatprep.subr.mxu0 %v2218
        %4389 = vmatpush1.msra.mxu0 %v2217
        %4390 = vmatprep.subr.mxu0 %v2230
        %4391 = vmatpush1.msra.mxu0 %v2229
        %4392 = vmatprep.subr.mxu0 %v2242
        %4393 = vmatpush1.msra.mxu0 %v2241
        %4394 = vmatprep.subr.mxu0 %v2254
        %4395 = vmatpush1.msra.mxu0 %v2253
        %4396 = vmatprep.subr.mxu0 %v2266
        %4397 = vmatpush1.msra.mxu0 %v2265
        %4398 = vmatprep.subr.mxu0 %v2278
        %4399 = vmatpush1.msra.mxu0 %v2277
        %4400 = vmatprep.subr.mxu0 %v2290
        %4401 = vmatpush1.msra.mxu0 %v2289
        %4402 = vmatprep.subr.mxu0 %v2302
        %4403 = vmatpush1.msra.mxu0 %v2301
        %4404 = vmatprep.subr.mxu0 %v2314
        %4405 = vmatpush1.msra.mxu0 %v2313
        %4406 = vmatprep.subr.mxu0 %v2326
        %4407 = vmatpush1.msra.mxu0 %v2325
        %4408 = vmatprep.subr.mxu0 %v2338
        %4409 = vmatpush1.msra.mxu0 %v2337
        %4410 = vmatprep.subr.mxu0 %v2350
        %4411 = vmatpush1.msra.mxu0 %v2349
        %4412 = vmatprep.subr.mxu0 %v2362
        %4413 = vmatpush1.msra.mxu0 %v2361
        %4414 = vmatprep.mubr.f32.mxu0 %v721
        %4415 = vmatmul.mubr.f32.gmra.mrb[0].mxu0 %v720
        %v4416 = vpop.f32.mrb[0].mxu0
        %v4417 = vadd.f32 %v3178, %v4416
        %v4418 = vpop.f32.mrb[0].mxu0
        %v4419 = vadd.f32 %v3182, %v4418
        %4420 = vmatprep.mubr.f32.mxu0 %v727
        %4421 = vmatmul.mubr.f32.gmra.mrb[0].mxu0 %v726
        %v4422 = vpop.f32.mrb[0].mxu0
        %v4423 = vadd.f32 %v3178, %v4422
        %v4424 = vpop.f32.mrb[0].mxu0
        %v4425 = vadd.f32 %v3182, %v4424
        %4426 = vdwg.mxu0
        %4427 = vmatprep.subr.mxu0 %v2374
        %4428 = vmatpush1.msra.mxu0 %v2373
        %4429 = vmatprep.subr.mxu0 %v2386
        %4430 = vmatpush1.msra.mxu0 %v2385
        %4431 = vmatprep.subr.mxu0 %v2398
        %4432 = vmatpush1.msra.mxu0 %v2397
        %4433 = vmatprep.subr.mxu0 %v2410
        %4434 = vmatpush1.msra.mxu0 %v2409
        %4435 = vmatprep.subr.mxu0 %v2422
        %4436 = vmatpush1.msra.mxu0 %v2421
        %4437 = vmatprep.subr.mxu0 %v2434
        %4438 = vmatpush1.msra.mxu0 %v2433
        %4439 = vmatprep.subr.mxu0 %v2446
        %4440 = vmatpush1.msra.mxu0 %v2445
        %4441 = vmatprep.subr.mxu0 %v2458
        %4442 = vmatpush1.msra.mxu0 %v2457
        %4443 = vmatprep.subr.mxu0 %v2470
        %4444 = vmatpush1.msra.mxu0 %v2469
        %4445 = vmatprep.subr.mxu0 %v2482
        %4446 = vmatpush1.msra.mxu0 %v2481
        %4447 = vmatprep.subr.mxu0 %v2494
        %4448 = vmatpush1.msra.mxu0 %v2493
        %4449 = vmatprep.subr.mxu0 %v2506
        %4450 = vmatpush1.msra.mxu0 %v2505
        %4451 = vmatprep.subr.mxu0 %v2518
        %4452 = vmatpush1.msra.mxu0 %v2517
        %4453 = vmatprep.subr.mxu0 %v2530
        %4454 = vmatpush1.msra.mxu0 %v2529
        %4455 = vmatprep.subr.mxu0 %v2542
        %4456 = vmatpush1.msra.mxu0 %v2541
        %4457 = vmatprep.subr.mxu0 %v2554
        %4458 = vmatpush1.msra.mxu0 %v2553
        %4459 = vmatprep.subr.mxu0 %v2566
        %4460 = vmatpush1.msra.mxu0 %v2565
        %4461 = vmatprep.subr.mxu0 %v2578
        %4462 = vmatpush1.msra.mxu0 %v2577
        %4463 = vmatprep.subr.mxu0 %v2590
        %4464 = vmatpush1.msra.mxu0 %v2589
        %4465 = vmatprep.subr.mxu0 %v2602
        %4466 = vmatpush1.msra.mxu0 %v2601
        %4467 = vmatprep.subr.mxu0 %v2614
        %4468 = vmatpush1.msra.mxu0 %v2613
        %4469 = vmatprep.subr.mxu0 %v2626
        %4470 = vmatpush1.msra.mxu0 %v2625
        %4471 = vmatprep.subr.mxu0 %v2638
        %4472 = vmatpush1.msra.mxu0 %v2637
        %4473 = vmatprep.subr.mxu0 %v2650
        %4474 = vmatpush1.msra.mxu0 %v2649
        %4475 = vmatprep.subr.mxu0 %v2662
        %4476 = vmatpush1.msra.mxu0 %v2661
        %4477 = vmatprep.subr.mxu0 %v2674
        %4478 = vmatpush1.msra.mxu0 %v2673
        %4479 = vmatprep.subr.mxu0 %v2686
        %4480 = vmatpush1.msra.mxu0 %v2685
        %4481 = vmatprep.subr.mxu0 %v2698
        %4482 = vmatpush1.msra.mxu0 %v2697
        %4483 = vmatprep.subr.mxu0 %v2710
        %4484 = vmatpush1.msra.mxu0 %v2709
        %4485 = vmatprep.subr.mxu0 %v2722
        %4486 = vmatpush1.msra.mxu0 %v2721
        %4487 = vmatprep.subr.mxu0 %v2734
        %4488 = vmatpush1.msra.mxu0 %v2733
        %4489 = vmatprep.subr.mxu0 %v2746
        %4490 = vmatpush1.msra.mxu0 %v2745
        %4491 = vmatprep.mubr.f32.mxu0 %v723
        %4492 = vmatmul.mubr.f32.gmra.mrb[0].mxu0 %v722
        %v4493 = vpop.f32.mrb[0].mxu0
        %v4494 = vadd.f32 %v4417, %v4493
        %v4495 = vpop.f32.mrb[0].mxu0
        %v4496 = vadd.f32 %v4419, %v4495
        %4497 = vmatprep.mubr.f32.mxu0 %v729
        %4498 = vmatmul.mubr.f32.gmra.mrb[0].mxu0 %v728
        %v4499 = vpop.f32.mrb[0].mxu0
        %v4500 = vadd.f32 %v4423, %v4499
        %v4501 = vpop.f32.mrb[0].mxu0
        %v4502 = vadd.f32 %v4425, %v4501
        %4503 = vdwg.mxu0
        %4504 = vmatprep.subr.mxu0 %v2758
        %4505 = vmatpush1.msra.mxu0 %v2757
        %4506 = vmatprep.subr.mxu0 %v2770
        %4507 = vmatpush1.msra.mxu0 %v2769
        %4508 = vmatprep.subr.mxu0 %v2782
        %4509 = vmatpush1.msra.mxu0 %v2781
        %4510 = vmatprep.subr.mxu0 %v2794
        %4511 = vmatpush1.msra.mxu0 %v2793
        %4512 = vmatprep.subr.mxu0 %v2806
        %4513 = vmatpush1.msra.mxu0 %v2805
        %4514 = vmatprep.subr.mxu0 %v2818
        %4515 = vmatpush1.msra.mxu0 %v2817
        %4516 = vmatprep.subr.mxu0 %v2830
        %4517 = vmatpush1.msra.mxu0 %v2829
        %4518 = vmatprep.subr.mxu0 %v2842
        %4519 = vmatpush1.msra.mxu0 %v2841
        %4520 = vmatprep.subr.mxu0 %v2854
        %4521 = vmatpush1.msra.mxu0 %v2853
        %4522 = vmatprep.subr.mxu0 %v2866
        %4523 = vmatpush1.msra.mxu0 %v2865
        %4524 = vmatprep.subr.mxu0 %v2878
        %4525 = vmatpush1.msra.mxu0 %v2877
        %4526 = vmatprep.subr.mxu0 %v2890
        %4527 = vmatpush1.msra.mxu0 %v2889
        %4528 = vmatprep.subr.mxu0 %v2902
        %4529 = vmatpush1.msra.mxu0 %v2901
        %4530 = vmatprep.subr.mxu0 %v2914
        %4531 = vmatpush1.msra.mxu0 %v2913
        %4532 = vmatprep.subr.mxu0 %v2926
        %4533 = vmatpush1.msra.mxu0 %v2925
        %4534 = vmatprep.subr.mxu0 %v2938
        %4535 = vmatpush1.msra.mxu0 %v2937
        %4536 = vmatprep.subr.mxu0 %v2950
        %4537 = vmatpush1.msra.mxu0 %v2949
        %4538 = vmatprep.subr.mxu0 %v2962
        %4539 = vmatpush1.msra.mxu0 %v2961
        %4540 = vmatprep.subr.mxu0 %v2974
        %4541 = vmatpush1.msra.mxu0 %v2973
        %4542 = vmatprep.subr.mxu0 %v2986
        %4543 = vmatpush1.msra.mxu0 %v2985
        %4544 = vmatprep.subr.mxu0 %v2998
        %4545 = vmatpush1.msra.mxu0 %v2997
        %4546 = vmatprep.subr.mxu0 %v3010
        %4547 = vmatpush1.msra.mxu0 %v3009
        %4548 = vmatprep.subr.mxu0 %v3022
        %4549 = vmatpush1.msra.mxu0 %v3021
        %4550 = vmatprep.subr.mxu0 %v3034
        %4551 = vmatpush1.msra.mxu0 %v3033
        %4552 = vmatprep.subr.mxu0 %v3046
        %4553 = vmatpush1.msra.mxu0 %v3045
        %4554 = vmatprep.subr.mxu0 %v3058
        %4555 = vmatpush1.msra.mxu0 %v3057
        %4556 = vmatprep.subr.mxu0 %v3070
        %4557 = vmatpush1.msra.mxu0 %v3069
        %4558 = vmatprep.subr.mxu0 %v3082
        %4559 = vmatpush1.msra.mxu0 %v3081
        %4560 = vmatprep.subr.mxu0 %v3094
        %4561 = vmatpush1.msra.mxu0 %v3093
        %4562 = vmatprep.subr.mxu0 %v3106
        %4563 = vmatpush1.msra.mxu0 %v3105
        %4564 = vmatprep.subr.mxu0 %v3118
        %4565 = vmatpush1.msra.mxu0 %v3117
        %4566 = vmatprep.subr.mxu0 %v3130
        %4567 = vmatpush1.msra.mxu0 %v3129
        %4568 = vmatprep.mubr.f32.mxu0 %v725
        %4569 = vmatmul.mubr.f32.gmra.mrb[0].mxu0 %v724
        %v4570 = vpop.f32.mrb[0].mxu0
        %v4571 = vadd.f32 %v4494, %v4570
        %v4572 = vpop.f32.mrb[0].mxu0
        %v4573 = vadd.f32 %v4496, %v4572
        %4574 = vmatprep.mubr.f32.mxu0 %v731
        %4575 = vmatmul.mubr.f32.gmra.mrb[0].mxu0 %v730
        %v4576 = vpop.f32.mrb[0].mxu0
        %v4577 = vadd.f32 %v4500, %v4576
        %v4578 = vpop.f32.mrb[0].mxu0
        %v4579 = vadd.f32 %v4502, %v4578
        %4580 = vdwg.mxu0
        %vm4581 = vcmask 785408
        %v4583 = vsel %vm4581, %v1549, 0
        %v4586 = vsel %vm4581, %v3416, 0
        %v4589 = vsel %vm4581, %v3422, 0
        %4591 = vmatprep.subr.mxu0 0.0
        %4592 = vmatpush1.xpose.msra.mxu0 %v4586
        %4593 = vmatprep.subr.mxu0 0.0
        %4594 = vmatpush1.xpose.msra.mxu0 %v4589
        %4595 = vmatprep.subr.mxu0 0.0
        %4596 = vmatpush1.xpose.msra.mxu0 0.0
        %4597 = vmatprep.subr.mxu0 0.0
        %4598 = vmatpush1.xpose.msra.mxu0 0.0
        %4599 = vmatprep.subr.mxu0 0.0
        %4600 = vmatpush1.xpose.msra.mxu0 0.0
        %4601 = vmatprep.subr.mxu0 0.0
        %4602 = vmatpush1.xpose.msra.mxu0 0.0
        %4603 = vmatprep.subr.mxu0 0.0
        %4604 = vmatpush1.xpose.msra.mxu0 0.0
        %4605 = vmatprep.subr.mxu0 0.0
        %4606 = vmatpush1.xpose.msra.mxu0 0.0
        %4607 = vmatprep.subr.mxu0 0.0
        %4608 = vmatpush1.xpose.msra.mxu0 0.0
        %4609 = vmatprep.subr.mxu0 0.0
        %4610 = vmatpush1.xpose.msra.mxu0 0.0
        %4611 = vmatprep.subr.mxu0 0.0
        %4612 = vmatpush1.xpose.msra.mxu0 0.0
        %4613 = vmatprep.subr.mxu0 0.0
        %4614 = vmatpush1.xpose.msra.mxu0 0.0
        %4615 = vmatprep.subr.mxu0 0.0
        %4616 = vmatpush1.xpose.msra.mxu0 0.0
        %4617 = vmatprep.subr.mxu0 0.0
        %4618 = vmatpush1.xpose.msra.mxu0 0.0
        %4619 = vmatprep.subr.mxu0 0.0
        %4620 = vmatpush1.xpose.msra.mxu0 0.0
        %4621 = vmatprep.subr.mxu0 0.0
        %4622 = vmatpush1.xpose.msra.mxu0 0.0
        %4623 = vmatprep.subr.mxu0 0.0
        %4624 = vmatpush1.xpose.msra.mxu0 0.0
        %4625 = vmatprep.subr.mxu0 0.0
        %4626 = vmatpush1.xpose.msra.mxu0 0.0
        %4627 = vmatprep.subr.mxu0 0.0
        %4628 = vmatpush1.xpose.msra.mxu0 0.0
        %4629 = vmatprep.subr.mxu0 0.0
        %4630 = vmatpush1.xpose.msra.mxu0 0.0
        %4631 = vmatprep.subr.mxu0 0.0
        %4632 = vmatpush1.xpose.msra.mxu0 0.0
        %4633 = vmatprep.subr.mxu0 0.0
        %4634 = vmatpush1.xpose.msra.mxu0 0.0
        %4635 = vmatprep.subr.mxu0 0.0
        %4636 = vmatpush1.xpose.msra.mxu0 0.0
        %4637 = vmatprep.subr.mxu0 0.0
        %4638 = vmatpush1.xpose.msra.mxu0 0.0
        %4639 = vmatprep.subr.mxu0 0.0
        %4640 = vmatpush1.xpose.msra.mxu0 0.0
        %4641 = vmatprep.subr.mxu0 0.0
        %4642 = vmatpush1.xpose.msra.mxu0 0.0
        %4643 = vmatprep.subr.mxu0 0.0
        %4644 = vmatpush1.xpose.msra.mxu0 0.0
        %4645 = vmatprep.subr.mxu0 0.0
        %4646 = vmatpush1.xpose.msra.mxu0 0.0
        %4647 = vmatprep.subr.mxu0 0.0
        %4648 = vmatpush1.xpose.msra.mxu0 0.0
        %4649 = vmatprep.subr.mxu0 0.0
        %4650 = vmatpush1.xpose.msra.mxu0 0.0
        %4651 = vmatprep.subr.mxu0 0.0
        %4652 = vmatpush1.xpose.msra.mxu0 0.0
        %4653 = vmatprep.subr.mxu0 0.0
        %4654 = vmatpush1.xpose.msra.mxu0 0.0
        %4655 = vmatprep.mubr.f32.mxu0 0.0
        %4656 = vmatmul.mubr.f32.gmra.mrb[0].mxu0 %v4583
        %v4657 = vpop.f32.mrb[0].mxu0
        %v4658 = vadd.f32 0.0, %v4657
        %v4659 = vpop.f32.mrb[0].mxu0
        %4660 = vdwg.mxu0
        %vm4661 = vcmask 130048
        %v4662 = vsel %vm4661, %v4658, -inf
        %4663 = vmax.xlane.f32.xlu0 %v4662
        %v4664 = vpop.xlane.xlu0 %4663
        %v4665 = vsub.f32 %v4658, %v4664
        %v4666 = vmul.f32 %v4665, 1.442695
        %v4667 = vpow.pop %v4666
        %v4668 = vsel %vm4661, %v4667, 0.0
        %4669 = vadd.xlane.f32.xlu0 %v4668
        %v4670 = vpop.xlane.xlu0 %4669
        %v4671 = vrcp.pop %v4670
        %v4672 = vmul.f32 %v4667, %v4671
        %v4674 = vsel %vm4661, %v4672, 0
        %4676 = vmatprep.subr.mxu0 0.0
        %4677 = vmatpush1.msra.mxu0 %v4109
        %4678 = vmatprep.subr.mxu0 0.0
        %4679 = vmatpush1.msra.mxu0 %v4115
        %4680 = vmatprep.subr.mxu0 0.0
        %4681 = vmatpush1.msra.mxu0 0.0
        %4682 = vmatprep.subr.mxu0 0.0
        %4683 = vmatpush1.msra.mxu0 0.0
        %4684 = vmatprep.subr.mxu0 0.0
        %4685 = vmatpush1.msra.mxu0 0.0
        %4686 = vmatprep.subr.mxu0 0.0
        %4687 = vmatpush1.msra.mxu0 0.0
        %4688 = vmatprep.subr.mxu0 0.0
        %4689 = vmatpush1.msra.mxu0 0.0
        %4690 = vmatprep.subr.mxu0 0.0
        %4691 = vmatpush1.msra.mxu0 0.0
        %4692 = vmatprep.subr.mxu0 0.0
        %4693 = vmatpush1.msra.mxu0 0.0
        %4694 = vmatprep.subr.mxu0 0.0
        %4695 = vmatpush1.msra.mxu0 0.0
        %4696 = vmatprep.subr.mxu0 0.0
        %4697 = vmatpush1.msra.mxu0 0.0
        %4698 = vmatprep.subr.mxu0 0.0
        %4699 = vmatpush1.msra.mxu0 0.0
        %4700 = vmatprep.subr.mxu0 0.0
        %4701 = vmatpush1.msra.mxu0 0.0
        %4702 = vmatprep.subr.mxu0 0.0
        %4703 = vmatpush1.msra.mxu0 0.0
        %4704 = vmatprep.subr.mxu0 0.0
        %4705 = vmatpush1.msra.mxu0 0.0
        %4706 = vmatprep.subr.mxu0 0.0
        %4707 = vmatpush1.msra.mxu0 0.0
        %4708 = vmatprep.subr.mxu0 0.0
        %4709 = vmatpush1.msra.mxu0 0.0
        %4710 = vmatprep.subr.mxu0 0.0
        %4711 = vmatpush1.msra.mxu0 0.0
        %4712 = vmatprep.subr.mxu0 0.0
        %4713 = vmatpush1.msra.mxu0 0.0
        %4714 = vmatprep.subr.mxu0 0.0
        %4715 = vmatpush1.msra.mxu0 0.0
        %4716 = vmatprep.subr.mxu0 0.0
        %4717 = vmatpush1.msra.mxu0 0.0
        %4718 = vmatprep.subr.mxu0 0.0
        %4719 = vmatpush1.msra.mxu0 0.0
        %4720 = vmatprep.subr.mxu0 0.0
        %4721 = vmatpush1.msra.mxu0 0.0
        %4722 = vmatprep.subr.mxu0 0.0
        %4723 = vmatpush1.msra.mxu0 0.0
        %4724 = vmatprep.subr.mxu0 0.0
        %4725 = vmatpush1.msra.mxu0 0.0
        %4726 = vmatprep.subr.mxu0 0.0
        %4727 = vmatpush1.msra.mxu0 0.0
        %4728 = vmatprep.subr.mxu0 0.0
        %4729 = vmatpush1.msra.mxu0 0.0
        %4730 = vmatprep.subr.mxu0 0.0
        %4731 = vmatpush1.msra.mxu0 0.0
        %4732 = vmatprep.subr.mxu0 0.0
        %4733 = vmatpush1.msra.mxu0 0.0
        %4734 = vmatprep.subr.mxu0 0.0
        %4735 = vmatpush1.msra.mxu0 0.0
        %4736 = vmatprep.subr.mxu0 0.0
        %4737 = vmatpush1.msra.mxu0 0.0
        %4738 = vmatprep.subr.mxu0 0.0
        %4739 = vmatpush1.msra.mxu0 0.0
        %4740 = vmatprep.mubr.f32.mxu0 0.0
        %4741 = vmatmul.mubr.f32.gmra.mrb[0].mxu0 %v4674
        %v4742 = vpop.f32.mrb[0].mxu0
        %v4743 = vadd.f32 0.0, %v4742
        %v4744 = vpop.f32.mrb[0].mxu0
        %4745 = vdwg.mxu0
        %4747 = vrot.lane.b32.xlu0 %v1549, 32
        %v4748 = vpop.permute.xlu0 %4747
        %4749 = vrot.lane.b32.xlu0 %v1551, 32
        %v4750 = vpop.permute.xlu0 %4749
        %vm4751 = vcmask 261120
        %v4752 = vsel %vm4751, %v4748, %v4750
        %4755 = vrot.lane.b32.xlu0 %v3416, 32
        %v4756 = vpop.permute.xlu0 %4755
        %4757 = vrot.lane.b32.xlu0 %v3418, 32
        %v4758 = vpop.permute.xlu0 %4757
        %4759 = vrot.lane.b32.xlu0 %v3422, 32
        %v4760 = vpop.permute.xlu0 %4759
        %4761 = vrot.lane.b32.xlu0 %v3424, 32
        %v4762 = vpop.permute.xlu0 %4761
        %v4763 = vsel %vm4751, %v4756, %v4758
        %v4764 = vsel %vm4751, %v4760, %v4762
        %v4765 = vsel %vm4581, %v4752, 0
        %v4767 = vsel %vm4581, %v4763, 0
        %v4769 = vsel %vm4581, %v4764, 0
        %4771 = vmatprep.subr.mxu0 0.0
        %4772 = vmatpush1.xpose.msra.mxu0 %v4767
        %4773 = vmatprep.subr.mxu0 0.0
        %4774 = vmatpush1.xpose.msra.mxu0 %v4769
        %4775 = vmatprep.subr.mxu0 0.0
        %4776 = vmatpush1.xpose.msra.mxu0 0.0
        %4777 = vmatprep.subr.mxu0 0.0
        %4778 = vmatpush1.xpose.msra.mxu0 0.0
        %4779 = vmatprep.subr.mxu0 0.0
        %4780 = vmatpush1.xpose.msra.mxu0 0.0
        %4781 = vmatprep.subr.mxu0 0.0
        %4782 = vmatpush1.xpose.msra.mxu0 0.0
        %4783 = vmatprep.subr.mxu0 0.0
        %4784 = vmatpush1.xpose.msra.mxu0 0.0
        %4785 = vmatprep.subr.mxu0 0.0
        %4786 = vmatpush1.xpose.msra.mxu0 0.0
        %4787 = vmatprep.subr.mxu0 0.0
        %4788 = vmatpush1.xpose.msra.mxu0 0.0
        %4789 = vmatprep.subr.mxu0 0.0
        %4790 = vmatpush1.xpose.msra.mxu0 0.0
        %4791 = vmatprep.subr.mxu0 0.0
        %4792 = vmatpush1.xpose.msra.mxu0 0.0
        %4793 = vmatprep.subr.mxu0 0.0
        %4794 = vmatpush1.xpose.msra.mxu0 0.0
        %4795 = vmatprep.subr.mxu0 0.0
        %4796 = vmatpush1.xpose.msra.mxu0 0.0
        %4797 = vmatprep.subr.mxu0 0.0
        %4798 = vmatpush1.xpose.msra.mxu0 0.0
        %4799 = vmatprep.subr.mxu0 0.0
        %4800 = vmatpush1.xpose.msra.mxu0 0.0
        %4801 = vmatprep.subr.mxu0 0.0
        %4802 = vmatpush1.xpose.msra.mxu0 0.0
        %4803 = vmatprep.subr.mxu0 0.0
        %4804 = vmatpush1.xpose.msra.mxu0 0.0
        %4805 = vmatprep.subr.mxu0 0.0
        %4806 = vmatpush1.xpose.msra.mxu0 0.0
        %4807 = vmatprep.subr.mxu0 0.0
        %4808 = vmatpush1.xpose.msra.mxu0 0.0
        %4809 = vmatprep.subr.mxu0 0.0
        %4810 = vmatpush1.xpose.msra.mxu0 0.0
        %4811 = vmatprep.subr.mxu0 0.0
        %4812 = vmatpush1.xpose.msra.mxu0 0.0
        %4813 = vmatprep.subr.mxu0 0.0
        %4814 = vmatpush1.xpose.msra.mxu0 0.0
        %4815 = vmatprep.subr.mxu0 0.0
        %4816 = vmatpush1.xpose.msra.mxu0 0.0
        %4817 = vmatprep.subr.mxu0 0.0
        %4818 = vmatpush1.xpose.msra.mxu0 0.0
        %4819 = vmatprep.subr.mxu0 0.0
        %4820 = vmatpush1.xpose.msra.mxu0 0.0
        %4821 = vmatprep.subr.mxu0 0.0
        %4822 = vmatpush1.xpose.msra.mxu0 0.0
        %4823 = vmatprep.subr.mxu0 0.0
        %4824 = vmatpush1.xpose.msra.mxu0 0.0
        %4825 = vmatprep.subr.mxu0 0.0
        %4826 = vmatpush1.xpose.msra.mxu0 0.0
        %4827 = vmatprep.subr.mxu0 0.0
        %4828 = vmatpush1.xpose.msra.mxu0 0.0
        %4829 = vmatprep.subr.mxu0 0.0
        %4830 = vmatpush1.xpose.msra.mxu0 0.0
        %4831 = vmatprep.subr.mxu0 0.0
        %4832 = vmatpush1.xpose.msra.mxu0 0.0
        %4833 = vmatprep.subr.mxu0 0.0
        %4834 = vmatpush1.xpose.msra.mxu0 0.0
        %4835 = vmatprep.mubr.f32.mxu0 0.0
        %4836 = vmatmul.mubr.f32.gmra.mrb[0].mxu0 %v4765
        %v4837 = vpop.f32.mrb[0].mxu0
        %v4838 = vadd.f32 0.0, %v4837
        %v4839 = vpop.f32.mrb[0].mxu0
        %4840 = vdwg.mxu0
        %v4841 = vsel %vm4661, %v4838, -inf
        %4842 = vmax.xlane.f32.xlu0 %v4841
        %v4843 = vpop.xlane.xlu0 %4842
        %v4844 = vsub.f32 %v4838, %v4843
        %v4845 = vmul.f32 %v4844, 1.442695
        %v4846 = vpow.pop %v4845
        %v4847 = vsel %vm4661, %v4846, 0.0
        %4848 = vadd.xlane.f32.xlu0 %v4847
        %v4849 = vpop.xlane.xlu0 %4848
        %v4850 = vrcp.pop %v4849
        %v4851 = vmul.f32 %v4846, %v4850
        %4856 = vrot.lane.b32.xlu0 %v4109, 32
        %v4857 = vpop.permute.xlu0 %4856
        %4858 = vrot.lane.b32.xlu0 %v4111, 32
        %v4859 = vpop.permute.xlu0 %4858
        %4860 = vrot.lane.b32.xlu0 %v4115, 32
        %v4861 = vpop.permute.xlu0 %4860
        %4862 = vrot.lane.b32.xlu0 %v4117, 32
        %v4863 = vpop.permute.xlu0 %4862
        %v4864 = vsel %vm4751, %v4857, %v4859
        %v4865 = vsel %vm4751, %v4861, %v4863
        %v4869 = vsel %vm4661, %v4851, 0
        %4871 = vmatprep.subr.mxu0 0.0
        %4872 = vmatpush1.msra.mxu0 %v4864
        %4873 = vmatprep.subr.mxu0 0.0
        %4874 = vmatpush1.msra.mxu0 %v4865
        %4875 = vmatprep.subr.mxu0 0.0
        %4876 = vmatpush1.msra.mxu0 0.0
        %4877 = vmatprep.subr.mxu0 0.0
        %4878 = vmatpush1.msra.mxu0 0.0
        %4879 = vmatprep.subr.mxu0 0.0
        %4880 = vmatpush1.msra.mxu0 0.0
        %4881 = vmatprep.subr.mxu0 0.0
        %4882 = vmatpush1.msra.mxu0 0.0
        %4883 = vmatprep.subr.mxu0 0.0
        %4884 = vmatpush1.msra.mxu0 0.0
        %4885 = vmatprep.subr.mxu0 0.0
        %4886 = vmatpush1.msra.mxu0 0.0
        %4887 = vmatprep.subr.mxu0 0.0
        %4888 = vmatpush1.msra.mxu0 0.0
        %4889 = vmatprep.subr.mxu0 0.0
        %4890 = vmatpush1.msra.mxu0 0.0
        %4891 = vmatprep.subr.mxu0 0.0
        %4892 = vmatpush1.msra.mxu0 0.0
        %4893 = vmatprep.subr.mxu0 0.0
        %4894 = vmatpush1.msra.mxu0 0.0
        %4895 = vmatprep.subr.mxu0 0.0
        %4896 = vmatpush1.msra.mxu0 0.0
        %4897 = vmatprep.subr.mxu0 0.0
        %4898 = vmatpush1.msra.mxu0 0.0
        %4899 = vmatprep.subr.mxu0 0.0
        %4900 = vmatpush1.msra.mxu0 0.0
        %4901 = vmatprep.subr.mxu0 0.0
        %4902 = vmatpush1.msra.mxu0 0.0
        %4903 = vmatprep.subr.mxu0 0.0
        %4904 = vmatpush1.msra.mxu0 0.0
        %4905 = vmatprep.subr.mxu0 0.0
        %4906 = vmatpush1.msra.mxu0 0.0
        %4907 = vmatprep.subr.mxu0 0.0
        %4908 = vmatpush1.msra.mxu0 0.0
        %4909 = vmatprep.subr.mxu0 0.0
        %4910 = vmatpush1.msra.mxu0 0.0
        %4911 = vmatprep.subr.mxu0 0.0
        %4912 = vmatpush1.msra.mxu0 0.0
        %4913 = vmatprep.subr.mxu0 0.0
        %4914 = vmatpush1.msra.mxu0 0.0
        %4915 = vmatprep.subr.mxu0 0.0
        %4916 = vmatpush1.msra.mxu0 0.0
        %4917 = vmatprep.subr.mxu0 0.0
        %4918 = vmatpush1.msra.mxu0 0.0
        %4919 = vmatprep.subr.mxu0 0.0
        %4920 = vmatpush1.msra.mxu0 0.0
        %4921 = vmatprep.subr.mxu0 0.0
        %4922 = vmatpush1.msra.mxu0 0.0
        %4923 = vmatprep.subr.mxu0 0.0
        %4924 = vmatpush1.msra.mxu0 0.0
        %4925 = vmatprep.subr.mxu0 0.0
        %4926 = vmatpush1.msra.mxu0 0.0
        %4927 = vmatprep.subr.mxu0 0.0
        %4928 = vmatpush1.msra.mxu0 0.0
        %4929 = vmatprep.subr.mxu0 0.0
        %4930 = vmatpush1.msra.mxu0 0.0
        %4931 = vmatprep.subr.mxu0 0.0
        %4932 = vmatpush1.msra.mxu0 0.0
        %4933 = vmatprep.subr.mxu0 0.0
        %4934 = vmatpush1.msra.mxu0 0.0
        %4935 = vmatprep.mubr.f32.mxu0 0.0
        %4936 = vmatmul.mubr.f32.gmra.mrb[0].mxu0 %v4869
        %v4937 = vpop.f32.mrb[0].mxu0
        %v4938 = vadd.f32 0.0, %v4937
        %v4939 = vpop.f32.mrb[0].mxu0
        %4940 = vdwg.mxu0
        %4942 = vrot.lane.b32.xlu0 %v1551, 64
        %v4943 = vpop.permute.xlu0 %4942
        %4944 = vrot.lane.b32.xlu0 %v1762, 64
        %v4945 = vpop.permute.xlu0 %4944
        %vm4946 = vcmask 523264
        %v4947 = vsel %vm4946, %v4943, %v4945
        %4950 = vrot.lane.b32.xlu0 %v3418, 64
        %v4951 = vpop.permute.xlu0 %4950
        %4952 = vrot.lane.b32.xlu0 %v3647, 64
        %v4953 = vpop.permute.xlu0 %4952
        %4954 = vrot.lane.b32.xlu0 %v3424, 64
        %v4955 = vpop.permute.xlu0 %4954
        %4956 = vrot.lane.b32.xlu0 %v3653, 64
        %v4957 = vpop.permute.xlu0 %4956
        %v4958 = vsel %vm4946, %v4951, %v4953
        %v4959 = vsel %vm4946, %v4955, %v4957
        %v4960 = vsel %vm4581, %v4947, 0
        %v4962 = vsel %vm4581, %v4958, 0
        %v4964 = vsel %vm4581, %v4959, 0
        %4966 = vmatprep.subr.mxu0 0.0
        %4967 = vmatpush1.xpose.msra.mxu0 %v4962
        %4968 = vmatprep.subr.mxu0 0.0
        %4969 = vmatpush1.xpose.msra.mxu0 %v4964
        %4970 = vmatprep.subr.mxu0 0.0
        %4971 = vmatpush1.xpose.msra.mxu0 0.0
        %4972 = vmatprep.subr.mxu0 0.0
        %4973 = vmatpush1.xpose.msra.mxu0 0.0
        %4974 = vmatprep.subr.mxu0 0.0
        %4975 = vmatpush1.xpose.msra.mxu0 0.0
        %4976 = vmatprep.subr.mxu0 0.0
        %4977 = vmatpush1.xpose.msra.mxu0 0.0
        %4978 = vmatprep.subr.mxu0 0.0
        %4979 = vmatpush1.xpose.msra.mxu0 0.0
        %4980 = vmatprep.subr.mxu0 0.0
        %4981 = vmatpush1.xpose.msra.mxu0 0.0
        %4982 = vmatprep.subr.mxu0 0.0
        %4983 = vmatpush1.xpose.msra.mxu0 0.0
        %4984 = vmatprep.subr.mxu0 0.0
        %4985 = vmatpush1.xpose.msra.mxu0 0.0
        %4986 = vmatprep.subr.mxu0 0.0
        %4987 = vmatpush1.xpose.msra.mxu0 0.0
        %4988 = vmatprep.subr.mxu0 0.0
        %4989 = vmatpush1.xpose.msra.mxu0 0.0
        %4990 = vmatprep.subr.mxu0 0.0
        %4991 = vmatpush1.xpose.msra.mxu0 0.0
        %4992 = vmatprep.subr.mxu0 0.0
        %4993 = vmatpush1.xpose.msra.mxu0 0.0
        %4994 = vmatprep.subr.mxu0 0.0
        %4995 = vmatpush1.xpose.msra.mxu0 0.0
        %4996 = vmatprep.subr.mxu0 0.0
        %4997 = vmatpush1.xpose.msra.mxu0 0.0
        %4998 = vmatprep.subr.mxu0 0.0
        %4999 = vmatpush1.xpose.msra.mxu0 0.0
        %5000 = vmatprep.subr.mxu0 0.0
        %5001 = vmatpush1.xpose.msra.mxu0 0.0
        %5002 = vmatprep.subr.mxu0 0.0
        %5003 = vmatpush1.xpose.msra.mxu0 0.0
        %5004 = vmatprep.subr.mxu0 0.0
        %5005 = vmatpush1.xpose.msra.mxu0 0.0
        %5006 = vmatprep.subr.mxu0 0.0
        %5007 = vmatpush1.xpose.msra.mxu0 0.0
        %5008 = vmatprep.subr.mxu0 0.0
        %5009 = vmatpush1.xpose.msra.mxu0 0.0
        %5010 = vmatprep.subr.mxu0 0.0
        %5011 = vmatpush1.xpose.msra.mxu0 0.0
        %5012 = vmatprep.subr.mxu0 0.0
        %5013 = vmatpush1.xpose.msra.mxu0 0.0
        %5014 = vmatprep.subr.mxu0 0.0
        %5015 = vmatpush1.xpose.msra.mxu0 0.0
        %5016 = vmatprep.subr.mxu0 0.0
        %5017 = vmatpush1.xpose.msra.mxu0 0.0
        %5018 = vmatprep.subr.mxu0 0.0
        %5019 = vmatpush1.xpose.msra.mxu0 0.0
        %5020 = vmatprep.subr.mxu0 0.0
        %5021 = vmatpush1.xpose.msra.mxu0 0.0
        %5022 = vmatprep.subr.mxu0 0.0
        %5023 = vmatpush1.xpose.msra.mxu0 0.0
        %5024 = vmatprep.subr.mxu0 0.0
        %5025 = vmatpush1.xpose.msra.mxu0 0.0
        %5026 = vmatprep.subr.mxu0 0.0
        %5027 = vmatpush1.xpose.msra.mxu0 0.0
        %5028 = vmatprep.subr.mxu0 0.0
        %5029 = vmatpush1.xpose.msra.mxu0 0.0
        %5030 = vmatprep.mubr.f32.mxu0 0.0
        %5031 = vmatmul.mubr.f32.gmra.mrb[0].mxu0 %v4960
        %v5032 = vpop.f32.mrb[0].mxu0
        %v5033 = vadd.f32 0.0, %v5032
        %v5034 = vpop.f32.mrb[0].mxu0
        %5035 = vdwg.mxu0
        %v5036 = vsel %vm4661, %v5033, -inf
        %5037 = vmax.xlane.f32.xlu0 %v5036
        %v5038 = vpop.xlane.xlu0 %5037
        %v5039 = vsub.f32 %v5033, %v5038
        %v5040 = vmul.f32 %v5039, 1.442695
        %v5041 = vpow.pop %v5040
        %v5042 = vsel %vm4661, %v5041, 0.0
        %5043 = vadd.xlane.f32.xlu0 %v5042
        %v5044 = vpop.xlane.xlu0 %5043
        %v5045 = vrcp.pop %v5044
        %v5046 = vmul.f32 %v5041, %v5045
        %5049 = vrot.lane.b32.xlu0 %v4111, 64
        %v5050 = vpop.permute.xlu0 %5049
        %5051 = vrot.lane.b32.xlu0 %v4340, 64
        %v5052 = vpop.permute.xlu0 %5051
        %5053 = vrot.lane.b32.xlu0 %v4117, 64
        %v5054 = vpop.permute.xlu0 %5053
        %5055 = vrot.lane.b32.xlu0 %v4346, 64
        %v5056 = vpop.permute.xlu0 %5055
        %v5057 = vsel %vm4946, %v5050, %v5052
        %v5058 = vsel %vm4946, %v5054, %v5056
        %v5062 = vsel %vm4661, %v5046, 0
        %5064 = vmatprep.subr.mxu0 0.0
        %5065 = vmatpush1.msra.mxu0 %v5057
        %5066 = vmatprep.subr.mxu0 0.0
        %5067 = vmatpush1.msra.mxu0 %v5058
        %5068 = vmatprep.subr.mxu0 0.0
        %5069 = vmatpush1.msra.mxu0 0.0
        %5070 = vmatprep.subr.mxu0 0.0
        %5071 = vmatpush1.msra.mxu0 0.0
        %5072 = vmatprep.subr.mxu0 0.0
        %5073 = vmatpush1.msra.mxu0 0.0
        %5074 = vmatprep.subr.mxu0 0.0
        %5075 = vmatpush1.msra.mxu0 0.0
        %5076 = vmatprep.subr.mxu0 0.0
        %5077 = vmatpush1.msra.mxu0 0.0
        %5078 = vmatprep.subr.mxu0 0.0
        %5079 = vmatpush1.msra.mxu0 0.0
        %5080 = vmatprep.subr.mxu0 0.0
        %5081 = vmatpush1.msra.mxu0 0.0
        %5082 = vmatprep.subr.mxu0 0.0
        %5083 = vmatpush1.msra.mxu0 0.0
        %5084 = vmatprep.subr.mxu0 0.0
        %5085 = vmatpush1.msra.mxu0 0.0
        %5086 = vmatprep.subr.mxu0 0.0
        %5087 = vmatpush1.msra.mxu0 0.0
        %5088 = vmatprep.subr.mxu0 0.0
        %5089 = vmatpush1.msra.mxu0 0.0
        %5090 = vmatprep.subr.mxu0 0.0
        %5091 = vmatpush1.msra.mxu0 0.0
        %5092 = vmatprep.subr.mxu0 0.0
        %5093 = vmatpush1.msra.mxu0 0.0
        %5094 = vmatprep.subr.mxu0 0.0
        %5095 = vmatpush1.msra.mxu0 0.0
        %5096 = vmatprep.subr.mxu0 0.0
        %5097 = vmatpush1.msra.mxu0 0.0
        %5098 = vmatprep.subr.mxu0 0.0
        %5099 = vmatpush1.msra.mxu0 0.0
        %5100 = vmatprep.subr.mxu0 0.0
        %5101 = vmatpush1.msra.mxu0 0.0
        %5102 = vmatprep.subr.mxu0 0.0
        %5103 = vmatpush1.msra.mxu0 0.0
        %5104 = vmatprep.subr.mxu0 0.0
        %5105 = vmatpush1.msra.mxu0 0.0
        %5106 = vmatprep.subr.mxu0 0.0
        %5107 = vmatpush1.msra.mxu0 0.0
        %5108 = vmatprep.subr.mxu0 0.0
        %5109 = vmatpush1.msra.mxu0 0.0
        %5110 = vmatprep.subr.mxu0 0.0
        %5111 = vmatpush1.msra.mxu0 0.0
        %5112 = vmatprep.subr.mxu0 0.0
        %5113 = vmatpush1.msra.mxu0 0.0
        %5114 = vmatprep.subr.mxu0 0.0
        %5115 = vmatpush1.msra.mxu0 0.0
        %5116 = vmatprep.subr.mxu0 0.0
        %5117 = vmatpush1.msra.mxu0 0.0
        %5118 = vmatprep.subr.mxu0 0.0
        %5119 = vmatpush1.msra.mxu0 0.0
        %5120 = vmatprep.subr.mxu0 0.0
        %5121 = vmatpush1.msra.mxu0 0.0
        %5122 = vmatprep.subr.mxu0 0.0
        %5123 = vmatpush1.msra.mxu0 0.0
        %5124 = vmatprep.subr.mxu0 0.0
        %5125 = vmatpush1.msra.mxu0 0.0
        %5126 = vmatprep.subr.mxu0 0.0
        %5127 = vmatpush1.msra.mxu0 0.0
        %5128 = vmatprep.mubr.f32.mxu0 0.0
        %5129 = vmatmul.mubr.f32.gmra.mrb[0].mxu0 %v5062
        %v5130 = vpop.f32.mrb[0].mxu0
        %v5131 = vadd.f32 0.0, %v5130
        %v5132 = vpop.f32.mrb[0].mxu0
        %5133 = vdwg.mxu0
        %5134 = vrot.lane.b32.xlu0 %v1762, 96
        %v5135 = vpop.permute.xlu0 %5134
        %5136 = vrot.lane.b32.xlu0 %v3647, 96
        %v5137 = vpop.permute.xlu0 %5136
        %5138 = vrot.lane.b32.xlu0 %v3653, 96
        %v5139 = vpop.permute.xlu0 %5138
        %v5140 = vsel %vm4581, %v5135, 0
        %v5142 = vsel %vm4581, %v5137, 0
        %v5144 = vsel %vm4581, %v5139, 0
        %5146 = vmatprep.subr.mxu0 0.0
        %5147 = vmatpush1.xpose.msra.mxu0 %v5142
        %5148 = vmatprep.subr.mxu0 0.0
        %5149 = vmatpush1.xpose.msra.mxu0 %v5144
        %5150 = vmatprep.subr.mxu0 0.0
        %5151 = vmatpush1.xpose.msra.mxu0 0.0
        %5152 = vmatprep.subr.mxu0 0.0
        %5153 = vmatpush1.xpose.msra.mxu0 0.0
        %5154 = vmatprep.subr.mxu0 0.0
        %5155 = vmatpush1.xpose.msra.mxu0 0.0
        %5156 = vmatprep.subr.mxu0 0.0
        %5157 = vmatpush1.xpose.msra.mxu0 0.0
        %5158 = vmatprep.subr.mxu0 0.0
        %5159 = vmatpush1.xpose.msra.mxu0 0.0
        %5160 = vmatprep.subr.mxu0 0.0
        %5161 = vmatpush1.xpose.msra.mxu0 0.0
        %5162 = vmatprep.subr.mxu0 0.0
        %5163 = vmatpush1.xpose.msra.mxu0 0.0
        %5164 = vmatprep.subr.mxu0 0.0
        %5165 = vmatpush1.xpose.msra.mxu0 0.0
        %5166 = vmatprep.subr.mxu0 0.0
        %5167 = vmatpush1.xpose.msra.mxu0 0.0
        %5168 = vmatprep.subr.mxu0 0.0
        %5169 = vmatpush1.xpose.msra.mxu0 0.0
        %5170 = vmatprep.subr.mxu0 0.0
        %5171 = vmatpush1.xpose.msra.mxu0 0.0
        %5172 = vmatprep.subr.mxu0 0.0
        %5173 = vmatpush1.xpose.msra.mxu0 0.0
        %5174 = vmatprep.subr.mxu0 0.0
        %5175 = vmatpush1.xpose.msra.mxu0 0.0
        %5176 = vmatprep.subr.mxu0 0.0
        %5177 = vmatpush1.xpose.msra.mxu0 0.0
        %5178 = vmatprep.subr.mxu0 0.0
        %5179 = vmatpush1.xpose.msra.mxu0 0.0
        %5180 = vmatprep.subr.mxu0 0.0
        %5181 = vmatpush1.xpose.msra.mxu0 0.0
        %5182 = vmatprep.subr.mxu0 0.0
        %5183 = vmatpush1.xpose.msra.mxu0 0.0
        %5184 = vmatprep.subr.mxu0 0.0
        %5185 = vmatpush1.xpose.msra.mxu0 0.0
        %5186 = vmatprep.subr.mxu0 0.0
        %5187 = vmatpush1.xpose.msra.mxu0 0.0
        %5188 = vmatprep.subr.mxu0 0.0
        %5189 = vmatpush1.xpose.msra.mxu0 0.0
        %5190 = vmatprep.subr.mxu0 0.0
        %5191 = vmatpush1.xpose.msra.mxu0 0.0
        %5192 = vmatprep.subr.mxu0 0.0
        %5193 = vmatpush1.xpose.msra.mxu0 0.0
        %5194 = vmatprep.subr.mxu0 0.0
        %5195 = vmatpush1.xpose.msra.mxu0 0.0
        %5196 = vmatprep.subr.mxu0 0.0
        %5197 = vmatpush1.xpose.msra.mxu0 0.0
        %5198 = vmatprep.subr.mxu0 0.0
        %5199 = vmatpush1.xpose.msra.mxu0 0.0
        %5200 = vmatprep.subr.mxu0 0.0
        %5201 = vmatpush1.xpose.msra.mxu0 0.0
        %5202 = vmatprep.subr.mxu0 0.0
        %5203 = vmatpush1.xpose.msra.mxu0 0.0
        %5204 = vmatprep.subr.mxu0 0.0
        %5205 = vmatpush1.xpose.msra.mxu0 0.0
        %5206 = vmatprep.subr.mxu0 0.0
        %5207 = vmatpush1.xpose.msra.mxu0 0.0
        %5208 = vmatprep.subr.mxu0 0.0
        %5209 = vmatpush1.xpose.msra.mxu0 0.0
        %5210 = vmatprep.mubr.f32.mxu0 0.0
        %5211 = vmatmul.mubr.f32.gmra.mrb[0].mxu0 %v5140
        %v5212 = vpop.f32.mrb[0].mxu0
        %v5213 = vadd.f32 0.0, %v5212
        %v5214 = vpop.f32.mrb[0].mxu0
        %5215 = vdwg.mxu0
        %v5216 = vsel %vm4661, %v5213, -inf
        %5217 = vmax.xlane.f32.xlu0 %v5216
        %v5218 = vpop.xlane.xlu0 %5217
        %v5219 = vsub.f32 %v5213, %v5218
        %v5220 = vmul.f32 %v5219, 1.442695
        %v5221 = vpow.pop %v5220
        %v5222 = vsel %vm4661, %v5221, 0.0
        %5223 = vadd.xlane.f32.xlu0 %v5222
        %v5224 = vpop.xlane.xlu0 %5223
        %v5225 = vrcp.pop %v5224
        %v5226 = vmul.f32 %v5221, %v5225
        %5227 = vrot.lane.b32.xlu0 %v4340, 96
        %v5228 = vpop.permute.xlu0 %5227
        %5229 = vrot.lane.b32.xlu0 %v4346, 96
        %v5230 = vpop.permute.xlu0 %5229
        %v5234 = vsel %vm4661, %v5226, 0
        %5236 = vmatprep.subr.mxu0 0.0
        %5237 = vmatpush1.msra.mxu0 %v5228
        %5238 = vmatprep.subr.mxu0 0.0
        %5239 = vmatpush1.msra.mxu0 %v5230
        %5240 = vmatprep.subr.mxu0 0.0
        %5241 = vmatpush1.msra.mxu0 0.0
        %5242 = vmatprep.subr.mxu0 0.0
        %5243 = vmatpush1.msra.mxu0 0.0
        %5244 = vmatprep.subr.mxu0 0.0
        %5245 = vmatpush1.msra.mxu0 0.0
        %5246 = vmatprep.subr.mxu0 0.0
        %5247 = vmatpush1.msra.mxu0 0.0
        %5248 = vmatprep.subr.mxu0 0.0
        %5249 = vmatpush1.msra.mxu0 0.0
        %5250 = vmatprep.subr.mxu0 0.0
        %5251 = vmatpush1.msra.mxu0 0.0
        %5252 = vmatprep.subr.mxu0 0.0
        %5253 = vmatpush1.msra.mxu0 0.0
        %5254 = vmatprep.subr.mxu0 0.0
        %5255 = vmatpush1.msra.mxu0 0.0
        %5256 = vmatprep.subr.mxu0 0.0
        %5257 = vmatpush1.msra.mxu0 0.0
        %5258 = vmatprep.subr.mxu0 0.0
        %5259 = vmatpush1.msra.mxu0 0.0
        %5260 = vmatprep.subr.mxu0 0.0
        %5261 = vmatpush1.msra.mxu0 0.0
        %5262 = vmatprep.subr.mxu0 0.0
        %5263 = vmatpush1.msra.mxu0 0.0
        %5264 = vmatprep.subr.mxu0 0.0
        %5265 = vmatpush1.msra.mxu0 0.0
        %5266 = vmatprep.subr.mxu0 0.0
        %5267 = vmatpush1.msra.mxu0 0.0
        %5268 = vmatprep.subr.mxu0 0.0
        %5269 = vmatpush1.msra.mxu0 0.0
        %5270 = vmatprep.subr.mxu0 0.0
        %5271 = vmatpush1.msra.mxu0 0.0
        %5272 = vmatprep.subr.mxu0 0.0
        %5273 = vmatpush1.msra.mxu0 0.0
        %5274 = vmatprep.subr.mxu0 0.0
        %5275 = vmatpush1.msra.mxu0 0.0
        %5276 = vmatprep.subr.mxu0 0.0
        %5277 = vmatpush1.msra.mxu0 0.0
        %5278 = vmatprep.subr.mxu0 0.0
        %5279 = vmatpush1.msra.mxu0 0.0
        %5280 = vmatprep.subr.mxu0 0.0
        %5281 = vmatpush1.msra.mxu0 0.0
        %5282 = vmatprep.subr.mxu0 0.0
        %5283 = vmatpush1.msra.mxu0 0.0
        %5284 = vmatprep.subr.mxu0 0.0
        %5285 = vmatpush1.msra.mxu0 0.0
        %5286 = vmatprep.subr.mxu0 0.0
        %5287 = vmatpush1.msra.mxu0 0.0
        %5288 = vmatprep.subr.mxu0 0.0
        %5289 = vmatpush1.msra.mxu0 0.0
        %5290 = vmatprep.subr.mxu0 0.0
        %5291 = vmatpush1.msra.mxu0 0.0
        %5292 = vmatprep.subr.mxu0 0.0
        %5293 = vmatpush1.msra.mxu0 0.0
        %5294 = vmatprep.subr.mxu0 0.0
        %5295 = vmatpush1.msra.mxu0 0.0
        %5296 = vmatprep.subr.mxu0 0.0
        %5297 = vmatpush1.msra.mxu0 0.0
        %5298 = vmatprep.subr.mxu0 0.0
        %5299 = vmatpush1.msra.mxu0 0.0
        %5300 = vmatprep.mubr.f32.mxu0 0.0
        %5301 = vmatmul.mubr.f32.gmra.mrb[0].mxu0 %v5234
        %v5302 = vpop.f32.mrb[0].mxu0
        %v5303 = vadd.f32 0.0, %v5302
        %v5304 = vpop.f32.mrb[0].mxu0
        %5305 = vdwg.mxu0
        %v5307 = vsel %vm4581, %v1764, 0
        %v5310 = vsel %vm4581, %v3649, 0
        %v5313 = vsel %vm4581, %v3655, 0
        %5315 = vmatprep.subr.mxu0 0.0
        %5316 = vmatpush1.xpose.msra.mxu0 %v5310
        %5317 = vmatprep.subr.mxu0 0.0
        %5318 = vmatpush1.xpose.msra.mxu0 %v5313
        %5319 = vmatprep.subr.mxu0 0.0
        %5320 = vmatpush1.xpose.msra.mxu0 0.0
        %5321 = vmatprep.subr.mxu0 0.0
        %5322 = vmatpush1.xpose.msra.mxu0 0.0
        %5323 = vmatprep.subr.mxu0 0.0
        %5324 = vmatpush1.xpose.msra.mxu0 0.0
        %5325 = vmatprep.subr.mxu0 0.0
        %5326 = vmatpush1.xpose.msra.mxu0 0.0
        %5327 = vmatprep.subr.mxu0 0.0
        %5328 = vmatpush1.xpose.msra.mxu0 0.0
        %5329 = vmatprep.subr.mxu0 0.0
        %5330 = vmatpush1.xpose.msra.mxu0 0.0
        %5331 = vmatprep.subr.mxu0 0.0
        %5332 = vmatpush1.xpose.msra.mxu0 0.0
        %5333 = vmatprep.subr.mxu0 0.0
        %5334 = vmatpush1.xpose.msra.mxu0 0.0
        %5335 = vmatprep.subr.mxu0 0.0
        %5336 = vmatpush1.xpose.msra.mxu0 0.0
        %5337 = vmatprep.subr.mxu0 0.0
        %5338 = vmatpush1.xpose.msra.mxu0 0.0
        %5339 = vmatprep.subr.mxu0 0.0
        %5340 = vmatpush1.xpose.msra.mxu0 0.0
        %5341 = vmatprep.subr.mxu0 0.0
        %5342 = vmatpush1.xpose.msra.mxu0 0.0
        %5343 = vmatprep.subr.mxu0 0.0
        %5344 = vmatpush1.xpose.msra.mxu0 0.0
        %5345 = vmatprep.subr.mxu0 0.0
        %5346 = vmatpush1.xpose.msra.mxu0 0.0
        %5347 = vmatprep.subr.mxu0 0.0
        %5348 = vmatpush1.xpose.msra.mxu0 0.0
        %5349 = vmatprep.subr.mxu0 0.0
        %5350 = vmatpush1.xpose.msra.mxu0 0.0
        %5351 = vmatprep.subr.mxu0 0.0
        %5352 = vmatpush1.xpose.msra.mxu0 0.0
        %5353 = vmatprep.subr.mxu0 0.0
        %5354 = vmatpush1.xpose.msra.mxu0 0.0
        %5355 = vmatprep.subr.mxu0 0.0
        %5356 = vmatpush1.xpose.msra.mxu0 0.0
        %5357 = vmatprep.subr.mxu0 0.0
        %5358 = vmatpush1.xpose.msra.mxu0 0.0
        %5359 = vmatprep.subr.mxu0 0.0
        %5360 = vmatpush1.xpose.msra.mxu0 0.0
        %5361 = vmatprep.subr.mxu0 0.0
        %5362 = vmatpush1.xpose.msra.mxu0 0.0
        %5363 = vmatprep.subr.mxu0 0.0
        %5364 = vmatpush1.xpose.msra.mxu0 0.0
        %5365 = vmatprep.subr.mxu0 0.0
        %5366 = vmatpush1.xpose.msra.mxu0 0.0
        %5367 = vmatprep.subr.mxu0 0.0
        %5368 = vmatpush1.xpose.msra.mxu0 0.0
        %5369 = vmatprep.subr.mxu0 0.0
        %5370 = vmatpush1.xpose.msra.mxu0 0.0
        %5371 = vmatprep.subr.mxu0 0.0
        %5372 = vmatpush1.xpose.msra.mxu0 0.0
        %5373 = vmatprep.subr.mxu0 0.0
        %5374 = vmatpush1.xpose.msra.mxu0 0.0
        %5375 = vmatprep.subr.mxu0 0.0
        %5376 = vmatpush1.xpose.msra.mxu0 0.0
        %5377 = vmatprep.subr.mxu0 0.0
        %5378 = vmatpush1.xpose.msra.mxu0 0.0
        %5379 = vmatprep.mubr.f32.mxu0 0.0
        %5380 = vmatmul.mubr.f32.gmra.mrb[0].mxu0 %v5307
        %v5381 = vpop.f32.mrb[0].mxu0
        %v5382 = vadd.f32 0.0, %v5381
        %v5383 = vpop.f32.mrb[0].mxu0
        %5384 = vdwg.mxu0
        %v5385 = vsel %vm4661, %v5382, -inf
        %5386 = vmax.xlane.f32.xlu0 %v5385
        %v5387 = vpop.xlane.xlu0 %5386
        %v5388 = vsub.f32 %v5382, %v5387
        %v5389 = vmul.f32 %v5388, 1.442695
        %v5390 = vpow.pop %v5389
        %v5391 = vsel %vm4661, %v5390, 0.0
        %5392 = vadd.xlane.f32.xlu0 %v5391
        %v5393 = vpop.xlane.xlu0 %5392
        %v5394 = vrcp.pop %v5393
        %v5395 = vmul.f32 %v5390, %v5394
        %v5397 = vsel %vm4661, %v5395, 0
        %5399 = vmatprep.subr.mxu0 0.0
        %5400 = vmatpush1.msra.mxu0 %v4342
        %5401 = vmatprep.subr.mxu0 0.0
        %5402 = vmatpush1.msra.mxu0 %v4348
        %5403 = vmatprep.subr.mxu0 0.0
        %5404 = vmatpush1.msra.mxu0 0.0
        %5405 = vmatprep.subr.mxu0 0.0
        %5406 = vmatpush1.msra.mxu0 0.0
        %5407 = vmatprep.subr.mxu0 0.0
        %5408 = vmatpush1.msra.mxu0 0.0
        %5409 = vmatprep.subr.mxu0 0.0
        %5410 = vmatpush1.msra.mxu0 0.0
        %5411 = vmatprep.subr.mxu0 0.0
        %5412 = vmatpush1.msra.mxu0 0.0
        %5413 = vmatprep.subr.mxu0 0.0
        %5414 = vmatpush1.msra.mxu0 0.0
        %5415 = vmatprep.subr.mxu0 0.0
        %5416 = vmatpush1.msra.mxu0 0.0
        %5417 = vmatprep.subr.mxu0 0.0
        %5418 = vmatpush1.msra.mxu0 0.0
        %5419 = vmatprep.subr.mxu0 0.0
        %5420 = vmatpush1.msra.mxu0 0.0
        %5421 = vmatprep.subr.mxu0 0.0
        %5422 = vmatpush1.msra.mxu0 0.0
        %5423 = vmatprep.subr.mxu0 0.0
        %5424 = vmatpush1.msra.mxu0 0.0
        %5425 = vmatprep.subr.mxu0 0.0
        %5426 = vmatpush1.msra.mxu0 0.0
        %5427 = vmatprep.subr.mxu0 0.0
        %5428 = vmatpush1.msra.mxu0 0.0
        %5429 = vmatprep.subr.mxu0 0.0
        %5430 = vmatpush1.msra.mxu0 0.0
        %5431 = vmatprep.subr.mxu0 0.0
        %5432 = vmatpush1.msra.mxu0 0.0
        %5433 = vmatprep.subr.mxu0 0.0
        %5434 = vmatpush1.msra.mxu0 0.0
        %5435 = vmatprep.subr.mxu0 0.0
        %5436 = vmatpush1.msra.mxu0 0.0
        %5437 = vmatprep.subr.mxu0 0.0
        %5438 = vmatpush1.msra.mxu0 0.0
        %5439 = vmatprep.subr.mxu0 0.0
        %5440 = vmatpush1.msra.mxu0 0.0
        %5441 = vmatprep.subr.mxu0 0.0
        %5442 = vmatpush1.msra.mxu0 0.0
        %5443 = vmatprep.subr.mxu0 0.0
        %5444 = vmatpush1.msra.mxu0 0.0
        %5445 = vmatprep.subr.mxu0 0.0
        %5446 = vmatpush1.msra.mxu0 0.0
        %5447 = vmatprep.subr.mxu0 0.0
        %5448 = vmatpush1.msra.mxu0 0.0
        %5449 = vmatprep.subr.mxu0 0.0
        %5450 = vmatpush1.msra.mxu0 0.0
        %5451 = vmatprep.subr.mxu0 0.0
        %5452 = vmatpush1.msra.mxu0 0.0
        %5453 = vmatprep.subr.mxu0 0.0
        %5454 = vmatpush1.msra.mxu0 0.0
        %5455 = vmatprep.subr.mxu0 0.0
        %5456 = vmatpush1.msra.mxu0 0.0
        %5457 = vmatprep.subr.mxu0 0.0
        %5458 = vmatpush1.msra.mxu0 0.0
        %5459 = vmatprep.subr.mxu0 0.0
        %5460 = vmatpush1.msra.mxu0 0.0
        %5461 = vmatprep.subr.mxu0 0.0
        %5462 = vmatpush1.msra.mxu0 0.0
        %5463 = vmatprep.mubr.f32.mxu0 0.0
        %5464 = vmatmul.mubr.f32.gmra.mrb[0].mxu0 %v5397
        %v5465 = vpop.f32.mrb[0].mxu0
        %v5466 = vadd.f32 0.0, %v5465
        %v5467 = vpop.f32.mrb[0].mxu0
        %5468 = vdwg.mxu0
        %5470 = vrot.lane.b32.xlu0 %v1764, 32
        %v5471 = vpop.permute.xlu0 %5470
        %5472 = vrot.lane.b32.xlu0 %v1975, 32
        %v5473 = vpop.permute.xlu0 %5472
        %v5474 = vsel %vm4751, %v5471, %v5473
        %5477 = vrot.lane.b32.xlu0 %v3649, 32
        %v5478 = vpop.permute.xlu0 %5477
        %5479 = vrot.lane.b32.xlu0 %v3878, 32
        %v5480 = vpop.permute.xlu0 %5479
        %5481 = vrot.lane.b32.xlu0 %v3655, 32
        %v5482 = vpop.permute.xlu0 %5481
        %5483 = vrot.lane.b32.xlu0 %v3884, 32
        %v5484 = vpop.permute.xlu0 %5483
        %v5485 = vsel %vm4751, %v5478, %v5480
        %v5486 = vsel %vm4751, %v5482, %v5484
        %v5487 = vsel %vm4581, %v5474, 0
        %v5489 = vsel %vm4581, %v5485, 0
        %v5491 = vsel %vm4581, %v5486, 0
        %5493 = vmatprep.subr.mxu0 0.0
        %5494 = vmatpush1.xpose.msra.mxu0 %v5489
        %5495 = vmatprep.subr.mxu0 0.0
        %5496 = vmatpush1.xpose.msra.mxu0 %v5491
        %5497 = vmatprep.subr.mxu0 0.0
        %5498 = vmatpush1.xpose.msra.mxu0 0.0
        %5499 = vmatprep.subr.mxu0 0.0
        %5500 = vmatpush1.xpose.msra.mxu0 0.0
        %5501 = vmatprep.subr.mxu0 0.0
        %5502 = vmatpush1.xpose.msra.mxu0 0.0
        %5503 = vmatprep.subr.mxu0 0.0
        %5504 = vmatpush1.xpose.msra.mxu0 0.0
        %5505 = vmatprep.subr.mxu0 0.0
        %5506 = vmatpush1.xpose.msra.mxu0 0.0
        %5507 = vmatprep.subr.mxu0 0.0
        %5508 = vmatpush1.xpose.msra.mxu0 0.0
        %5509 = vmatprep.subr.mxu0 0.0
        %5510 = vmatpush1.xpose.msra.mxu0 0.0
        %5511 = vmatprep.subr.mxu0 0.0
        %5512 = vmatpush1.xpose.msra.mxu0 0.0
        %5513 = vmatprep.subr.mxu0 0.0
        %5514 = vmatpush1.xpose.msra.mxu0 0.0
        %5515 = vmatprep.subr.mxu0 0.0
        %5516 = vmatpush1.xpose.msra.mxu0 0.0
        %5517 = vmatprep.subr.mxu0 0.0
        %5518 = vmatpush1.xpose.msra.mxu0 0.0
        %5519 = vmatprep.subr.mxu0 0.0
        %5520 = vmatpush1.xpose.msra.mxu0 0.0
        %5521 = vmatprep.subr.mxu0 0.0
        %5522 = vmatpush1.xpose.msra.mxu0 0.0
        %5523 = vmatprep.subr.mxu0 0.0
        %5524 = vmatpush1.xpose.msra.mxu0 0.0
        %5525 = vmatprep.subr.mxu0 0.0
        %5526 = vmatpush1.xpose.msra.mxu0 0.0
        %5527 = vmatprep.subr.mxu0 0.0
        %5528 = vmatpush1.xpose.msra.mxu0 0.0
        %5529 = vmatprep.subr.mxu0 0.0
        %5530 = vmatpush1.xpose.msra.mxu0 0.0
        %5531 = vmatprep.subr.mxu0 0.0
        %5532 = vmatpush1.xpose.msra.mxu0 0.0
        %5533 = vmatprep.subr.mxu0 0.0
        %5534 = vmatpush1.xpose.msra.mxu0 0.0
        %5535 = vmatprep.subr.mxu0 0.0
        %5536 = vmatpush1.xpose.msra.mxu0 0.0
        %5537 = vmatprep.subr.mxu0 0.0
        %5538 = vmatpush1.xpose.msra.mxu0 0.0
        %5539 = vmatprep.subr.mxu0 0.0
        %5540 = vmatpush1.xpose.msra.mxu0 0.0
        %5541 = vmatprep.subr.mxu0 0.0
        %5542 = vmatpush1.xpose.msra.mxu0 0.0
        %5543 = vmatprep.subr.mxu0 0.0
        %5544 = vmatpush1.xpose.msra.mxu0 0.0
        %5545 = vmatprep.subr.mxu0 0.0
        %5546 = vmatpush1.xpose.msra.mxu0 0.0
        %5547 = vmatprep.subr.mxu0 0.0
        %5548 = vmatpush1.xpose.msra.mxu0 0.0
        %5549 = vmatprep.subr.mxu0 0.0
        %5550 = vmatpush1.xpose.msra.mxu0 0.0
        %5551 = vmatprep.subr.mxu0 0.0
        %5552 = vmatpush1.xpose.msra.mxu0 0.0
        %5553 = vmatprep.subr.mxu0 0.0
        %5554 = vmatpush1.xpose.msra.mxu0 0.0
        %5555 = vmatprep.subr.mxu0 0.0
        %5556 = vmatpush1.xpose.msra.mxu0 0.0
        %5557 = vmatprep.mubr.f32.mxu0 0.0
        %5558 = vmatmul.mubr.f32.gmra.mrb[0].mxu0 %v5487
        %v5559 = vpop.f32.mrb[0].mxu0
        %v5560 = vadd.f32 0.0, %v5559
        %v5561 = vpop.f32.mrb[0].mxu0
        %5562 = vdwg.mxu0
        %v5563 = vsel %vm4661, %v5560, -inf
        %5564 = vmax.xlane.f32.xlu0 %v5563
        %v5565 = vpop.xlane.xlu0 %5564
        %v5566 = vsub.f32 %v5560, %v5565
        %v5567 = vmul.f32 %v5566, 1.442695
        %v5568 = vpow.pop %v5567
        %v5569 = vsel %vm4661, %v5568, 0.0
        %5570 = vadd.xlane.f32.xlu0 %v5569
        %v5571 = vpop.xlane.xlu0 %5570
        %v5572 = vrcp.pop %v5571
        %v5573 = vmul.f32 %v5568, %v5572
        %5578 = vrot.lane.b32.xlu0 %v4342, 32
        %v5579 = vpop.permute.xlu0 %5578
        %5580 = vrot.lane.b32.xlu0 %v4571, 32
        %v5581 = vpop.permute.xlu0 %5580
        %5582 = vrot.lane.b32.xlu0 %v4348, 32
        %v5583 = vpop.permute.xlu0 %5582
        %5584 = vrot.lane.b32.xlu0 %v4577, 32
        %v5585 = vpop.permute.xlu0 %5584
        %v5586 = vsel %vm4751, %v5579, %v5581
        %v5587 = vsel %vm4751, %v5583, %v5585
        %v5591 = vsel %vm4661, %v5573, 0
        %5593 = vmatprep.subr.mxu0 0.0
        %5594 = vmatpush1.msra.mxu0 %v5586
        %5595 = vmatprep.subr.mxu0 0.0
        %5596 = vmatpush1.msra.mxu0 %v5587
        %5597 = vmatprep.subr.mxu0 0.0
        %5598 = vmatpush1.msra.mxu0 0.0
        %5599 = vmatprep.subr.mxu0 0.0
        %5600 = vmatpush1.msra.mxu0 0.0
        %5601 = vmatprep.subr.mxu0 0.0
        %5602 = vmatpush1.msra.mxu0 0.0
        %5603 = vmatprep.subr.mxu0 0.0
        %5604 = vmatpush1.msra.mxu0 0.0
        %5605 = vmatprep.subr.mxu0 0.0
        %5606 = vmatpush1.msra.mxu0 0.0
        %5607 = vmatprep.subr.mxu0 0.0
        %5608 = vmatpush1.msra.mxu0 0.0
        %5609 = vmatprep.subr.mxu0 0.0
        %5610 = vmatpush1.msra.mxu0 0.0
        %5611 = vmatprep.subr.mxu0 0.0
        %5612 = vmatpush1.msra.mxu0 0.0
        %5613 = vmatprep.subr.mxu0 0.0
        %5614 = vmatpush1.msra.mxu0 0.0
        %5615 = vmatprep.subr.mxu0 0.0
        %5616 = vmatpush1.msra.mxu0 0.0
        %5617 = vmatprep.subr.mxu0 0.0
        %5618 = vmatpush1.msra.mxu0 0.0
        %5619 = vmatprep.subr.mxu0 0.0
        %5620 = vmatpush1.msra.mxu0 0.0
        %5621 = vmatprep.subr.mxu0 0.0
        %5622 = vmatpush1.msra.mxu0 0.0
        %5623 = vmatprep.subr.mxu0 0.0
        %5624 = vmatpush1.msra.mxu0 0.0
        %5625 = vmatprep.subr.mxu0 0.0
        %5626 = vmatpush1.msra.mxu0 0.0
        %5627 = vmatprep.subr.mxu0 0.0
        %5628 = vmatpush1.msra.mxu0 0.0
        %5629 = vmatprep.subr.mxu0 0.0
        %5630 = vmatpush1.msra.mxu0 0.0
        %5631 = vmatprep.subr.mxu0 0.0
        %5632 = vmatpush1.msra.mxu0 0.0
        %5633 = vmatprep.subr.mxu0 0.0
        %5634 = vmatpush1.msra.mxu0 0.0
        %5635 = vmatprep.subr.mxu0 0.0
        %5636 = vmatpush1.msra.mxu0 0.0
        %5637 = vmatprep.subr.mxu0 0.0
        %5638 = vmatpush1.msra.mxu0 0.0
        %5639 = vmatprep.subr.mxu0 0.0
        %5640 = vmatpush1.msra.mxu0 0.0
        %5641 = vmatprep.subr.mxu0 0.0
        %5642 = vmatpush1.msra.mxu0 0.0
        %5643 = vmatprep.subr.mxu0 0.0
        %5644 = vmatpush1.msra.mxu0 0.0
        %5645 = vmatprep.subr.mxu0 0.0
        %5646 = vmatpush1.msra.mxu0 0.0
        %5647 = vmatprep.subr.mxu0 0.0
        %5648 = vmatpush1.msra.mxu0 0.0
        %5649 = vmatprep.subr.mxu0 0.0
        %5650 = vmatpush1.msra.mxu0 0.0
        %5651 = vmatprep.subr.mxu0 0.0
        %5652 = vmatpush1.msra.mxu0 0.0
        %5653 = vmatprep.subr.mxu0 0.0
        %5654 = vmatpush1.msra.mxu0 0.0
        %5655 = vmatprep.subr.mxu0 0.0
        %5656 = vmatpush1.msra.mxu0 0.0
        %5657 = vmatprep.mubr.f32.mxu0 0.0
        %5658 = vmatmul.mubr.f32.gmra.mrb[0].mxu0 %v5591
        %v5659 = vpop.f32.mrb[0].mxu0
        %v5660 = vadd.f32 0.0, %v5659
        %v5661 = vpop.f32.mrb[0].mxu0
        %5662 = vdwg.mxu0
        %5664 = vrot.lane.b32.xlu0 %v1975, 64
        %v5665 = vpop.permute.xlu0 %5664
        %5666 = vrot.lane.b32.xlu0 %v1977, 64
        %v5667 = vpop.permute.xlu0 %5666
        %v5668 = vsel %vm4946, %v5665, %v5667
        %5671 = vrot.lane.b32.xlu0 %v3878, 64
        %v5672 = vpop.permute.xlu0 %5671
        %5673 = vrot.lane.b32.xlu0 %v3880, 64
        %v5674 = vpop.permute.xlu0 %5673
        %5675 = vrot.lane.b32.xlu0 %v3884, 64
        %v5676 = vpop.permute.xlu0 %5675
        %5677 = vrot.lane.b32.xlu0 %v3886, 64
        %v5678 = vpop.permute.xlu0 %5677
        %v5679 = vsel %vm4946, %v5672, %v5674
        %v5680 = vsel %vm4946, %v5676, %v5678
        %v5681 = vsel %vm4581, %v5668, 0
        %v5683 = vsel %vm4581, %v5679, 0
        %v5685 = vsel %vm4581, %v5680, 0
        %5687 = vmatprep.subr.mxu0 0.0
        %5688 = vmatpush1.xpose.msra.mxu0 %v5683
        %5689 = vmatprep.subr.mxu0 0.0
        %5690 = vmatpush1.xpose.msra.mxu0 %v5685
        %5691 = vmatprep.subr.mxu0 0.0
        %5692 = vmatpush1.xpose.msra.mxu0 0.0
        %5693 = vmatprep.subr.mxu0 0.0
        %5694 = vmatpush1.xpose.msra.mxu0 0.0
        %5695 = vmatprep.subr.mxu0 0.0
        %5696 = vmatpush1.xpose.msra.mxu0 0.0
        %5697 = vmatprep.subr.mxu0 0.0
        %5698 = vmatpush1.xpose.msra.mxu0 0.0
        %5699 = vmatprep.subr.mxu0 0.0
        %5700 = vmatpush1.xpose.msra.mxu0 0.0
        %5701 = vmatprep.subr.mxu0 0.0
        %5702 = vmatpush1.xpose.msra.mxu0 0.0
        %5703 = vmatprep.subr.mxu0 0.0
        %5704 = vmatpush1.xpose.msra.mxu0 0.0
        %5705 = vmatprep.subr.mxu0 0.0
        %5706 = vmatpush1.xpose.msra.mxu0 0.0
        %5707 = vmatprep.subr.mxu0 0.0
        %5708 = vmatpush1.xpose.msra.mxu0 0.0
        %5709 = vmatprep.subr.mxu0 0.0
        %5710 = vmatpush1.xpose.msra.mxu0 0.0
        %5711 = vmatprep.subr.mxu0 0.0
        %5712 = vmatpush1.xpose.msra.mxu0 0.0
        %5713 = vmatprep.subr.mxu0 0.0
        %5714 = vmatpush1.xpose.msra.mxu0 0.0
        %5715 = vmatprep.subr.mxu0 0.0
        %5716 = vmatpush1.xpose.msra.mxu0 0.0
        %5717 = vmatprep.subr.mxu0 0.0
        %5718 = vmatpush1.xpose.msra.mxu0 0.0
        %5719 = vmatprep.subr.mxu0 0.0
        %5720 = vmatpush1.xpose.msra.mxu0 0.0
        %5721 = vmatprep.subr.mxu0 0.0
        %5722 = vmatpush1.xpose.msra.mxu0 0.0
        %5723 = vmatprep.subr.mxu0 0.0
        %5724 = vmatpush1.xpose.msra.mxu0 0.0
        %5725 = vmatprep.subr.mxu0 0.0
        %5726 = vmatpush1.xpose.msra.mxu0 0.0
        %5727 = vmatprep.subr.mxu0 0.0
        %5728 = vmatpush1.xpose.msra.mxu0 0.0
        %5729 = vmatprep.subr.mxu0 0.0
        %5730 = vmatpush1.xpose.msra.mxu0 0.0
        %5731 = vmatprep.subr.mxu0 0.0
        %5732 = vmatpush1.xpose.msra.mxu0 0.0
        %5733 = vmatprep.subr.mxu0 0.0
        %5734 = vmatpush1.xpose.msra.mxu0 0.0
        %5735 = vmatprep.subr.mxu0 0.0
        %5736 = vmatpush1.xpose.msra.mxu0 0.0
        %5737 = vmatprep.subr.mxu0 0.0
        %5738 = vmatpush1.xpose.msra.mxu0 0.0
        %5739 = vmatprep.subr.mxu0 0.0
        %5740 = vmatpush1.xpose.msra.mxu0 0.0
        %5741 = vmatprep.subr.mxu0 0.0
        %5742 = vmatpush1.xpose.msra.mxu0 0.0
        %5743 = vmatprep.subr.mxu0 0.0
        %5744 = vmatpush1.xpose.msra.mxu0 0.0
        %5745 = vmatprep.subr.mxu0 0.0
        %5746 = vmatpush1.xpose.msra.mxu0 0.0
        %5747 = vmatprep.subr.mxu0 0.0
        %5748 = vmatpush1.xpose.msra.mxu0 0.0
        %5749 = vmatprep.subr.mxu0 0.0
        %5750 = vmatpush1.xpose.msra.mxu0 0.0
        %5751 = vmatprep.mubr.f32.mxu0 0.0
        %5752 = vmatmul.mubr.f32.gmra.mrb[0].mxu0 %v5681
        %v5753 = vpop.f32.mrb[0].mxu0
        %v5754 = vadd.f32 0.0, %v5753
        %v5755 = vpop.f32.mrb[0].mxu0
        %5756 = vdwg.mxu0
        %v5757 = vsel %vm4661, %v5754, -inf
        %5758 = vmax.xlane.f32.xlu0 %v5757
        %v5759 = vpop.xlane.xlu0 %5758
        %v5760 = vsub.f32 %v5754, %v5759
        %v5761 = vmul.f32 %v5760, 1.442695
        %v5762 = vpow.pop %v5761
        %v5763 = vsel %vm4661, %v5762, 0.0
        %5764 = vadd.xlane.f32.xlu0 %v5763
        %v5765 = vpop.xlane.xlu0 %5764
        %v5766 = vrcp.pop %v5765
        %v5767 = vmul.f32 %v5762, %v5766
        %5770 = vrot.lane.b32.xlu0 %v4571, 64
        %v5771 = vpop.permute.xlu0 %5770
        %5772 = vrot.lane.b32.xlu0 %v4573, 64
        %v5773 = vpop.permute.xlu0 %5772
        %5774 = vrot.lane.b32.xlu0 %v4577, 64
        %v5775 = vpop.permute.xlu0 %5774
        %5776 = vrot.lane.b32.xlu0 %v4579, 64
        %v5777 = vpop.permute.xlu0 %5776
        %v5778 = vsel %vm4946, %v5771, %v5773
        %v5779 = vsel %vm4946, %v5775, %v5777
        %v5783 = vsel %vm4661, %v5767, 0
        %5785 = vmatprep.subr.mxu0 0.0
        %5786 = vmatpush1.msra.mxu0 %v5778
        %5787 = vmatprep.subr.mxu0 0.0
        %5788 = vmatpush1.msra.mxu0 %v5779
        %5789 = vmatprep.subr.mxu0 0.0
        %5790 = vmatpush1.msra.mxu0 0.0
        %5791 = vmatprep.subr.mxu0 0.0
        %5792 = vmatpush1.msra.mxu0 0.0
        %5793 = vmatprep.subr.mxu0 0.0
        %5794 = vmatpush1.msra.mxu0 0.0
        %5795 = vmatprep.subr.mxu0 0.0
        %5796 = vmatpush1.msra.mxu0 0.0
        %5797 = vmatprep.subr.mxu0 0.0
        %5798 = vmatpush1.msra.mxu0 0.0
        %5799 = vmatprep.subr.mxu0 0.0
        %5800 = vmatpush1.msra.mxu0 0.0
        %5801 = vmatprep.subr.mxu0 0.0
        %5802 = vmatpush1.msra.mxu0 0.0
        %5803 = vmatprep.subr.mxu0 0.0
        %5804 = vmatpush1.msra.mxu0 0.0
        %5805 = vmatprep.subr.mxu0 0.0
        %5806 = vmatpush1.msra.mxu0 0.0
        %5807 = vmatprep.subr.mxu0 0.0
        %5808 = vmatpush1.msra.mxu0 0.0
        %5809 = vmatprep.subr.mxu0 0.0
        %5810 = vmatpush1.msra.mxu0 0.0
        %5811 = vmatprep.subr.mxu0 0.0
        %5812 = vmatpush1.msra.mxu0 0.0
        %5813 = vmatprep.subr.mxu0 0.0
        %5814 = vmatpush1.msra.mxu0 0.0
        %5815 = vmatprep.subr.mxu0 0.0
        %5816 = vmatpush1.msra.mxu0 0.0
        %5817 = vmatprep.subr.mxu0 0.0
        %5818 = vmatpush1.msra.mxu0 0.0
        %5819 = vmatprep.subr.mxu0 0.0
        %5820 = vmatpush1.msra.mxu0 0.0
        %5821 = vmatprep.subr.mxu0 0.0
        %5822 = vmatpush1.msra.mxu0 0.0
        %5823 = vmatprep.subr.mxu0 0.0
        %5824 = vmatpush1.msra.mxu0 0.0
        %5825 = vmatprep.subr.mxu0 0.0
        %5826 = vmatpush1.msra.mxu0 0.0
        %5827 = vmatprep.subr.mxu0 0.0
        %5828 = vmatpush1.msra.mxu0 0.0
        %5829 = vmatprep.subr.mxu0 0.0
        %5830 = vmatpush1.msra.mxu0 0.0
        %5831 = vmatprep.subr.mxu0 0.0
        %5832 = vmatpush1.msra.mxu0 0.0
        %5833 = vmatprep.subr.mxu0 0.0
        %5834 = vmatpush1.msra.mxu0 0.0
        %5835 = vmatprep.subr.mxu0 0.0
        %5836 = vmatpush1.msra.mxu0 0.0
        %5837 = vmatprep.subr.mxu0 0.0
        %5838 = vmatpush1.msra.mxu0 0.0
        %5839 = vmatprep.subr.mxu0 0.0
        %5840 = vmatpush1.msra.mxu0 0.0
        %5841 = vmatprep.subr.mxu0 0.0
        %5842 = vmatpush1.msra.mxu0 0.0
        %5843 = vmatprep.subr.mxu0 0.0
        %5844 = vmatpush1.msra.mxu0 0.0
        %5845 = vmatprep.subr.mxu0 0.0
        %5846 = vmatpush1.msra.mxu0 0.0
        %5847 = vmatprep.subr.mxu0 0.0
        %5848 = vmatpush1.msra.mxu0 0.0
        %5849 = vmatprep.mubr.f32.mxu0 0.0
        %5850 = vmatmul.mubr.f32.gmra.mrb[0].mxu0 %v5783
        %v5851 = vpop.f32.mrb[0].mxu0
        %v5852 = vadd.f32 0.0, %v5851
        %v5853 = vpop.f32.mrb[0].mxu0
        %5854 = vdwg.mxu0
        %5855 = vrot.lane.b32.xlu0 %v1977, 96
        %v5856 = vpop.permute.xlu0 %5855
        %5857 = vrot.lane.b32.xlu0 %v3880, 96
        %v5858 = vpop.permute.xlu0 %5857
        %5859 = vrot.lane.b32.xlu0 %v3886, 96
        %v5860 = vpop.permute.xlu0 %5859
        %v5861 = vsel %vm4581, %v5856, 0
        %v5863 = vsel %vm4581, %v5858, 0
        %v5865 = vsel %vm4581, %v5860, 0
        %5867 = vmatprep.subr.mxu0 0.0
        %5868 = vmatpush1.xpose.msra.mxu0 %v5863
        %5869 = vmatprep.subr.mxu0 0.0
        %5870 = vmatpush1.xpose.msra.mxu0 %v5865
        %5871 = vmatprep.subr.mxu0 0.0
        %5872 = vmatpush1.xpose.msra.mxu0 0.0
        %5873 = vmatprep.subr.mxu0 0.0
        %5874 = vmatpush1.xpose.msra.mxu0 0.0
        %5875 = vmatprep.subr.mxu0 0.0
        %5876 = vmatpush1.xpose.msra.mxu0 0.0
        %5877 = vmatprep.subr.mxu0 0.0
        %5878 = vmatpush1.xpose.msra.mxu0 0.0
        %5879 = vmatprep.subr.mxu0 0.0
        %5880 = vmatpush1.xpose.msra.mxu0 0.0
        %5881 = vmatprep.subr.mxu0 0.0
        %5882 = vmatpush1.xpose.msra.mxu0 0.0
        %5883 = vmatprep.subr.mxu0 0.0
        %5884 = vmatpush1.xpose.msra.mxu0 0.0
        %5885 = vmatprep.subr.mxu0 0.0
        %5886 = vmatpush1.xpose.msra.mxu0 0.0
        %5887 = vmatprep.subr.mxu0 0.0
        %5888 = vmatpush1.xpose.msra.mxu0 0.0
        %5889 = vmatprep.subr.mxu0 0.0
        %5890 = vmatpush1.xpose.msra.mxu0 0.0
        %5891 = vmatprep.subr.mxu0 0.0
        %5892 = vmatpush1.xpose.msra.mxu0 0.0
        %5893 = vmatprep.subr.mxu0 0.0
        %5894 = vmatpush1.xpose.msra.mxu0 0.0
        %5895 = vmatprep.subr.mxu0 0.0
        %5896 = vmatpush1.xpose.msra.mxu0 0.0
        %5897 = vmatprep.subr.mxu0 0.0
        %5898 = vmatpush1.xpose.msra.mxu0 0.0
        %5899 = vmatprep.subr.mxu0 0.0
        %5900 = vmatpush1.xpose.msra.mxu0 0.0
        %5901 = vmatprep.subr.mxu0 0.0
        %5902 = vmatpush1.xpose.msra.mxu0 0.0
        %5903 = vmatprep.subr.mxu0 0.0
        %5904 = vmatpush1.xpose.msra.mxu0 0.0
        %5905 = vmatprep.subr.mxu0 0.0
        %5906 = vmatpush1.xpose.msra.mxu0 0.0
        %5907 = vmatprep.subr.mxu0 0.0
        %5908 = vmatpush1.xpose.msra.mxu0 0.0
        %5909 = vmatprep.subr.mxu0 0.0
        %5910 = vmatpush1.xpose.msra.mxu0 0.0
        %5911 = vmatprep.subr.mxu0 0.0
        %5912 = vmatpush1.xpose.msra.mxu0 0.0
        %5913 = vmatprep.subr.mxu0 0.0
        %5914 = vmatpush1.xpose.msra.mxu0 0.0
        %5915 = vmatprep.subr.mxu0 0.0
        %5916 = vmatpush1.xpose.msra.mxu0 0.0
        %5917 = vmatprep.subr.mxu0 0.0
        %5918 = vmatpush1.xpose.msra.mxu0 0.0
        %5919 = vmatprep.subr.mxu0 0.0
        %5920 = vmatpush1.xpose.msra.mxu0 0.0
        %5921 = vmatprep.subr.mxu0 0.0
        %5922 = vmatpush1.xpose.msra.mxu0 0.0
        %5923 = vmatprep.subr.mxu0 0.0
        %5924 = vmatpush1.xpose.msra.mxu0 0.0
        %5925 = vmatprep.subr.mxu0 0.0
        %5926 = vmatpush1.xpose.msra.mxu0 0.0
        %5927 = vmatprep.subr.mxu0 0.0
        %5928 = vmatpush1.xpose.msra.mxu0 0.0
        %5929 = vmatprep.subr.mxu0 0.0
        %5930 = vmatpush1.xpose.msra.mxu0 0.0
        %5931 = vmatprep.mubr.f32.mxu0 0.0
        %5932 = vmatmul.mubr.f32.gmra.mrb[0].mxu0 %v5861
        %v5933 = vpop.f32.mrb[0].mxu0
        %v5934 = vadd.f32 0.0, %v5933
        %v5935 = vpop.f32.mrb[0].mxu0
        %5936 = vdwg.mxu0
        %v5937 = vsel %vm4661, %v5934, -inf
        %5938 = vmax.xlane.f32.xlu0 %v5937
        %v5939 = vpop.xlane.xlu0 %5938
        %v5940 = vsub.f32 %v5934, %v5939
        %v5941 = vmul.f32 %v5940, 1.442695
        %v5942 = vpow.pop %v5941
        %v5943 = vsel %vm4661, %v5942, 0.0
        %5944 = vadd.xlane.f32.xlu0 %v5943
        %v5945 = vpop.xlane.xlu0 %5944
        %v5946 = vrcp.pop %v5945
        %v5947 = vmul.f32 %v5942, %v5946
        %5948 = vrot.lane.b32.xlu0 %v4573, 96
        %v5949 = vpop.permute.xlu0 %5948
        %5950 = vrot.lane.b32.xlu0 %v4579, 96
        %v5951 = vpop.permute.xlu0 %5950
        %v5955 = vsel %vm4661, %v5947, 0
        %5957 = vmatprep.subr.mxu0 0.0
        %5958 = vmatpush1.msra.mxu0 %v5949
        %5959 = vmatprep.subr.mxu0 0.0
        %5960 = vmatpush1.msra.mxu0 %v5951
        %5961 = vmatprep.subr.mxu0 0.0
        %5962 = vmatpush1.msra.mxu0 0.0
        %5963 = vmatprep.subr.mxu0 0.0
        %5964 = vmatpush1.msra.mxu0 0.0
        %5965 = vmatprep.subr.mxu0 0.0
        %5966 = vmatpush1.msra.mxu0 0.0
        %5967 = vmatprep.subr.mxu0 0.0
        %5968 = vmatpush1.msra.mxu0 0.0
        %5969 = vmatprep.subr.mxu0 0.0
        %5970 = vmatpush1.msra.mxu0 0.0
        %5971 = vmatprep.subr.mxu0 0.0
        %5972 = vmatpush1.msra.mxu0 0.0
        %5973 = vmatprep.subr.mxu0 0.0
        %5974 = vmatpush1.msra.mxu0 0.0
        %5975 = vmatprep.subr.mxu0 0.0
        %5976 = vmatpush1.msra.mxu0 0.0
        %5977 = vmatprep.subr.mxu0 0.0
        %5978 = vmatpush1.msra.mxu0 0.0
        %5979 = vmatprep.subr.mxu0 0.0
        %5980 = vmatpush1.msra.mxu0 0.0
        %5981 = vmatprep.subr.mxu0 0.0
        %5982 = vmatpush1.msra.mxu0 0.0
        %5983 = vmatprep.subr.mxu0 0.0
        %5984 = vmatpush1.msra.mxu0 0.0
        %5985 = vmatprep.subr.mxu0 0.0
        %5986 = vmatpush1.msra.mxu0 0.0
        %5987 = vmatprep.subr.mxu0 0.0
        %5988 = vmatpush1.msra.mxu0 0.0
        %5989 = vmatprep.subr.mxu0 0.0
        %5990 = vmatpush1.msra.mxu0 0.0
        %5991 = vmatprep.subr.mxu0 0.0
        %5992 = vmatpush1.msra.mxu0 0.0
        %5993 = vmatprep.subr.mxu0 0.0
        %5994 = vmatpush1.msra.mxu0 0.0
        %5995 = vmatprep.subr.mxu0 0.0
        %5996 = vmatpush1.msra.mxu0 0.0
        %5997 = vmatprep.subr.mxu0 0.0
        %5998 = vmatpush1.msra.mxu0 0.0
        %5999 = vmatprep.subr.mxu0 0.0
        %6000 = vmatpush1.msra.mxu0 0.0
        %6001 = vmatprep.subr.mxu0 0.0
        %6002 = vmatpush1.msra.mxu0 0.0
        %6003 = vmatprep.subr.mxu0 0.0
        %6004 = vmatpush1.msra.mxu0 0.0
        %6005 = vmatprep.subr.mxu0 0.0
        %6006 = vmatpush1.msra.mxu0 0.0
        %6007 = vmatprep.subr.mxu0 0.0
        %6008 = vmatpush1.msra.mxu0 0.0
        %6009 = vmatprep.subr.mxu0 0.0
        %6010 = vmatpush1.msra.mxu0 0.0
        %6011 = vmatprep.subr.mxu0 0.0
        %6012 = vmatpush1.msra.mxu0 0.0
        %6013 = vmatprep.subr.mxu0 0.0
        %6014 = vmatpush1.msra.mxu0 0.0
        %6015 = vmatprep.subr.mxu0 0.0
        %6016 = vmatpush1.msra.mxu0 0.0
        %6017 = vmatprep.subr.mxu0 0.0
        %6018 = vmatpush1.msra.mxu0 0.0
        %6019 = vmatprep.subr.mxu0 0.0
        %6020 = vmatpush1.msra.mxu0 0.0
        %6021 = vmatprep.mubr.f32.mxu0 0.0
        %6022 = vmatmul.mubr.f32.gmra.mrb[0].mxu0 %v5955
        %v6023 = vpop.f32.mrb[0].mxu0
        %v6024 = vadd.f32 0.0, %v6023
        %v6025 = vpop.f32.mrb[0].mxu0
        %6026 = vdwg.mxu0
        %6028 = vrot.lane.b32.xlu0 %v4938, 96
        %v6029 = vpop.permute.xlu0 %6028
        %6032 = vrot.lane.b32.xlu0 %v5131, 64
        %v6033 = vpop.permute.xlu0 %6032
        %6036 = vrot.lane.b32.xlu0 %v5303, 32
        %v6037 = vpop.permute.xlu0 %6036
        %6040 = vrot.lane.b32.xlu0 %v5660, 96
        %v6041 = vpop.permute.xlu0 %6040
        %6044 = vrot.lane.b32.xlu0 %v5852, 64
        %v6045 = vpop.permute.xlu0 %6044
        %6048 = vrot.lane.b32.xlu0 %v6024, 32
        %v6049 = vpop.permute.xlu0 %6048
        %v6051 = vsel %vm4581, %v4743, %v6029
        %v6052 = vsel %vm4946, %v6029, %v6033
        %v6053 = vsel %vm4751, %v6033, %v6037
        %v6054 = vsel %vm4581, %v5466, %v6041
        %v6055 = vsel %vm4946, %v6041, %v6045
        %v6056 = vsel %vm4751, %v6045, %v6049
        %v6057 = vld [vmem:[#allocation10] sm:$0xff]
        %v6058 = vld [vmem:[#allocation10 + $0x8] sm:$0xff]
        %v6059 = vld [vmem:[#allocation10 + $0x10] sm:$0xff]
        %v6060 = vld [vmem:[#allocation10 + $0x18] sm:$0xff]
        %v6061 = vld [vmem:[#allocation10 + $0x20] sm:$0xff]
        %v6062 = vld [vmem:[#allocation10 + $0x28] sm:$0xff]
        %v6063 = vld [vmem:[#allocation10 + $0x30] sm:$0xff]
        %v6064 = vld [vmem:[#allocation10 + $0x38] sm:$0xff]
        %v6065 = vld [vmem:[#allocation10 + $0x40] sm:$0xff]
        %v6066 = vld [vmem:[#allocation10 + $0x48] sm:$0xff]
        %v6067 = vld [vmem:[#allocation10 + $0x50] sm:$0xff]
        %v6068 = vld [vmem:[#allocation10 + $0x58] sm:$0xff]
        %v6069 = vld [vmem:[#allocation10 + $0x60] sm:$0xff]
        %v6070 = vld [vmem:[#allocation10 + $0x68] sm:$0xff]
        %v6071 = vld [vmem:[#allocation10 + $0x70] sm:$0xff]
        %v6072 = vld [vmem:[#allocation10 + $0x78] sm:$0xff]
        %v6073 = vld [vmem:[#allocation10 + $0x80] sm:$0xff]
        %v6074 = vld [vmem:[#allocation10 + $0x88] sm:$0xff]
        %v6075 = vld [vmem:[#allocation10 + $0x90] sm:$0xff]
        %v6076 = vld [vmem:[#allocation10 + $0x98] sm:$0xff]
        %v6077 = vld [vmem:[#allocation10 + $0xa0] sm:$0xff]
        %v6078 = vld [vmem:[#allocation10 + $0xa8] sm:$0xff]
        %v6079 = vld [vmem:[#allocation10 + $0xb0] sm:$0xff]
        %v6080 = vld [vmem:[#allocation10 + $0xb8] sm:$0xff]
        %v6081 = vld [vmem:[#allocation10 + $0xc0] sm:$0xff]
        %v6082 = vld [vmem:[#allocation10 + $0xc8] sm:$0xff]
        %v6083 = vld [vmem:[#allocation10 + $0xd0] sm:$0xff]
        %v6084 = vld [vmem:[#allocation10 + $0xd8] sm:$0xff]
        %v6085 = vld [vmem:[#allocation10 + $0xe0] sm:$0xff]
        %v6086 = vld [vmem:[#allocation10 + $0xe8] sm:$0xff]
        %v6087 = vld [vmem:[#allocation10 + $0xf0] sm:$0xff]
        %v6088 = vld [vmem:[#allocation10 + $0xf8] sm:$0xff]
        %v6089 = vld [vmem:[#allocation10 + $0x100] sm:$0xff]
        %v6090 = vld [vmem:[#allocation10 + $0x108] sm:$0xff]
        %v6091 = vld [vmem:[#allocation10 + $0x110] sm:$0xff]
        %v6092 = vld [vmem:[#allocation10 + $0x118] sm:$0xff]
        %v6093 = vld [vmem:[#allocation10 + $0x120] sm:$0xff]
        %v6094 = vld [vmem:[#allocation10 + $0x128] sm:$0xff]
        %v6095 = vld [vmem:[#allocation10 + $0x130] sm:$0xff]
        %v6096 = vld [vmem:[#allocation10 + $0x138] sm:$0xff]
        %v6097 = vld [vmem:[#allocation10 + $0x140] sm:$0xff]
        %v6098 = vld [vmem:[#allocation10 + $0x148] sm:$0xff]
        %v6099 = vld [vmem:[#allocation10 + $0x150] sm:$0xff]
        %v6100 = vld [vmem:[#allocation10 + $0x158] sm:$0xff]
        %v6101 = vld [vmem:[#allocation10 + $0x160] sm:$0xff]
        %v6102 = vld [vmem:[#allocation10 + $0x168] sm:$0xff]
        %v6103 = vld [vmem:[#allocation10 + $0x170] sm:$0xff]
        %v6104 = vld [vmem:[#allocation10 + $0x178] sm:$0xff]
        %v6105 = vld [vmem:[#allocation10 + $0x180] sm:$0xff]
        %v6106 = vld [vmem:[#allocation10 + $0x188] sm:$0xff]
        %v6107 = vld [vmem:[#allocation10 + $0x190] sm:$0xff]
        %v6108 = vld [vmem:[#allocation10 + $0x198] sm:$0xff]
        %v6109 = vld [vmem:[#allocation10 + $0x1a0] sm:$0xff]
        %v6110 = vld [vmem:[#allocation10 + $0x1a8] sm:$0xff]
        %v6111 = vld [vmem:[#allocation10 + $0x1b0] sm:$0xff]
        %v6112 = vld [vmem:[#allocation10 + $0x1b8] sm:$0xff]
        %v6113 = vld [vmem:[#allocation10 + $0x1c0] sm:$0xff]
        %v6114 = vld [vmem:[#allocation10 + $0x1c8] sm:$0xff]
        %v6115 = vld [vmem:[#allocation10 + $0x1d0] sm:$0xff]
        %v6116 = vld [vmem:[#allocation10 + $0x1d8] sm:$0xff]
        %v6117 = vld [vmem:[#allocation10 + $0x1e0] sm:$0xff]
        %v6118 = vld [vmem:[#allocation10 + $0x1e8] sm:$0xff]
        %v6119 = vld [vmem:[#allocation10 + $0x1f0] sm:$0xff]
        %v6120 = vld [vmem:[#allocation10 + $0x1f8] sm:$0xff]
        %v6121 = vld [vmem:[#allocation10 + $0x200] sm:$0xff]
        %v6122 = vld [vmem:[#allocation10 + $0x208] sm:$0xff]
        %v6123 = vld [vmem:[#allocation10 + $0x210] sm:$0xff]
        %v6124 = vld [vmem:[#allocation10 + $0x218] sm:$0xff]
        %v6125 = vld [vmem:[#allocation10 + $0x220] sm:$0xff]
        %v6126 = vld [vmem:[#allocation10 + $0x228] sm:$0xff]
        %v6127 = vld [vmem:[#allocation10 + $0x230] sm:$0xff]
        %v6128 = vld [vmem:[#allocation10 + $0x238] sm:$0xff]
        %v6129 = vld [vmem:[#allocation10 + $0x240] sm:$0xff]
        %v6130 = vld [vmem:[#allocation10 + $0x248] sm:$0xff]
        %v6131 = vld [vmem:[#allocation10 + $0x250] sm:$0xff]
        %v6132 = vld [vmem:[#allocation10 + $0x258] sm:$0xff]
        %v6133 = vld [vmem:[#allocation10 + $0x260] sm:$0xff]
        %v6134 = vld [vmem:[#allocation10 + $0x268] sm:$0xff]
        %v6135 = vld [vmem:[#allocation10 + $0x270] sm:$0xff]
        %v6136 = vld [vmem:[#allocation10 + $0x278] sm:$0xff]
        %v6137 = vld [vmem:[#allocation10 + $0x280] sm:$0xff]
        %v6138 = vld [vmem:[#allocation10 + $0x288] sm:$0xff]
        %v6139 = vld [vmem:[#allocation10 + $0x290] sm:$0xff]
        %v6140 = vld [vmem:[#allocation10 + $0x298] sm:$0xff]
        %v6141 = vld [vmem:[#allocation10 + $0x2a0] sm:$0xff]
        %v6142 = vld [vmem:[#allocation10 + $0x2a8] sm:$0xff]
        %v6143 = vld [vmem:[#allocation10 + $0x2b0] sm:$0xff]
        %v6144 = vld [vmem:[#allocation10 + $0x2b8] sm:$0xff]
        %v6145 = vld [vmem:[#allocation10 + $0x2c0] sm:$0xff]
        %v6146 = vld [vmem:[#allocation10 + $0x2c8] sm:$0xff]
        %v6147 = vld [vmem:[#allocation10 + $0x2d0] sm:$0xff]
        %v6148 = vld [vmem:[#allocation10 + $0x2d8] sm:$0xff]
        %v6149 = vld [vmem:[#allocation10 + $0x2e0] sm:$0xff]
        %v6150 = vld [vmem:[#allocation10 + $0x2e8] sm:$0xff]
        %v6151 = vld [vmem:[#allocation10 + $0x2f0] sm:$0xff]
        %v6152 = vld [vmem:[#allocation10 + $0x2f8] sm:$0xff]
        %v6153 = vld [vmem:[#allocation10 + $0x300] sm:$0xff]
        %v6154 = vld [vmem:[#allocation10 + $0x308] sm:$0xff]
        %v6155 = vld [vmem:[#allocation10 + $0x310] sm:$0xff]
        %v6156 = vld [vmem:[#allocation10 + $0x318] sm:$0xff]
        %v6157 = vld [vmem:[#allocation10 + $0x320] sm:$0xff]
        %v6158 = vld [vmem:[#allocation10 + $0x328] sm:$0xff]
        %v6159 = vld [vmem:[#allocation10 + $0x330] sm:$0xff]
        %v6160 = vld [vmem:[#allocation10 + $0x338] sm:$0xff]
        %v6161 = vld [vmem:[#allocation10 + $0x340] sm:$0xff]
        %v6162 = vld [vmem:[#allocation10 + $0x348] sm:$0xff]
        %v6163 = vld [vmem:[#allocation10 + $0x350] sm:$0xff]
        %v6164 = vld [vmem:[#allocation10 + $0x358] sm:$0xff]
        %v6165 = vld [vmem:[#allocation10 + $0x360] sm:$0xff]
        %v6166 = vld [vmem:[#allocation10 + $0x368] sm:$0xff]
        %v6167 = vld [vmem:[#allocation10 + $0x370] sm:$0xff]
        %v6168 = vld [vmem:[#allocation10 + $0x378] sm:$0xff]
        %v6169 = vld [vmem:[#allocation10 + $0x380] sm:$0xff]
        %v6170 = vld [vmem:[#allocation10 + $0x388] sm:$0xff]
        %v6171 = vld [vmem:[#allocation10 + $0x390] sm:$0xff]
        %v6172 = vld [vmem:[#allocation10 + $0x398] sm:$0xff]
        %v6173 = vld [vmem:[#allocation10 + $0x3a0] sm:$0xff]
        %v6174 = vld [vmem:[#allocation10 + $0x3a8] sm:$0xff]
        %v6175 = vld [vmem:[#allocation10 + $0x3b0] sm:$0xff]
        %v6176 = vld [vmem:[#allocation10 + $0x3b8] sm:$0xff]
        %v6177 = vld [vmem:[#allocation10 + $0x3c0] sm:$0xff]
        %v6178 = vld [vmem:[#allocation10 + $0x3c8] sm:$0xff]
        %v6179 = vld [vmem:[#allocation10 + $0x3d0] sm:$0xff]
        %v6180 = vld [vmem:[#allocation10 + $0x3d8] sm:$0xff]
        %v6181 = vld [vmem:[#allocation10 + $0x3e0] sm:$0xff]
        %v6182 = vld [vmem:[#allocation10 + $0x3e8] sm:$0xff]
        %v6183 = vld [vmem:[#allocation10 + $0x3f0] sm:$0xff]
        %v6184 = vld [vmem:[#allocation10 + $0x3f8] sm:$0xff]
        %v6185 = vld [vmem:[#allocation10 + $0x400] sm:$0xff]
        %v6186 = vld [vmem:[#allocation10 + $0x408] sm:$0xff]
        %v6187 = vld [vmem:[#allocation10 + $0x410] sm:$0xff]
        %v6188 = vld [vmem:[#allocation10 + $0x418] sm:$0xff]
        %v6189 = vld [vmem:[#allocation10 + $0x420] sm:$0xff]
        %v6190 = vld [vmem:[#allocation10 + $0x428] sm:$0xff]
        %v6191 = vld [vmem:[#allocation10 + $0x430] sm:$0xff]
        %v6192 = vld [vmem:[#allocation10 + $0x438] sm:$0xff]
        %v6193 = vld [vmem:[#allocation10 + $0x440] sm:$0xff]
        %v6194 = vld [vmem:[#allocation10 + $0x448] sm:$0xff]
        %v6195 = vld [vmem:[#allocation10 + $0x450] sm:$0xff]
        %v6196 = vld [vmem:[#allocation10 + $0x458] sm:$0xff]
        %v6197 = vld [vmem:[#allocation10 + $0x460] sm:$0xff]
        %v6198 = vld [vmem:[#allocation10 + $0x468] sm:$0xff]
        %v6199 = vld [vmem:[#allocation10 + $0x470] sm:$0xff]
        %v6200 = vld [vmem:[#allocation10 + $0x478] sm:$0xff]
        %v6201 = vld [vmem:[#allocation10 + $0x480] sm:$0xff]
        %v6202 = vld [vmem:[#allocation10 + $0x488] sm:$0xff]
        %v6203 = vld [vmem:[#allocation10 + $0x490] sm:$0xff]
        %v6204 = vld [vmem:[#allocation10 + $0x498] sm:$0xff]
        %v6205 = vld [vmem:[#allocation10 + $0x4a0] sm:$0xff]
        %v6206 = vld [vmem:[#allocation10 + $0x4a8] sm:$0xff]
        %v6207 = vld [vmem:[#allocation10 + $0x4b0] sm:$0xff]
        %v6208 = vld [vmem:[#allocation10 + $0x4b8] sm:$0xff]
        %v6209 = vld [vmem:[#allocation10 + $0x4c0] sm:$0xff]
        %v6210 = vld [vmem:[#allocation10 + $0x4c8] sm:$0xff]
        %v6211 = vld [vmem:[#allocation10 + $0x4d0] sm:$0xff]
        %v6212 = vld [vmem:[#allocation10 + $0x4d8] sm:$0xff]
        %v6213 = vld [vmem:[#allocation10 + $0x4e0] sm:$0xff]
        %v6214 = vld [vmem:[#allocation10 + $0x4e8] sm:$0xff]
        %v6215 = vld [vmem:[#allocation10 + $0x4f0] sm:$0xff]
        %v6216 = vld [vmem:[#allocation10 + $0x4f8] sm:$0xff]
        %v6217 = vld [vmem:[#allocation10 + $0x500] sm:$0xff]
        %v6218 = vld [vmem:[#allocation10 + $0x508] sm:$0xff]
        %v6219 = vld [vmem:[#allocation10 + $0x510] sm:$0xff]
        %v6220 = vld [vmem:[#allocation10 + $0x518] sm:$0xff]
        %v6221 = vld [vmem:[#allocation10 + $0x520] sm:$0xff]
        %v6222 = vld [vmem:[#allocation10 + $0x528] sm:$0xff]
        %v6223 = vld [vmem:[#allocation10 + $0x530] sm:$0xff]
        %v6224 = vld [vmem:[#allocation10 + $0x538] sm:$0xff]
        %v6225 = vld [vmem:[#allocation10 + $0x540] sm:$0xff]
        %v6226 = vld [vmem:[#allocation10 + $0x548] sm:$0xff]
        %v6227 = vld [vmem:[#allocation10 + $0x550] sm:$0xff]
        %v6228 = vld [vmem:[#allocation10 + $0x558] sm:$0xff]
        %v6229 = vld [vmem:[#allocation10 + $0x560] sm:$0xff]
        %v6230 = vld [vmem:[#allocation10 + $0x568] sm:$0xff]
        %v6231 = vld [vmem:[#allocation10 + $0x570] sm:$0xff]
        %v6232 = vld [vmem:[#allocation10 + $0x578] sm:$0xff]
        %v6233 = vld [vmem:[#allocation10 + $0x580] sm:$0xff]
        %v6234 = vld [vmem:[#allocation10 + $0x588] sm:$0xff]
        %v6235 = vld [vmem:[#allocation10 + $0x590] sm:$0xff]
        %v6236 = vld [vmem:[#allocation10 + $0x598] sm:$0xff]
        %v6237 = vld [vmem:[#allocation10 + $0x5a0] sm:$0xff]
        %v6238 = vld [vmem:[#allocation10 + $0x5a8] sm:$0xff]
        %v6239 = vld [vmem:[#allocation10 + $0x5b0] sm:$0xff]
        %v6240 = vld [vmem:[#allocation10 + $0x5b8] sm:$0xff]
        %v6241 = vld [vmem:[#allocation10 + $0x5c0] sm:$0xff]
        %v6242 = vld [vmem:[#allocation10 + $0x5c8] sm:$0xff]
        %v6243 = vld [vmem:[#allocation10 + $0x5d0] sm:$0xff]
        %v6244 = vld [vmem:[#allocation10 + $0x5d8] sm:$0xff]
        %v6245 = vld [vmem:[#allocation10 + $0x5e0] sm:$0xff]
        %v6246 = vld [vmem:[#allocation10 + $0x5e8] sm:$0xff]
        %v6247 = vld [vmem:[#allocation10 + $0x5f0] sm:$0xff]
        %v6248 = vld [vmem:[#allocation10 + $0x5f8] sm:$0xff]
        %v6249 = vld [vmem:[#allocation10 + $0x600] sm:$0xff]
        %v6250 = vld [vmem:[#allocation10 + $0x608] sm:$0xff]
        %v6251 = vld [vmem:[#allocation10 + $0x610] sm:$0xff]
        %v6252 = vld [vmem:[#allocation10 + $0x618] sm:$0xff]
        %v6253 = vld [vmem:[#allocation10 + $0x620] sm:$0xff]
        %v6254 = vld [vmem:[#allocation10 + $0x628] sm:$0xff]
        %v6255 = vld [vmem:[#allocation10 + $0x630] sm:$0xff]
        %v6256 = vld [vmem:[#allocation10 + $0x638] sm:$0xff]
        %v6257 = vld [vmem:[#allocation10 + $0x640] sm:$0xff]
        %v6258 = vld [vmem:[#allocation10 + $0x648] sm:$0xff]
        %v6259 = vld [vmem:[#allocation10 + $0x650] sm:$0xff]
        %v6260 = vld [vmem:[#allocation10 + $0x658] sm:$0xff]
        %v6261 = vld [vmem:[#allocation10 + $0x660] sm:$0xff]
        %v6262 = vld [vmem:[#allocation10 + $0x668] sm:$0xff]
        %v6263 = vld [vmem:[#allocation10 + $0x670] sm:$0xff]
        %v6264 = vld [vmem:[#allocation10 + $0x678] sm:$0xff]
        %v6265 = vld [vmem:[#allocation10 + $0x680] sm:$0xff]
        %v6266 = vld [vmem:[#allocation10 + $0x688] sm:$0xff]
        %v6267 = vld [vmem:[#allocation10 + $0x690] sm:$0xff]
        %v6268 = vld [vmem:[#allocation10 + $0x698] sm:$0xff]
        %v6269 = vld [vmem:[#allocation10 + $0x6a0] sm:$0xff]
        %v6270 = vld [vmem:[#allocation10 + $0x6a8] sm:$0xff]
        %v6271 = vld [vmem:[#allocation10 + $0x6b0] sm:$0xff]
        %v6272 = vld [vmem:[#allocation10 + $0x6b8] sm:$0xff]
        %v6273 = vld [vmem:[#allocation10 + $0x6c0] sm:$0xff]
        %v6274 = vld [vmem:[#allocation10 + $0x6c8] sm:$0xff]
        %v6275 = vld [vmem:[#allocation10 + $0x6d0] sm:$0xff]
        %v6276 = vld [vmem:[#allocation10 + $0x6d8] sm:$0xff]
        %v6277 = vld [vmem:[#allocation10 + $0x6e0] sm:$0xff]
        %v6278 = vld [vmem:[#allocation10 + $0x6e8] sm:$0xff]
        %v6279 = vld [vmem:[#allocation10 + $0x6f0] sm:$0xff]
        %v6280 = vld [vmem:[#allocation10 + $0x6f8] sm:$0xff]
        %v6281 = vld [vmem:[#allocation10 + $0x700] sm:$0xff]
        %v6282 = vld [vmem:[#allocation10 + $0x708] sm:$0xff]
        %v6283 = vld [vmem:[#allocation10 + $0x710] sm:$0xff]
        %v6284 = vld [vmem:[#allocation10 + $0x718] sm:$0xff]
        %v6285 = vld [vmem:[#allocation10 + $0x720] sm:$0xff]
        %v6286 = vld [vmem:[#allocation10 + $0x728] sm:$0xff]
        %v6287 = vld [vmem:[#allocation10 + $0x730] sm:$0xff]
        %v6288 = vld [vmem:[#allocation10 + $0x738] sm:$0xff]
        %v6289 = vld [vmem:[#allocation10 + $0x740] sm:$0xff]
        %v6290 = vld [vmem:[#allocation10 + $0x748] sm:$0xff]
        %v6291 = vld [vmem:[#allocation10 + $0x750] sm:$0xff]
        %v6292 = vld [vmem:[#allocation10 + $0x758] sm:$0xff]
        %v6293 = vld [vmem:[#allocation10 + $0x760] sm:$0xff]
        %v6294 = vld [vmem:[#allocation10 + $0x768] sm:$0xff]
        %v6295 = vld [vmem:[#allocation10 + $0x770] sm:$0xff]
        %v6296 = vld [vmem:[#allocation10 + $0x778] sm:$0xff]
        %v6297 = vld [vmem:[#allocation10 + $0x780] sm:$0xff]
        %v6298 = vld [vmem:[#allocation10 + $0x788] sm:$0xff]
        %v6299 = vld [vmem:[#allocation10 + $0x790] sm:$0xff]
        %v6300 = vld [vmem:[#allocation10 + $0x798] sm:$0xff]
        %v6301 = vld [vmem:[#allocation10 + $0x7a0] sm:$0xff]
        %v6302 = vld [vmem:[#allocation10 + $0x7a8] sm:$0xff]
        %v6303 = vld [vmem:[#allocation10 + $0x7b0] sm:$0xff]
        %v6304 = vld [vmem:[#allocation10 + $0x7b8] sm:$0xff]
        %v6305 = vld [vmem:[#allocation10 + $0x7c0] sm:$0xff]
        %v6306 = vld [vmem:[#allocation10 + $0x7c8] sm:$0xff]
        %v6307 = vld [vmem:[#allocation10 + $0x7d0] sm:$0xff]
        %v6308 = vld [vmem:[#allocation10 + $0x7d8] sm:$0xff]
        %v6309 = vld [vmem:[#allocation10 + $0x7e0] sm:$0xff]
        %v6310 = vld [vmem:[#allocation10 + $0x7e8] sm:$0xff]
        %v6311 = vld [vmem:[#allocation10 + $0x7f0] sm:$0xff]
        %v6312 = vld [vmem:[#allocation10 + $0x7f8] sm:$0xff]
        %v6313 = vld [vmem:[#allocation10 + $0x800] sm:$0xff]
        %v6314 = vld [vmem:[#allocation10 + $0x808] sm:$0xff]
        %v6315 = vld [vmem:[#allocation10 + $0x810] sm:$0xff]
        %v6316 = vld [vmem:[#allocation10 + $0x818] sm:$0xff]
        %v6317 = vld [vmem:[#allocation10 + $0x820] sm:$0xff]
        %v6318 = vld [vmem:[#allocation10 + $0x828] sm:$0xff]
        %v6319 = vld [vmem:[#allocation10 + $0x830] sm:$0xff]
        %v6320 = vld [vmem:[#allocation10 + $0x838] sm:$0xff]
        %v6321 = vld [vmem:[#allocation10 + $0x840] sm:$0xff]
        %v6322 = vld [vmem:[#allocation10 + $0x848] sm:$0xff]
        %v6323 = vld [vmem:[#allocation10 + $0x850] sm:$0xff]
        %v6324 = vld [vmem:[#allocation10 + $0x858] sm:$0xff]
        %v6325 = vld [vmem:[#allocation10 + $0x860] sm:$0xff]
        %v6326 = vld [vmem:[#allocation10 + $0x868] sm:$0xff]
        %v6327 = vld [vmem:[#allocation10 + $0x870] sm:$0xff]
        %v6328 = vld [vmem:[#allocation10 + $0x878] sm:$0xff]
        %v6329 = vld [vmem:[#allocation10 + $0x880] sm:$0xff]
        %v6330 = vld [vmem:[#allocation10 + $0x888] sm:$0xff]
        %v6331 = vld [vmem:[#allocation10 + $0x890] sm:$0xff]
        %v6332 = vld [vmem:[#allocation10 + $0x898] sm:$0xff]
        %v6333 = vld [vmem:[#allocation10 + $0x8a0] sm:$0xff]
        %v6334 = vld [vmem:[#allocation10 + $0x8a8] sm:$0xff]
        %v6335 = vld [vmem:[#allocation10 + $0x8b0] sm:$0xff]
        %v6336 = vld [vmem:[#allocation10 + $0x8b8] sm:$0xff]
        %v6337 = vld [vmem:[#allocation10 + $0x8c0] sm:$0xff]
        %v6338 = vld [vmem:[#allocation10 + $0x8c8] sm:$0xff]
        %v6339 = vld [vmem:[#allocation10 + $0x8d0] sm:$0xff]
        %v6340 = vld [vmem:[#allocation10 + $0x8d8] sm:$0xff]
        %v6341 = vld [vmem:[#allocation10 + $0x8e0] sm:$0xff]
        %v6342 = vld [vmem:[#allocation10 + $0x8e8] sm:$0xff]
        %v6343 = vld [vmem:[#allocation10 + $0x8f0] sm:$0xff]
        %v6344 = vld [vmem:[#allocation10 + $0x8f8] sm:$0xff]
        %v6345 = vld [vmem:[#allocation10 + $0x900] sm:$0xff]
        %v6346 = vld [vmem:[#allocation10 + $0x908] sm:$0xff]
        %v6347 = vld [vmem:[#allocation10 + $0x910] sm:$0xff]
        %v6348 = vld [vmem:[#allocation10 + $0x918] sm:$0xff]
        %v6349 = vld [vmem:[#allocation10 + $0x920] sm:$0xff]
        %v6350 = vld [vmem:[#allocation10 + $0x928] sm:$0xff]
        %v6351 = vld [vmem:[#allocation10 + $0x930] sm:$0xff]
        %v6352 = vld [vmem:[#allocation10 + $0x938] sm:$0xff]
        %v6353 = vld [vmem:[#allocation10 + $0x940] sm:$0xff]
        %v6354 = vld [vmem:[#allocation10 + $0x948] sm:$0xff]
        %v6355 = vld [vmem:[#allocation10 + $0x950] sm:$0xff]
        %v6356 = vld [vmem:[#allocation10 + $0x958] sm:$0xff]
        %v6357 = vld [vmem:[#allocation10 + $0x960] sm:$0xff]
        %v6358 = vld [vmem:[#allocation10 + $0x968] sm:$0xff]
        %v6359 = vld [vmem:[#allocation10 + $0x970] sm:$0xff]
        %v6360 = vld [vmem:[#allocation10 + $0x978] sm:$0xff]
        %v6361 = vld [vmem:[#allocation10 + $0x980] sm:$0xff]
        %v6362 = vld [vmem:[#allocation10 + $0x988] sm:$0xff]
        %v6363 = vld [vmem:[#allocation10 + $0x990] sm:$0xff]
        %v6364 = vld [vmem:[#allocation10 + $0x998] sm:$0xff]
        %v6365 = vld [vmem:[#allocation10 + $0x9a0] sm:$0xff]
        %v6366 = vld [vmem:[#allocation10 + $0x9a8] sm:$0xff]
        %v6367 = vld [vmem:[#allocation10 + $0x9b0] sm:$0xff]
        %v6368 = vld [vmem:[#allocation10 + $0x9b8] sm:$0xff]
        %v6369 = vld [vmem:[#allocation10 + $0x9c0] sm:$0xff]
        %v6370 = vld [vmem:[#allocation10 + $0x9c8] sm:$0xff]
        %v6371 = vld [vmem:[#allocation10 + $0x9d0] sm:$0xff]
        %v6372 = vld [vmem:[#allocation10 + $0x9d8] sm:$0xff]
        %v6373 = vld [vmem:[#allocation10 + $0x9e0] sm:$0xff]
        %v6374 = vld [vmem:[#allocation10 + $0x9e8] sm:$0xff]
        %v6375 = vld [vmem:[#allocation10 + $0x9f0] sm:$0xff]
        %v6376 = vld [vmem:[#allocation10 + $0x9f8] sm:$0xff]
        %v6377 = vld [vmem:[#allocation10 + $0xa00] sm:$0xff]
        %v6378 = vld [vmem:[#allocation10 + $0xa08] sm:$0xff]
        %v6379 = vld [vmem:[#allocation10 + $0xa10] sm:$0xff]
        %v6380 = vld [vmem:[#allocation10 + $0xa18] sm:$0xff]
        %v6381 = vld [vmem:[#allocation10 + $0xa20] sm:$0xff]
        %v6382 = vld [vmem:[#allocation10 + $0xa28] sm:$0xff]
        %v6383 = vld [vmem:[#allocation10 + $0xa30] sm:$0xff]
        %v6384 = vld [vmem:[#allocation10 + $0xa38] sm:$0xff]
        %v6385 = vld [vmem:[#allocation10 + $0xa40] sm:$0xff]
        %v6386 = vld [vmem:[#allocation10 + $0xa48] sm:$0xff]
        %v6387 = vld [vmem:[#allocation10 + $0xa50] sm:$0xff]
        %v6388 = vld [vmem:[#allocation10 + $0xa58] sm:$0xff]
        %v6389 = vld [vmem:[#allocation10 + $0xa60] sm:$0xff]
        %v6390 = vld [vmem:[#allocation10 + $0xa68] sm:$0xff]
        %v6391 = vld [vmem:[#allocation10 + $0xa70] sm:$0xff]
        %v6392 = vld [vmem:[#allocation10 + $0xa78] sm:$0xff]
        %v6393 = vld [vmem:[#allocation10 + $0xa80] sm:$0xff]
        %v6394 = vld [vmem:[#allocation10 + $0xa88] sm:$0xff]
        %v6395 = vld [vmem:[#allocation10 + $0xa90] sm:$0xff]
        %v6396 = vld [vmem:[#allocation10 + $0xa98] sm:$0xff]
        %v6397 = vld [vmem:[#allocation10 + $0xaa0] sm:$0xff]
        %v6398 = vld [vmem:[#allocation10 + $0xaa8] sm:$0xff]
        %v6399 = vld [vmem:[#allocation10 + $0xab0] sm:$0xff]
        %v6400 = vld [vmem:[#allocation10 + $0xab8] sm:$0xff]
        %v6401 = vld [vmem:[#allocation10 + $0xac0] sm:$0xff]
        %v6402 = vld [vmem:[#allocation10 + $0xac8] sm:$0xff]
        %v6403 = vld [vmem:[#allocation10 + $0xad0] sm:$0xff]
        %v6404 = vld [vmem:[#allocation10 + $0xad8] sm:$0xff]
        %v6405 = vld [vmem:[#allocation10 + $0xae0] sm:$0xff]
        %v6406 = vld [vmem:[#allocation10 + $0xae8] sm:$0xff]
        %v6407 = vld [vmem:[#allocation10 + $0xaf0] sm:$0xff]
        %v6408 = vld [vmem:[#allocation10 + $0xaf8] sm:$0xff]
        %v6409 = vld [vmem:[#allocation10 + $0xb00] sm:$0xff]
        %v6410 = vld [vmem:[#allocation10 + $0xb08] sm:$0xff]
        %v6411 = vld [vmem:[#allocation10 + $0xb10] sm:$0xff]
        %v6412 = vld [vmem:[#allocation10 + $0xb18] sm:$0xff]
        %v6413 = vld [vmem:[#allocation10 + $0xb20] sm:$0xff]
        %v6414 = vld [vmem:[#allocation10 + $0xb28] sm:$0xff]
        %v6415 = vld [vmem:[#allocation10 + $0xb30] sm:$0xff]
        %v6416 = vld [vmem:[#allocation10 + $0xb38] sm:$0xff]
        %v6417 = vld [vmem:[#allocation10 + $0xb40] sm:$0xff]
        %v6418 = vld [vmem:[#allocation10 + $0xb48] sm:$0xff]
        %v6419 = vld [vmem:[#allocation10 + $0xb50] sm:$0xff]
        %v6420 = vld [vmem:[#allocation10 + $0xb58] sm:$0xff]
        %v6421 = vld [vmem:[#allocation10 + $0xb60] sm:$0xff]
        %v6422 = vld [vmem:[#allocation10 + $0xb68] sm:$0xff]
        %v6423 = vld [vmem:[#allocation10 + $0xb70] sm:$0xff]
        %v6424 = vld [vmem:[#allocation10 + $0xb78] sm:$0xff]
        %v6425 = vld [vmem:[#allocation10 + $0xb80] sm:$0xff]
        %v6426 = vld [vmem:[#allocation10 + $0xb88] sm:$0xff]
        %v6427 = vld [vmem:[#allocation10 + $0xb90] sm:$0xff]
        %v6428 = vld [vmem:[#allocation10 + $0xb98] sm:$0xff]
        %v6429 = vld [vmem:[#allocation10 + $0xba0] sm:$0xff]
        %v6430 = vld [vmem:[#allocation10 + $0xba8] sm:$0xff]
        %v6431 = vld [vmem:[#allocation10 + $0xbb0] sm:$0xff]
        %v6432 = vld [vmem:[#allocation10 + $0xbb8] sm:$0xff]
        %v6433 = vld [vmem:[#allocation10 + $0xbc0] sm:$0xff]
        %v6434 = vld [vmem:[#allocation10 + $0xbc8] sm:$0xff]
        %v6435 = vld [vmem:[#allocation10 + $0xbd0] sm:$0xff]
        %v6436 = vld [vmem:[#allocation10 + $0xbd8] sm:$0xff]
        %v6437 = vld [vmem:[#allocation10 + $0xbe0] sm:$0xff]
        %v6438 = vld [vmem:[#allocation10 + $0xbe8] sm:$0xff]
        %v6439 = vld [vmem:[#allocation10 + $0xbf0] sm:$0xff]
        %v6440 = vld [vmem:[#allocation10 + $0xbf8] sm:$0xff]
        %v6441 = vld [vmem:[#allocation10 + $0xc00] sm:$0xff]
        %v6442 = vld [vmem:[#allocation10 + $0xc08] sm:$0xff]
        %v6443 = vld [vmem:[#allocation10 + $0xc10] sm:$0xff]
        %v6444 = vld [vmem:[#allocation10 + $0xc18] sm:$0xff]
        %v6445 = vld [vmem:[#allocation10 + $0xc20] sm:$0xff]
        %v6446 = vld [vmem:[#allocation10 + $0xc28] sm:$0xff]
        %v6447 = vld [vmem:[#allocation10 + $0xc30] sm:$0xff]
        %v6448 = vld [vmem:[#allocation10 + $0xc38] sm:$0xff]
        %v6449 = vld [vmem:[#allocation10 + $0xc40] sm:$0xff]
        %v6450 = vld [vmem:[#allocation10 + $0xc48] sm:$0xff]
        %v6451 = vld [vmem:[#allocation10 + $0xc50] sm:$0xff]
        %v6452 = vld [vmem:[#allocation10 + $0xc58] sm:$0xff]
        %v6453 = vld [vmem:[#allocation10 + $0xc60] sm:$0xff]
        %v6454 = vld [vmem:[#allocation10 + $0xc68] sm:$0xff]
        %v6455 = vld [vmem:[#allocation10 + $0xc70] sm:$0xff]
        %v6456 = vld [vmem:[#allocation10 + $0xc78] sm:$0xff]
        %v6457 = vld [vmem:[#allocation10 + $0xc80] sm:$0xff]
        %v6458 = vld [vmem:[#allocation10 + $0xc88] sm:$0xff]
        %v6459 = vld [vmem:[#allocation10 + $0xc90] sm:$0xff]
        %v6460 = vld [vmem:[#allocation10 + $0xc98] sm:$0xff]
        %v6461 = vld [vmem:[#allocation10 + $0xca0] sm:$0xff]
        %v6462 = vld [vmem:[#allocation10 + $0xca8] sm:$0xff]
        %v6463 = vld [vmem:[#allocation10 + $0xcb0] sm:$0xff]
        %v6464 = vld [vmem:[#allocation10 + $0xcb8] sm:$0xff]
        %v6465 = vld [vmem:[#allocation10 + $0xcc0] sm:$0xff]
        %v6466 = vld [vmem:[#allocation10 + $0xcc8] sm:$0xff]
        %v6467 = vld [vmem:[#allocation10 + $0xcd0] sm:$0xff]
        %v6468 = vld [vmem:[#allocation10 + $0xcd8] sm:$0xff]
        %v6469 = vld [vmem:[#allocation10 + $0xce0] sm:$0xff]
        %v6470 = vld [vmem:[#allocation10 + $0xce8] sm:$0xff]
        %v6471 = vld [vmem:[#allocation10 + $0xcf0] sm:$0xff]
        %v6472 = vld [vmem:[#allocation10 + $0xcf8] sm:$0xff]
        %v6473 = vld [vmem:[#allocation10 + $0xd00] sm:$0xff]
        %v6474 = vld [vmem:[#allocation10 + $0xd08] sm:$0xff]
        %v6475 = vld [vmem:[#allocation10 + $0xd10] sm:$0xff]
        %v6476 = vld [vmem:[#allocation10 + $0xd18] sm:$0xff]
        %v6477 = vld [vmem:[#allocation10 + $0xd20] sm:$0xff]
        %v6478 = vld [vmem:[#allocation10 + $0xd28] sm:$0xff]
        %v6479 = vld [vmem:[#allocation10 + $0xd30] sm:$0xff]
        %v6480 = vld [vmem:[#allocation10 + $0xd38] sm:$0xff]
        %v6481 = vld [vmem:[#allocation10 + $0xd40] sm:$0xff]
        %v6482 = vld [vmem:[#allocation10 + $0xd48] sm:$0xff]
        %v6483 = vld [vmem:[#allocation10 + $0xd50] sm:$0xff]
        %v6484 = vld [vmem:[#allocation10 + $0xd58] sm:$0xff]
        %v6485 = vld [vmem:[#allocation10 + $0xd60] sm:$0xff]
        %v6486 = vld [vmem:[#allocation10 + $0xd68] sm:$0xff]
        %v6487 = vld [vmem:[#allocation10 + $0xd70] sm:$0xff]
        %v6488 = vld [vmem:[#allocation10 + $0xd78] sm:$0xff]
        %v6489 = vld [vmem:[#allocation10 + $0xd80] sm:$0xff]
        %v6490 = vld [vmem:[#allocation10 + $0xd88] sm:$0xff]
        %v6491 = vld [vmem:[#allocation10 + $0xd90] sm:$0xff]
        %v6492 = vld [vmem:[#allocation10 + $0xd98] sm:$0xff]
        %v6493 = vld [vmem:[#allocation10 + $0xda0] sm:$0xff]
        %v6494 = vld [vmem:[#allocation10 + $0xda8] sm:$0xff]
        %v6495 = vld [vmem:[#allocation10 + $0xdb0] sm:$0xff]
        %v6496 = vld [vmem:[#allocation10 + $0xdb8] sm:$0xff]
        %v6497 = vld [vmem:[#allocation10 + $0xdc0] sm:$0xff]
        %v6498 = vld [vmem:[#allocation10 + $0xdc8] sm:$0xff]
        %v6499 = vld [vmem:[#allocation10 + $0xdd0] sm:$0xff]
        %v6500 = vld [vmem:[#allocation10 + $0xdd8] sm:$0xff]
        %v6501 = vld [vmem:[#allocation10 + $0xde0] sm:$0xff]
        %v6502 = vld [vmem:[#allocation10 + $0xde8] sm:$0xff]
        %v6503 = vld [vmem:[#allocation10 + $0xdf0] sm:$0xff]
        %v6504 = vld [vmem:[#allocation10 + $0xdf8] sm:$0xff]
        %v6505 = vld [vmem:[#allocation10 + $0xe00] sm:$0xff]
        %v6506 = vld [vmem:[#allocation10 + $0xe08] sm:$0xff]
        %v6507 = vld [vmem:[#allocation10 + $0xe10] sm:$0xff]
        %v6508 = vld [vmem:[#allocation10 + $0xe18] sm:$0xff]
        %v6509 = vld [vmem:[#allocation10 + $0xe20] sm:$0xff]
        %v6510 = vld [vmem:[#allocation10 + $0xe28] sm:$0xff]
        %v6511 = vld [vmem:[#allocation10 + $0xe30] sm:$0xff]
        %v6512 = vld [vmem:[#allocation10 + $0xe38] sm:$0xff]
        %v6513 = vld [vmem:[#allocation10 + $0xe40] sm:$0xff]
        %v6514 = vld [vmem:[#allocation10 + $0xe48] sm:$0xff]
        %v6515 = vld [vmem:[#allocation10 + $0xe50] sm:$0xff]
        %v6516 = vld [vmem:[#allocation10 + $0xe58] sm:$0xff]
        %v6517 = vld [vmem:[#allocation10 + $0xe60] sm:$0xff]
        %v6518 = vld [vmem:[#allocation10 + $0xe68] sm:$0xff]
        %v6519 = vld [vmem:[#allocation10 + $0xe70] sm:$0xff]
        %v6520 = vld [vmem:[#allocation10 + $0xe78] sm:$0xff]
        %v6521 = vld [vmem:[#allocation10 + $0xe80] sm:$0xff]
        %v6522 = vld [vmem:[#allocation10 + $0xe88] sm:$0xff]
        %v6523 = vld [vmem:[#allocation10 + $0xe90] sm:$0xff]
        %v6524 = vld [vmem:[#allocation10 + $0xe98] sm:$0xff]
        %v6525 = vld [vmem:[#allocation10 + $0xea0] sm:$0xff]
        %v6526 = vld [vmem:[#allocation10 + $0xea8] sm:$0xff]
        %v6527 = vld [vmem:[#allocation10 + $0xeb0] sm:$0xff]
        %v6528 = vld [vmem:[#allocation10 + $0xeb8] sm:$0xff]
        %v6529 = vld [vmem:[#allocation10 + $0xec0] sm:$0xff]
        %v6530 = vld [vmem:[#allocation10 + $0xec8] sm:$0xff]
        %v6531 = vld [vmem:[#allocation10 + $0xed0] sm:$0xff]
        %v6532 = vld [vmem:[#allocation10 + $0xed8] sm:$0xff]
        %v6533 = vld [vmem:[#allocation10 + $0xee0] sm:$0xff]
        %v6534 = vld [vmem:[#allocation10 + $0xee8] sm:$0xff]
        %v6535 = vld [vmem:[#allocation10 + $0xef0] sm:$0xff]
        %v6536 = vld [vmem:[#allocation10 + $0xef8] sm:$0xff]
        %v6537 = vld [vmem:[#allocation10 + $0xf00] sm:$0xff]
        %v6538 = vld [vmem:[#allocation10 + $0xf08] sm:$0xff]
        %v6539 = vld [vmem:[#allocation10 + $0xf10] sm:$0xff]
        %v6540 = vld [vmem:[#allocation10 + $0xf18] sm:$0xff]
        %v6541 = vld [vmem:[#allocation10 + $0xf20] sm:$0xff]
        %v6542 = vld [vmem:[#allocation10 + $0xf28] sm:$0xff]
        %v6543 = vld [vmem:[#allocation10 + $0xf30] sm:$0xff]
        %v6544 = vld [vmem:[#allocation10 + $0xf38] sm:$0xff]
        %v6545 = vld [vmem:[#allocation10 + $0xf40] sm:$0xff]
        %v6546 = vld [vmem:[#allocation10 + $0xf48] sm:$0xff]
        %v6547 = vld [vmem:[#allocation10 + $0xf50] sm:$0xff]
        %v6548 = vld [vmem:[#allocation10 + $0xf58] sm:$0xff]
        %v6549 = vld [vmem:[#allocation10 + $0xf60] sm:$0xff]
        %v6550 = vld [vmem:[#allocation10 + $0xf68] sm:$0xff]
        %v6551 = vld [vmem:[#allocation10 + $0xf70] sm:$0xff]
        %v6552 = vld [vmem:[#allocation10 + $0xf78] sm:$0xff]
        %v6553 = vld [vmem:[#allocation10 + $0xf80] sm:$0xff]
        %v6554 = vld [vmem:[#allocation10 + $0xf88] sm:$0xff]
        %v6555 = vld [vmem:[#allocation10 + $0xf90] sm:$0xff]
        %v6556 = vld [vmem:[#allocation10 + $0xf98] sm:$0xff]
        %v6557 = vld [vmem:[#allocation10 + $0xfa0] sm:$0xff]
        %v6558 = vld [vmem:[#allocation10 + $0xfa8] sm:$0xff]
        %v6559 = vld [vmem:[#allocation10 + $0xfb0] sm:$0xff]
        %v6560 = vld [vmem:[#allocation10 + $0xfb8] sm:$0xff]
        %v6561 = vld [vmem:[#allocation10 + $0xfc0] sm:$0xff]
        %v6562 = vld [vmem:[#allocation10 + $0xfc8] sm:$0xff]
        %v6563 = vld [vmem:[#allocation10 + $0xfd0] sm:$0xff]
        %v6564 = vld [vmem:[#allocation10 + $0xfd8] sm:$0xff]
        %v6565 = vld [vmem:[#allocation10 + $0xfe0] sm:$0xff]
        %v6566 = vld [vmem:[#allocation10 + $0xfe8] sm:$0xff]
        %v6567 = vld [vmem:[#allocation10 + $0xff0] sm:$0xff]
        %v6568 = vld [vmem:[#allocation10 + $0xff8] sm:$0xff]
        %v6569 = vld [vmem:[#allocation10 + $0x1000] sm:$0xff]
        %v6570 = vld [vmem:[#allocation10 + $0x1008] sm:$0xff]
        %v6571 = vld [vmem:[#allocation10 + $0x1010] sm:$0xff]
        %v6572 = vld [vmem:[#allocation10 + $0x1018] sm:$0xff]
        %v6573 = vld [vmem:[#allocation10 + $0x1020] sm:$0xff]
        %v6574 = vld [vmem:[#allocation10 + $0x1028] sm:$0xff]
        %v6575 = vld [vmem:[#allocation10 + $0x1030] sm:$0xff]
        %v6576 = vld [vmem:[#allocation10 + $0x1038] sm:$0xff]
        %v6577 = vld [vmem:[#allocation10 + $0x1040] sm:$0xff]
        %v6578 = vld [vmem:[#allocation10 + $0x1048] sm:$0xff]
        %v6579 = vld [vmem:[#allocation10 + $0x1050] sm:$0xff]
        %v6580 = vld [vmem:[#allocation10 + $0x1058] sm:$0xff]
        %v6581 = vld [vmem:[#allocation10 + $0x1060] sm:$0xff]
        %v6582 = vld [vmem:[#allocation10 + $0x1068] sm:$0xff]
        %v6583 = vld [vmem:[#allocation10 + $0x1070] sm:$0xff]
        %v6584 = vld [vmem:[#allocation10 + $0x1078] sm:$0xff]
        %v6585 = vld [vmem:[#allocation10 + $0x1080] sm:$0xff]
        %v6586 = vld [vmem:[#allocation10 + $0x1088] sm:$0xff]
        %v6587 = vld [vmem:[#allocation10 + $0x1090] sm:$0xff]
        %v6588 = vld [vmem:[#allocation10 + $0x1098] sm:$0xff]
        %v6589 = vld [vmem:[#allocation10 + $0x10a0] sm:$0xff]
        %v6590 = vld [vmem:[#allocation10 + $0x10a8] sm:$0xff]
        %v6591 = vld [vmem:[#allocation10 + $0x10b0] sm:$0xff]
        %v6592 = vld [vmem:[#allocation10 + $0x10b8] sm:$0xff]
        %v6593 = vld [vmem:[#allocation10 + $0x10c0] sm:$0xff]
        %v6594 = vld [vmem:[#allocation10 + $0x10c8] sm:$0xff]
        %v6595 = vld [vmem:[#allocation10 + $0x10d0] sm:$0xff]
        %v6596 = vld [vmem:[#allocation10 + $0x10d8] sm:$0xff]
        %v6597 = vld [vmem:[#allocation10 + $0x10e0] sm:$0xff]
        %v6598 = vld [vmem:[#allocation10 + $0x10e8] sm:$0xff]
        %v6599 = vld [vmem:[#allocation10 + $0x10f0] sm:$0xff]
        %v6600 = vld [vmem:[#allocation10 + $0x10f8] sm:$0xff]
        %v6601 = vld [vmem:[#allocation10 + $0x1100] sm:$0xff]
        %v6602 = vld [vmem:[#allocation10 + $0x1108] sm:$0xff]
        %v6603 = vld [vmem:[#allocation10 + $0x1110] sm:$0xff]
        %v6604 = vld [vmem:[#allocation10 + $0x1118] sm:$0xff]
        %v6605 = vld [vmem:[#allocation10 + $0x1120] sm:$0xff]
        %v6606 = vld [vmem:[#allocation10 + $0x1128] sm:$0xff]
        %v6607 = vld [vmem:[#allocation10 + $0x1130] sm:$0xff]
        %v6608 = vld [vmem:[#allocation10 + $0x1138] sm:$0xff]
        %v6609 = vld [vmem:[#allocation10 + $0x1140] sm:$0xff]
        %v6610 = vld [vmem:[#allocation10 + $0x1148] sm:$0xff]
        %v6611 = vld [vmem:[#allocation10 + $0x1150] sm:$0xff]
        %v6612 = vld [vmem:[#allocation10 + $0x1158] sm:$0xff]
        %v6613 = vld [vmem:[#allocation10 + $0x1160] sm:$0xff]
        %v6614 = vld [vmem:[#allocation10 + $0x1168] sm:$0xff]
        %v6615 = vld [vmem:[#allocation10 + $0x1170] sm:$0xff]
        %v6616 = vld [vmem:[#allocation10 + $0x1178] sm:$0xff]
        %v6617 = vld [vmem:[#allocation10 + $0x1180] sm:$0xff]
        %v6618 = vld [vmem:[#allocation10 + $0x1188] sm:$0xff]
        %v6619 = vld [vmem:[#allocation10 + $0x1190] sm:$0xff]
        %v6620 = vld [vmem:[#allocation10 + $0x1198] sm:$0xff]
        %v6621 = vld [vmem:[#allocation10 + $0x11a0] sm:$0xff]
        %v6622 = vld [vmem:[#allocation10 + $0x11a8] sm:$0xff]
        %v6623 = vld [vmem:[#allocation10 + $0x11b0] sm:$0xff]
        %v6624 = vld [vmem:[#allocation10 + $0x11b8] sm:$0xff]
        %v6625 = vld [vmem:[#allocation10 + $0x11c0] sm:$0xff]
        %v6626 = vld [vmem:[#allocation10 + $0x11c8] sm:$0xff]
        %v6627 = vld [vmem:[#allocation10 + $0x11d0] sm:$0xff]
        %v6628 = vld [vmem:[#allocation10 + $0x11d8] sm:$0xff]
        %v6629 = vld [vmem:[#allocation10 + $0x11e0] sm:$0xff]
        %v6630 = vld [vmem:[#allocation10 + $0x11e8] sm:$0xff]
        %v6631 = vld [vmem:[#allocation10 + $0x11f0] sm:$0xff]
        %v6632 = vld [vmem:[#allocation10 + $0x11f8] sm:$0xff]
        %v6633 = vld [vmem:[#allocation11] sm:$0x3f]
        %v6635 = vlaneseq
        %v6636 = vshrl.u32 %v6635, 7
        %v6637 = vsub.s32 0, %v6636
        %v6638 = vrot.slane %v6633, %v6637
        %v6639 = vlaneseq
        %v6640 = vshrl.u32 %v6639, 7
        %v6641 = vsub.s32 1, %v6640
        %v6642 = vrot.slane %v6633, %v6641
        %v6643 = vlaneseq
        %v6644 = vshrl.u32 %v6643, 7
        %v6645 = vsub.s32 2, %v6644
        %v6646 = vrot.slane %v6633, %v6645
        %v6647 = vlaneseq
        %v6648 = vshrl.u32 %v6647, 7
        %v6649 = vsub.s32 3, %v6648
        %v6650 = vrot.slane %v6633, %v6649
        %v6651 = vlaneseq
        %v6652 = vshrl.u32 %v6651, 7
        %v6653 = vsub.s32 4, %v6652
        %v6654 = vrot.slane %v6633, %v6653
        %v6655 = vlaneseq
        %v6656 = vshrl.u32 %v6655, 7
        %v6657 = vsub.s32 5, %v6656
        %v6658 = vrot.slane %v6633, %v6657
        %6665 = vmatprep.subr.mxu0 %v6058
        %6666 = vmatpush1.msra.mxu0 %v6057
        %6667 = vmatprep.subr.mxu0 %v6064
        %6668 = vmatpush1.msra.mxu0 %v6063
        %6669 = vmatprep.subr.mxu0 %v6070
        %6670 = vmatpush1.msra.mxu0 %v6069
        %6671 = vmatprep.subr.mxu0 %v6076
        %6672 = vmatpush1.msra.mxu0 %v6075
        %6673 = vmatprep.subr.mxu0 %v6082
        %6674 = vmatpush1.msra.mxu0 %v6081
        %6675 = vmatprep.subr.mxu0 %v6088
        %6676 = vmatpush1.msra.mxu0 %v6087
        %6677 = vmatprep.subr.mxu0 %v6094
        %6678 = vmatpush1.msra.mxu0 %v6093
        %6679 = vmatprep.subr.mxu0 %v6100
        %6680 = vmatpush1.msra.mxu0 %v6099
        %6681 = vmatprep.subr.mxu0 %v6106
        %6682 = vmatpush1.msra.mxu0 %v6105
        %6683 = vmatprep.subr.mxu0 %v6112
        %6684 = vmatpush1.msra.mxu0 %v6111
        %6685 = vmatprep.subr.mxu0 %v6118
        %6686 = vmatpush1.msra.mxu0 %v6117
        %6687 = vmatprep.subr.mxu0 %v6124
        %6688 = vmatpush1.msra.mxu0 %v6123
        %6689 = vmatprep.subr.mxu0 %v6130
        %6690 = vmatpush1.msra.mxu0 %v6129
        %6691 = vmatprep.subr.mxu0 %v6136
        %6692 = vmatpush1.msra.mxu0 %v6135
        %6693 = vmatprep.subr.mxu0 %v6142
        %6694 = vmatpush1.msra.mxu0 %v6141
        %6695 = vmatprep.subr.mxu0 %v6148
        %6696 = vmatpush1.msra.mxu0 %v6147
        %6697 = vmatprep.subr.mxu0 %v6154
        %6698 = vmatpush1.msra.mxu0 %v6153
        %6699 = vmatprep.subr.mxu0 %v6160
        %6700 = vmatpush1.msra.mxu0 %v6159
        %6701 = vmatprep.subr.mxu0 %v6166
        %6702 = vmatpush1.msra.mxu0 %v6165
        %6703 = vmatprep.subr.mxu0 %v6172
        %6704 = vmatpush1.msra.mxu0 %v6171
        %6705 = vmatprep.subr.mxu0 %v6178
        %6706 = vmatpush1.msra.mxu0 %v6177
        %6707 = vmatprep.subr.mxu0 %v6184
        %6708 = vmatpush1.msra.mxu0 %v6183
        %6709 = vmatprep.subr.mxu0 %v6190
        %6710 = vmatpush1.msra.mxu0 %v6189
        %6711 = vmatprep.subr.mxu0 %v6196
        %6712 = vmatpush1.msra.mxu0 %v6195
        %6713 = vmatprep.subr.mxu0 %v6202
        %6714 = vmatpush1.msra.mxu0 %v6201
        %6715 = vmatprep.subr.mxu0 %v6208
        %6716 = vmatpush1.msra.mxu0 %v6207
        %6717 = vmatprep.subr.mxu0 %v6214
        %6718 = vmatpush1.msra.mxu0 %v6213
        %6719 = vmatprep.subr.mxu0 %v6220
        %6720 = vmatpush1.msra.mxu0 %v6219
        %6721 = vmatprep.subr.mxu0 %v6226
        %6722 = vmatpush1.msra.mxu0 %v6225
        %6723 = vmatprep.subr.mxu0 %v6232
        %6724 = vmatpush1.msra.mxu0 %v6231
        %6725 = vmatprep.subr.mxu0 %v6238
        %6726 = vmatpush1.msra.mxu0 %v6237
        %6727 = vmatprep.subr.mxu0 %v6244
        %6728 = vmatpush1.msra.mxu0 %v6243
        %6729 = vmatprep.mubr.f32.mxu0 %v6052
        %6730 = vmatmul.mubr.f32.gmra.mrb[0].mxu0 %v6051
        %v6731 = vpop.f32.mrb[0].mxu0
        %v6732 = vadd.f32 %v6638, %v6731
        %v6733 = vpop.f32.mrb[0].mxu0
        %v6734 = vadd.f32 %v6642, %v6733
        %6735 = vdwg.mxu0
        %6736 = vmatprep.subr.mxu0 %v6250
        %6737 = vmatpush1.msra.mxu0 %v6249
        %6738 = vmatprep.subr.mxu0 %v6256
        %6739 = vmatpush1.msra.mxu0 %v6255
        %6740 = vmatprep.subr.mxu0 %v6262
        %6741 = vmatpush1.msra.mxu0 %v6261
        %6742 = vmatprep.subr.mxu0 %v6268
        %6743 = vmatpush1.msra.mxu0 %v6267
        %6744 = vmatprep.subr.mxu0 %v6274
        %6745 = vmatpush1.msra.mxu0 %v6273
        %6746 = vmatprep.subr.mxu0 %v6280
        %6747 = vmatpush1.msra.mxu0 %v6279
        %6748 = vmatprep.subr.mxu0 %v6286
        %6749 = vmatpush1.msra.mxu0 %v6285
        %6750 = vmatprep.subr.mxu0 %v6292
        %6751 = vmatpush1.msra.mxu0 %v6291
        %6752 = vmatprep.subr.mxu0 %v6298
        %6753 = vmatpush1.msra.mxu0 %v6297
        %6754 = vmatprep.subr.mxu0 %v6304
        %6755 = vmatpush1.msra.mxu0 %v6303
        %6756 = vmatprep.subr.mxu0 %v6310
        %6757 = vmatpush1.msra.mxu0 %v6309
        %6758 = vmatprep.subr.mxu0 %v6316
        %6759 = vmatpush1.msra.mxu0 %v6315
        %6760 = vmatprep.subr.mxu0 %v6322
        %6761 = vmatpush1.msra.mxu0 %v6321
        %6762 = vmatprep.subr.mxu0 %v6328
        %6763 = vmatpush1.msra.mxu0 %v6327
        %6764 = vmatprep.subr.mxu0 %v6334
        %6765 = vmatpush1.msra.mxu0 %v6333
        %6766 = vmatprep.subr.mxu0 %v6340
        %6767 = vmatpush1.msra.mxu0 %v6339
        %6768 = vmatprep.subr.mxu0 %v6346
        %6769 = vmatpush1.msra.mxu0 %v6345
        %6770 = vmatprep.subr.mxu0 %v6352
        %6771 = vmatpush1.msra.mxu0 %v6351
        %6772 = vmatprep.subr.mxu0 %v6358
        %6773 = vmatpush1.msra.mxu0 %v6357
        %6774 = vmatprep.subr.mxu0 %v6364
        %6775 = vmatpush1.msra.mxu0 %v6363
        %6776 = vmatprep.subr.mxu0 %v6370
        %6777 = vmatpush1.msra.mxu0 %v6369
        %6778 = vmatprep.subr.mxu0 %v6376
        %6779 = vmatpush1.msra.mxu0 %v6375
        %6780 = vmatprep.subr.mxu0 %v6382
        %6781 = vmatpush1.msra.mxu0 %v6381
        %6782 = vmatprep.subr.mxu0 %v6388
        %6783 = vmatpush1.msra.mxu0 %v6387
        %6784 = vmatprep.subr.mxu0 %v6394
        %6785 = vmatpush1.msra.mxu0 %v6393
        %6786 = vmatprep.subr.mxu0 %v6400
        %6787 = vmatpush1.msra.mxu0 %v6399
        %6788 = vmatprep.subr.mxu0 %v6406
        %6789 = vmatpush1.msra.mxu0 %v6405
        %6790 = vmatprep.subr.mxu0 %v6412
        %6791 = vmatpush1.msra.mxu0 %v6411
        %6792 = vmatprep.subr.mxu0 %v6418
        %6793 = vmatpush1.msra.mxu0 %v6417
        %6794 = vmatprep.subr.mxu0 %v6424
        %6795 = vmatpush1.msra.mxu0 %v6423
        %6796 = vmatprep.subr.mxu0 %v6430
        %6797 = vmatpush1.msra.mxu0 %v6429
        %6798 = vmatprep.subr.mxu0 %v6436
        %6799 = vmatpush1.msra.mxu0 %v6435
        %6800 = vmatprep.mubr.f32.mxu0 %v6054
        %6801 = vmatmul.mubr.f32.gmra.mrb[0].mxu0 %v6053
        %v6802 = vpop.f32.mrb[0].mxu0
        %v6803 = vadd.f32 %v6732, %v6802
        %v6804 = vpop.f32.mrb[0].mxu0
        %v6805 = vadd.f32 %v6734, %v6804
        %6806 = vdwg.mxu0
        %6807 = vmatprep.subr.mxu0 %v6442
        %6808 = vmatpush1.msra.mxu0 %v6441
        %6809 = vmatprep.subr.mxu0 %v6448
        %6810 = vmatpush1.msra.mxu0 %v6447
        %6811 = vmatprep.subr.mxu0 %v6454
        %6812 = vmatpush1.msra.mxu0 %v6453
        %6813 = vmatprep.subr.mxu0 %v6460
        %6814 = vmatpush1.msra.mxu0 %v6459
        %6815 = vmatprep.subr.mxu0 %v6466
        %6816 = vmatpush1.msra.mxu0 %v6465
        %6817 = vmatprep.subr.mxu0 %v6472
        %6818 = vmatpush1.msra.mxu0 %v6471
        %6819 = vmatprep.subr.mxu0 %v6478
        %6820 = vmatpush1.msra.mxu0 %v6477
        %6821 = vmatprep.subr.mxu0 %v6484
        %6822 = vmatpush1.msra.mxu0 %v6483
        %6823 = vmatprep.subr.mxu0 %v6490
        %6824 = vmatpush1.msra.mxu0 %v6489
        %6825 = vmatprep.subr.mxu0 %v6496
        %6826 = vmatpush1.msra.mxu0 %v6495
        %6827 = vmatprep.subr.mxu0 %v6502
        %6828 = vmatpush1.msra.mxu0 %v6501
        %6829 = vmatprep.subr.mxu0 %v6508
        %6830 = vmatpush1.msra.mxu0 %v6507
        %6831 = vmatprep.subr.mxu0 %v6514
        %6832 = vmatpush1.msra.mxu0 %v6513
        %6833 = vmatprep.subr.mxu0 %v6520
        %6834 = vmatpush1.msra.mxu0 %v6519
        %6835 = vmatprep.subr.mxu0 %v6526
        %6836 = vmatpush1.msra.mxu0 %v6525
        %6837 = vmatprep.subr.mxu0 %v6532
        %6838 = vmatpush1.msra.mxu0 %v6531
        %6839 = vmatprep.subr.mxu0 %v6538
        %6840 = vmatpush1.msra.mxu0 %v6537
        %6841 = vmatprep.subr.mxu0 %v6544
        %6842 = vmatpush1.msra.mxu0 %v6543
        %6843 = vmatprep.subr.mxu0 %v6550
        %6844 = vmatpush1.msra.mxu0 %v6549
        %6845 = vmatprep.subr.mxu0 %v6556
        %6846 = vmatpush1.msra.mxu0 %v6555
        %6847 = vmatprep.subr.mxu0 %v6562
        %6848 = vmatpush1.msra.mxu0 %v6561
        %6849 = vmatprep.subr.mxu0 %v6568
        %6850 = vmatpush1.msra.mxu0 %v6567
        %6851 = vmatprep.subr.mxu0 %v6574
        %6852 = vmatpush1.msra.mxu0 %v6573
        %6853 = vmatprep.subr.mxu0 %v6580
        %6854 = vmatpush1.msra.mxu0 %v6579
        %6855 = vmatprep.subr.mxu0 %v6586
        %6856 = vmatpush1.msra.mxu0 %v6585
        %6857 = vmatprep.subr.mxu0 %v6592
        %6858 = vmatpush1.msra.mxu0 %v6591
        %6859 = vmatprep.subr.mxu0 %v6598
        %6860 = vmatpush1.msra.mxu0 %v6597
        %6861 = vmatprep.subr.mxu0 %v6604
        %6862 = vmatpush1.msra.mxu0 %v6603
        %6863 = vmatprep.subr.mxu0 %v6610
        %6864 = vmatpush1.msra.mxu0 %v6609
        %6865 = vmatprep.subr.mxu0 %v6616
        %6866 = vmatpush1.msra.mxu0 %v6615
        %6867 = vmatprep.subr.mxu0 %v6622
        %6868 = vmatpush1.msra.mxu0 %v6621
        %6869 = vmatprep.subr.mxu0 %v6628
        %6870 = vmatpush1.msra.mxu0 %v6627
        %6871 = vmatprep.mubr.f32.mxu0 %v6056
        %6872 = vmatmul.mubr.f32.gmra.mrb[0].mxu0 %v6055
        %v6873 = vpop.f32.mrb[0].mxu0
        %v6874 = vadd.f32 %v6803, %v6873
        %v6875 = vpop.f32.mrb[0].mxu0
        %v6876 = vadd.f32 %v6805, %v6875
        %6877 = vdwg.mxu0
        %6878 = vmatprep.subr.mxu0 %v6060
        %6879 = vmatpush1.msra.mxu0 %v6059
        %6880 = vmatprep.subr.mxu0 %v6066
        %6881 = vmatpush1.msra.mxu0 %v6065
        %6882 = vmatprep.subr.mxu0 %v6072
        %6883 = vmatpush1.msra.mxu0 %v6071
        %6884 = vmatprep.subr.mxu0 %v6078
        %6885 = vmatpush1.msra.mxu0 %v6077
        %6886 = vmatprep.subr.mxu0 %v6084
        %6887 = vmatpush1.msra.mxu0 %v6083
        %6888 = vmatprep.subr.mxu0 %v6090
        %6889 = vmatpush1.msra.mxu0 %v6089
        %6890 = vmatprep.subr.mxu0 %v6096
        %6891 = vmatpush1.msra.mxu0 %v6095
        %6892 = vmatprep.subr.mxu0 %v6102
        %6893 = vmatpush1.msra.mxu0 %v6101
        %6894 = vmatprep.subr.mxu0 %v6108
        %6895 = vmatpush1.msra.mxu0 %v6107
        %6896 = vmatprep.subr.mxu0 %v6114
        %6897 = vmatpush1.msra.mxu0 %v6113
        %6898 = vmatprep.subr.mxu0 %v6120
        %6899 = vmatpush1.msra.mxu0 %v6119
        %6900 = vmatprep.subr.mxu0 %v6126
        %6901 = vmatpush1.msra.mxu0 %v6125
        %6902 = vmatprep.subr.mxu0 %v6132
        %6903 = vmatpush1.msra.mxu0 %v6131
        %6904 = vmatprep.subr.mxu0 %v6138
        %6905 = vmatpush1.msra.mxu0 %v6137
        %6906 = vmatprep.subr.mxu0 %v6144
        %6907 = vmatpush1.msra.mxu0 %v6143
        %6908 = vmatprep.subr.mxu0 %v6150
        %6909 = vmatpush1.msra.mxu0 %v6149
        %6910 = vmatprep.subr.mxu0 %v6156
        %6911 = vmatpush1.msra.mxu0 %v6155
        %6912 = vmatprep.subr.mxu0 %v6162
        %6913 = vmatpush1.msra.mxu0 %v6161
        %6914 = vmatprep.subr.mxu0 %v6168
        %6915 = vmatpush1.msra.mxu0 %v6167
        %6916 = vmatprep.subr.mxu0 %v6174
        %6917 = vmatpush1.msra.mxu0 %v6173
        %6918 = vmatprep.subr.mxu0 %v6180
        %6919 = vmatpush1.msra.mxu0 %v6179
        %6920 = vmatprep.subr.mxu0 %v6186
        %6921 = vmatpush1.msra.mxu0 %v6185
        %6922 = vmatprep.subr.mxu0 %v6192
        %6923 = vmatpush1.msra.mxu0 %v6191
        %6924 = vmatprep.subr.mxu0 %v6198
        %6925 = vmatpush1.msra.mxu0 %v6197
        %6926 = vmatprep.subr.mxu0 %v6204
        %6927 = vmatpush1.msra.mxu0 %v6203
        %6928 = vmatprep.subr.mxu0 %v6210
        %6929 = vmatpush1.msra.mxu0 %v6209
        %6930 = vmatprep.subr.mxu0 %v6216
        %6931 = vmatpush1.msra.mxu0 %v6215
        %6932 = vmatprep.subr.mxu0 %v6222
        %6933 = vmatpush1.msra.mxu0 %v6221
        %6934 = vmatprep.subr.mxu0 %v6228
        %6935 = vmatpush1.msra.mxu0 %v6227
        %6936 = vmatprep.subr.mxu0 %v6234
        %6937 = vmatpush1.msra.mxu0 %v6233
        %6938 = vmatprep.subr.mxu0 %v6240
        %6939 = vmatpush1.msra.mxu0 %v6239
        %6940 = vmatprep.subr.mxu0 %v6246
        %6941 = vmatpush1.msra.mxu0 %v6245
        %6942 = vmatprep.mubr.f32.mxu0 %v6052
        %6943 = vmatmul.mubr.f32.gmra.mrb[0].mxu0 %v6051
        %v6944 = vpop.f32.mrb[0].mxu0
        %v6945 = vadd.f32 %v6646, %v6944
        %v6946 = vpop.f32.mrb[0].mxu0
        %v6947 = vadd.f32 %v6650, %v6946
        %6948 = vdwg.mxu0
        %6949 = vmatprep.subr.mxu0 %v6252
        %6950 = vmatpush1.msra.mxu0 %v6251
        %6951 = vmatprep.subr.mxu0 %v6258
        %6952 = vmatpush1.msra.mxu0 %v6257
        %6953 = vmatprep.subr.mxu0 %v6264
        %6954 = vmatpush1.msra.mxu0 %v6263
        %6955 = vmatprep.subr.mxu0 %v6270
        %6956 = vmatpush1.msra.mxu0 %v6269
        %6957 = vmatprep.subr.mxu0 %v6276
        %6958 = vmatpush1.msra.mxu0 %v6275
        %6959 = vmatprep.subr.mxu0 %v6282
        %6960 = vmatpush1.msra.mxu0 %v6281
        %6961 = vmatprep.subr.mxu0 %v6288
        %6962 = vmatpush1.msra.mxu0 %v6287
        %6963 = vmatprep.subr.mxu0 %v6294
        %6964 = vmatpush1.msra.mxu0 %v6293
        %6965 = vmatprep.subr.mxu0 %v6300
        %6966 = vmatpush1.msra.mxu0 %v6299
        %6967 = vmatprep.subr.mxu0 %v6306
        %6968 = vmatpush1.msra.mxu0 %v6305
        %6969 = vmatprep.subr.mxu0 %v6312
        %6970 = vmatpush1.msra.mxu0 %v6311
        %6971 = vmatprep.subr.mxu0 %v6318
        %6972 = vmatpush1.msra.mxu0 %v6317
        %6973 = vmatprep.subr.mxu0 %v6324
        %6974 = vmatpush1.msra.mxu0 %v6323
        %6975 = vmatprep.subr.mxu0 %v6330
        %6976 = vmatpush1.msra.mxu0 %v6329
        %6977 = vmatprep.subr.mxu0 %v6336
        %6978 = vmatpush1.msra.mxu0 %v6335
        %6979 = vmatprep.subr.mxu0 %v6342
        %6980 = vmatpush1.msra.mxu0 %v6341
        %6981 = vmatprep.subr.mxu0 %v6348
        %6982 = vmatpush1.msra.mxu0 %v6347
        %6983 = vmatprep.subr.mxu0 %v6354
        %6984 = vmatpush1.msra.mxu0 %v6353
        %6985 = vmatprep.subr.mxu0 %v6360
        %6986 = vmatpush1.msra.mxu0 %v6359
        %6987 = vmatprep.subr.mxu0 %v6366
        %6988 = vmatpush1.msra.mxu0 %v6365
        %6989 = vmatprep.subr.mxu0 %v6372
        %6990 = vmatpush1.msra.mxu0 %v6371
        %6991 = vmatprep.subr.mxu0 %v6378
        %6992 = vmatpush1.msra.mxu0 %v6377
        %6993 = vmatprep.subr.mxu0 %v6384
        %6994 = vmatpush1.msra.mxu0 %v6383
        %6995 = vmatprep.subr.mxu0 %v6390
        %6996 = vmatpush1.msra.mxu0 %v6389
        %6997 = vmatprep.subr.mxu0 %v6396
        %6998 = vmatpush1.msra.mxu0 %v6395
        %6999 = vmatprep.subr.mxu0 %v6402
        %7000 = vmatpush1.msra.mxu0 %v6401
        %7001 = vmatprep.subr.mxu0 %v6408
        %7002 = vmatpush1.msra.mxu0 %v6407
        %7003 = vmatprep.subr.mxu0 %v6414
        %7004 = vmatpush1.msra.mxu0 %v6413
        %7005 = vmatprep.subr.mxu0 %v6420
        %7006 = vmatpush1.msra.mxu0 %v6419
        %7007 = vmatprep.subr.mxu0 %v6426
        %7008 = vmatpush1.msra.mxu0 %v6425
        %7009 = vmatprep.subr.mxu0 %v6432
        %7010 = vmatpush1.msra.mxu0 %v6431
        %7011 = vmatprep.subr.mxu0 %v6438
        %7012 = vmatpush1.msra.mxu0 %v6437
        %7013 = vmatprep.mubr.f32.mxu0 %v6054
        %7014 = vmatmul.mubr.f32.gmra.mrb[0].mxu0 %v6053
        %v7015 = vpop.f32.mrb[0].mxu0
        %v7016 = vadd.f32 %v6945, %v7015
        %v7017 = vpop.f32.mrb[0].mxu0
        %v7018 = vadd.f32 %v6947, %v7017
        %7019 = vdwg.mxu0
        %7020 = vmatprep.subr.mxu0 %v6444
        %7021 = vmatpush1.msra.mxu0 %v6443
        %7022 = vmatprep.subr.mxu0 %v6450
        %7023 = vmatpush1.msra.mxu0 %v6449
        %7024 = vmatprep.subr.mxu0 %v6456
        %7025 = vmatpush1.msra.mxu0 %v6455
        %7026 = vmatprep.subr.mxu0 %v6462
        %7027 = vmatpush1.msra.mxu0 %v6461
        %7028 = vmatprep.subr.mxu0 %v6468
        %7029 = vmatpush1.msra.mxu0 %v6467
        %7030 = vmatprep.subr.mxu0 %v6474
        %7031 = vmatpush1.msra.mxu0 %v6473
        %7032 = vmatprep.subr.mxu0 %v6480
        %7033 = vmatpush1.msra.mxu0 %v6479
        %7034 = vmatprep.subr.mxu0 %v6486
        %7035 = vmatpush1.msra.mxu0 %v6485
        %7036 = vmatprep.subr.mxu0 %v6492
        %7037 = vmatpush1.msra.mxu0 %v6491
        %7038 = vmatprep.subr.mxu0 %v6498
        %7039 = vmatpush1.msra.mxu0 %v6497
        %7040 = vmatprep.subr.mxu0 %v6504
        %7041 = vmatpush1.msra.mxu0 %v6503
        %7042 = vmatprep.subr.mxu0 %v6510
        %7043 = vmatpush1.msra.mxu0 %v6509
        %7044 = vmatprep.subr.mxu0 %v6516
        %7045 = vmatpush1.msra.mxu0 %v6515
        %7046 = vmatprep.subr.mxu0 %v6522
        %7047 = vmatpush1.msra.mxu0 %v6521
        %7048 = vmatprep.subr.mxu0 %v6528
        %7049 = vmatpush1.msra.mxu0 %v6527
        %7050 = vmatprep.subr.mxu0 %v6534
        %7051 = vmatpush1.msra.mxu0 %v6533
        %7052 = vmatprep.subr.mxu0 %v6540
        %7053 = vmatpush1.msra.mxu0 %v6539
        %7054 = vmatprep.subr.mxu0 %v6546
        %7055 = vmatpush1.msra.mxu0 %v6545
        %7056 = vmatprep.subr.mxu0 %v6552
        %7057 = vmatpush1.msra.mxu0 %v6551
        %7058 = vmatprep.subr.mxu0 %v6558
        %7059 = vmatpush1.msra.mxu0 %v6557
        %7060 = vmatprep.subr.mxu0 %v6564
        %7061 = vmatpush1.msra.mxu0 %v6563
        %7062 = vmatprep.subr.mxu0 %v6570
        %7063 = vmatpush1.msra.mxu0 %v6569
        %7064 = vmatprep.subr.mxu0 %v6576
        %7065 = vmatpush1.msra.mxu0 %v6575
        %7066 = vmatprep.subr.mxu0 %v6582
        %7067 = vmatpush1.msra.mxu0 %v6581
        %7068 = vmatprep.subr.mxu0 %v6588
        %7069 = vmatpush1.msra.mxu0 %v6587
        %7070 = vmatprep.subr.mxu0 %v6594
        %7071 = vmatpush1.msra.mxu0 %v6593
        %7072 = vmatprep.subr.mxu0 %v6600
        %7073 = vmatpush1.msra.mxu0 %v6599
        %7074 = vmatprep.subr.mxu0 %v6606
        %7075 = vmatpush1.msra.mxu0 %v6605
        %7076 = vmatprep.subr.mxu0 %v6612
        %7077 = vmatpush1.msra.mxu0 %v6611
        %7078 = vmatprep.subr.mxu0 %v6618
        %7079 = vmatpush1.msra.mxu0 %v6617
        %7080 = vmatprep.subr.mxu0 %v6624
        %7081 = vmatpush1.msra.mxu0 %v6623
        %7082 = vmatprep.subr.mxu0 %v6630
        %7083 = vmatpush1.msra.mxu0 %v6629
        %7084 = vmatprep.mubr.f32.mxu0 %v6056
        %7085 = vmatmul.mubr.f32.gmra.mrb[0].mxu0 %v6055
        %v7086 = vpop.f32.mrb[0].mxu0
        %v7087 = vadd.f32 %v7016, %v7086
        %v7088 = vpop.f32.mrb[0].mxu0
        %v7089 = vadd.f32 %v7018, %v7088
        %7090 = vdwg.mxu0
        %7091 = vmatprep.subr.mxu0 %v6062
        %7092 = vmatpush1.msra.mxu0 %v6061
        %7093 = vmatprep.subr.mxu0 %v6068
        %7094 = vmatpush1.msra.mxu0 %v6067
        %7095 = vmatprep.subr.mxu0 %v6074
        %7096 = vmatpush1.msra.mxu0 %v6073
        %7097 = vmatprep.subr.mxu0 %v6080
        %7098 = vmatpush1.msra.mxu0 %v6079
        %7099 = vmatprep.subr.mxu0 %v6086
        %7100 = vmatpush1.msra.mxu0 %v6085
        %7101 = vmatprep.subr.mxu0 %v6092
        %7102 = vmatpush1.msra.mxu0 %v6091
        %7103 = vmatprep.subr.mxu0 %v6098
        %7104 = vmatpush1.msra.mxu0 %v6097
        %7105 = vmatprep.subr.mxu0 %v6104
        %7106 = vmatpush1.msra.mxu0 %v6103
        %7107 = vmatprep.subr.mxu0 %v6110
        %7108 = vmatpush1.msra.mxu0 %v6109
        %7109 = vmatprep.subr.mxu0 %v6116
        %7110 = vmatpush1.msra.mxu0 %v6115
        %7111 = vmatprep.subr.mxu0 %v6122
        %7112 = vmatpush1.msra.mxu0 %v6121
        %7113 = vmatprep.subr.mxu0 %v6128
        %7114 = vmatpush1.msra.mxu0 %v6127
        %7115 = vmatprep.subr.mxu0 %v6134
        %7116 = vmatpush1.msra.mxu0 %v6133
        %7117 = vmatprep.subr.mxu0 %v6140
        %7118 = vmatpush1.msra.mxu0 %v6139
        %7119 = vmatprep.subr.mxu0 %v6146
        %7120 = vmatpush1.msra.mxu0 %v6145
        %7121 = vmatprep.subr.mxu0 %v6152
        %7122 = vmatpush1.msra.mxu0 %v6151
        %7123 = vmatprep.subr.mxu0 %v6158
        %7124 = vmatpush1.msra.mxu0 %v6157
        %7125 = vmatprep.subr.mxu0 %v6164
        %7126 = vmatpush1.msra.mxu0 %v6163
        %7127 = vmatprep.subr.mxu0 %v6170
        %7128 = vmatpush1.msra.mxu0 %v6169
        %7129 = vmatprep.subr.mxu0 %v6176
        %7130 = vmatpush1.msra.mxu0 %v6175
        %7131 = vmatprep.subr.mxu0 %v6182
        %7132 = vmatpush1.msra.mxu0 %v6181
        %7133 = vmatprep.subr.mxu0 %v6188
        %7134 = vmatpush1.msra.mxu0 %v6187
        %7135 = vmatprep.subr.mxu0 %v6194
        %7136 = vmatpush1.msra.mxu0 %v6193
        %7137 = vmatprep.subr.mxu0 %v6200
        %7138 = vmatpush1.msra.mxu0 %v6199
        %7139 = vmatprep.subr.mxu0 %v6206
        %7140 = vmatpush1.msra.mxu0 %v6205
        %7141 = vmatprep.subr.mxu0 %v6212
        %7142 = vmatpush1.msra.mxu0 %v6211
        %7143 = vmatprep.subr.mxu0 %v6218
        %7144 = vmatpush1.msra.mxu0 %v6217
        %7145 = vmatprep.subr.mxu0 %v6224
        %7146 = vmatpush1.msra.mxu0 %v6223
        %7147 = vmatprep.subr.mxu0 %v6230
        %7148 = vmatpush1.msra.mxu0 %v6229
        %7149 = vmatprep.subr.mxu0 %v6236
        %7150 = vmatpush1.msra.mxu0 %v6235
        %7151 = vmatprep.subr.mxu0 %v6242
        %7152 = vmatpush1.msra.mxu0 %v6241
        %7153 = vmatprep.subr.mxu0 %v6248
        %7154 = vmatpush1.msra.mxu0 %v6247
        %7155 = vmatprep.mubr.f32.mxu0 %v6052
        %7156 = vmatmul.mubr.f32.gmra.mrb[0].mxu0 %v6051
        %v7157 = vpop.f32.mrb[0].mxu0
        %v7158 = vadd.f32 %v6654, %v7157
        %v7159 = vpop.f32.mrb[0].mxu0
        %v7160 = vadd.f32 %v6658, %v7159
        %7161 = vdwg.mxu0
        %7162 = vmatprep.subr.mxu0 %v6254
        %7163 = vmatpush1.msra.mxu0 %v6253
        %7164 = vmatprep.subr.mxu0 %v6260
        %7165 = vmatpush1.msra.mxu0 %v6259
        %7166 = vmatprep.subr.mxu0 %v6266
        %7167 = vmatpush1.msra.mxu0 %v6265
        %7168 = vmatprep.subr.mxu0 %v6272
        %7169 = vmatpush1.msra.mxu0 %v6271
        %7170 = vmatprep.subr.mxu0 %v6278
        %7171 = vmatpush1.msra.mxu0 %v6277
        %7172 = vmatprep.subr.mxu0 %v6284
        %7173 = vmatpush1.msra.mxu0 %v6283
        %7174 = vmatprep.subr.mxu0 %v6290
        %7175 = vmatpush1.msra.mxu0 %v6289
        %7176 = vmatprep.subr.mxu0 %v6296
        %7177 = vmatpush1.msra.mxu0 %v6295
        %7178 = vmatprep.subr.mxu0 %v6302
        %7179 = vmatpush1.msra.mxu0 %v6301
        %7180 = vmatprep.subr.mxu0 %v6308
        %7181 = vmatpush1.msra.mxu0 %v6307
        %7182 = vmatprep.subr.mxu0 %v6314
        %7183 = vmatpush1.msra.mxu0 %v6313
        %7184 = vmatprep.subr.mxu0 %v6320
        %7185 = vmatpush1.msra.mxu0 %v6319
        %7186 = vmatprep.subr.mxu0 %v6326
        %7187 = vmatpush1.msra.mxu0 %v6325
        %7188 = vmatprep.subr.mxu0 %v6332
        %7189 = vmatpush1.msra.mxu0 %v6331
        %7190 = vmatprep.subr.mxu0 %v6338
        %7191 = vmatpush1.msra.mxu0 %v6337
        %7192 = vmatprep.subr.mxu0 %v6344
        %7193 = vmatpush1.msra.mxu0 %v6343
        %7194 = vmatprep.subr.mxu0 %v6350
        %7195 = vmatpush1.msra.mxu0 %v6349
        %7196 = vmatprep.subr.mxu0 %v6356
        %7197 = vmatpush1.msra.mxu0 %v6355
        %7198 = vmatprep.subr.mxu0 %v6362
        %7199 = vmatpush1.msra.mxu0 %v6361
        %7200 = vmatprep.subr.mxu0 %v6368
        %7201 = vmatpush1.msra.mxu0 %v6367
        %7202 = vmatprep.subr.mxu0 %v6374
        %7203 = vmatpush1.msra.mxu0 %v6373
        %7204 = vmatprep.subr.mxu0 %v6380
        %7205 = vmatpush1.msra.mxu0 %v6379
        %7206 = vmatprep.subr.mxu0 %v6386
        %7207 = vmatpush1.msra.mxu0 %v6385
        %7208 = vmatprep.subr.mxu0 %v6392
        %7209 = vmatpush1.msra.mxu0 %v6391
        %7210 = vmatprep.subr.mxu0 %v6398
        %7211 = vmatpush1.msra.mxu0 %v6397
        %7212 = vmatprep.subr.mxu0 %v6404
        %7213 = vmatpush1.msra.mxu0 %v6403
        %7214 = vmatprep.subr.mxu0 %v6410
        %7215 = vmatpush1.msra.mxu0 %v6409
        %7216 = vmatprep.subr.mxu0 %v6416
        %7217 = vmatpush1.msra.mxu0 %v6415
        %7218 = vmatprep.subr.mxu0 %v6422
        %7219 = vmatpush1.msra.mxu0 %v6421
        %7220 = vmatprep.subr.mxu0 %v6428
        %7221 = vmatpush1.msra.mxu0 %v6427
        %7222 = vmatprep.subr.mxu0 %v6434
        %7223 = vmatpush1.msra.mxu0 %v6433
        %7224 = vmatprep.subr.mxu0 %v6440
        %7225 = vmatpush1.msra.mxu0 %v6439
        %7226 = vmatprep.mubr.f32.mxu0 %v6054
        %7227 = vmatmul.mubr.f32.gmra.mrb[0].mxu0 %v6053
        %v7228 = vpop.f32.mrb[0].mxu0
        %v7229 = vadd.f32 %v7158, %v7228
        %v7230 = vpop.f32.mrb[0].mxu0
        %v7231 = vadd.f32 %v7160, %v7230
        %7232 = vdwg.mxu0
        %7233 = vmatprep.subr.mxu0 %v6446
        %7234 = vmatpush1.msra.mxu0 %v6445
        %7235 = vmatprep.subr.mxu0 %v6452
        %7236 = vmatpush1.msra.mxu0 %v6451
        %7237 = vmatprep.subr.mxu0 %v6458
        %7238 = vmatpush1.msra.mxu0 %v6457
        %7239 = vmatprep.subr.mxu0 %v6464
        %7240 = vmatpush1.msra.mxu0 %v6463
        %7241 = vmatprep.subr.mxu0 %v6470
        %7242 = vmatpush1.msra.mxu0 %v6469
        %7243 = vmatprep.subr.mxu0 %v6476
        %7244 = vmatpush1.msra.mxu0 %v6475
        %7245 = vmatprep.subr.mxu0 %v6482
        %7246 = vmatpush1.msra.mxu0 %v6481
        %7247 = vmatprep.subr.mxu0 %v6488
        %7248 = vmatpush1.msra.mxu0 %v6487
        %7249 = vmatprep.subr.mxu0 %v6494
        %7250 = vmatpush1.msra.mxu0 %v6493
        %7251 = vmatprep.subr.mxu0 %v6500
        %7252 = vmatpush1.msra.mxu0 %v6499
        %7253 = vmatprep.subr.mxu0 %v6506
        %7254 = vmatpush1.msra.mxu0 %v6505
        %7255 = vmatprep.subr.mxu0 %v6512
        %7256 = vmatpush1.msra.mxu0 %v6511
        %7257 = vmatprep.subr.mxu0 %v6518
        %7258 = vmatpush1.msra.mxu0 %v6517
        %7259 = vmatprep.subr.mxu0 %v6524
        %7260 = vmatpush1.msra.mxu0 %v6523
        %7261 = vmatprep.subr.mxu0 %v6530
        %7262 = vmatpush1.msra.mxu0 %v6529
        %7263 = vmatprep.subr.mxu0 %v6536
        %7264 = vmatpush1.msra.mxu0 %v6535
        %7265 = vmatprep.subr.mxu0 %v6542
        %7266 = vmatpush1.msra.mxu0 %v6541
        %7267 = vmatprep.subr.mxu0 %v6548
        %7268 = vmatpush1.msra.mxu0 %v6547
        %7269 = vmatprep.subr.mxu0 %v6554
        %7270 = vmatpush1.msra.mxu0 %v6553
        %7271 = vmatprep.subr.mxu0 %v6560
        %7272 = vmatpush1.msra.mxu0 %v6559
        %7273 = vmatprep.subr.mxu0 %v6566
        %7274 = vmatpush1.msra.mxu0 %v6565
        %7275 = vmatprep.subr.mxu0 %v6572
        %7276 = vmatpush1.msra.mxu0 %v6571
        %7277 = vmatprep.subr.mxu0 %v6578
        %7278 = vmatpush1.msra.mxu0 %v6577
        %7279 = vmatprep.subr.mxu0 %v6584
        %7280 = vmatpush1.msra.mxu0 %v6583
        %7281 = vmatprep.subr.mxu0 %v6590
        %7282 = vmatpush1.msra.mxu0 %v6589
        %7283 = vmatprep.subr.mxu0 %v6596
        %7284 = vmatpush1.msra.mxu0 %v6595
        %7285 = vmatprep.subr.mxu0 %v6602
        %7286 = vmatpush1.msra.mxu0 %v6601
        %7287 = vmatprep.subr.mxu0 %v6608
        %7288 = vmatpush1.msra.mxu0 %v6607
        %7289 = vmatprep.subr.mxu0 %v6614
        %7290 = vmatpush1.msra.mxu0 %v6613
        %7291 = vmatprep.subr.mxu0 %v6620
        %7292 = vmatpush1.msra.mxu0 %v6619
        %7293 = vmatprep.subr.mxu0 %v6626
        %7294 = vmatpush1.msra.mxu0 %v6625
        %7295 = vmatprep.subr.mxu0 %v6632
        %7296 = vmatpush1.msra.mxu0 %v6631
        %7297 = vmatprep.mubr.f32.mxu0 %v6056
        %7298 = vmatmul.mubr.f32.gmra.mrb[0].mxu0 %v6055
        %v7299 = vpop.f32.mrb[0].mxu0
        %v7300 = vadd.f32 %v7229, %v7299
        %v7301 = vpop.f32.mrb[0].mxu0
        %v7302 = vadd.f32 %v7231, %v7301
        %7303 = vdwg.mxu0
        %v7304 = vadd.f32 %v714, %v6874
        %v7305 = vadd.f32 %v715, %v6876
        %v7306 = vadd.f32 %v716, %v7087
        %v7307 = vadd.f32 %v717, %v7089
        %v7308 = vadd.f32 %v718, %v7300
        %v7309 = vadd.f32 %v719, %v7302
        %v7310 = vrot.slane %v7304, 4
        %v7311 = vadd.f32 %v7304, %v7310
        %v7312 = vrot.slane %v7311, 2
        %v7313 = vadd.f32 %v7311, %v7312
        %v7314 = vrot.slane %v7313, 1
        %v7315 = vadd.f32 %v7313, %v7314
        %v7316 = vrot.slane %v7305, 4
        %v7317 = vadd.f32 %v7305, %v7316
        %v7318 = vrot.slane %v7317, 2
        %v7319 = vadd.f32 %v7317, %v7318
        %v7320 = vrot.slane %v7319, 1
        %v7321 = vadd.f32 %v7319, %v7320
        %v7322 = vrot.slane %v7306, 4
        %v7323 = vadd.f32 %v7306, %v7322
        %v7324 = vrot.slane %v7323, 2
        %v7325 = vadd.f32 %v7323, %v7324
        %v7326 = vrot.slane %v7325, 1
        %v7327 = vadd.f32 %v7325, %v7326
        %v7328 = vrot.slane %v7307, 4
        %v7329 = vadd.f32 %v7307, %v7328
        %v7330 = vrot.slane %v7329, 2
        %v7331 = vadd.f32 %v7329, %v7330
        %v7332 = vrot.slane %v7331, 1
        %v7333 = vadd.f32 %v7331, %v7332
        %v7334 = vrot.slane %v7308, 4
        %v7335 = vadd.f32 %v7308, %v7334
        %v7336 = vrot.slane %v7335, 2
        %v7337 = vadd.f32 %v7335, %v7336
        %v7338 = vrot.slane %v7337, 1
        %v7339 = vadd.f32 %v7337, %v7338
        %v7340 = vrot.slane %v7309, 4
        %v7341 = vadd.f32 %v7309, %v7340
        %v7342 = vrot.slane %v7341, 2
        %v7343 = vadd.f32 %v7341, %v7342
        %v7344 = vrot.slane %v7343, 1
        %v7345 = vadd.f32 %v7343, %v7344
        %v7346 = vrcp.pop 8.0
        %v7347 = vmul.f32 %v7315, %v7346
        %v7348 = vmul.f32 %v7321, %v7346
        %v7349 = vmul.f32 %v7327, %v7346
        %v7350 = vmul.f32 %v7333, %v7346
        %v7351 = vmul.f32 %v7339, %v7346
        %v7352 = vmul.f32 %v7345, %v7346
        %v7353 = vld [vmem:[%s8] sm:$0xff]
        %v7354 = vld [vmem:[%s8 + $0x8] sm:$0xff]
        %v7355 = vld [vmem:[%s8 + $0x10] sm:$0xff]
        %v7356 = vld [vmem:[%s8 + $0x18] sm:$0xff]
        %v7357 = vld [vmem:[%s8 + $0x20] sm:$0xff]
        %v7358 = vld [vmem:[%s8 + $0x28] sm:$0xff]
        %v7359 = vld [vmem:[%s8 + $0x30] sm:$0xff]
        %v7360 = vld [vmem:[%s8 + $0x38] sm:$0xff]
        %v7361 = vld [vmem:[%s8 + $0x40] sm:$0xff]
        %v7362 = vld [vmem:[%s8 + $0x48] sm:$0xff]
        %v7363 = vld [vmem:[%s8 + $0x50] sm:$0xff]
        %v7364 = vld [vmem:[%s8 + $0x58] sm:$0xff]
        %v7365 = vld [vmem:[%s8 + $0x60] sm:$0xff]
        %v7366 = vld [vmem:[%s8 + $0x68] sm:$0xff]
        %v7367 = vld [vmem:[%s8 + $0x70] sm:$0xff]
        %v7368 = vld [vmem:[%s8 + $0x78] sm:$0xff]
        %v7369 = vld [vmem:[%s8 + $0x80] sm:$0xff]
        %v7370 = vld [vmem:[%s8 + $0x88] sm:$0xff]
        %v7371 = vld [vmem:[%s8 + $0x90] sm:$0xff]
        %v7372 = vld [vmem:[%s8 + $0x98] sm:$0xff]
        %v7373 = vld [vmem:[%s8 + $0xa0] sm:$0xff]
        %v7374 = vld [vmem:[%s8 + $0xa8] sm:$0xff]
        %v7375 = vld [vmem:[%s8 + $0xb0] sm:$0xff]
        %v7376 = vld [vmem:[%s8 + $0xb8] sm:$0xff]
        %v7377 = vld [vmem:[%s8 + $0xc0] sm:$0xff]
        %v7378 = vld [vmem:[%s8 + $0xc8] sm:$0xff]
        %v7379 = vld [vmem:[%s8 + $0xd0] sm:$0xff]
        %v7380 = vld [vmem:[%s8 + $0xd8] sm:$0xff]
        %v7381 = vld [vmem:[%s8 + $0xe0] sm:$0xff]
        %v7382 = vld [vmem:[%s8 + $0xe8] sm:$0xff]
        %v7383 = vld [vmem:[%s8 + $0xf0] sm:$0xff]
        %v7384 = vld [vmem:[%s8 + $0xf8] sm:$0xff]
        %v7385 = vld [vmem:[%s8 + $0x100] sm:$0xff]
        %v7386 = vld [vmem:[%s8 + $0x108] sm:$0xff]
        %v7387 = vld [vmem:[%s8 + $0x110] sm:$0xff]
        %v7388 = vld [vmem:[%s8 + $0x118] sm:$0xff]
        %v7389 = vld [vmem:[%s8 + $0x120] sm:$0xff]
        %v7390 = vld [vmem:[%s8 + $0x128] sm:$0xff]
        %v7391 = vld [vmem:[%s8 + $0x130] sm:$0xff]
        %v7392 = vld [vmem:[%s8 + $0x138] sm:$0xff]
        %v7393 = vld [vmem:[%s8 + $0x140] sm:$0xff]
        %v7394 = vld [vmem:[%s8 + $0x148] sm:$0xff]
        %v7395 = vld [vmem:[%s8 + $0x150] sm:$0xff]
        %v7396 = vld [vmem:[%s8 + $0x158] sm:$0xff]
        %v7397 = vld [vmem:[%s8 + $0x160] sm:$0xff]
        %v7398 = vld [vmem:[%s8 + $0x168] sm:$0xff]
        %v7399 = vld [vmem:[%s8 + $0x170] sm:$0xff]
        %v7400 = vld [vmem:[%s8 + $0x178] sm:$0xff]
        %v7401 = vld [vmem:[%s8 + $0x180] sm:$0xff]
        %v7402 = vld [vmem:[%s8 + $0x188] sm:$0xff]
        %v7403 = vld [vmem:[%s8 + $0x190] sm:$0xff]
        %v7404 = vld [vmem:[%s8 + $0x198] sm:$0xff]
        %v7405 = vld [vmem:[%s8 + $0x1a0] sm:$0xff]
        %v7406 = vld [vmem:[%s8 + $0x1a8] sm:$0xff]
        %v7407 = vld [vmem:[%s8 + $0x1b0] sm:$0xff]
        %v7408 = vld [vmem:[%s8 + $0x1b8] sm:$0xff]
        %v7409 = vld [vmem:[%s8 + $0x1c0] sm:$0xff]
        %v7410 = vld [vmem:[%s8 + $0x1c8] sm:$0xff]
        %v7411 = vld [vmem:[%s8 + $0x1d0] sm:$0xff]
        %v7412 = vld [vmem:[%s8 + $0x1d8] sm:$0xff]
        %v7413 = vld [vmem:[%s8 + $0x1e0] sm:$0xff]
        %v7414 = vld [vmem:[%s8 + $0x1e8] sm:$0xff]
        %v7415 = vld [vmem:[%s8 + $0x1f0] sm:$0xff]
        %v7416 = vld [vmem:[%s8 + $0x1f8] sm:$0xff]
        %v7417 = vld [vmem:[%s8 + $0x200] sm:$0xff]
        %v7418 = vld [vmem:[%s8 + $0x208] sm:$0xff]
        %v7419 = vld [vmem:[%s8 + $0x210] sm:$0xff]
        %v7420 = vld [vmem:[%s8 + $0x218] sm:$0xff]
        %v7421 = vld [vmem:[%s8 + $0x220] sm:$0xff]
        %v7422 = vld [vmem:[%s8 + $0x228] sm:$0xff]
        %v7423 = vld [vmem:[%s8 + $0x230] sm:$0xff]
        %v7424 = vld [vmem:[%s8 + $0x238] sm:$0xff]
        %v7425 = vld [vmem:[%s8 + $0x240] sm:$0xff]
        %v7426 = vld [vmem:[%s8 + $0x248] sm:$0xff]
        %v7427 = vld [vmem:[%s8 + $0x250] sm:$0xff]
        %v7428 = vld [vmem:[%s8 + $0x258] sm:$0xff]
        %v7429 = vld [vmem:[%s8 + $0x260] sm:$0xff]
        %v7430 = vld [vmem:[%s8 + $0x268] sm:$0xff]
        %v7431 = vld [vmem:[%s8 + $0x270] sm:$0xff]
        %v7432 = vld [vmem:[%s8 + $0x278] sm:$0xff]
        %v7433 = vld [vmem:[%s8 + $0x280] sm:$0xff]
        %v7434 = vld [vmem:[%s8 + $0x288] sm:$0xff]
        %v7435 = vld [vmem:[%s8 + $0x290] sm:$0xff]
        %v7436 = vld [vmem:[%s8 + $0x298] sm:$0xff]
        %v7437 = vld [vmem:[%s8 + $0x2a0] sm:$0xff]
        %v7438 = vld [vmem:[%s8 + $0x2a8] sm:$0xff]
        %v7439 = vld [vmem:[%s8 + $0x2b0] sm:$0xff]
        %v7440 = vld [vmem:[%s8 + $0x2b8] sm:$0xff]
        %v7441 = vld [vmem:[%s8 + $0x2c0] sm:$0xff]
        %v7442 = vld [vmem:[%s8 + $0x2c8] sm:$0xff]
        %v7443 = vld [vmem:[%s8 + $0x2d0] sm:$0xff]
        %v7444 = vld [vmem:[%s8 + $0x2d8] sm:$0xff]
        %v7445 = vld [vmem:[%s8 + $0x2e0] sm:$0xff]
        %v7446 = vld [vmem:[%s8 + $0x2e8] sm:$0xff]
        %v7447 = vld [vmem:[%s8 + $0x2f0] sm:$0xff]
        %v7448 = vld [vmem:[%s8 + $0x2f8] sm:$0xff]
        %v7449 = vld [vmem:[%s8 + $0x300] sm:$0xff]
        %v7450 = vld [vmem:[%s8 + $0x308] sm:$0xff]
        %v7451 = vld [vmem:[%s8 + $0x310] sm:$0xff]
        %v7452 = vld [vmem:[%s8 + $0x318] sm:$0xff]
        %v7453 = vld [vmem:[%s8 + $0x320] sm:$0xff]
        %v7454 = vld [vmem:[%s8 + $0x328] sm:$0xff]
        %v7455 = vld [vmem:[%s8 + $0x330] sm:$0xff]
        %v7456 = vld [vmem:[%s8 + $0x338] sm:$0xff]
        %v7457 = vld [vmem:[%s8 + $0x340] sm:$0xff]
        %v7458 = vld [vmem:[%s8 + $0x348] sm:$0xff]
        %v7459 = vld [vmem:[%s8 + $0x350] sm:$0xff]
        %v7460 = vld [vmem:[%s8 + $0x358] sm:$0xff]
        %v7461 = vld [vmem:[%s8 + $0x360] sm:$0xff]
        %v7462 = vld [vmem:[%s8 + $0x368] sm:$0xff]
        %v7463 = vld [vmem:[%s8 + $0x370] sm:$0xff]
        %v7464 = vld [vmem:[%s8 + $0x378] sm:$0xff]
        %v7465 = vld [vmem:[%s8 + $0x380] sm:$0xff]
        %v7466 = vld [vmem:[%s8 + $0x388] sm:$0xff]
        %v7467 = vld [vmem:[%s8 + $0x390] sm:$0xff]
        %v7468 = vld [vmem:[%s8 + $0x398] sm:$0xff]
        %v7469 = vld [vmem:[%s8 + $0x3a0] sm:$0xff]
        %v7470 = vld [vmem:[%s8 + $0x3a8] sm:$0xff]
        %v7471 = vld [vmem:[%s8 + $0x3b0] sm:$0xff]
        %v7472 = vld [vmem:[%s8 + $0x3b8] sm:$0xff]
        %v7473 = vld [vmem:[%s8 + $0x3c0] sm:$0xff]
        %v7474 = vld [vmem:[%s8 + $0x3c8] sm:$0xff]
        %v7475 = vld [vmem:[%s8 + $0x3d0] sm:$0xff]
        %v7476 = vld [vmem:[%s8 + $0x3d8] sm:$0xff]
        %v7477 = vld [vmem:[%s8 + $0x3e0] sm:$0xff]
        %v7478 = vld [vmem:[%s8 + $0x3e8] sm:$0xff]
        %v7479 = vld [vmem:[%s8 + $0x3f0] sm:$0xff]
        %v7480 = vld [vmem:[%s8 + $0x3f8] sm:$0xff]
        %v7481 = vld [vmem:[%s8 + $0x400] sm:$0xff]
        %v7482 = vld [vmem:[%s8 + $0x408] sm:$0xff]
        %v7483 = vld [vmem:[%s8 + $0x410] sm:$0xff]
        %v7484 = vld [vmem:[%s8 + $0x418] sm:$0xff]
        %v7485 = vld [vmem:[%s8 + $0x420] sm:$0xff]
        %v7486 = vld [vmem:[%s8 + $0x428] sm:$0xff]
        %v7487 = vld [vmem:[%s8 + $0x430] sm:$0xff]
        %v7488 = vld [vmem:[%s8 + $0x438] sm:$0xff]
        %v7489 = vld [vmem:[%s8 + $0x440] sm:$0xff]
        %v7490 = vld [vmem:[%s8 + $0x448] sm:$0xff]
        %v7491 = vld [vmem:[%s8 + $0x450] sm:$0xff]
        %v7492 = vld [vmem:[%s8 + $0x458] sm:$0xff]
        %v7493 = vld [vmem:[%s8 + $0x460] sm:$0xff]
        %v7494 = vld [vmem:[%s8 + $0x468] sm:$0xff]
        %v7495 = vld [vmem:[%s8 + $0x470] sm:$0xff]
        %v7496 = vld [vmem:[%s8 + $0x478] sm:$0xff]
        %v7497 = vld [vmem:[%s8 + $0x480] sm:$0xff]
        %v7498 = vld [vmem:[%s8 + $0x488] sm:$0xff]
        %v7499 = vld [vmem:[%s8 + $0x490] sm:$0xff]
        %v7500 = vld [vmem:[%s8 + $0x498] sm:$0xff]
        %v7501 = vld [vmem:[%s8 + $0x4a0] sm:$0xff]
        %v7502 = vld [vmem:[%s8 + $0x4a8] sm:$0xff]
        %v7503 = vld [vmem:[%s8 + $0x4b0] sm:$0xff]
        %v7504 = vld [vmem:[%s8 + $0x4b8] sm:$0xff]
        %v7505 = vld [vmem:[%s8 + $0x4c0] sm:$0xff]
        %v7506 = vld [vmem:[%s8 + $0x4c8] sm:$0xff]
        %v7507 = vld [vmem:[%s8 + $0x4d0] sm:$0xff]
        %v7508 = vld [vmem:[%s8 + $0x4d8] sm:$0xff]
        %v7509 = vld [vmem:[%s8 + $0x4e0] sm:$0xff]
        %v7510 = vld [vmem:[%s8 + $0x4e8] sm:$0xff]
        %v7511 = vld [vmem:[%s8 + $0x4f0] sm:$0xff]
        %v7512 = vld [vmem:[%s8 + $0x4f8] sm:$0xff]
        %v7513 = vld [vmem:[%s8 + $0x500] sm:$0xff]
        %v7514 = vld [vmem:[%s8 + $0x508] sm:$0xff]
        %v7515 = vld [vmem:[%s8 + $0x510] sm:$0xff]
        %v7516 = vld [vmem:[%s8 + $0x518] sm:$0xff]
        %v7517 = vld [vmem:[%s8 + $0x520] sm:$0xff]
        %v7518 = vld [vmem:[%s8 + $0x528] sm:$0xff]
        %v7519 = vld [vmem:[%s8 + $0x530] sm:$0xff]
        %v7520 = vld [vmem:[%s8 + $0x538] sm:$0xff]
        %v7521 = vld [vmem:[%s8 + $0x540] sm:$0xff]
        %v7522 = vld [vmem:[%s8 + $0x548] sm:$0xff]
        %v7523 = vld [vmem:[%s8 + $0x550] sm:$0xff]
        %v7524 = vld [vmem:[%s8 + $0x558] sm:$0xff]
        %v7525 = vld [vmem:[%s8 + $0x560] sm:$0xff]
        %v7526 = vld [vmem:[%s8 + $0x568] sm:$0xff]
        %v7527 = vld [vmem:[%s8 + $0x570] sm:$0xff]
        %v7528 = vld [vmem:[%s8 + $0x578] sm:$0xff]
        %v7529 = vld [vmem:[%s8 + $0x580] sm:$0xff]
        %v7530 = vld [vmem:[%s8 + $0x588] sm:$0xff]
        %v7531 = vld [vmem:[%s8 + $0x590] sm:$0xff]
        %v7532 = vld [vmem:[%s8 + $0x598] sm:$0xff]
        %v7533 = vld [vmem:[%s8 + $0x5a0] sm:$0xff]
        %v7534 = vld [vmem:[%s8 + $0x5a8] sm:$0xff]
        %v7535 = vld [vmem:[%s8 + $0x5b0] sm:$0xff]
        %v7536 = vld [vmem:[%s8 + $0x5b8] sm:$0xff]
        %v7537 = vld [vmem:[%s8 + $0x5c0] sm:$0xff]
        %v7538 = vld [vmem:[%s8 + $0x5c8] sm:$0xff]
        %v7539 = vld [vmem:[%s8 + $0x5d0] sm:$0xff]
        %v7540 = vld [vmem:[%s8 + $0x5d8] sm:$0xff]
        %v7541 = vld [vmem:[%s8 + $0x5e0] sm:$0xff]
        %v7542 = vld [vmem:[%s8 + $0x5e8] sm:$0xff]
        %v7543 = vld [vmem:[%s8 + $0x5f0] sm:$0xff]
        %v7544 = vld [vmem:[%s8 + $0x5f8] sm:$0xff]
        %v7545 = vld [vmem:[#allocation13] sm:$0x3]
        %v7547 = vlaneseq
        %v7548 = vshrl.u32 %v7547, 7
        %v7549 = vsub.s32 0, %v7548
        %v7550 = vrot.slane %v7545, %v7549
        %v7551 = vlaneseq
        %v7552 = vshrl.u32 %v7551, 7
        %v7553 = vsub.s32 1, %v7552
        %v7554 = vrot.slane %v7545, %v7553
        %7557 = vmatprep.subr.mxu0 %v7354
        %7558 = vmatpush1.msra.mxu0 %v7353
        %7559 = vmatprep.subr.mxu0 %v7356
        %7560 = vmatpush1.msra.mxu0 %v7355
        %7561 = vmatprep.subr.mxu0 %v7358
        %7562 = vmatpush1.msra.mxu0 %v7357
        %7563 = vmatprep.subr.mxu0 %v7360
        %7564 = vmatpush1.msra.mxu0 %v7359
        %7565 = vmatprep.subr.mxu0 %v7362
        %7566 = vmatpush1.msra.mxu0 %v7361
        %7567 = vmatprep.subr.mxu0 %v7364
        %7568 = vmatpush1.msra.mxu0 %v7363
        %7569 = vmatprep.subr.mxu0 %v7366
        %7570 = vmatpush1.msra.mxu0 %v7365
        %7571 = vmatprep.subr.mxu0 %v7368
        %7572 = vmatpush1.msra.mxu0 %v7367
        %7573 = vmatprep.subr.mxu0 %v7370
        %7574 = vmatpush1.msra.mxu0 %v7369
        %7575 = vmatprep.subr.mxu0 %v7372
        %7576 = vmatpush1.msra.mxu0 %v7371
        %7577 = vmatprep.subr.mxu0 %v7374
        %7578 = vmatpush1.msra.mxu0 %v7373
        %7579 = vmatprep.subr.mxu0 %v7376
        %7580 = vmatpush1.msra.mxu0 %v7375
        %7581 = vmatprep.subr.mxu0 %v7378
        %7582 = vmatpush1.msra.mxu0 %v7377
        %7583 = vmatprep.subr.mxu0 %v7380
        %7584 = vmatpush1.msra.mxu0 %v7379
        %7585 = vmatprep.subr.mxu0 %v7382
        %7586 = vmatpush1.msra.mxu0 %v7381
        %7587 = vmatprep.subr.mxu0 %v7384
        %7588 = vmatpush1.msra.mxu0 %v7383
        %7589 = vmatprep.subr.mxu0 %v7386
        %7590 = vmatpush1.msra.mxu0 %v7385
        %7591 = vmatprep.subr.mxu0 %v7388
        %7592 = vmatpush1.msra.mxu0 %v7387
        %7593 = vmatprep.subr.mxu0 %v7390
        %7594 = vmatpush1.msra.mxu0 %v7389
        %7595 = vmatprep.subr.mxu0 %v7392
        %7596 = vmatpush1.msra.mxu0 %v7391
        %7597 = vmatprep.subr.mxu0 %v7394
        %7598 = vmatpush1.msra.mxu0 %v7393
        %7599 = vmatprep.subr.mxu0 %v7396
        %7600 = vmatpush1.msra.mxu0 %v7395
        %7601 = vmatprep.subr.mxu0 %v7398
        %7602 = vmatpush1.msra.mxu0 %v7397
        %7603 = vmatprep.subr.mxu0 %v7400
        %7604 = vmatpush1.msra.mxu0 %v7399
        %7605 = vmatprep.subr.mxu0 %v7402
        %7606 = vmatpush1.msra.mxu0 %v7401
        %7607 = vmatprep.subr.mxu0 %v7404
        %7608 = vmatpush1.msra.mxu0 %v7403
        %7609 = vmatprep.subr.mxu0 %v7406
        %7610 = vmatpush1.msra.mxu0 %v7405
        %7611 = vmatprep.subr.mxu0 %v7408
        %7612 = vmatpush1.msra.mxu0 %v7407
        %7613 = vmatprep.subr.mxu0 %v7410
        %7614 = vmatpush1.msra.mxu0 %v7409
        %7615 = vmatprep.subr.mxu0 %v7412
        %7616 = vmatpush1.msra.mxu0 %v7411
        %7617 = vmatprep.subr.mxu0 %v7414
        %7618 = vmatpush1.msra.mxu0 %v7413
        %7619 = vmatprep.subr.mxu0 %v7416
        %7620 = vmatpush1.msra.mxu0 %v7415
        %7621 = vmatprep.mubr.f32.mxu0 %v7348
        %7622 = vmatmul.mubr.f32.gmra.mrb[0].mxu0 %v7347
        %v7623 = vpop.f32.mrb[0].mxu0
        %v7624 = vadd.f32 %v7550, %v7623
        %v7625 = vpop.f32.mrb[0].mxu0
        %v7626 = vadd.f32 %v7554, %v7625
        %7627 = vdwg.mxu0
        %7628 = vmatprep.subr.mxu0 %v7418
        %7629 = vmatpush1.msra.mxu0 %v7417
        %7630 = vmatprep.subr.mxu0 %v7420
        %7631 = vmatpush1.msra.mxu0 %v7419
        %7632 = vmatprep.subr.mxu0 %v7422
        %7633 = vmatpush1.msra.mxu0 %v7421
        %7634 = vmatprep.subr.mxu0 %v7424
        %7635 = vmatpush1.msra.mxu0 %v7423
        %7636 = vmatprep.subr.mxu0 %v7426
        %7637 = vmatpush1.msra.mxu0 %v7425
        %7638 = vmatprep.subr.mxu0 %v7428
        %7639 = vmatpush1.msra.mxu0 %v7427
        %7640 = vmatprep.subr.mxu0 %v7430
        %7641 = vmatpush1.msra.mxu0 %v7429
        %7642 = vmatprep.subr.mxu0 %v7432
        %7643 = vmatpush1.msra.mxu0 %v7431
        %7644 = vmatprep.subr.mxu0 %v7434
        %7645 = vmatpush1.msra.mxu0 %v7433
        %7646 = vmatprep.subr.mxu0 %v7436
        %7647 = vmatpush1.msra.mxu0 %v7435
        %7648 = vmatprep.subr.mxu0 %v7438
        %7649 = vmatpush1.msra.mxu0 %v7437
        %7650 = vmatprep.subr.mxu0 %v7440
        %7651 = vmatpush1.msra.mxu0 %v7439
        %7652 = vmatprep.subr.mxu0 %v7442
        %7653 = vmatpush1.msra.mxu0 %v7441
        %7654 = vmatprep.subr.mxu0 %v7444
        %7655 = vmatpush1.msra.mxu0 %v7443
        %7656 = vmatprep.subr.mxu0 %v7446
        %7657 = vmatpush1.msra.mxu0 %v7445
        %7658 = vmatprep.subr.mxu0 %v7448
        %7659 = vmatpush1.msra.mxu0 %v7447
        %7660 = vmatprep.subr.mxu0 %v7450
        %7661 = vmatpush1.msra.mxu0 %v7449
        %7662 = vmatprep.subr.mxu0 %v7452
        %7663 = vmatpush1.msra.mxu0 %v7451
        %7664 = vmatprep.subr.mxu0 %v7454
        %7665 = vmatpush1.msra.mxu0 %v7453
        %7666 = vmatprep.subr.mxu0 %v7456
        %7667 = vmatpush1.msra.mxu0 %v7455
        %7668 = vmatprep.subr.mxu0 %v7458
        %7669 = vmatpush1.msra.mxu0 %v7457
        %7670 = vmatprep.subr.mxu0 %v7460
        %7671 = vmatpush1.msra.mxu0 %v7459
        %7672 = vmatprep.subr.mxu0 %v7462
        %7673 = vmatpush1.msra.mxu0 %v7461
        %7674 = vmatprep.subr.mxu0 %v7464
        %7675 = vmatpush1.msra.mxu0 %v7463
        %7676 = vmatprep.subr.mxu0 %v7466
        %7677 = vmatpush1.msra.mxu0 %v7465
        %7678 = vmatprep.subr.mxu0 %v7468
        %7679 = vmatpush1.msra.mxu0 %v7467
        %7680 = vmatprep.subr.mxu0 %v7470
        %7681 = vmatpush1.msra.mxu0 %v7469
        %7682 = vmatprep.subr.mxu0 %v7472
        %7683 = vmatpush1.msra.mxu0 %v7471
        %7684 = vmatprep.subr.mxu0 %v7474
        %7685 = vmatpush1.msra.mxu0 %v7473
        %7686 = vmatprep.subr.mxu0 %v7476
        %7687 = vmatpush1.msra.mxu0 %v7475
        %7688 = vmatprep.subr.mxu0 %v7478
        %7689 = vmatpush1.msra.mxu0 %v7477
        %7690 = vmatprep.subr.mxu0 %v7480
        %7691 = vmatpush1.msra.mxu0 %v7479
        %7692 = vmatprep.mubr.f32.mxu0 %v7350
        %7693 = vmatmul.mubr.f32.gmra.mrb[0].mxu0 %v7349
        %v7694 = vpop.f32.mrb[0].mxu0
        %v7695 = vadd.f32 %v7624, %v7694
        %v7696 = vpop.f32.mrb[0].mxu0
        %v7697 = vadd.f32 %v7626, %v7696
        %7698 = vdwg.mxu0
        %7699 = vmatprep.subr.mxu0 %v7482
        %7700 = vmatpush1.msra.mxu0 %v7481
        %7701 = vmatprep.subr.mxu0 %v7484
        %7702 = vmatpush1.msra.mxu0 %v7483
        %7703 = vmatprep.subr.mxu0 %v7486
        %7704 = vmatpush1.msra.mxu0 %v7485
        %7705 = vmatprep.subr.mxu0 %v7488
        %7706 = vmatpush1.msra.mxu0 %v7487
        %7707 = vmatprep.subr.mxu0 %v7490
        %7708 = vmatpush1.msra.mxu0 %v7489
        %7709 = vmatprep.subr.mxu0 %v7492
        %7710 = vmatpush1.msra.mxu0 %v7491
        %7711 = vmatprep.subr.mxu0 %v7494
        %7712 = vmatpush1.msra.mxu0 %v7493
        %7713 = vmatprep.subr.mxu0 %v7496
        %7714 = vmatpush1.msra.mxu0 %v7495
        %7715 = vmatprep.subr.mxu0 %v7498
        %7716 = vmatpush1.msra.mxu0 %v7497
        %7717 = vmatprep.subr.mxu0 %v7500
        %7718 = vmatpush1.msra.mxu0 %v7499
        %7719 = vmatprep.subr.mxu0 %v7502
        %7720 = vmatpush1.msra.mxu0 %v7501
        %7721 = vmatprep.subr.mxu0 %v7504
        %7722 = vmatpush1.msra.mxu0 %v7503
        %7723 = vmatprep.subr.mxu0 %v7506
        %7724 = vmatpush1.msra.mxu0 %v7505
        %7725 = vmatprep.subr.mxu0 %v7508
        %7726 = vmatpush1.msra.mxu0 %v7507
        %7727 = vmatprep.subr.mxu0 %v7510
        %7728 = vmatpush1.msra.mxu0 %v7509
        %7729 = vmatprep.subr.mxu0 %v7512
        %7730 = vmatpush1.msra.mxu0 %v7511
        %7731 = vmatprep.subr.mxu0 %v7514
        %7732 = vmatpush1.msra.mxu0 %v7513
        %7733 = vmatprep.subr.mxu0 %v7516
        %7734 = vmatpush1.msra.mxu0 %v7515
        %7735 = vmatprep.subr.mxu0 %v7518
        %7736 = vmatpush1.msra.mxu0 %v7517
        %7737 = vmatprep.subr.mxu0 %v7520
        %7738 = vmatpush1.msra.mxu0 %v7519
        %7739 = vmatprep.subr.mxu0 %v7522
        %7740 = vmatpush1.msra.mxu0 %v7521
        %7741 = vmatprep.subr.mxu0 %v7524
        %7742 = vmatpush1.msra.mxu0 %v7523
        %7743 = vmatprep.subr.mxu0 %v7526
        %7744 = vmatpush1.msra.mxu0 %v7525
        %7745 = vmatprep.subr.mxu0 %v7528
        %7746 = vmatpush1.msra.mxu0 %v7527
        %7747 = vmatprep.subr.mxu0 %v7530
        %7748 = vmatpush1.msra.mxu0 %v7529
        %7749 = vmatprep.subr.mxu0 %v7532
        %7750 = vmatpush1.msra.mxu0 %v7531
        %7751 = vmatprep.subr.mxu0 %v7534
        %7752 = vmatpush1.msra.mxu0 %v7533
        %7753 = vmatprep.subr.mxu0 %v7536
        %7754 = vmatpush1.msra.mxu0 %v7535
        %7755 = vmatprep.subr.mxu0 %v7538
        %7756 = vmatpush1.msra.mxu0 %v7537
        %7757 = vmatprep.subr.mxu0 %v7540
        %7758 = vmatpush1.msra.mxu0 %v7539
        %7759 = vmatprep.subr.mxu0 %v7542
        %7760 = vmatpush1.msra.mxu0 %v7541
        %7761 = vmatprep.subr.mxu0 %v7544
        %7762 = vmatpush1.msra.mxu0 %v7543
        %7763 = vmatprep.mubr.f32.mxu0 %v7352
        %7764 = vmatmul.mubr.f32.gmra.mrb[0].mxu0 %v7351
        %v7765 = vpop.f32.mrb[0].mxu0
        %v7766 = vadd.f32 %v7695, %v7765
        %v7767 = vpop.f32.mrb[0].mxu0
        %v7768 = vadd.f32 %v7697, %v7767
        %7769 = vdwg.mxu0
        %v7770 = vmax.f32 %v7766, 0.0
        %v7771 = vmax.f32 %v7768, 0.0
        %v7772 = vld [vmem:[#allocation14] sm:$0xff]
        %v7773 = vld [vmem:[#allocation14 + $0x8] sm:$0xff]
        %v7774 = vld [vmem:[#allocation14 + $0x10] sm:$0xff]
        %v7775 = vld [vmem:[#allocation14 + $0x18] sm:$0xff]
        %v7776 = vld [vmem:[#allocation14 + $0x20] sm:$0xff]
        %v7777 = vld [vmem:[#allocation14 + $0x28] sm:$0xff]
        %v7778 = vld [vmem:[#allocation14 + $0x30] sm:$0xff]
        %v7779 = vld [vmem:[#allocation14 + $0x38] sm:$0xff]
        %v7780 = vld [vmem:[#allocation14 + $0x40] sm:$0xff]
        %v7781 = vld [vmem:[#allocation14 + $0x48] sm:$0xff]
        %v7782 = vld [vmem:[#allocation14 + $0x50] sm:$0xff]
        %v7783 = vld [vmem:[#allocation14 + $0x58] sm:$0xff]
        %v7784 = vld [vmem:[#allocation14 + $0x60] sm:$0xff]
        %v7785 = vld [vmem:[#allocation14 + $0x68] sm:$0xff]
        %v7786 = vld [vmem:[#allocation14 + $0x70] sm:$0xff]
        %v7787 = vld [vmem:[#allocation14 + $0x78] sm:$0xff]
        %v7788 = vld [vmem:[#allocation14 + $0x80] sm:$0xff]
        %v7789 = vld [vmem:[#allocation14 + $0x88] sm:$0xff]
        %v7790 = vld [vmem:[#allocation14 + $0x90] sm:$0xff]
        %v7791 = vld [vmem:[#allocation14 + $0x98] sm:$0xff]
        %v7792 = vld [vmem:[#allocation14 + $0xa0] sm:$0xff]
        %v7793 = vld [vmem:[#allocation14 + $0xa8] sm:$0xff]
        %v7794 = vld [vmem:[#allocation14 + $0xb0] sm:$0xff]
        %v7795 = vld [vmem:[#allocation14 + $0xb8] sm:$0xff]
        %v7796 = vld [vmem:[#allocation14 + $0xc0] sm:$0xff]
        %v7797 = vld [vmem:[#allocation14 + $0xc8] sm:$0xff]
        %v7798 = vld [vmem:[#allocation14 + $0xd0] sm:$0xff]
        %v7799 = vld [vmem:[#allocation14 + $0xd8] sm:$0xff]
        %v7800 = vld [vmem:[#allocation14 + $0xe0] sm:$0xff]
        %v7801 = vld [vmem:[#allocation14 + $0xe8] sm:$0xff]
        %v7802 = vld [vmem:[#allocation14 + $0xf0] sm:$0xff]
        %v7803 = vld [vmem:[#allocation14 + $0xf8] sm:$0xff]
        %v7804 = vld [vmem:[#allocation16] sm:$0x1]
        %7805 = vmatprep.subr.mxu0 0.0
        %7806 = vmatpush1.msra.mxu0 %v7772
        %7807 = vmatprep.subr.mxu0 0.0
        %7808 = vmatpush1.msra.mxu0 %v7773
        %7809 = vmatprep.subr.mxu0 0.0
        %7810 = vmatpush1.msra.mxu0 %v7774
        %7811 = vmatprep.subr.mxu0 0.0
        %7812 = vmatpush1.msra.mxu0 %v7775
        %7813 = vmatprep.subr.mxu0 0.0
        %7814 = vmatpush1.msra.mxu0 %v7776
        %7815 = vmatprep.subr.mxu0 0.0
        %7816 = vmatpush1.msra.mxu0 %v7777
        %7817 = vmatprep.subr.mxu0 0.0
        %7818 = vmatpush1.msra.mxu0 %v7778
        %7819 = vmatprep.subr.mxu0 0.0
        %7820 = vmatpush1.msra.mxu0 %v7779
        %7821 = vmatprep.subr.mxu0 0.0
        %7822 = vmatpush1.msra.mxu0 %v7780
        %7823 = vmatprep.subr.mxu0 0.0
        %7824 = vmatpush1.msra.mxu0 %v7781
        %7825 = vmatprep.subr.mxu0 0.0
        %7826 = vmatpush1.msra.mxu0 %v7782
        %7827 = vmatprep.subr.mxu0 0.0
        %7828 = vmatpush1.msra.mxu0 %v7783
        %7829 = vmatprep.subr.mxu0 0.0
        %7830 = vmatpush1.msra.mxu0 %v7784
        %7831 = vmatprep.subr.mxu0 0.0
        %7832 = vmatpush1.msra.mxu0 %v7785
        %7833 = vmatprep.subr.mxu0 0.0
        %7834 = vmatpush1.msra.mxu0 %v7786
        %7835 = vmatprep.subr.mxu0 0.0
        %7836 = vmatpush1.msra.mxu0 %v7787
        %7837 = vmatprep.subr.mxu0 0.0
        %7838 = vmatpush1.msra.mxu0 %v7788
        %7839 = vmatprep.subr.mxu0 0.0
        %7840 = vmatpush1.msra.mxu0 %v7789
        %7841 = vmatprep.subr.mxu0 0.0
        %7842 = vmatpush1.msra.mxu0 %v7790
        %7843 = vmatprep.subr.mxu0 0.0
        %7844 = vmatpush1.msra.mxu0 %v7791
        %7845 = vmatprep.subr.mxu0 0.0
        %7846 = vmatpush1.msra.mxu0 %v7792
        %7847 = vmatprep.subr.mxu0 0.0
        %7848 = vmatpush1.msra.mxu0 %v7793
        %7849 = vmatprep.subr.mxu0 0.0
        %7850 = vmatpush1.msra.mxu0 %v7794
        %7851 = vmatprep.subr.mxu0 0.0
        %7852 = vmatpush1.msra.mxu0 %v7795
        %7853 = vmatprep.subr.mxu0 0.0
        %7854 = vmatpush1.msra.mxu0 %v7796
        %7855 = vmatprep.subr.mxu0 0.0
        %7856 = vmatpush1.msra.mxu0 %v7797
        %7857 = vmatprep.subr.mxu0 0.0
        %7858 = vmatpush1.msra.mxu0 %v7798
        %7859 = vmatprep.subr.mxu0 0.0
        %7860 = vmatpush1.msra.mxu0 %v7799
        %7861 = vmatprep.subr.mxu0 0.0
        %7862 = vmatpush1.msra.mxu0 %v7800
        %7863 = vmatprep.subr.mxu0 0.0
        %7864 = vmatpush1.msra.mxu0 %v7801
        %7865 = vmatprep.subr.mxu0 0.0
        %7866 = vmatpush1.msra.mxu0 %v7802
        %7867 = vmatprep.subr.mxu0 0.0
        %7868 = vmatpush1.msra.mxu0 %v7803
        %7869 = vmatprep.mubr.f32.mxu0 %v7771
        %7870 = vmatmul.mubr.f32.gmra.mrb[0].mxu0 %v7770
        %v7871 = vpop.f32.mrb[0].mxu0
        %v7872 = vadd.f32 %v7804, %v7871
        %v7873 = vpop.f32.mrb[0].mxu0
        %7874 = vdwg.mxu0
        %v7875 = vmax.f32 %v7872, 0.0
        %v7876 = vld [vmem:[#allocation17] sm:$0xff]
        %v7877 = vld [vmem:[#allocation17 + $0x8] sm:$0xff]
        %v7878 = vld [vmem:[#allocation17 + $0x10] sm:$0xff]
        %v7879 = vld [vmem:[#allocation17 + $0x18] sm:$0xff]
        %v7880 = vld [vmem:[#allocation17 + $0x20] sm:$0xff]
        %v7881 = vld [vmem:[#allocation17 + $0x28] sm:$0xff]
        %v7882 = vld [vmem:[#allocation17 + $0x30] sm:$0xff]
        %v7883 = vld [vmem:[#allocation17 + $0x38] sm:$0xff]
        %v7884 = vld [vmem:[#allocation19] sm:$0x1]
        %v7886 = vsel %vm4946, %v7875, 0
        %7888 = vmatprep.subr.mxu0 0.0
        %7889 = vmatpush1.msra.mxu0 %v7876
        %7890 = vmatprep.subr.mxu0 0.0
        %7891 = vmatpush1.msra.mxu0 %v7877
        %7892 = vmatprep.subr.mxu0 0.0
        %7893 = vmatpush1.msra.mxu0 %v7878
        %7894 = vmatprep.subr.mxu0 0.0
        %7895 = vmatpush1.msra.mxu0 %v7879
        %7896 = vmatprep.subr.mxu0 0.0
        %7897 = vmatpush1.msra.mxu0 %v7880
        %7898 = vmatprep.subr.mxu0 0.0
        %7899 = vmatpush1.msra.mxu0 %v7881
        %7900 = vmatprep.subr.mxu0 0.0
        %7901 = vmatpush1.msra.mxu0 %v7882
        %7902 = vmatprep.subr.mxu0 0.0
        %7903 = vmatpush1.msra.mxu0 %v7883
        %7904 = vmatprep.subr.mxu0 0.0
        %7905 = vmatpush1.msra.mxu0 0.0
        %7906 = vmatprep.subr.mxu0 0.0
        %7907 = vmatpush1.msra.mxu0 0.0
        %7908 = vmatprep.subr.mxu0 0.0
        %7909 = vmatpush1.msra.mxu0 0.0
        %7910 = vmatprep.subr.mxu0 0.0
        %7911 = vmatpush1.msra.mxu0 0.0
        %7912 = vmatprep.subr.mxu0 0.0
        %7913 = vmatpush1.msra.mxu0 0.0
        %7914 = vmatprep.subr.mxu0 0.0
        %7915 = vmatpush1.msra.mxu0 0.0
        %7916 = vmatprep.subr.mxu0 0.0
        %7917 = vmatpush1.msra.mxu0 0.0
        %7918 = vmatprep.subr.mxu0 0.0
        %7919 = vmatpush1.msra.mxu0 0.0
        %7920 = vmatprep.subr.mxu0 0.0
        %7921 = vmatpush1.msra.mxu0 0.0
        %7922 = vmatprep.subr.mxu0 0.0
        %7923 = vmatpush1.msra.mxu0 0.0
        %7924 = vmatprep.subr.mxu0 0.0
        %7925 = vmatpush1.msra.mxu0 0.0
        %7926 = vmatprep.subr.mxu0 0.0
        %7927 = vmatpush1.msra.mxu0 0.0
        %7928 = vmatprep.subr.mxu0 0.0
        %7929 = vmatpush1.msra.mxu0 0.0
        %7930 = vmatprep.subr.mxu0 0.0
        %7931 = vmatpush1.msra.mxu0 0.0
        %7932 = vmatprep.subr.mxu0 0.0
        %7933 = vmatpush1.msra.mxu0 0.0
        %7934 = vmatprep.subr.mxu0 0.0
        %7935 = vmatpush1.msra.mxu0 0.0
        %7936 = vmatprep.subr.mxu0 0.0
        %7937 = vmatpush1.msra.mxu0 0.0
        %7938 = vmatprep.subr.mxu0 0.0
        %7939 = vmatpush1.msra.mxu0 0.0
        %7940 = vmatprep.subr.mxu0 0.0
        %7941 = vmatpush1.msra.mxu0 0.0
        %7942 = vmatprep.subr.mxu0 0.0
        %7943 = vmatpush1.msra.mxu0 0.0
        %7944 = vmatprep.subr.mxu0 0.0
        %7945 = vmatpush1.msra.mxu0 0.0
        %7946 = vmatprep.subr.mxu0 0.0
        %7947 = vmatpush1.msra.mxu0 0.0
        %7948 = vmatprep.subr.mxu0 0.0
        %7949 = vmatpush1.msra.mxu0 0.0
        %7950 = vmatprep.subr.mxu0 0.0
        %7951 = vmatpush1.msra.mxu0 0.0
        %7952 = vmatprep.mubr.f32.mxu0 0.0
        %7953 = vmatmul.mubr.f32.gmra.mrb[0].mxu0 %v7886
        %v7954 = vpop.f32.mrb[0].mxu0
        %v7955 = vadd.f32 %v7884, %v7954
        %v7956 = vpop.f32.mrb[0].mxu0
        %7957 = vdwg.mxu0
        %v7958 = vmax.f32 %v7955, 0.0
        %v7959 = vld [vmem:[#allocation20] sm:$0xff]
        %v7960 = vld [vmem:[#allocation20 + $0x8] sm:$0xff]
        %v7961 = vld [vmem:[#allocation22] sm:$0x1]
        %v7963 = vsel %vm4661, %v7958, 0
        %7965 = vmatprep.subr.mxu0 0.0
        %7966 = vmatpush1.msra.mxu0 %v7959
        %7967 = vmatprep.subr.mxu0 0.0
        %7968 = vmatpush1.msra.mxu0 %v7960
        %7969 = vmatprep.subr.mxu0 0.0
        %7970 = vmatpush1.msra.mxu0 0.0
        %7971 = vmatprep.subr.mxu0 0.0
        %7972 = vmatpush1.msra.mxu0 0.0
        %7973 = vmatprep.subr.mxu0 0.0
        %7974 = vmatpush1.msra.mxu0 0.0
        %7975 = vmatprep.subr.mxu0 0.0
        %7976 = vmatpush1.msra.mxu0 0.0
        %7977 = vmatprep.subr.mxu0 0.0
        %7978 = vmatpush1.msra.mxu0 0.0
        %7979 = vmatprep.subr.mxu0 0.0
        %7980 = vmatpush1.msra.mxu0 0.0
        %7981 = vmatprep.subr.mxu0 0.0
        %7982 = vmatpush1.msra.mxu0 0.0
        %7983 = vmatprep.subr.mxu0 0.0
        %7984 = vmatpush1.msra.mxu0 0.0
        %7985 = vmatprep.subr.mxu0 0.0
        %7986 = vmatpush1.msra.mxu0 0.0
        %7987 = vmatprep.subr.mxu0 0.0
        %7988 = vmatpush1.msra.mxu0 0.0
        %7989 = vmatprep.subr.mxu0 0.0
        %7990 = vmatpush1.msra.mxu0 0.0
        %7991 = vmatprep.subr.mxu0 0.0
        %7992 = vmatpush1.msra.mxu0 0.0
        %7993 = vmatprep.subr.mxu0 0.0
        %7994 = vmatpush1.msra.mxu0 0.0
        %7995 = vmatprep.subr.mxu0 0.0
        %7996 = vmatpush1.msra.mxu0 0.0
        %7997 = vmatprep.subr.mxu0 0.0
        %7998 = vmatpush1.msra.mxu0 0.0
        %7999 = vmatprep.subr.mxu0 0.0
        %8000 = vmatpush1.msra.mxu0 0.0
        %8001 = vmatprep.subr.mxu0 0.0
        %8002 = vmatpush1.msra.mxu0 0.0
        %8003 = vmatprep.subr.mxu0 0.0
        %8004 = vmatpush1.msra.mxu0 0.0
        %8005 = vmatprep.subr.mxu0 0.0
        %8006 = vmatpush1.msra.mxu0 0.0
        %8007 = vmatprep.subr.mxu0 0.0
        %8008 = vmatpush1.msra.mxu0 0.0
        %8009 = vmatprep.subr.mxu0 0.0
        %8010 = vmatpush1.msra.mxu0 0.0
        %8011 = vmatprep.subr.mxu0 0.0
        %8012 = vmatpush1.msra.mxu0 0.0
        %8013 = vmatprep.subr.mxu0 0.0
        %8014 = vmatpush1.msra.mxu0 0.0
        %8015 = vmatprep.subr.mxu0 0.0
        %8016 = vmatpush1.msra.mxu0 0.0
        %8017 = vmatprep.subr.mxu0 0.0
        %8018 = vmatpush1.msra.mxu0 0.0
        %8019 = vmatprep.subr.mxu0 0.0
        %8020 = vmatpush1.msra.mxu0 0.0
        %8021 = vmatprep.subr.mxu0 0.0
        %8022 = vmatpush1.msra.mxu0 0.0
        %8023 = vmatprep.subr.mxu0 0.0
        %8024 = vmatpush1.msra.mxu0 0.0
        %8025 = vmatprep.subr.mxu0 0.0
        %8026 = vmatpush1.msra.mxu0 0.0
        %8027 = vmatprep.subr.mxu0 0.0
        %8028 = vmatpush1.msra.mxu0 0.0
        %8029 = vmatprep.mubr.f32.mxu0 0.0
        %8030 = vmatmul.mubr.f32.gmra.mrb[0].mxu0 %v7963
        %v8031 = vpop.f32.mrb[0].mxu0
        %v8032 = vadd.f32 %v7961, %v8031
        %v8033 = vpop.f32.mrb[0].mxu0
        %8034 = vdwg.mxu0
        %v8035 = vmax.f32 %v8032, 0.0
        %vm8036 = vcmask 90112
        %8037 = vst.msk [vmem:[%s703] sm:$0x1] %vm8036, %v8035
        %s8038 = sand.u32 %s391, 1
        %s8039 = scalar_lea.sflag [#allocation4], %s8038
        %s8040 = sand.u32 %s391, 1
        %s8041 = scalar_lea.vmem [#allocation23], %s8040
        // Predicated region
        $region137: #{multi_classifier_forward.1} parent=83 // pred_check
          %p8042 = pneg %p401
        $region138: #{multi_classifier_forward.1} parent=83 // pred_check_branch
          %8044 = sbr.rel (%p8042) target = $region140
        $region139: #{multi_classifier_forward.1} parent=83 // pred_region
          %s8046 = ssub.s32 16, 16
          %8047 = vsyncadd %s8039, %s8046
          %s8048 = smul.addr %s37, 16
          %s8049 = scalar_lea.hbm %s16, %s8048
          %s8051 = sshll.u32 %s8041, 4
          %s8052 = int_to_ptr.vmem [resolvable:$true] %s8051
          %8054 = dma.vmem_to_hbm [thread:$0]  %s8052, 16, %s8049, %s8039
        $region140: #{multi_classifier_forward.1} parent=83 // pred_fallthru
          _
      $region84: #{multi_classifier_forward.1} parent=5 // pred_fallthru
        _
      %p8055 = scmp.le.s32.totalorder 2, %s32
      // Predicated region
      $region141: #{multi_classifier_forward.1} parent=5 // pred_check
        %p8056 = pneg %p8055
      $region142: #{multi_classifier_forward.1} parent=5 // pred_check_branch
        %8058 = sbr.rel (%p8056) target = $region144
      $region143: #{multi_classifier_forward.1} parent=5 // pred_region
        %s8059 = ssub.s32 %s32, 2
        // Predicated region
        $region145: #{multi_classifier_forward.1} parent=143 // pred_check
          %p8060 = pneg %p407
        $region146: #{multi_classifier_forward.1} parent=143 // pred_check_branch
          %8062 = sbr.rel (%p8060) target = $region148
        $region147: #{multi_classifier_forward.1} parent=143 // pred_region
          %s8063 = sand.u32 %s392, 1
          %s8064 = scalar_lea.sflag [#allocation4], %s8063
          %s8065 = sand.u32 %s392, 1
          %s8066 = scalar_lea.vmem [#allocation23], %s8065
          %8067 = dma.done %s8064, 16
        $region148: #{multi_classifier_forward.1} parent=143 // pred_fallthru
          _
      $region144: #{multi_classifier_forward.1} parent=5 // pred_fallthru
        _
    $region6: #{multi_classifier_forward.1} parent=1 // loop_footer
      %s36 = sadd.s32 1, %s32
    $region7: #{multi_classifier_forward.1} parent=1 // loop_footer_branch
      %31 = sbr.rel target = $region3
    $region8: #{multi_classifier_forward.1} parent=1 // loop_exit
      _
    %8068 = vsyncpa [#allocation3], 1
    %s8069 = scalar_lea.sflag [#allocation3], 1
    %8070 = vsyncpa %s8069, 1
    %8071 = vsyncpa [#allocation6], 1
    %8072 = vsyncpa [#allocation9], 1
    %8073 = vsyncpa [#allocation12], 1
    %8074 = vsyncpa [#allocation15], 1
    %8075 = vsyncpa [#allocation18], 1
    %8076 = vsyncpa [#allocation21], 1
    %8077 = vsyncpa [#allocation4], 1
    %s8078 = scalar_lea.sflag [#allocation4], 1
    %8079 = vsyncpa %s8078, 1

</llo_original>
